<compile_context>
chip_gen: v5e
topology: v5e:2x2
jax: 0.10.0
libtpu: 0.0.40
codegen_flags: <defaults>
</compile_context>

<pallas_src>
import functools

import jax
import jax.numpy as jnp
from jax.experimental import pallas as pl
from jax.experimental.pallas import tpu as pltpu


# ----------------------------------------------------------------------------
# Pallas kernels
# ----------------------------------------------------------------------------
def _backbone_kernel(p_ref, wc_ref, bc_ref, wh_ref, bh_ref, out_ref):
    # p_ref: (TB, HW, C9) bf16   out_ref: (TB, D) f32
    tb, hw, c9 = p_ref.shape
    p = p_ref[...].reshape(tb * hw, c9)                              # (TB*HW, C9)
    fm = jnp.dot(p, wc_ref[...], preferred_element_type=jnp.float32) + bc_ref[...]
    fm = jnp.maximum(fm, 0.0)                                        # ReLU
    gap = jnp.mean(fm.reshape(tb, hw, -1), axis=1)                   # GAP -> (TB, F)
    out_ref[...] = (jnp.dot(gap.astype(jnp.bfloat16), wh_ref[...],
                            preferred_element_type=jnp.float32) + bh_ref[...])


def _sag_head_kernel(feat_ref, ce_ref,
                     cfw1_ref, cfb1_ref, cfw2_ref, cfb2_ref, cfw3_ref, cfb3_ref,
                     ofw1_ref, ofb1_ref, ofw2_ref, ofb2_ref,
                     olw1_ref, olb1_ref, olw2_ref, olb2_ref,
                     emb_ref, pred_ref):
    # Fused per-row head: cond MLP -> sigmoid gate -> x*cond -> emb MLP, pred MLP.
    def dense(x, w_ref, b_ref):
        return (jnp.dot(x.astype(jnp.bfloat16), w_ref[...],
                        preferred_element_type=jnp.float32) + b_ref[...])

    def leaky(x):                                   # PyTorch default slope 0.01
        return jnp.where(x > 0, x, 0.01 * x)

    # cond_fea_extractor: 64 -> 128 -> 256 -> 512 (sigmoid gate)
    h = leaky(dense(ce_ref[...], cfw1_ref, cfb1_ref))
    h = leaky(dense(h, cfw2_ref, cfb2_ref))
    gate = jax.nn.sigmoid(dense(h, cfw3_ref, cfb3_ref))
    xg = feat_ref[...] * gate                       # x * cond  (dropout = identity)

    # out_fea_extractor: 512 -> 512 -> 128
    e = leaky(dense(xg, ofw1_ref, ofb1_ref))
    emb_ref[...] = dense(e, ofw2_ref, ofb2_ref)

    # out_linear: 512 -> 512 -> 3 (padded to 128 lanes, sliced in wrapper)
    q = leaky(dense(xg, olw1_ref, olb1_ref))
    pred_ref[...] = dense(q, olw2_ref, olb2_ref)


# ----------------------------------------------------------------------------
# Wrappers
# ----------------------------------------------------------------------------
def im2col_3x3(x):
    # x: (N, C, H, W) -> (N, H*W, C*9), stride 1, padding 1 ("same" conv)
    N, C, H, W = x.shape
    xp = jnp.pad(x, ((0, 0), (0, 0), (1, 1), (1, 1)))
    cols = []
    for dy in range(3):
        for dx in range(3):
            cols.append(xp[:, :, dy:dy + H, dx:dx + W])              # (N,C,H,W)
    p = jnp.stack(cols, axis=2)                                      # (N,C,9,H,W)
    p = jnp.transpose(p, (0, 3, 4, 1, 2))                            # (N,H,W,C,9)
    return p.reshape(N, H * W, C * 9)


def _pad_rows(a, multiple):
    n = a.shape[0]
    n_pad = ((n + multiple - 1) // multiple) * multiple
    if n_pad != n:
        a = jnp.pad(a, ((0, n_pad - n),) + ((0, 0),) * (a.ndim - 1))
    return a, n_pad


def backbone_forward(imgs, bb, tb=16):
    # synthetic backbone: conv3x3 + ReLU + GAP + linear head -> (N, D)
    N, C, H, W = imgs.shape
    hw, c9 = H * W, C * 9
    patches = im2col_3x3(imgs).astype(jnp.bfloat16)                  # (N, HW, C9) bf16
    patches, n_pad = _pad_rows(patches, tb)
    f = bb["wc"].shape[1]
    d = bb["wh"].shape[1]
    flops = 2 * n_pad * hw * c9 * f + 2 * n_pad * f * d
    out = pl.pallas_call(
        _backbone_kernel,
        grid=(n_pad // tb,),
        in_specs=[
            pl.BlockSpec((tb, hw, c9), lambda n: (n, 0, 0)),
            pl.BlockSpec((c9, f), lambda n: (0, 0)),
            pl.BlockSpec((1, f), lambda n: (0, 0)),
            pl.BlockSpec((f, d), lambda n: (0, 0)),
            pl.BlockSpec((1, d), lambda n: (0, 0)),
        ],
        out_specs=pl.BlockSpec((tb, d), lambda n: (n, 0)),
        out_shape=jax.ShapeDtypeStruct((n_pad, d), jnp.float32),
        compiler_params=pltpu.CompilerParams(dimension_semantics=("parallel",)),
        cost_estimate=pl.CostEstimate(
            flops=flops, transcendentals=0,
            bytes_accessed=patches.size * 2 + n_pad * d * 4),
    )(patches, bb["wc"], bb["bc"], bb["wh"], bb["bh"])
    return out[:N]


def sag_head(feat, ce, p, tb=32):
    # One fused kernel for the whole per-row head chain.
    bk, fea = feat.shape
    feat, bk_pad = _pad_rows(feat, tb)
    ce, _ = _pad_rows(ce.astype(jnp.bfloat16), tb)
    weights = (p["cf_w1"], p["cf_b1"], p["cf_w2"], p["cf_b2"], p["cf_w3"], p["cf_b3"],
               p["of_w1"], p["of_b1"], p["of_w2"], p["of_b2"],
               p["ol_w1"], p["ol_b1"], p["ol_w2"], p["ol_b2"])
    w_specs = [pl.BlockSpec(w.shape, lambda n: (0, 0)) for w in weights]
    flops = 2 * bk_pad * (64 * 128 + 128 * 256 + 256 * fea
                          + 2 * fea * fea + 2 * fea * 128)
    w_bytes = sum(w.size * w.dtype.itemsize for w in weights)
    emb_pad, pred_pad = pl.pallas_call(
        _sag_head_kernel,
        grid=(bk_pad // tb,),
        in_specs=[pl.BlockSpec((tb, fea), lambda n: (n, 0)),
                  pl.BlockSpec((tb, ce.shape[1]), lambda n: (n, 0))] + w_specs,
        out_specs=(pl.BlockSpec((tb, 128), lambda n: (n, 0)),
                   pl.BlockSpec((tb, 128), lambda n: (n, 0))),
        out_shape=(jax.ShapeDtypeStruct((bk_pad, 128), jnp.float32),
                   jax.ShapeDtypeStruct((bk_pad, 128), jnp.float32)),
        compiler_params=pltpu.CompilerParams(dimension_semantics=("parallel",)),
        cost_estimate=pl.CostEstimate(
            flops=flops, transcendentals=bk_pad * fea,
            bytes_accessed=bk_pad * (fea * 4 + 64 * 2 + 2 * 128 * 4) + w_bytes),
    )(feat, ce, *weights)
    return emb_pad[:bk], pred_pad[:bk, :3]


# ----------------------------------------------------------------------------
# Model forward (mirrors Sag_Model_25D.forward)
# ----------------------------------------------------------------------------
def sag_forward(params, x, cond, with_emb=False):
    b, k, d, h, w = x.shape
    levels = k // 5
    imgs = x.reshape(b * k, d, h, w)
    feat = backbone_forward(imgs, params["bb"])                      # (b*k, 512)
    ce = jnp.take(params["cond_emb"], cond.reshape(-1), axis=0)      # (b*k, 64) embedding gather
    emb, pred = sag_head(feat, ce, params)                           # fused head
    pred = pred.reshape(b, k, 3).reshape(b, -1)                      # (b, 3k)
    if with_emb:
        embeds = emb.reshape(b, -1, levels, 128)
        embeds = jnp.transpose(embeds, (0, 2, 1, 3))
        embeds = embeds.reshape(b, 5, -1)
        return pred, embeds
    return pred


# ----------------------------------------------------------------------------
# Deterministic parameter init (synthetic, matching module-implied shapes)
# ----------------------------------------------------------------------------
def init_params(key):
    kit = iter(jax.random.split(key, 32))

    def nrm(shape, dtype=jnp.float32, s=0.05):
        return (jax.random.normal(next(kit), shape, jnp.float32) * s).astype(dtype)

    bf = jnp.bfloat16
    F_BB, FEA = 32, 512       # synthetic backbone conv width, feature dim

    # out_linear second layer: true shape (512, 3), zero-padded to 128 lanes.
    ol_w2 = jnp.zeros((FEA, 128), jnp.float32).at[:, :3].set(nrm((FEA, 3)))
    ol_b2 = jnp.zeros((1, 128), jnp.float32).at[:, :3].set(nrm((1, 3)))

    return dict(
        bb=dict(wc=nrm((3 * 9, F_BB), bf), bc=nrm((1, F_BB)),
                wh=nrm((F_BB, FEA), bf), bh=nrm((1, FEA))),
        cond_emb=nrm((5, 64)),
        cf_w1=nrm((64, 128), bf),  cf_b1=nrm((1, 128)),
        cf_w2=nrm((128, 256), bf), cf_b2=nrm((1, 256)),
        cf_w3=nrm((256, FEA), bf), cf_b3=nrm((1, FEA)),
        of_w1=nrm((FEA, FEA), bf), of_b1=nrm((1, FEA)),
        of_w2=nrm((FEA, 128), bf), of_b2=nrm((1, 128)),
        ol_w1=nrm((FEA, FEA), bf), ol_b1=nrm((1, FEA)),
        ol_w2=ol_w2.astype(bf),    ol_b2=ol_b2,
    )


# ----------------------------------------------------------------------------
if __name__ == "__main__":
    key = jax.random.PRNGKey(0)
    kp, kx, kc = jax.random.split(key, 3)
    params = init_params(kp)

    # sag input: (b, k=25 (5 levels x 5 conditions), 3, 16, 16); cond ints in [0,5)
    b, k = 2, 25
    x = jax.random.normal(kx, (b, k, 3, 16, 16), jnp.float32)
    cond = jax.random.randint(kc, (b, k), 0, 5)

    fwd = jax.jit(functools.partial(sag_forward, with_emb=True))
    pred, embeds = fwd(params, x, cond)
    pred, embeds = jax.block_until_ready((pred, embeds))
    assert pred.shape == (b, 3 * k), pred.shape
    assert embeds.shape == (b, 5, (k // 5) * 128), embeds.shape
    print("KERNEL_OK")
</pallas_src>

<mosaic_0001>
module attributes {stable_mosaic.version = 11 : i64} {
  func.func @_backbone_kernel(%arg0: i32, %arg1: memref<16x256x27xbf16, #tpu.memory_space<vmem>>, %arg2: memref<27x32xbf16, #tpu.memory_space<vmem>>, %arg3: memref<1x32xf32, #tpu.memory_space<vmem>>, %arg4: memref<32x512xbf16, #tpu.memory_space<vmem>>, %arg5: memref<1x512xf32, #tpu.memory_space<vmem>>, %arg6: memref<16x512xf32, #tpu.memory_space<vmem>>) attributes {dimension_semantics = [#tpu.dimension_semantics<parallel>], iteration_bounds = array<i64: 4>, scalar_prefetch = 0 : i64, scratch_operands = 0 : i64, tpu.core_type = #tpu.core_type<tc>, window_params = [{transform_indices = @transform_0, window_bounds = array<i64: 16, 256, 27>}, {pipeline_mode = #tpu.pipeline_mode<synchronous>, transform_indices = @transform_1, window_bounds = array<i64: 27, 32>}, {pipeline_mode = #tpu.pipeline_mode<synchronous>, transform_indices = @transform_2, window_bounds = array<i64: 1, 32>}, {pipeline_mode = #tpu.pipeline_mode<synchronous>, transform_indices = @transform_3, window_bounds = array<i64: 32, 512>}, {pipeline_mode = #tpu.pipeline_mode<synchronous>, transform_indices = @transform_4, window_bounds = array<i64: 1, 512>}, {transform_indices = @transform_5, window_bounds = array<i64: 16, 512>}]} {
    %c0 = arith.constant 0 : index
    %c0_0 = arith.constant 0 : index
    %c0_1 = arith.constant 0 : index
    %0 = vector.load %arg1[%c0, %c0_0, %c0_1] : memref<16x256x27xbf16, #tpu.memory_space<vmem>>, vector<16x256x27xbf16>
    %1 = vector.shape_cast %0 : vector<16x256x27xbf16> to vector<4096x27xbf16>
    %c0_2 = arith.constant 0 : index
    %c0_3 = arith.constant 0 : index
    %2 = vector.load %arg2[%c0_2, %c0_3] : memref<27x32xbf16, #tpu.memory_space<vmem>>, vector<27x32xbf16>
    %cst = arith.constant dense<0.000000e+00> : vector<4096x32xf32>
    %3 = tpu.matmul %1, %2, %cst {dimension_numbers = #tpu.dot_dimension_numbers<[1], [0], [0], [1], [0, 0, 1, 1], [], []>} : vector<4096x27xbf16>, vector<27x32xbf16>, vector<4096x32xf32> -> vector<4096x32xf32>
    %c0_4 = arith.constant 0 : index
    %c0_5 = arith.constant 0 : index
    %4 = vector.load %arg3[%c0_4, %c0_5] : memref<1x32xf32, #tpu.memory_space<vmem>>, vector<1x32xf32>
    %5 = vector.broadcast %4 : vector<1x32xf32> to vector<4096x32xf32>
    %6 = arith.addf %3, %5 : vector<4096x32xf32>
    %cst_6 = arith.constant 0.000000e+00 : f32
    %7 = vector.broadcast %cst_6 : f32 to vector<4096x32xf32>
    %8 = arith.maximumf %6, %7 : vector<4096x32xf32>
    %9 = vector.shape_cast %8 : vector<4096x32xf32> to vector<16x256x32xf32>
    %cst_7 = arith.constant dense<0.000000e+00> : vector<16x32xf32>
    %10 = vector.multi_reduction <add>, %9, %cst_7 [1] : vector<16x256x32xf32> to vector<16x32xf32>
    %cst_8 = arith.constant 2.560000e+02 : f32
    %11 = vector.broadcast %cst_8 : f32 to vector<16x32xf32>
    %12 = arith.divf %10, %11 : vector<16x32xf32>
    %13 = arith.truncf %12 : vector<16x32xf32> to vector<16x32xbf16>
    %c0_9 = arith.constant 0 : index
    %c0_10 = arith.constant 0 : index
    %14 = vector.load %arg4[%c0_9, %c0_10] : memref<32x512xbf16, #tpu.memory_space<vmem>>, vector<32x512xbf16>
    %cst_11 = arith.constant dense<0.000000e+00> : vector<16x512xf32>
    %15 = tpu.matmul %13, %14, %cst_11 {dimension_numbers = #tpu.dot_dimension_numbers<[1], [0], [0], [1], [0, 0, 1, 1], [], []>} : vector<16x32xbf16>, vector<32x512xbf16>, vector<16x512xf32> -> vector<16x512xf32>
    %c0_12 = arith.constant 0 : index
    %c0_13 = arith.constant 0 : index
    %16 = vector.load %arg5[%c0_12, %c0_13] : memref<1x512xf32, #tpu.memory_space<vmem>>, vector<1x512xf32>
    %17 = vector.broadcast %16 : vector<1x512xf32> to vector<16x512xf32>
    %18 = arith.addf %15, %17 : vector<16x512xf32>
    %c0_14 = arith.constant 0 : index
    %c0_15 = arith.constant 0 : index
    %19 = vector.load %arg6[%c0_14, %c0_15] : memref<16x512xf32, #tpu.memory_space<vmem>>, vector<16x512xf32>
    tpu.vector_store %arg6[%c0_14, %c0_15], %18 {strides = array<i32>} : memref<16x512xf32, #tpu.memory_space<vmem>>, vector<16x512xf32>,
    return
  }
  func.func @transform_0(%arg0: i32) -> (i32, i32, i32) {
    %c0_i32 = arith.constant 0 : i32
    %c0_i32_0 = arith.constant 0 : i32
    %c0_i32_1 = arith.constant 0 : i32
    return %arg0, %c0_i32, %c0_i32_0 : i32, i32, i32
  }
  func.func @transform_1(%arg0: i32) -> (i32, i32) {
    %c0_i32 = arith.constant 0 : i32
    %c0_i32_0 = arith.constant 0 : i32
    %c0_i32_1 = arith.constant 0 : i32
    return %c0_i32, %c0_i32_0 : i32, i32
  }
  func.func @transform_2(%arg0: i32) -> (i32, i32) {
    %c0_i32 = arith.constant 0 : i32
    %c0_i32_0 = arith.constant 0 : i32
    %c0_i32_1 = arith.constant 0 : i32
    return %c0_i32, %c0_i32_0 : i32, i32
  }
  func.func @transform_3(%arg0: i32) -> (i32, i32) {
    %c0_i32 = arith.constant 0 : i32
    %c0_i32_0 = arith.constant 0 : i32
    %c0_i32_1 = arith.constant 0 : i32
    return %c0_i32, %c0_i32_0 : i32, i32
  }
  func.func @transform_4(%arg0: i32) -> (i32, i32) {
    %c0_i32 = arith.constant 0 : i32
    %c0_i32_0 = arith.constant 0 : i32
    %c0_i32_1 = arith.constant 0 : i32
    return %c0_i32, %c0_i32_0 : i32, i32
  }
  func.func @transform_5(%arg0: i32) -> (i32, i32) {
    %c0_i32 = arith.constant 0 : i32
    %c0_i32_0 = arith.constant 0 : i32
    return %arg0, %c0_i32 : i32, i32
  }
}

module attributes {stable_mosaic.version = 11 : i64} {
  func.func @_sag_head_kernel(%arg0: i32, %arg1: memref<32x512xf32, #tpu.memory_space<vmem>>, %arg2: memref<32x64xbf16, #tpu.memory_space<vmem>>, %arg3: memref<64x128xbf16, #tpu.memory_space<vmem>>, %arg4: memref<1x128xf32, #tpu.memory_space<vmem>>, %arg5: memref<128x256xbf16, #tpu.memory_space<vmem>>, %arg6: memref<1x256xf32, #tpu.memory_space<vmem>>, %arg7: memref<256x512xbf16, #tpu.memory_space<vmem>>, %arg8: memref<1x512xf32, #tpu.memory_space<vmem>>, %arg9: memref<512x512xbf16, #tpu.memory_space<vmem>>, %arg10: memref<1x512xf32, #tpu.memory_space<vmem>>, %arg11: memref<512x128xbf16, #tpu.memory_space<vmem>>, %arg12: memref<1x128xf32, #tpu.memory_space<vmem>>, %arg13: memref<512x512xbf16, #tpu.memory_space<vmem>>, %arg14: memref<1x512xf32, #tpu.memory_space<vmem>>, %arg15: memref<512x128xbf16, #tpu.memory_space<vmem>>, %arg16: memref<1x128xf32, #tpu.memory_space<vmem>>, %arg17: memref<32x128xf32, #tpu.memory_space<vmem>>, %arg18: memref<32x128xf32, #tpu.memory_space<vmem>>) attributes {dimension_semantics = [#tpu.dimension_semantics<parallel>], iteration_bounds = array<i64: 2>, scalar_prefetch = 0 : i64, scratch_operands = 0 : i64, tpu.core_type = #tpu.core_type<tc>, window_params = [{transform_indices = @transform_0, window_bounds = array<i64: 32, 512>}, {transform_indices = @transform_1, window_bounds = array<i64: 32, 64>}, {pipeline_mode = #tpu.pipeline_mode<synchronous>, transform_indices = @transform_2, window_bounds = array<i64: 64, 128>}, {pipeline_mode = #tpu.pipeline_mode<synchronous>, transform_indices = @transform_3, window_bounds = array<i64: 1, 128>}, {pipeline_mode = #tpu.pipeline_mode<synchronous>, transform_indices = @transform_4, window_bounds = array<i64: 128, 256>}, {pipeline_mode = #tpu.pipeline_mode<synchronous>, transform_indices = @transform_5, window_bounds = array<i64: 1, 256>}, {pipeline_mode = #tpu.pipeline_mode<synchronous>, transform_indices = @transform_6, window_bounds = array<i64: 256, 512>}, {pipeline_mode = #tpu.pipeline_mode<synchronous>, transform_indices = @transform_7, window_bounds = array<i64: 1, 512>}, {pipeline_mode = #tpu.pipeline_mode<synchronous>, transform_indices = @transform_8, window_bounds = array<i64: 512, 512>}, {pipeline_mode = #tpu.pipeline_mode<synchronous>, transform_indices = @transform_9, window_bounds = array<i64: 1, 512>}, {pipeline_mode = #tpu.pipeline_mode<synchronous>, transform_indices = @transform_10, window_bounds = array<i64: 512, 128>}, {pipeline_mode = #tpu.pipeline_mode<synchronous>, transform_indices = @transform_11, window_bounds = array<i64: 1, 128>}, {pipeline_mode = #tpu.pipeline_mode<synchronous>, transform_indices = @transform_12, window_bounds = array<i64: 512, 512>}, {pipeline_mode = #tpu.pipeline_mode<synchronous>, transform_indices = @transform_13, window_bounds = array<i64: 1, 512>}, {pipeline_mode = #tpu.pipeline_mode<synchronous>, transform_indices = @transform_14, window_bounds = array<i64: 512, 128>}, {pipeline_mode = #tpu.pipeline_mode<synchronous>, transform_indices = @transform_15, window_bounds = array<i64: 1, 128>}, {transform_indices = @transform_16, window_bounds = array<i64: 32, 128>}, {transform_indices = @transform_17, window_bounds = array<i64: 32, 128>}]} {
    %c0 = arith.constant 0 : index
    %c0_0 = arith.constant 0 : index
    %0 = vector.load %arg2[%c0, %c0_0] : memref<32x64xbf16, #tpu.memory_space<vmem>>, vector<32x64xbf16>
    %c0_1 = arith.constant 0 : index
    %c0_2 = arith.constant 0 : index
    %1 = vector.load %arg3[%c0_1, %c0_2] : memref<64x128xbf16, #tpu.memory_space<vmem>>, vector<64x128xbf16>
    %cst = arith.constant dense<0.000000e+00> : vector<32x128xf32>
    %2 = tpu.matmul %0, %1, %cst {dimension_numbers = #tpu.dot_dimension_numbers<[1], [0], [0], [1], [0, 0, 1, 1], [], []>} : vector<32x64xbf16>, vector<64x128xbf16>, vector<32x128xf32> -> vector<32x128xf32>
    %c0_3 = arith.constant 0 : index
    %c0_4 = arith.constant 0 : index
    %3 = vector.load %arg4[%c0_3, %c0_4] : memref<1x128xf32, #tpu.memory_space<vmem>>, vector<1x128xf32>
    %4 = vector.broadcast %3 : vector<1x128xf32> to vector<32x128xf32>
    %5 = arith.addf %2, %4 : vector<32x128xf32>
    %cst_5 = arith.constant 0.000000e+00 : f32
    %6 = vector.broadcast %cst_5 : f32 to vector<32x128xf32>
    %7 = arith.cmpf ogt, %5, %6 : vector<32x128xf32>
    %cst_6 = arith.constant 0.00999999977 : f32
    %8 = vector.broadcast %cst_6 : f32 to vector<32x128xf32>
    %9 = arith.mulf %8, %5 : vector<32x128xf32>
    %10 = arith.select %7, %5, %9 : vector<32x128xi1>, vector<32x128xf32>
    %11 = arith.truncf %10 : vector<32x128xf32> to vector<32x128xbf16>
    %c0_7 = arith.constant 0 : index
    %c0_8 = arith.constant 0 : index
    %12 = vector.load %arg5[%c0_7, %c0_8] : memref<128x256xbf16, #tpu.memory_space<vmem>>, vector<128x256xbf16>
    %cst_9 = arith.constant dense<0.000000e+00> : vector<32x256xf32>
    %13 = tpu.matmul %11, %12, %cst_9 {dimension_numbers = #tpu.dot_dimension_numbers<[1], [0], [0], [1], [0, 0, 1, 1], [], []>} : vector<32x128xbf16>, vector<128x256xbf16>, vector<32x256xf32> -> vector<32x256xf32>
    %c0_10 = arith.constant 0 : index
    %c0_11 = arith.constant 0 : index
    %14 = vector.load %arg6[%c0_10, %c0_11] : memref<1x256xf32, #tpu.memory_space<vmem>>, vector<1x256xf32>
    %15 = vector.broadcast %14 : vector<1x256xf32> to vector<32x256xf32>
    %16 = arith.addf %13, %15 : vector<32x256xf32>
    %cst_12 = arith.constant 0.000000e+00 : f32
    %17 = vector.broadcast %cst_12 : f32 to vector<32x256xf32>
    %18 = arith.cmpf ogt, %16, %17 : vector<32x256xf32>
    %cst_13 = arith.constant 0.00999999977 : f32
    %19 = vector.broadcast %cst_13 : f32 to vector<32x256xf32>
    %20 = arith.mulf %19, %16 : vector<32x256xf32>
    %21 = arith.select %18, %16, %20 : vector<32x256xi1>, vector<32x256xf32>
    %22 = arith.truncf %21 : vector<32x256xf32> to vector<32x256xbf16>
    %c0_14 = arith.constant 0 : index
    %c0_15 = arith.constant 0 : index
    %23 = vector.load %arg7[%c0_14, %c0_15] : memref<256x512xbf16, #tpu.memory_space<vmem>>, vector<256x512xbf16>
    %cst_16 = arith.constant dense<0.000000e+00> : vector<32x512xf32>
    %24 = tpu.matmul %22, %23, %cst_16 {dimension_numbers = #tpu.dot_dimension_numbers<[1], [0], [0], [1], [0, 0, 1, 1], [], []>} : vector<32x256xbf16>, vector<256x512xbf16>, vector<32x512xf32> -> vector<32x512xf32>
    %c0_17 = arith.constant 0 : index
    %c0_18 = arith.constant 0 : index
    %25 = vector.load %arg8[%c0_17, %c0_18] : memref<1x512xf32, #tpu.memory_space<vmem>>, vector<1x512xf32>
    %26 = vector.broadcast %25 : vector<1x512xf32> to vector<32x512xf32>
    %27 = arith.addf %24, %26 : vector<32x512xf32>
    %28 = arith.negf %27 : vector<32x512xf32>
    %29 = math.exp %28 : vector<32x512xf32>
    %cst_19 = arith.constant 1.000000e+00 : f32
    %30 = vector.broadcast %cst_19 : f32 to vector<32x512xf32>
    %31 = arith.addf %30, %29 : vector<32x512xf32>
    %32 = arith.divf %30, %31 : vector<32x512xf32>
    %c0_20 = arith.constant 0 : index
    %c0_21 = arith.constant 0 : index
    %33 = vector.load %arg1[%c0_20, %c0_21] : memref<32x512xf32, #tpu.memory_space<vmem>>, vector<32x512xf32>
    %34 = arith.mulf %33, %32 : vector<32x512xf32>
    %35 = arith.truncf %34 : vector<32x512xf32> to vector<32x512xbf16>
    %c0_22 = arith.constant 0 : index
    %c0_23 = arith.constant 0 : index
    %36 = vector.load %arg9[%c0_22, %c0_23] : memref<512x512xbf16, #tpu.memory_space<vmem>>, vector<512x512xbf16>
    %cst_24 = arith.constant dense<0.000000e+00> : vector<32x512xf32>
    %37 = tpu.matmul %35, %36, %cst_24 {dimension_numbers = #tpu.dot_dimension_numbers<[1], [0], [0], [1], [0, 0, 1, 1], [], []>} : vector<32x512xbf16>, vector<512x512xbf16>, vector<32x512xf32> -> vector<32x512xf32>
    %c0_25 = arith.constant 0 : index
    %c0_26 = arith.constant 0 : index
    %38 = vector.load %arg10[%c0_25, %c0_26] : memref<1x512xf32, #tpu.memory_space<vmem>>, vector<1x512xf32>
    %39 = vector.broadcast %38 : vector<1x512xf32> to vector<32x512xf32>
    %40 = arith.addf %37, %39 : vector<32x512xf32>
    %cst_27 = arith.constant 0.000000e+00 : f32
    %41 = vector.broadcast %cst_27 : f32 to vector<32x512xf32>
    %42 = arith.cmpf ogt, %40, %41 : vector<32x512xf32>
    %cst_28 = arith.constant 0.00999999977 : f32
    %43 = vector.broadcast %cst_28 : f32 to vector<32x512xf32>
    %44 = arith.mulf %43, %40 : vector<32x512xf32>
    %45 = arith.select %42, %40, %44 : vector<32x512xi1>, vector<32x512xf32>
    %46 = arith.truncf %45 : vector<32x512xf32> to vector<32x512xbf16>
    %c0_29 = arith.constant 0 : index
    %c0_30 = arith.constant 0 : index
    %47 = vector.load %arg11[%c0_29, %c0_30] : memref<512x128xbf16, #tpu.memory_space<vmem>>, vector<512x128xbf16>
    %cst_31 = arith.constant dense<0.000000e+00> : vector<32x128xf32>
    %48 = tpu.matmul %46, %47, %cst_31 {dimension_numbers = #tpu.dot_dimension_numbers<[1], [0], [0], [1], [0, 0, 1, 1], [], []>} : vector<32x512xbf16>, vector<512x128xbf16>, vector<32x128xf32> -> vector<32x128xf32>
    %c0_32 = arith.constant 0 : index
    %c0_33 = arith.constant 0 : index
    %49 = vector.load %arg12[%c0_32, %c0_33] : memref<1x128xf32, #tpu.memory_space<vmem>>, vector<1x128xf32>
    %50 = vector.broadcast %49 : vector<1x128xf32> to vector<32x128xf32>
    %51 = arith.addf %48, %50 : vector<32x128xf32>
    %c0_34 = arith.constant 0 : index
    %c0_35 = arith.constant 0 : index
    %52 = vector.load %arg17[%c0_34, %c0_35] : memref<32x128xf32, #tpu.memory_space<vmem>>, vector<32x128xf32>
    tpu.vector_store %arg17[%c0_34, %c0_35], %51 {strides = array<i32>} : memref<32x128xf32, #tpu.memory_space<vmem>>, vector<32x128xf32>,
    %53 = arith.truncf %34 : vector<32x512xf32> to vector<32x512xbf16>
    %c0_36 = arith.constant 0 : index
    %c0_37 = arith.constant 0 : index
    %54 = vector.load %arg13[%c0_36, %c0_37] : memref<512x512xbf16, #tpu.memory_space<vmem>>, vector<512x512xbf16>
    %cst_38 = arith.constant dense<0.000000e+00> : vector<32x512xf32>
    %55 = tpu.matmul %53, %54, %cst_38 {dimension_numbers = #tpu.dot_dimension_numbers<[1], [0], [0], [1], [0, 0, 1, 1], [], []>} : vector<32x512xbf16>, vector<512x512xbf16>, vector<32x512xf32> -> vector<32x512xf32>
    %c0_39 = arith.constant 0 : index
    %c0_40 = arith.constant 0 : index
    %56 = vector.load %arg14[%c0_39, %c0_40] : memref<1x512xf32, #tpu.memory_space<vmem>>, vector<1x512xf32>
    %57 = vector.broadcast %56 : vector<1x512xf32> to vector<32x512xf32>
    %58 = arith.addf %55, %57 : vector<32x512xf32>
    %cst_41 = arith.constant 0.000000e+00 : f32
    %59 = vector.broadcast %cst_41 : f32 to vector<32x512xf32>
    %60 = arith.cmpf ogt, %58, %59 : vector<32x512xf32>
    %cst_42 = arith.constant 0.00999999977 : f32
    %61 = vector.broadcast %cst_42 : f32 to vector<32x512xf32>
    %62 = arith.mulf %61, %58 : vector<32x512xf32>
    %63 = arith.select %60, %58, %62 : vector<32x512xi1>, vector<32x512xf32>
    %64 = arith.truncf %63 : vector<32x512xf32> to vector<32x512xbf16>
    %c0_43 = arith.constant 0 : index
    %c0_44 = arith.constant 0 : index
    %65 = vector.load %arg15[%c0_43, %c0_44] : memref<512x128xbf16, #tpu.memory_space<vmem>>, vector<512x128xbf16>
    %cst_45 = arith.constant dense<0.000000e+00> : vector<32x128xf32>
    %66 = tpu.matmul %64, %65, %cst_45 {dimension_numbers = #tpu.dot_dimension_numbers<[1], [0], [0], [1], [0, 0, 1, 1], [], []>} : vector<32x512xbf16>, vector<512x128xbf16>, vector<32x128xf32> -> vector<32x128xf32>
    %c0_46 = arith.constant 0 : index
    %c0_47 = arith.constant 0 : index
    %67 = vector.load %arg16[%c0_46, %c0_47] : memref<1x128xf32, #tpu.memory_space<vmem>>, vector<1x128xf32>
    %68 = vector.broadcast %67 : vector<1x128xf32> to vector<32x128xf32>
    %69 = arith.addf %66, %68 : vector<32x128xf32>
    %c0_48 = arith.constant 0 : index
    %c0_49 = arith.constant 0 : index
    %70 = vector.load %arg18[%c0_48, %c0_49] : memref<32x128xf32, #tpu.memory_space<vmem>>, vector<32x128xf32>
    tpu.vector_store %arg18[%c0_48, %c0_49], %69 {strides = array<i32>} : memref<32x128xf32, #tpu.memory_space<vmem>>, vector<32x128xf32>,
    return
  }
  func.func @transform_0(%arg0: i32) -> (i32, i32) {
    %c0_i32 = arith.constant 0 : i32
    %c0_i32_0 = arith.constant 0 : i32
    return %arg0, %c0_i32 : i32, i32
  }
  func.func @transform_1(%arg0: i32) -> (i32, i32) {
    %c0_i32 = arith.constant 0 : i32
    %c0_i32_0 = arith.constant 0 : i32
    return %arg0, %c0_i32 : i32, i32
  }
  func.func @transform_2(%arg0: i32) -> (i32, i32) {
    %c0_i32 = arith.constant 0 : i32
    %c0_i32_0 = arith.constant 0 : i32
    %c0_i32_1 = arith.constant 0 : i32
    return %c0_i32, %c0_i32_0 : i32, i32
  }
  func.func @transform_3(%arg0: i32) -> (i32, i32) {
    %c0_i32 = arith.constant 0 : i32
    %c0_i32_0 = arith.constant 0 : i32
    %c0_i32_1 = arith.constant 0 : i32
    return %c0_i32, %c0_i32_0 : i32, i32
  }
  func.func @transform_4(%arg0: i32) -> (i32, i32) {
    %c0_i32 = arith.constant 0 : i32
    %c0_i32_0 = arith.constant 0 : i32
    %c0_i32_1 = arith.constant 0 : i32
    return %c0_i32, %c0_i32_0 : i32, i32
  }
  func.func @transform_5(%arg0: i32) -> (i32, i32) {
    %c0_i32 = arith.constant 0 : i32
    %c0_i32_0 = arith.constant 0 : i32
    %c0_i32_1 = arith.constant 0 : i32
    return %c0_i32, %c0_i32_0 : i32, i32
  }
  func.func @transform_6(%arg0: i32) -> (i32, i32) {
    %c0_i32 = arith.constant 0 : i32
    %c0_i32_0 = arith.constant 0 : i32
    %c0_i32_1 = arith.constant 0 : i32
    return %c0_i32, %c0_i32_0 : i32, i32
  }
  func.func @transform_7(%arg0: i32) -> (i32, i32) {
    %c0_i32 = arith.constant 0 : i32
    %c0_i32_0 = arith.constant 0 : i32
    %c0_i32_1 = arith.constant 0 : i32
    return %c0_i32, %c0_i32_0 : i32, i32
  }
  func.func @transform_8(%arg0: i32) -> (i32, i32) {
    %c0_i32 = arith.constant 0 : i32
    %c0_i32_0 = arith.constant 0 : i32
    %c0_i32_1 = arith.constant 0 : i32
    return %c0_i32, %c0_i32_0 : i32, i32
  }
  func.func @transform_9(%arg0: i32) -> (i32, i32) {
    %c0_i32 = arith.constant 0 : i32
    %c0_i32_0 = arith.constant 0 : i32
    %c0_i32_1 = arith.constant 0 : i32
    return %c0_i32, %c0_i32_0 : i32, i32
  }
  func.func @transform_10(%arg0: i32) -> (i32, i32) {
    %c0_i32 = arith.constant 0 : i32
    %c0_i32_0 = arith.constant 0 : i32
    %c0_i32_1 = arith.constant 0 : i32
    return %c0_i32, %c0_i32_0 : i32, i32
  }
  func.func @transform_11(%arg0: i32) -> (i32, i32) {
    %c0_i32 = arith.constant 0 : i32
    %c0_i32_0 = arith.constant 0 : i32
    %c0_i32_1 = arith.constant 0 : i32
    return %c0_i32, %c0_i32_0 : i32, i32
  }
  func.func @transform_12(%arg0: i32) -> (i32, i32) {
    %c0_i32 = arith.constant 0 : i32
    %c0_i32_0 = arith.constant 0 : i32
    %c0_i32_1 = arith.constant 0 : i32
    return %c0_i32, %c0_i32_0 : i32, i32
  }
  func.func @transform_13(%arg0: i32) -> (i32, i32) {
    %c0_i32 = arith.constant 0 : i32
    %c0_i32_0 = arith.constant 0 : i32
    %c0_i32_1 = arith.constant 0 : i32
    return %c0_i32, %c0_i32_0 : i32, i32
  }
  func.func @transform_14(%arg0: i32) -> (i32, i32) {
    %c0_i32 = arith.constant 0 : i32
    %c0_i32_0 = arith.constant 0 : i32
    %c0_i32_1 = arith.constant 0 : i32
    return %c0_i32, %c0_i32_0 : i32, i32
  }
  func.func @transform_15(%arg0: i32) -> (i32, i32) {
    %c0_i32 = arith.constant 0 : i32
    %c0_i32_0 = arith.constant 0 : i32
    %c0_i32_1 = arith.constant 0 : i32
    return %c0_i32, %c0_i32_0 : i32, i32
  }
  func.func @transform_16(%arg0: i32) -> (i32, i32) {
    %c0_i32 = arith.constant 0 : i32
    %c0_i32_0 = arith.constant 0 : i32
    return %arg0, %c0_i32 : i32, i32
  }
  func.func @transform_17(%arg0: i32) -> (i32, i32) {
    %c0_i32 = arith.constant 0 : i32
    %c0_i32_0 = arith.constant 0 : i32
    return %arg0, %c0_i32 : i32, i32
  }
}

</mosaic_0001>

<llo_original>
// kernel: sag_forward.3
$region0: #{sag_forward.3}
  #allocation0 [shape = 'u32[]', space=smem, size = 0x4, offset = 0x4, fixed_abs, tag = 'smem constant byte address 0x4 - core index']
  #allocation1 [shape = 'u32[72,128]{1,0:T(1,128)}', space=vmem, size = 0x9000, scoped, tag = 'internal scratch']
  %s0 = inlined_call_operand.vmem [shape: f32[64,512], index: 0, kind: input, shape index: {}]
  %s1 = inlined_call_operand.vmem [shape: bf16[64,64], index: 1, kind: input, shape index: {}]
  %s2 = inlined_call_operand.vmem [shape: bf16[64,128], index: 2, kind: input, shape index: {}]
  %s3 = inlined_call_operand.vmem [shape: f32[1,128], index: 3, kind: input, shape index: {}]
  %s4 = inlined_call_operand.vmem [shape: bf16[128,256], index: 4, kind: input, shape index: {}]
  %s5 = inlined_call_operand.vmem [shape: f32[1,256], index: 5, kind: input, shape index: {}]
  %s6 = inlined_call_operand.vmem [shape: bf16[256,512], index: 6, kind: input, shape index: {}]
  %s7 = inlined_call_operand.vmem [shape: f32[1,512], index: 7, kind: input, shape index: {}]
  %s8 = inlined_call_operand.vmem [shape: bf16[512,512], index: 8, kind: input, shape index: {}]
  %s9 = inlined_call_operand.vmem [shape: f32[1,512], index: 9, kind: input, shape index: {}]
  %s10 = inlined_call_operand.vmem [shape: bf16[512,128], index: 10, kind: input, shape index: {}]
  %s11 = inlined_call_operand.vmem [shape: f32[1,128], index: 11, kind: input, shape index: {}]
  %s12 = inlined_call_operand.vmem [shape: bf16[512,512], index: 12, kind: input, shape index: {}]
  %s13 = inlined_call_operand.vmem [shape: f32[1,512], index: 13, kind: input, shape index: {}]
  %s14 = inlined_call_operand.vmem [shape: bf16[512,128], index: 14, kind: input, shape index: {}]
  %s15 = inlined_call_operand.vmem [shape: f32[1,128], index: 15, kind: input, shape index: {}]
  %s16 = inlined_call_operand.vmem [shape: f32[64,128], index: 16, kind: output, shape index: {0}]
  %s17 = inlined_call_operand.vmem [shape: f32[64,128], index: 17, kind: output, shape index: {1}]
  %18 = xla_tuple %s16, %s17
  %s19 = sld [smem:[#allocation0]]
  $region105: #{sag_forward.3} parent=0
    _
  %s21 = ssub.s32 1, %s19
  %s22 = scalar_select 0, %s21, %s19
  loop: start=0, step=1, limit=4
  $region2: #{sag_forward.3} parent=0 // loop_pre_header
    _
  $region3: #{sag_forward.3} parent=0 // loop_header
    %s24 = sphi 0, %s28
    %p25 = scmp.ge.s32.totalorder %s24, 4
    %s34 = sphi 0, %s36
    %s37 = sphi 0, %s34
    %s38 = sphi 0, %s37
    %s54 = sphi 0, %s38
    %s60 = sphi 0, %s62
    %s63 = sphi 0, %s60
    %s64 = sphi 0, %s63
    %s80 = sphi 0, %s64
    %s84 = sphi 0, %s84
    %s86 = sphi 0, %s84
    %s87 = sphi 0, %s86
    %s101 = sphi 0, %s87
    %s105 = sphi 0, %s105
    %s107 = sphi 0, %s105
    %s108 = sphi 0, %s107
    %s122 = sphi 0, %s108
    %s126 = sphi 0, %s126
    %s128 = sphi 0, %s126
    %s129 = sphi 0, %s128
    %s143 = sphi 0, %s129
    %s147 = sphi 0, %s147
    %s149 = sphi 0, %s147
    %s150 = sphi 0, %s149
    %s164 = sphi 0, %s150
    %s168 = sphi 0, %s168
    %s170 = sphi 0, %s168
    %s171 = sphi 0, %s170
    %s185 = sphi 0, %s171
    %s189 = sphi 0, %s189
    %s191 = sphi 0, %s189
    %s192 = sphi 0, %s191
    %s206 = sphi 0, %s192
    %s210 = sphi 0, %s210
    %s212 = sphi 0, %s210
    %s213 = sphi 0, %s212
    %s227 = sphi 0, %s213
    %s231 = sphi 0, %s231
    %s233 = sphi 0, %s231
    %s234 = sphi 0, %s233
    %s248 = sphi 0, %s234
    %s252 = sphi 0, %s252
    %s254 = sphi 0, %s252
    %s255 = sphi 0, %s254
    %s269 = sphi 0, %s255
    %s273 = sphi 0, %s273
    %s275 = sphi 0, %s273
    %s276 = sphi 0, %s275
    %s290 = sphi 0, %s276
    %s294 = sphi 0, %s294
    %s296 = sphi 0, %s294
    %s297 = sphi 0, %s296
    %s311 = sphi 0, %s297
    %s315 = sphi 0, %s315
    %s317 = sphi 0, %s315
    %s318 = sphi 0, %s317
    %s332 = sphi 0, %s318
    %s336 = sphi 0, %s336
    %s338 = sphi 0, %s336
    %s339 = sphi 0, %s338
    %s353 = sphi 0, %s339
    %s357 = sphi 0, %s357
    %s359 = sphi 0, %s357
    %s360 = sphi 0, %s359
    %s374 = sphi 0, %s360
    %s380 = sphi 0, %s382
    %s383 = sphi 0, %s380
    %s384 = sphi 0, %s383
    %s400 = sphi 0, %s384
    %s406 = sphi 0, %s408
    %s409 = sphi 0, %s406
    %s410 = sphi 0, %s409
    %s426 = sphi 0, %s410
  $region4: #{sag_forward.3} parent=0 // loop_header_branch
    %27 = sbr.rel (%p25) target = $region8
  $region5: #{sag_forward.3} parent=0 // loop_body
    %s29 = ssub.s32 %s24, 1
    %s30 = ssub.s32 %s24, 2
    %s31 = sadd.s32 %s24, 1
    %s32 = ssub.s32 %s24, %s31
    %p33 = scmp.eq.s32.totalorder %s32, 0
    %s35 = sadd.s32 %s34, 1
    %s36 = scalar_select %p33, %s34, %s35
    %p39 = pneg %p33
    %p40 = scmp.eq.s32.totalorder %s24, 1
    %p41 = por %p39, %p40
    %p42 = scmp.ne.s32.totalorder %s34, %s37
    %p43 = scmp.eq.s32.totalorder %s24, 0
    %p44 = por %p42, %p43
    %p45 = scmp.ne.s32.totalorder %s34, %s37
    %p46 = scmp.eq.s32.totalorder %s29, 1
    %p47 = por %p45, %p46
    %p48 = scmp.ne.s32.totalorder %s37, %s38
    %p49 = scmp.eq.s32.totalorder %s29, 0
    %p50 = por %p48, %p49
    %p51 = scmp.ne.s32.totalorder %s37, %s38
    %p52 = scmp.eq.s32.totalorder %s30, 1
    %p53 = por %p51, %p52
    %p55 = scmp.ne.s32.totalorder %s38, %s54
    %p56 = scmp.eq.s32.totalorder %s30, 0
    %p57 = por %p55, %p56
    %s58 = ssub.s32 %s24, %s31
    %p59 = scmp.eq.s32.totalorder %s58, 0
    %s61 = sadd.s32 %s60, 1
    %s62 = scalar_select %p59, %s60, %s61
    %p65 = pneg %p59
    %p66 = scmp.eq.s32.totalorder %s24, 1
    %p67 = por %p65, %p66
    %p68 = scmp.ne.s32.totalorder %s60, %s63
    %p69 = scmp.eq.s32.totalorder %s24, 0
    %p70 = por %p68, %p69
    %p71 = scmp.ne.s32.totalorder %s60, %s63
    %p72 = scmp.eq.s32.totalorder %s29, 1
    %p73 = por %p71, %p72
    %p74 = scmp.ne.s32.totalorder %s63, %s64
    %p75 = scmp.eq.s32.totalorder %s29, 0
    %p76 = por %p74, %p75
    %p77 = scmp.ne.s32.totalorder %s63, %s64
    %p78 = scmp.eq.s32.totalorder %s30, 1
    %p79 = por %p77, %p78
    %p81 = scmp.ne.s32.totalorder %s64, %s80
    %p82 = scmp.eq.s32.totalorder %s30, 0
    %p83 = por %p81, %p82
    %s85 = sadd.s32 %s84, 1
    %p88 = scmp.eq.s32.totalorder %s24, 1
    %p89 = scmp.ne.s32.totalorder %s84, %s86
    %p90 = scmp.eq.s32.totalorder %s24, 0
    %p91 = por %p89, %p90
    %p92 = scmp.ne.s32.totalorder %s84, %s86
    %p93 = scmp.eq.s32.totalorder %s29, 1
    %p94 = por %p92, %p93
    %p95 = scmp.ne.s32.totalorder %s86, %s87
    %p96 = scmp.eq.s32.totalorder %s29, 0
    %p97 = por %p95, %p96
    %p98 = scmp.ne.s32.totalorder %s86, %s87
    %p99 = scmp.eq.s32.totalorder %s30, 1
    %p100 = por %p98, %p99
    %p102 = scmp.ne.s32.totalorder %s87, %s101
    %p103 = scmp.eq.s32.totalorder %s30, 0
    %p104 = por %p102, %p103
    %s106 = sadd.s32 %s105, 1
    %p109 = scmp.eq.s32.totalorder %s24, 1
    %p110 = scmp.ne.s32.totalorder %s105, %s107
    %p111 = scmp.eq.s32.totalorder %s24, 0
    %p112 = por %p110, %p111
    %p113 = scmp.ne.s32.totalorder %s105, %s107
    %p114 = scmp.eq.s32.totalorder %s29, 1
    %p115 = por %p113, %p114
    %p116 = scmp.ne.s32.totalorder %s107, %s108
    %p117 = scmp.eq.s32.totalorder %s29, 0
    %p118 = por %p116, %p117
    %p119 = scmp.ne.s32.totalorder %s107, %s108
    %p120 = scmp.eq.s32.totalorder %s30, 1
    %p121 = por %p119, %p120
    %p123 = scmp.ne.s32.totalorder %s108, %s122
    %p124 = scmp.eq.s32.totalorder %s30, 0
    %p125 = por %p123, %p124
    %s127 = sadd.s32 %s126, 1
    %p130 = scmp.eq.s32.totalorder %s24, 1
    %p131 = scmp.ne.s32.totalorder %s126, %s128
    %p132 = scmp.eq.s32.totalorder %s24, 0
    %p133 = por %p131, %p132
    %p134 = scmp.ne.s32.totalorder %s126, %s128
    %p135 = scmp.eq.s32.totalorder %s29, 1
    %p136 = por %p134, %p135
    %p137 = scmp.ne.s32.totalorder %s128, %s129
    %p138 = scmp.eq.s32.totalorder %s29, 0
    %p139 = por %p137, %p138
    %p140 = scmp.ne.s32.totalorder %s128, %s129
    %p141 = scmp.eq.s32.totalorder %s30, 1
    %p142 = por %p140, %p141
    %p144 = scmp.ne.s32.totalorder %s129, %s143
    %p145 = scmp.eq.s32.totalorder %s30, 0
    %p146 = por %p144, %p145
    %s148 = sadd.s32 %s147, 1
    %p151 = scmp.eq.s32.totalorder %s24, 1
    %p152 = scmp.ne.s32.totalorder %s147, %s149
    %p153 = scmp.eq.s32.totalorder %s24, 0
    %p154 = por %p152, %p153
    %p155 = scmp.ne.s32.totalorder %s147, %s149
    %p156 = scmp.eq.s32.totalorder %s29, 1
    %p157 = por %p155, %p156
    %p158 = scmp.ne.s32.totalorder %s149, %s150
    %p159 = scmp.eq.s32.totalorder %s29, 0
    %p160 = por %p158, %p159
    %p161 = scmp.ne.s32.totalorder %s149, %s150
    %p162 = scmp.eq.s32.totalorder %s30, 1
    %p163 = por %p161, %p162
    %p165 = scmp.ne.s32.totalorder %s150, %s164
    %p166 = scmp.eq.s32.totalorder %s30, 0
    %p167 = por %p165, %p166
    %s169 = sadd.s32 %s168, 1
    %p172 = scmp.eq.s32.totalorder %s24, 1
    %p173 = scmp.ne.s32.totalorder %s168, %s170
    %p174 = scmp.eq.s32.totalorder %s24, 0
    %p175 = por %p173, %p174
    %p176 = scmp.ne.s32.totalorder %s168, %s170
    %p177 = scmp.eq.s32.totalorder %s29, 1
    %p178 = por %p176, %p177
    %p179 = scmp.ne.s32.totalorder %s170, %s171
    %p180 = scmp.eq.s32.totalorder %s29, 0
    %p181 = por %p179, %p180
    %p182 = scmp.ne.s32.totalorder %s170, %s171
    %p183 = scmp.eq.s32.totalorder %s30, 1
    %p184 = por %p182, %p183
    %p186 = scmp.ne.s32.totalorder %s171, %s185
    %p187 = scmp.eq.s32.totalorder %s30, 0
    %p188 = por %p186, %p187
    %s190 = sadd.s32 %s189, 1
    %p193 = scmp.eq.s32.totalorder %s24, 1
    %p194 = scmp.ne.s32.totalorder %s189, %s191
    %p195 = scmp.eq.s32.totalorder %s24, 0
    %p196 = por %p194, %p195
    %p197 = scmp.ne.s32.totalorder %s189, %s191
    %p198 = scmp.eq.s32.totalorder %s29, 1
    %p199 = por %p197, %p198
    %p200 = scmp.ne.s32.totalorder %s191, %s192
    %p201 = scmp.eq.s32.totalorder %s29, 0
    %p202 = por %p200, %p201
    %p203 = scmp.ne.s32.totalorder %s191, %s192
    %p204 = scmp.eq.s32.totalorder %s30, 1
    %p205 = por %p203, %p204
    %p207 = scmp.ne.s32.totalorder %s192, %s206
    %p208 = scmp.eq.s32.totalorder %s30, 0
    %p209 = por %p207, %p208
    %s211 = sadd.s32 %s210, 1
    %p214 = scmp.eq.s32.totalorder %s24, 1
    %p215 = scmp.ne.s32.totalorder %s210, %s212
    %p216 = scmp.eq.s32.totalorder %s24, 0
    %p217 = por %p215, %p216
    %p218 = scmp.ne.s32.totalorder %s210, %s212
    %p219 = scmp.eq.s32.totalorder %s29, 1
    %p220 = por %p218, %p219
    %p221 = scmp.ne.s32.totalorder %s212, %s213
    %p222 = scmp.eq.s32.totalorder %s29, 0
    %p223 = por %p221, %p222
    %p224 = scmp.ne.s32.totalorder %s212, %s213
    %p225 = scmp.eq.s32.totalorder %s30, 1
    %p226 = por %p224, %p225
    %p228 = scmp.ne.s32.totalorder %s213, %s227
    %p229 = scmp.eq.s32.totalorder %s30, 0
    %p230 = por %p228, %p229
    %s232 = sadd.s32 %s231, 1
    %p235 = scmp.eq.s32.totalorder %s24, 1
    %p236 = scmp.ne.s32.totalorder %s231, %s233
    %p237 = scmp.eq.s32.totalorder %s24, 0
    %p238 = por %p236, %p237
    %p239 = scmp.ne.s32.totalorder %s231, %s233
    %p240 = scmp.eq.s32.totalorder %s29, 1
    %p241 = por %p239, %p240
    %p242 = scmp.ne.s32.totalorder %s233, %s234
    %p243 = scmp.eq.s32.totalorder %s29, 0
    %p244 = por %p242, %p243
    %p245 = scmp.ne.s32.totalorder %s233, %s234
    %p246 = scmp.eq.s32.totalorder %s30, 1
    %p247 = por %p245, %p246
    %p249 = scmp.ne.s32.totalorder %s234, %s248
    %p250 = scmp.eq.s32.totalorder %s30, 0
    %p251 = por %p249, %p250
    %s253 = sadd.s32 %s252, 1
    %p256 = scmp.eq.s32.totalorder %s24, 1
    %p257 = scmp.ne.s32.totalorder %s252, %s254
    %p258 = scmp.eq.s32.totalorder %s24, 0
    %p259 = por %p257, %p258
    %p260 = scmp.ne.s32.totalorder %s252, %s254
    %p261 = scmp.eq.s32.totalorder %s29, 1
    %p262 = por %p260, %p261
    %p263 = scmp.ne.s32.totalorder %s254, %s255
    %p264 = scmp.eq.s32.totalorder %s29, 0
    %p265 = por %p263, %p264
    %p266 = scmp.ne.s32.totalorder %s254, %s255
    %p267 = scmp.eq.s32.totalorder %s30, 1
    %p268 = por %p266, %p267
    %p270 = scmp.ne.s32.totalorder %s255, %s269
    %p271 = scmp.eq.s32.totalorder %s30, 0
    %p272 = por %p270, %p271
    %s274 = sadd.s32 %s273, 1
    %p277 = scmp.eq.s32.totalorder %s24, 1
    %p278 = scmp.ne.s32.totalorder %s273, %s275
    %p279 = scmp.eq.s32.totalorder %s24, 0
    %p280 = por %p278, %p279
    %p281 = scmp.ne.s32.totalorder %s273, %s275
    %p282 = scmp.eq.s32.totalorder %s29, 1
    %p283 = por %p281, %p282
    %p284 = scmp.ne.s32.totalorder %s275, %s276
    %p285 = scmp.eq.s32.totalorder %s29, 0
    %p286 = por %p284, %p285
    %p287 = scmp.ne.s32.totalorder %s275, %s276
    %p288 = scmp.eq.s32.totalorder %s30, 1
    %p289 = por %p287, %p288
    %p291 = scmp.ne.s32.totalorder %s276, %s290
    %p292 = scmp.eq.s32.totalorder %s30, 0
    %p293 = por %p291, %p292
    %s295 = sadd.s32 %s294, 1
    %p298 = scmp.eq.s32.totalorder %s24, 1
    %p299 = scmp.ne.s32.totalorder %s294, %s296
    %p300 = scmp.eq.s32.totalorder %s24, 0
    %p301 = por %p299, %p300
    %p302 = scmp.ne.s32.totalorder %s294, %s296
    %p303 = scmp.eq.s32.totalorder %s29, 1
    %p304 = por %p302, %p303
    %p305 = scmp.ne.s32.totalorder %s296, %s297
    %p306 = scmp.eq.s32.totalorder %s29, 0
    %p307 = por %p305, %p306
    %p308 = scmp.ne.s32.totalorder %s296, %s297
    %p309 = scmp.eq.s32.totalorder %s30, 1
    %p310 = por %p308, %p309
    %p312 = scmp.ne.s32.totalorder %s297, %s311
    %p313 = scmp.eq.s32.totalorder %s30, 0
    %p314 = por %p312, %p313
    %s316 = sadd.s32 %s315, 1
    %p319 = scmp.eq.s32.totalorder %s24, 1
    %p320 = scmp.ne.s32.totalorder %s315, %s317
    %p321 = scmp.eq.s32.totalorder %s24, 0
    %p322 = por %p320, %p321
    %p323 = scmp.ne.s32.totalorder %s315, %s317
    %p324 = scmp.eq.s32.totalorder %s29, 1
    %p325 = por %p323, %p324
    %p326 = scmp.ne.s32.totalorder %s317, %s318
    %p327 = scmp.eq.s32.totalorder %s29, 0
    %p328 = por %p326, %p327
    %p329 = scmp.ne.s32.totalorder %s317, %s318
    %p330 = scmp.eq.s32.totalorder %s30, 1
    %p331 = por %p329, %p330
    %p333 = scmp.ne.s32.totalorder %s318, %s332
    %p334 = scmp.eq.s32.totalorder %s30, 0
    %p335 = por %p333, %p334
    %s337 = sadd.s32 %s336, 1
    %p340 = scmp.eq.s32.totalorder %s24, 1
    %p341 = scmp.ne.s32.totalorder %s336, %s338
    %p342 = scmp.eq.s32.totalorder %s24, 0
    %p343 = por %p341, %p342
    %p344 = scmp.ne.s32.totalorder %s336, %s338
    %p345 = scmp.eq.s32.totalorder %s29, 1
    %p346 = por %p344, %p345
    %p347 = scmp.ne.s32.totalorder %s338, %s339
    %p348 = scmp.eq.s32.totalorder %s29, 0
    %p349 = por %p347, %p348
    %p350 = scmp.ne.s32.totalorder %s338, %s339
    %p351 = scmp.eq.s32.totalorder %s30, 1
    %p352 = por %p350, %p351
    %p354 = scmp.ne.s32.totalorder %s339, %s353
    %p355 = scmp.eq.s32.totalorder %s30, 0
    %p356 = por %p354, %p355
    %s358 = sadd.s32 %s357, 1
    %p361 = scmp.eq.s32.totalorder %s24, 1
    %p362 = scmp.ne.s32.totalorder %s357, %s359
    %p363 = scmp.eq.s32.totalorder %s24, 0
    %p364 = por %p362, %p363
    %p365 = scmp.ne.s32.totalorder %s357, %s359
    %p366 = scmp.eq.s32.totalorder %s29, 1
    %p367 = por %p365, %p366
    %p368 = scmp.ne.s32.totalorder %s359, %s360
    %p369 = scmp.eq.s32.totalorder %s29, 0
    %p370 = por %p368, %p369
    %p371 = scmp.ne.s32.totalorder %s359, %s360
    %p372 = scmp.eq.s32.totalorder %s30, 1
    %p373 = por %p371, %p372
    %p375 = scmp.ne.s32.totalorder %s360, %s374
    %p376 = scmp.eq.s32.totalorder %s30, 0
    %p377 = por %p375, %p376
    %s378 = ssub.s32 %s24, %s31
    %p379 = scmp.eq.s32.totalorder %s378, 0
    %s381 = sadd.s32 %s380, 1
    %s382 = scalar_select %p379, %s380, %s381
    %p385 = pneg %p379
    %p386 = scmp.eq.s32.totalorder %s24, 1
    %p387 = por %p385, %p386
    %p388 = scmp.ne.s32.totalorder %s380, %s383
    %p389 = scmp.eq.s32.totalorder %s24, 0
    %p390 = por %p388, %p389
    %p391 = scmp.ne.s32.totalorder %s380, %s383
    %p392 = scmp.eq.s32.totalorder %s29, 1
    %p393 = por %p391, %p392
    %p394 = scmp.ne.s32.totalorder %s383, %s384
    %p395 = scmp.eq.s32.totalorder %s29, 0
    %p396 = por %p394, %p395
    %p397 = scmp.ne.s32.totalorder %s383, %s384
    %p398 = scmp.eq.s32.totalorder %s30, 1
    %p399 = por %p397, %p398
    %p401 = scmp.ne.s32.totalorder %s384, %s400
    %p402 = scmp.eq.s32.totalorder %s30, 0
    %p403 = por %p401, %p402
    %s404 = ssub.s32 %s24, %s31
    %p405 = scmp.eq.s32.totalorder %s404, 0
    %s407 = sadd.s32 %s406, 1
    %s408 = scalar_select %p405, %s406, %s407
    %p411 = pneg %p405
    %p412 = scmp.eq.s32.totalorder %s24, 1
    %p413 = por %p411, %p412
    %p414 = scmp.ne.s32.totalorder %s406, %s409
    %p415 = scmp.eq.s32.totalorder %s24, 0
    %p416 = por %p414, %p415
    %p417 = scmp.ne.s32.totalorder %s406, %s409
    %p418 = scmp.eq.s32.totalorder %s29, 1
    %p419 = por %p417, %p418
    %p420 = scmp.ne.s32.totalorder %s409, %s410
    %p421 = scmp.eq.s32.totalorder %s29, 0
    %p422 = por %p420, %p421
    %p423 = scmp.ne.s32.totalorder %s409, %s410
    %p424 = scmp.eq.s32.totalorder %s30, 1
    %p425 = por %p423, %p424
    %p427 = scmp.ne.s32.totalorder %s410, %s426
    %p428 = scmp.eq.s32.totalorder %s30, 0
    %p429 = por %p427, %p428
    %p430 = scmp.le.s32.totalorder 1, %s24
    %p431 = scmp.lt.s32.totalorder %s24, 3
    %p432 = pnand %p430, %p431
    %p433 = pneg %p432
    // Predicated region
    $region9: #{sag_forward.3} parent=5 // pred_check
      _
    $region10: #{sag_forward.3} parent=5 // pred_check_branch
      %435 = sbr.rel (%p432) target = $region12
    $region11: #{sag_forward.3} parent=5 // pred_region
      %s436 = ssub.s32 %s24, 1
      // Predicated region
      $region13: #{sag_forward.3} parent=11 // pred_check
        %p437 = pneg %p97
      $region14: #{sag_forward.3} parent=11 // pred_check_branch
        %439 = sbr.rel (%p437) target = $region16
      $region15: #{sag_forward.3} parent=11 // pred_region
        _
      $region16: #{sag_forward.3} parent=11 // pred_fallthru
        _
      // Predicated region
      $region17: #{sag_forward.3} parent=11 // pred_check
        %p440 = pneg %p118
      $region18: #{sag_forward.3} parent=11 // pred_check_branch
        %442 = sbr.rel (%p440) target = $region20
      $region19: #{sag_forward.3} parent=11 // pred_region
        _
      $region20: #{sag_forward.3} parent=11 // pred_fallthru
        _
      // Predicated region
      $region21: #{sag_forward.3} parent=11 // pred_check
        %p443 = pneg %p139
      $region22: #{sag_forward.3} parent=11 // pred_check_branch
        %445 = sbr.rel (%p443) target = $region24
      $region23: #{sag_forward.3} parent=11 // pred_region
        _
      $region24: #{sag_forward.3} parent=11 // pred_fallthru
        _
      // Predicated region
      $region25: #{sag_forward.3} parent=11 // pred_check
        %p446 = pneg %p160
      $region26: #{sag_forward.3} parent=11 // pred_check_branch
        %448 = sbr.rel (%p446) target = $region28
      $region27: #{sag_forward.3} parent=11 // pred_region
        _
      $region28: #{sag_forward.3} parent=11 // pred_fallthru
        _
      // Predicated region
      $region29: #{sag_forward.3} parent=11 // pred_check
        %p449 = pneg %p181
      $region30: #{sag_forward.3} parent=11 // pred_check_branch
        %451 = sbr.rel (%p449) target = $region32
      $region31: #{sag_forward.3} parent=11 // pred_region
        _
      $region32: #{sag_forward.3} parent=11 // pred_fallthru
        _
      // Predicated region
      $region33: #{sag_forward.3} parent=11 // pred_check
        %p452 = pneg %p202
      $region34: #{sag_forward.3} parent=11 // pred_check_branch
        %454 = sbr.rel (%p452) target = $region36
      $region35: #{sag_forward.3} parent=11 // pred_region
        _
      $region36: #{sag_forward.3} parent=11 // pred_fallthru
        _
      // Predicated region
      $region37: #{sag_forward.3} parent=11 // pred_check
        %p455 = pneg %p223
      $region38: #{sag_forward.3} parent=11 // pred_check_branch
        %457 = sbr.rel (%p455) target = $region40
      $region39: #{sag_forward.3} parent=11 // pred_region
        _
      $region40: #{sag_forward.3} parent=11 // pred_fallthru
        _
      // Predicated region
      $region41: #{sag_forward.3} parent=11 // pred_check
        %p458 = pneg %p244
      $region42: #{sag_forward.3} parent=11 // pred_check_branch
        %460 = sbr.rel (%p458) target = $region44
      $region43: #{sag_forward.3} parent=11 // pred_region
        _
      $region44: #{sag_forward.3} parent=11 // pred_fallthru
        _
      // Predicated region
      $region45: #{sag_forward.3} parent=11 // pred_check
        %p461 = pneg %p265
      $region46: #{sag_forward.3} parent=11 // pred_check_branch
        %463 = sbr.rel (%p461) target = $region48
      $region47: #{sag_forward.3} parent=11 // pred_region
        _
      $region48: #{sag_forward.3} parent=11 // pred_fallthru
        _
      // Predicated region
      $region49: #{sag_forward.3} parent=11 // pred_check
        %p464 = pneg %p286
      $region50: #{sag_forward.3} parent=11 // pred_check_branch
        %466 = sbr.rel (%p464) target = $region52
      $region51: #{sag_forward.3} parent=11 // pred_region
        _
      $region52: #{sag_forward.3} parent=11 // pred_fallthru
        _
      // Predicated region
      $region53: #{sag_forward.3} parent=11 // pred_check
        %p467 = pneg %p307
      $region54: #{sag_forward.3} parent=11 // pred_check_branch
        %469 = sbr.rel (%p467) target = $region56
      $region55: #{sag_forward.3} parent=11 // pred_region
        _
      $region56: #{sag_forward.3} parent=11 // pred_fallthru
        _
      // Predicated region
      $region57: #{sag_forward.3} parent=11 // pred_check
        %p470 = pneg %p328
      $region58: #{sag_forward.3} parent=11 // pred_check_branch
        %472 = sbr.rel (%p470) target = $region60
      $region59: #{sag_forward.3} parent=11 // pred_region
        _
      $region60: #{sag_forward.3} parent=11 // pred_fallthru
        _
      // Predicated region
      $region61: #{sag_forward.3} parent=11 // pred_check
        %p473 = pneg %p349
      $region62: #{sag_forward.3} parent=11 // pred_check_branch
        %475 = sbr.rel (%p473) target = $region64
      $region63: #{sag_forward.3} parent=11 // pred_region
        _
      $region64: #{sag_forward.3} parent=11 // pred_fallthru
        _
      // Predicated region
      $region65: #{sag_forward.3} parent=11 // pred_check
        %p476 = pneg %p370
      $region66: #{sag_forward.3} parent=11 // pred_check_branch
        %478 = sbr.rel (%p476) target = $region68
      $region67: #{sag_forward.3} parent=11 // pred_region
        _
      $region68: #{sag_forward.3} parent=11 // pred_fallthru
        _
    $region12: #{sag_forward.3} parent=5 // pred_fallthru
      _
    %p479 = scmp.lt.s32.totalorder %s24, 2
    // Predicated region
    $region69: #{sag_forward.3} parent=5 // pred_check
      %p480 = pneg %p479
    $region70: #{sag_forward.3} parent=5 // pred_check_branch
      %482 = sbr.rel (%p480) target = $region72
    $region71: #{sag_forward.3} parent=5 // pred_region
      // Predicated region
      $region73: #{sag_forward.3} parent=71 // pred_check
        %p483 = pneg %p44
      $region74: #{sag_forward.3} parent=71 // pred_check_branch
        %485 = sbr.rel (%p483) target = $region76
      $region75: #{sag_forward.3} parent=71 // pred_region
        %s486 = smul.u32 4, %s24
        %p487 = scmp.lt.s32.totalorder %s486, 7
        %s488 = scalar_select %p487, %s486, 7
        %s489 = smul.addr %s488, 4
        %s490 = smul.addr %s489, 8
        %s491 = scalar_lea.vmem %s0, %s490
        %s492 = smul.u32 4, %s24
      $region76: #{sag_forward.3} parent=71 // pred_fallthru
        _
      // Predicated region
      $region77: #{sag_forward.3} parent=71 // pred_check
        %p493 = pneg %p70
      $region78: #{sag_forward.3} parent=71 // pred_check_branch
        %495 = sbr.rel (%p493) target = $region80
      $region79: #{sag_forward.3} parent=71 // pred_region
        %s496 = smul.u32 4, %s24
        %p497 = scmp.lt.s32.totalorder %s496, 7
        %s498 = scalar_select %p497, %s496, 7
        %s499 = smul.addr %s498, 4
        %s500 = scalar_lea.vmem %s1, %s499
        %s501 = smul.u32 4, %s24
      $region80: #{sag_forward.3} parent=71 // pred_fallthru
        _
    $region72: #{sag_forward.3} parent=5 // pred_fallthru
      _
    %p502 = scmp.le.s32.totalorder 1, %s24
    %p503 = scmp.lt.s32.totalorder %s24, 3
    %p504 = pnand %p502, %p503
    %p505 = pneg %p504
    // Predicated region
    $region81: #{sag_forward.3} parent=5 // pred_check
      _
    $region82: #{sag_forward.3} parent=5 // pred_check_branch
      %507 = sbr.rel (%p504) target = $region84
    $region83: #{sag_forward.3} parent=5 // pred_region
      %s508 = ssub.s32 %s24, 1
      %s509 = smul.u32 4, %s29
      %p510 = scmp.lt.s32.totalorder %s509, 7
      %s511 = scalar_select %p510, %s509, 7
      %s512 = smul.addr %s511, 4
      %s513 = smul.addr %s512, 8
      %s514 = scalar_lea.vmem %s0, %s513
      %p515 = pneg %p50
      %p516 = pneg %p47
      %s517 = smul.u32 4, %s29
      %p518 = scmp.lt.s32.totalorder %s517, 7
      %s519 = scalar_select %p518, %s517, 7
      %s520 = smul.addr %s519, 4
      %s521 = scalar_lea.vmem %s1, %s520
      %p522 = pneg %p76
      %p523 = pneg %p73
      %p524 = pneg %p97
      %p525 = pneg %p94
      %p526 = pneg %p118
      %p527 = pneg %p115
      %p528 = pneg %p139
      %p529 = pneg %p136
      %p530 = pneg %p160
      %p531 = pneg %p157
      %p532 = pneg %p181
      %p533 = pneg %p178
      %p534 = pneg %p202
      %p535 = pneg %p199
      %p536 = pneg %p223
      %p537 = pneg %p220
      %p538 = pneg %p244
      %p539 = pneg %p241
      %p540 = pneg %p265
      %p541 = pneg %p262
      %p542 = pneg %p286
      %p543 = pneg %p283
      %p544 = pneg %p307
      %p545 = pneg %p304
      %p546 = pneg %p328
      %p547 = pneg %p325
      %p548 = pneg %p349
      %p549 = pneg %p346
      %p550 = pneg %p370
      %p551 = pneg %p367
      %p552 = pneg %p396
      %p553 = pneg %p393
      %s554 = smul.u32 4, %s29
      %p555 = scmp.lt.s32.totalorder %s554, 7
      %s556 = scalar_select %p555, %s554, 7
      %s557 = smul.addr %s556, 8
      %s558 = scalar_lea.vmem %s16, %s557
      %p559 = pneg %p422
      %p560 = pneg %p419
      %s561 = smul.u32 4, %s29
      %p562 = scmp.lt.s32.totalorder %s561, 7
      %s563 = scalar_select %p562, %s561, 7
      %s564 = smul.addr %s563, 8
      %s565 = scalar_lea.vmem %s17, %s564
      %s566 = smul.u32 4, %s29
      %p567 = scmp.lt.s32.totalorder %s566, 7
      %s568 = scalar_select %p567, %s566, 7
      %s569 = smul.addr %s568, 4
      %s570 = smul.addr %s569, 8
      %s571 = scalar_lea.vmem %s0, %s570
      %s572 = smul.u32 4, %s29
      %s573 = smul.u32 4, %s29
      %p574 = scmp.lt.s32.totalorder %s573, 7
      %s575 = scalar_select %p574, %s573, 7
      %s576 = smul.addr %s575, 4
      %s577 = scalar_lea.vmem %s1, %s576
      %s578 = smul.u32 4, %s29
      %s579 = smul.u32 4, %s29
      %p580 = scmp.lt.s32.totalorder %s579, 7
      %s581 = scalar_select %p580, %s579, 7
      %s582 = smul.addr %s581, 8
      %s583 = scalar_lea.vmem %s16, %s582
      %s584 = smul.u32 4, %s29
      %s585 = smul.u32 4, %s29
      %p586 = scmp.lt.s32.totalorder %s585, 7
      %s587 = scalar_select %p586, %s585, 7
      %s588 = smul.addr %s587, 8
      %s589 = scalar_lea.vmem %s17, %s588
      %s590 = smul.u32 4, %s29
      %v592 = vld [vmem:[%s577] sm:$0xf]
      %v593 = vld [vmem:[%s577 + $0x4] sm:$0xf]
      %v594 = vld [vmem:[%s577 + $0x8] sm:$0xf]
      %v595 = vld [vmem:[%s577 + $0xc] sm:$0xf]
      %v596 = vld [vmem:[%s2] sm:$0xf]
      %v597 = vld [vmem:[%s2 + $0x4] sm:$0xf]
      %v598 = vld [vmem:[%s2 + $0x8] sm:$0xf]
      %v599 = vld [vmem:[%s2 + $0xc] sm:$0xf]
      %v600 = vld [vmem:[%s2 + $0x10] sm:$0xf]
      %v601 = vld [vmem:[%s2 + $0x14] sm:$0xf]
      %v602 = vld [vmem:[%s2 + $0x18] sm:$0xf]
      %v603 = vld [vmem:[%s2 + $0x1c] sm:$0xf]
      %v604 = vld [vmem:[%s3] sm:$0x1]
      %v606 = vperm.slane %v604, 0
      %v612 = vunpack.c.l.b16 %v592
      %v613 = vunpack.c.l.b16 %v593
      %v614 = vunpack.c.l.b16 %v594
      %v615 = vunpack.c.l.b16 %v595
      %v616 = vpack.c.b16 %v613, %v612
      %v617 = vpack.c.b16 %v615, %v614
      %v626 = vunpack.c.l.b16 %v596
      %v627 = vunpack.c.l.b16 %v597
      %v628 = vunpack.c.l.b16 %v598
      %v629 = vunpack.c.l.b16 %v599
      %v630 = vunpack.c.l.b16 %v600
      %v631 = vunpack.c.l.b16 %v601
      %v632 = vunpack.c.l.b16 %v602
      %v633 = vunpack.c.l.b16 %v603
      %v634 = vpack.c.b16 %v627, %v626
      %v635 = vpack.c.b16 %v629, %v628
      %v636 = vpack.c.b16 %v631, %v630
      %v637 = vpack.c.b16 %v633, %v632
      %vm642 = vcmask 523264
      %v644 = vsel %vm642, %v616, 0
      %v647 = vsel %vm642, %v617, 0
      %649 = vmatpush.bf16.msra.mxu0 0
      %650 = vmatpush.bf16.msra.mxu0 0
      %651 = vmatpush.bf16.msra.mxu0 0
      %652 = vmatpush.bf16.msra.mxu0 0
      %653 = vmatpush.bf16.msra.mxu0 %v637
      %654 = vmatpush.bf16.msra.mxu0 %v636
      %655 = vmatpush.bf16.msra.mxu0 %v635
      %656 = vmatpush.bf16.msra.mxu0 %v634
      %657 = vmatmul.bf16.gmra.mxu0 %v644
      %v658 = vpop.f32.mrf.mxu0
      %v659 = vadd.f32 %v606, %v658
      %v660 = vpop.f32.mrf.mxu0
      %v661 = vadd.f32 %v606, %v660
      %662 = vmatmul.bf16.gmra.mxu0 %v647
      %v663 = vpop.f32.mrf.mxu0
      %v664 = vadd.f32 %v606, %v663
      %v665 = vpop.f32.mrf.mxu0
      %v666 = vadd.f32 %v606, %v665
      %667 = vdwg.mxu0
      %vm668 = vcmp.gt.f32.partialorder %v659, 0.0
      %vm669 = vcmp.gt.f32.partialorder %v661, 0.0
      %vm670 = vcmp.gt.f32.partialorder %v664, 0.0
      %vm671 = vcmp.gt.f32.partialorder %v666, 0.0
      %v672 = vmul.f32 %v659, 0.01
      %v673 = vmul.f32 %v661, 0.01
      %v674 = vmul.f32 %v664, 0.01
      %v675 = vmul.f32 %v666, 0.01
      %v676 = vsel %vm668, %v659, %v672
      %v677 = vsel %vm669, %v661, %v673
      %v678 = vsel %vm670, %v664, %v674
      %v679 = vsel %vm671, %v666, %v675
      %v680 = vpack.c.bf16 %v677, %v676
      %v681 = vpack.c.bf16 %v679, %v678
      %v682 = vld [vmem:[%s4] sm:$0xff]
      %v683 = vld [vmem:[%s4 + $0x8] sm:$0xff]
      %v684 = vld [vmem:[%s4 + $0x10] sm:$0xff]
      %v685 = vld [vmem:[%s4 + $0x18] sm:$0xff]
      %v686 = vld [vmem:[%s4 + $0x20] sm:$0xff]
      %v687 = vld [vmem:[%s4 + $0x28] sm:$0xff]
      %v688 = vld [vmem:[%s4 + $0x30] sm:$0xff]
      %v689 = vld [vmem:[%s4 + $0x38] sm:$0xff]
      %v690 = vld [vmem:[%s4 + $0x40] sm:$0xff]
      %v691 = vld [vmem:[%s4 + $0x48] sm:$0xff]
      %v692 = vld [vmem:[%s4 + $0x50] sm:$0xff]
      %v693 = vld [vmem:[%s4 + $0x58] sm:$0xff]
      %v694 = vld [vmem:[%s4 + $0x60] sm:$0xff]
      %v695 = vld [vmem:[%s4 + $0x68] sm:$0xff]
      %v696 = vld [vmem:[%s4 + $0x70] sm:$0xff]
      %v697 = vld [vmem:[%s4 + $0x78] sm:$0xff]
      %v698 = vld [vmem:[%s5] sm:$0x3]
      %v700 = vperm.slane %v698, 0
      %v701 = vperm.slane %v698, 1
      %v720 = vunpack.c.l.b16 %v682
      %v721 = vunpack.c.h.b16 %v682
      %v722 = vunpack.c.l.b16 %v683
      %v723 = vunpack.c.h.b16 %v683
      %v724 = vunpack.c.l.b16 %v684
      %v725 = vunpack.c.h.b16 %v684
      %v726 = vunpack.c.l.b16 %v685
      %v727 = vunpack.c.h.b16 %v685
      %v728 = vunpack.c.l.b16 %v686
      %v729 = vunpack.c.h.b16 %v686
      %v730 = vunpack.c.l.b16 %v687
      %v731 = vunpack.c.h.b16 %v687
      %v732 = vunpack.c.l.b16 %v688
      %v733 = vunpack.c.h.b16 %v688
      %v734 = vunpack.c.l.b16 %v689
      %v735 = vunpack.c.h.b16 %v689
      %v736 = vunpack.c.l.b16 %v690
      %v737 = vunpack.c.h.b16 %v690
      %v738 = vunpack.c.l.b16 %v691
      %v739 = vunpack.c.h.b16 %v691
      %v740 = vunpack.c.l.b16 %v692
      %v741 = vunpack.c.h.b16 %v692
      %v742 = vunpack.c.l.b16 %v693
      %v743 = vunpack.c.h.b16 %v693
      %v744 = vunpack.c.l.b16 %v694
      %v745 = vunpack.c.h.b16 %v694
      %v746 = vunpack.c.l.b16 %v695
      %v747 = vunpack.c.h.b16 %v695
      %v748 = vunpack.c.l.b16 %v696
      %v749 = vunpack.c.h.b16 %v696
      %v750 = vunpack.c.l.b16 %v697
      %v751 = vunpack.c.h.b16 %v697
      %v752 = vpack.c.b16 %v722, %v720
      %v753 = vpack.c.b16 %v723, %v721
      %v754 = vpack.c.b16 %v726, %v724
      %v755 = vpack.c.b16 %v727, %v725
      %v756 = vpack.c.b16 %v730, %v728
      %v757 = vpack.c.b16 %v731, %v729
      %v758 = vpack.c.b16 %v734, %v732
      %v759 = vpack.c.b16 %v735, %v733
      %v760 = vpack.c.b16 %v738, %v736
      %v761 = vpack.c.b16 %v739, %v737
      %v762 = vpack.c.b16 %v742, %v740
      %v763 = vpack.c.b16 %v743, %v741
      %v764 = vpack.c.b16 %v746, %v744
      %v765 = vpack.c.b16 %v747, %v745
      %v766 = vpack.c.b16 %v750, %v748
      %v767 = vpack.c.b16 %v751, %v749
      %784 = vmatpush.bf16.msra.mxu0 %v766
      %785 = vmatpush.bf16.msra.mxu0 %v764
      %786 = vmatpush.bf16.msra.mxu0 %v762
      %787 = vmatpush.bf16.msra.mxu0 %v760
      %788 = vmatpush.bf16.msra.mxu0 %v758
      %789 = vmatpush.bf16.msra.mxu0 %v756
      %790 = vmatpush.bf16.msra.mxu0 %v754
      %791 = vmatpush.bf16.msra.mxu0 %v752
      %792 = vmatmul.bf16.gmra.mxu0 %v680
      %v793 = vpop.f32.mrf.mxu0
      %v794 = vadd.f32 %v700, %v793
      %v795 = vpop.f32.mrf.mxu0
      %v796 = vadd.f32 %v700, %v795
      %797 = vmatmul.bf16.gmra.mxu0 %v681
      %v798 = vpop.f32.mrf.mxu0
      %v799 = vadd.f32 %v700, %v798
      %v800 = vpop.f32.mrf.mxu0
      %v801 = vadd.f32 %v700, %v800
      %802 = vdwg.mxu0
      %803 = vmatpush.bf16.msra.mxu0 %v767
      %804 = vmatpush.bf16.msra.mxu0 %v765
      %805 = vmatpush.bf16.msra.mxu0 %v763
      %806 = vmatpush.bf16.msra.mxu0 %v761
      %807 = vmatpush.bf16.msra.mxu0 %v759
      %808 = vmatpush.bf16.msra.mxu0 %v757
      %809 = vmatpush.bf16.msra.mxu0 %v755
      %810 = vmatpush.bf16.msra.mxu0 %v753
      %811 = vmatmul.bf16.gmra.mxu0 %v680
      %v812 = vpop.f32.mrf.mxu0
      %v813 = vadd.f32 %v701, %v812
      %v814 = vpop.f32.mrf.mxu0
      %v815 = vadd.f32 %v701, %v814
      %816 = vmatmul.bf16.gmra.mxu0 %v681
      %v817 = vpop.f32.mrf.mxu0
      %v818 = vadd.f32 %v701, %v817
      %v819 = vpop.f32.mrf.mxu0
      %v820 = vadd.f32 %v701, %v819
      %821 = vdwg.mxu0
      %vm822 = vcmp.gt.f32.partialorder %v794, 0.0
      %vm823 = vcmp.gt.f32.partialorder %v813, 0.0
      %vm824 = vcmp.gt.f32.partialorder %v796, 0.0
      %vm825 = vcmp.gt.f32.partialorder %v815, 0.0
      %vm826 = vcmp.gt.f32.partialorder %v799, 0.0
      %vm827 = vcmp.gt.f32.partialorder %v818, 0.0
      %vm828 = vcmp.gt.f32.partialorder %v801, 0.0
      %vm829 = vcmp.gt.f32.partialorder %v820, 0.0
      %v830 = vmul.f32 %v794, 0.01
      %v831 = vmul.f32 %v813, 0.01
      %v832 = vmul.f32 %v796, 0.01
      %v833 = vmul.f32 %v815, 0.01
      %v834 = vmul.f32 %v799, 0.01
      %v835 = vmul.f32 %v818, 0.01
      %v836 = vmul.f32 %v801, 0.01
      %v837 = vmul.f32 %v820, 0.01
      %v838 = vsel %vm822, %v794, %v830
      %v839 = vsel %vm823, %v813, %v831
      %v840 = vsel %vm824, %v796, %v832
      %v841 = vsel %vm825, %v815, %v833
      %v842 = vsel %vm826, %v799, %v834
      %v843 = vsel %vm827, %v818, %v835
      %v844 = vsel %vm828, %v801, %v836
      %v845 = vsel %vm829, %v820, %v837
      %v846 = vpack.c.bf16 %v840, %v838
      %v847 = vpack.c.bf16 %v841, %v839
      %v848 = vpack.c.bf16 %v844, %v842
      %v849 = vpack.c.bf16 %v845, %v843
      %v850 = vld [vmem:[%s6] sm:$0xff]
      %v851 = vld [vmem:[%s6 + $0x8] sm:$0xff]
      %v852 = vld [vmem:[%s6 + $0x10] sm:$0xff]
      %v853 = vld [vmem:[%s6 + $0x18] sm:$0xff]
      %v854 = vld [vmem:[%s6 + $0x20] sm:$0xff]
      %v855 = vld [vmem:[%s6 + $0x28] sm:$0xff]
      %v856 = vld [vmem:[%s6 + $0x30] sm:$0xff]
      %v857 = vld [vmem:[%s6 + $0x38] sm:$0xff]
      %v858 = vld [vmem:[%s6 + $0x40] sm:$0xff]
      %v859 = vld [vmem:[%s6 + $0x48] sm:$0xff]
      %v860 = vld [vmem:[%s6 + $0x50] sm:$0xff]
      %v861 = vld [vmem:[%s6 + $0x58] sm:$0xff]
      %v862 = vld [vmem:[%s6 + $0x60] sm:$0xff]
      %v863 = vld [vmem:[%s6 + $0x68] sm:$0xff]
      %v864 = vld [vmem:[%s6 + $0x70] sm:$0xff]
      %v865 = vld [vmem:[%s6 + $0x78] sm:$0xff]
      %v866 = vld [vmem:[%s6 + $0x80] sm:$0xff]
      %v867 = vld [vmem:[%s6 + $0x88] sm:$0xff]
      %v868 = vld [vmem:[%s6 + $0x90] sm:$0xff]
      %v869 = vld [vmem:[%s6 + $0x98] sm:$0xff]
      %v870 = vld [vmem:[%s6 + $0xa0] sm:$0xff]
      %v871 = vld [vmem:[%s6 + $0xa8] sm:$0xff]
      %v872 = vld [vmem:[%s6 + $0xb0] sm:$0xff]
      %v873 = vld [vmem:[%s6 + $0xb8] sm:$0xff]
      %v874 = vld [vmem:[%s6 + $0xc0] sm:$0xff]
      %v875 = vld [vmem:[%s6 + $0xc8] sm:$0xff]
      %v876 = vld [vmem:[%s6 + $0xd0] sm:$0xff]
      %v877 = vld [vmem:[%s6 + $0xd8] sm:$0xff]
      %v878 = vld [vmem:[%s6 + $0xe0] sm:$0xff]
      %v879 = vld [vmem:[%s6 + $0xe8] sm:$0xff]
      %v880 = vld [vmem:[%s6 + $0xf0] sm:$0xff]
      %v881 = vld [vmem:[%s6 + $0xf8] sm:$0xff]
      %v882 = vld [vmem:[%s6 + $0x100] sm:$0xff]
      %v883 = vld [vmem:[%s6 + $0x108] sm:$0xff]
      %v884 = vld [vmem:[%s6 + $0x110] sm:$0xff]
      %v885 = vld [vmem:[%s6 + $0x118] sm:$0xff]
      %v886 = vld [vmem:[%s6 + $0x120] sm:$0xff]
      %v887 = vld [vmem:[%s6 + $0x128] sm:$0xff]
      %v888 = vld [vmem:[%s6 + $0x130] sm:$0xff]
      %v889 = vld [vmem:[%s6 + $0x138] sm:$0xff]
      %v890 = vld [vmem:[%s6 + $0x140] sm:$0xff]
      %v891 = vld [vmem:[%s6 + $0x148] sm:$0xff]
      %v892 = vld [vmem:[%s6 + $0x150] sm:$0xff]
      %v893 = vld [vmem:[%s6 + $0x158] sm:$0xff]
      %v894 = vld [vmem:[%s6 + $0x160] sm:$0xff]
      %v895 = vld [vmem:[%s6 + $0x168] sm:$0xff]
      %v896 = vld [vmem:[%s6 + $0x170] sm:$0xff]
      %v897 = vld [vmem:[%s6 + $0x178] sm:$0xff]
      %v898 = vld [vmem:[%s6 + $0x180] sm:$0xff]
      %v899 = vld [vmem:[%s6 + $0x188] sm:$0xff]
      %v900 = vld [vmem:[%s6 + $0x190] sm:$0xff]
      %v901 = vld [vmem:[%s6 + $0x198] sm:$0xff]
      %v902 = vld [vmem:[%s6 + $0x1a0] sm:$0xff]
      %v903 = vld [vmem:[%s6 + $0x1a8] sm:$0xff]
      %v904 = vld [vmem:[%s6 + $0x1b0] sm:$0xff]
      %v905 = vld [vmem:[%s6 + $0x1b8] sm:$0xff]
      %v906 = vld [vmem:[%s6 + $0x1c0] sm:$0xff]
      %v907 = vld [vmem:[%s6 + $0x1c8] sm:$0xff]
      %v908 = vld [vmem:[%s6 + $0x1d0] sm:$0xff]
      %v909 = vld [vmem:[%s6 + $0x1d8] sm:$0xff]
      %v910 = vld [vmem:[%s6 + $0x1e0] sm:$0xff]
      %v911 = vld [vmem:[%s6 + $0x1e8] sm:$0xff]
      %v912 = vld [vmem:[%s6 + $0x1f0] sm:$0xff]
      %v913 = vld [vmem:[%s6 + $0x1f8] sm:$0xff]
      %v914 = vld [vmem:[%s7] sm:$0xf]
      %v916 = vperm.slane %v914, 0
      %v917 = vperm.slane %v914, 1
      %v918 = vperm.slane %v914, 2
      %v919 = vperm.slane %v914, 3
      %v988 = vunpack.c.l.b16 %v850
      %v989 = vunpack.c.h.b16 %v850
      %v990 = vunpack.c.l.b16 %v851
      %v991 = vunpack.c.h.b16 %v851
      %v992 = vunpack.c.l.b16 %v852
      %v993 = vunpack.c.h.b16 %v852
      %v994 = vunpack.c.l.b16 %v853
      %v995 = vunpack.c.h.b16 %v853
      %v996 = vunpack.c.l.b16 %v854
      %v997 = vunpack.c.h.b16 %v854
      %v998 = vunpack.c.l.b16 %v855
      %v999 = vunpack.c.h.b16 %v855
      %v1000 = vunpack.c.l.b16 %v856
      %v1001 = vunpack.c.h.b16 %v856
      %v1002 = vunpack.c.l.b16 %v857
      %v1003 = vunpack.c.h.b16 %v857
      %v1004 = vunpack.c.l.b16 %v858
      %v1005 = vunpack.c.h.b16 %v858
      %v1006 = vunpack.c.l.b16 %v859
      %v1007 = vunpack.c.h.b16 %v859
      %v1008 = vunpack.c.l.b16 %v860
      %v1009 = vunpack.c.h.b16 %v860
      %v1010 = vunpack.c.l.b16 %v861
      %v1011 = vunpack.c.h.b16 %v861
      %v1012 = vunpack.c.l.b16 %v862
      %v1013 = vunpack.c.h.b16 %v862
      %v1014 = vunpack.c.l.b16 %v863
      %v1015 = vunpack.c.h.b16 %v863
      %v1016 = vunpack.c.l.b16 %v864
      %v1017 = vunpack.c.h.b16 %v864
      %v1018 = vunpack.c.l.b16 %v865
      %v1019 = vunpack.c.h.b16 %v865
      %v1020 = vunpack.c.l.b16 %v866
      %v1021 = vunpack.c.h.b16 %v866
      %v1022 = vunpack.c.l.b16 %v867
      %v1023 = vunpack.c.h.b16 %v867
      %v1024 = vunpack.c.l.b16 %v868
      %v1025 = vunpack.c.h.b16 %v868
      %v1026 = vunpack.c.l.b16 %v869
      %v1027 = vunpack.c.h.b16 %v869
      %v1028 = vunpack.c.l.b16 %v870
      %v1029 = vunpack.c.h.b16 %v870
      %v1030 = vunpack.c.l.b16 %v871
      %v1031 = vunpack.c.h.b16 %v871
      %v1032 = vunpack.c.l.b16 %v872
      %v1033 = vunpack.c.h.b16 %v872
      %v1034 = vunpack.c.l.b16 %v873
      %v1035 = vunpack.c.h.b16 %v873
      %v1036 = vunpack.c.l.b16 %v874
      %v1037 = vunpack.c.h.b16 %v874
      %v1038 = vunpack.c.l.b16 %v875
      %v1039 = vunpack.c.h.b16 %v875
      %v1040 = vunpack.c.l.b16 %v876
      %v1041 = vunpack.c.h.b16 %v876
      %v1042 = vunpack.c.l.b16 %v877
      %v1043 = vunpack.c.h.b16 %v877
      %v1044 = vunpack.c.l.b16 %v878
      %v1045 = vunpack.c.h.b16 %v878
      %v1046 = vunpack.c.l.b16 %v879
      %v1047 = vunpack.c.h.b16 %v879
      %v1048 = vunpack.c.l.b16 %v880
      %v1049 = vunpack.c.h.b16 %v880
      %v1050 = vunpack.c.l.b16 %v881
      %v1051 = vunpack.c.h.b16 %v881
      %v1052 = vunpack.c.l.b16 %v882
      %v1053 = vunpack.c.h.b16 %v882
      %v1054 = vunpack.c.l.b16 %v883
      %v1055 = vunpack.c.h.b16 %v883
      %v1056 = vunpack.c.l.b16 %v884
      %v1057 = vunpack.c.h.b16 %v884
      %v1058 = vunpack.c.l.b16 %v885
      %v1059 = vunpack.c.h.b16 %v885
      %v1060 = vunpack.c.l.b16 %v886
      %v1061 = vunpack.c.h.b16 %v886
      %v1062 = vunpack.c.l.b16 %v887
      %v1063 = vunpack.c.h.b16 %v887
      %v1064 = vunpack.c.l.b16 %v888
      %v1065 = vunpack.c.h.b16 %v888
      %v1066 = vunpack.c.l.b16 %v889
      %v1067 = vunpack.c.h.b16 %v889
      %v1068 = vunpack.c.l.b16 %v890
      %v1069 = vunpack.c.h.b16 %v890
      %v1070 = vunpack.c.l.b16 %v891
      %v1071 = vunpack.c.h.b16 %v891
      %v1072 = vunpack.c.l.b16 %v892
      %v1073 = vunpack.c.h.b16 %v892
      %v1074 = vunpack.c.l.b16 %v893
      %v1075 = vunpack.c.h.b16 %v893
      %v1076 = vunpack.c.l.b16 %v894
      %v1077 = vunpack.c.h.b16 %v894
      %v1078 = vunpack.c.l.b16 %v895
      %v1079 = vunpack.c.h.b16 %v895
      %v1080 = vunpack.c.l.b16 %v896
      %v1081 = vunpack.c.h.b16 %v896
      %v1082 = vunpack.c.l.b16 %v897
      %v1083 = vunpack.c.h.b16 %v897
      %v1084 = vunpack.c.l.b16 %v898
      %v1085 = vunpack.c.h.b16 %v898
      %v1086 = vunpack.c.l.b16 %v899
      %v1087 = vunpack.c.h.b16 %v899
      %v1088 = vunpack.c.l.b16 %v900
      %v1089 = vunpack.c.h.b16 %v900
      %v1090 = vunpack.c.l.b16 %v901
      %v1091 = vunpack.c.h.b16 %v901
      %v1092 = vunpack.c.l.b16 %v902
      %v1093 = vunpack.c.h.b16 %v902
      %v1094 = vunpack.c.l.b16 %v903
      %v1095 = vunpack.c.h.b16 %v903
      %v1096 = vunpack.c.l.b16 %v904
      %v1097 = vunpack.c.h.b16 %v904
      %v1098 = vunpack.c.l.b16 %v905
      %v1099 = vunpack.c.h.b16 %v905
      %v1100 = vunpack.c.l.b16 %v906
      %v1101 = vunpack.c.h.b16 %v906
      %v1102 = vunpack.c.l.b16 %v907
      %v1103 = vunpack.c.h.b16 %v907
      %v1104 = vunpack.c.l.b16 %v908
      %v1105 = vunpack.c.h.b16 %v908
      %v1106 = vunpack.c.l.b16 %v909
      %v1107 = vunpack.c.h.b16 %v909
      %v1108 = vunpack.c.l.b16 %v910
      %v1109 = vunpack.c.h.b16 %v910
      %v1110 = vunpack.c.l.b16 %v911
      %v1111 = vunpack.c.h.b16 %v911
      %v1112 = vunpack.c.l.b16 %v912
      %v1113 = vunpack.c.h.b16 %v912
      %v1114 = vunpack.c.l.b16 %v913
      %v1115 = vunpack.c.h.b16 %v913
      %v1116 = vpack.c.b16 %v992, %v988
      %v1117 = vpack.c.b16 %v993, %v989
      %v1118 = vpack.c.b16 %v994, %v990
      %v1119 = vpack.c.b16 %v995, %v991
      %v1120 = vpack.c.b16 %v1000, %v996
      %v1121 = vpack.c.b16 %v1001, %v997
      %v1122 = vpack.c.b16 %v1002, %v998
      %v1123 = vpack.c.b16 %v1003, %v999
      %v1124 = vpack.c.b16 %v1008, %v1004
      %v1125 = vpack.c.b16 %v1009, %v1005
      %v1126 = vpack.c.b16 %v1010, %v1006
      %v1127 = vpack.c.b16 %v1011, %v1007
      %v1128 = vpack.c.b16 %v1016, %v1012
      %v1129 = vpack.c.b16 %v1017, %v1013
      %v1130 = vpack.c.b16 %v1018, %v1014
      %v1131 = vpack.c.b16 %v1019, %v1015
      %v1132 = vpack.c.b16 %v1024, %v1020
      %v1133 = vpack.c.b16 %v1025, %v1021
      %v1134 = vpack.c.b16 %v1026, %v1022
      %v1135 = vpack.c.b16 %v1027, %v1023
      %v1136 = vpack.c.b16 %v1032, %v1028
      %v1137 = vpack.c.b16 %v1033, %v1029
      %v1138 = vpack.c.b16 %v1034, %v1030
      %v1139 = vpack.c.b16 %v1035, %v1031
      %v1140 = vpack.c.b16 %v1040, %v1036
      %v1141 = vpack.c.b16 %v1041, %v1037
      %v1142 = vpack.c.b16 %v1042, %v1038
      %v1143 = vpack.c.b16 %v1043, %v1039
      %v1144 = vpack.c.b16 %v1048, %v1044
      %v1145 = vpack.c.b16 %v1049, %v1045
      %v1146 = vpack.c.b16 %v1050, %v1046
      %v1147 = vpack.c.b16 %v1051, %v1047
      %v1148 = vpack.c.b16 %v1056, %v1052
      %v1149 = vpack.c.b16 %v1057, %v1053
      %v1150 = vpack.c.b16 %v1058, %v1054
      %v1151 = vpack.c.b16 %v1059, %v1055
      %v1152 = vpack.c.b16 %v1064, %v1060
      %v1153 = vpack.c.b16 %v1065, %v1061
      %v1154 = vpack.c.b16 %v1066, %v1062
      %v1155 = vpack.c.b16 %v1067, %v1063
      %v1156 = vpack.c.b16 %v1072, %v1068
      %v1157 = vpack.c.b16 %v1073, %v1069
      %v1158 = vpack.c.b16 %v1074, %v1070
      %v1159 = vpack.c.b16 %v1075, %v1071
      %v1160 = vpack.c.b16 %v1080, %v1076
      %v1161 = vpack.c.b16 %v1081, %v1077
      %v1162 = vpack.c.b16 %v1082, %v1078
      %v1163 = vpack.c.b16 %v1083, %v1079
      %v1164 = vpack.c.b16 %v1088, %v1084
      %v1165 = vpack.c.b16 %v1089, %v1085
      %v1166 = vpack.c.b16 %v1090, %v1086
      %v1167 = vpack.c.b16 %v1091, %v1087
      %v1168 = vpack.c.b16 %v1096, %v1092
      %v1169 = vpack.c.b16 %v1097, %v1093
      %v1170 = vpack.c.b16 %v1098, %v1094
      %v1171 = vpack.c.b16 %v1099, %v1095
      %v1172 = vpack.c.b16 %v1104, %v1100
      %v1173 = vpack.c.b16 %v1105, %v1101
      %v1174 = vpack.c.b16 %v1106, %v1102
      %v1175 = vpack.c.b16 %v1107, %v1103
      %v1176 = vpack.c.b16 %v1112, %v1108
      %v1177 = vpack.c.b16 %v1113, %v1109
      %v1178 = vpack.c.b16 %v1114, %v1110
      %v1179 = vpack.c.b16 %v1115, %v1111
      %1244 = vmatpush.bf16.msra.mxu0 %v1144
      %1245 = vmatpush.bf16.msra.mxu0 %v1140
      %1246 = vmatpush.bf16.msra.mxu0 %v1136
      %1247 = vmatpush.bf16.msra.mxu0 %v1132
      %1248 = vmatpush.bf16.msra.mxu0 %v1128
      %1249 = vmatpush.bf16.msra.mxu0 %v1124
      %1250 = vmatpush.bf16.msra.mxu0 %v1120
      %1251 = vmatpush.bf16.msra.mxu0 %v1116
      %1252 = vmatmul.bf16.gmra.mxu0 %v846
      %v1253 = vpop.f32.mrf.mxu0
      %v1254 = vadd.f32 %v916, %v1253
      %v1255 = vpop.f32.mrf.mxu0
      %v1256 = vadd.f32 %v916, %v1255
      %1257 = vmatmul.bf16.gmra.mxu0 %v848
      %v1258 = vpop.f32.mrf.mxu0
      %v1259 = vadd.f32 %v916, %v1258
      %v1260 = vpop.f32.mrf.mxu0
      %v1261 = vadd.f32 %v916, %v1260
      %1262 = vdwg.mxu0
      %1263 = vmatpush.bf16.msra.mxu0 %v1176
      %1264 = vmatpush.bf16.msra.mxu0 %v1172
      %1265 = vmatpush.bf16.msra.mxu0 %v1168
      %1266 = vmatpush.bf16.msra.mxu0 %v1164
      %1267 = vmatpush.bf16.msra.mxu0 %v1160
      %1268 = vmatpush.bf16.msra.mxu0 %v1156
      %1269 = vmatpush.bf16.msra.mxu0 %v1152
      %1270 = vmatpush.bf16.msra.mxu0 %v1148
      %1271 = vmatmul.bf16.gmra.mxu0 %v847
      %v1272 = vpop.f32.mrf.mxu0
      %v1273 = vadd.f32 %v1254, %v1272
      %v1274 = vpop.f32.mrf.mxu0
      %v1275 = vadd.f32 %v1256, %v1274
      %1276 = vmatmul.bf16.gmra.mxu0 %v849
      %v1277 = vpop.f32.mrf.mxu0
      %v1278 = vadd.f32 %v1259, %v1277
      %v1279 = vpop.f32.mrf.mxu0
      %v1280 = vadd.f32 %v1261, %v1279
      %1281 = vdwg.mxu0
      %1282 = vmatpush.bf16.msra.mxu0 %v1145
      %1283 = vmatpush.bf16.msra.mxu0 %v1141
      %1284 = vmatpush.bf16.msra.mxu0 %v1137
      %1285 = vmatpush.bf16.msra.mxu0 %v1133
      %1286 = vmatpush.bf16.msra.mxu0 %v1129
      %1287 = vmatpush.bf16.msra.mxu0 %v1125
      %1288 = vmatpush.bf16.msra.mxu0 %v1121
      %1289 = vmatpush.bf16.msra.mxu0 %v1117
      %1290 = vmatmul.bf16.gmra.mxu0 %v846
      %v1291 = vpop.f32.mrf.mxu0
      %v1292 = vadd.f32 %v917, %v1291
      %v1293 = vpop.f32.mrf.mxu0
      %v1294 = vadd.f32 %v917, %v1293
      %1295 = vmatmul.bf16.gmra.mxu0 %v848
      %v1296 = vpop.f32.mrf.mxu0
      %v1297 = vadd.f32 %v917, %v1296
      %v1298 = vpop.f32.mrf.mxu0
      %v1299 = vadd.f32 %v917, %v1298
      %1300 = vdwg.mxu0
      %1301 = vmatpush.bf16.msra.mxu0 %v1177
      %1302 = vmatpush.bf16.msra.mxu0 %v1173
      %1303 = vmatpush.bf16.msra.mxu0 %v1169
      %1304 = vmatpush.bf16.msra.mxu0 %v1165
      %1305 = vmatpush.bf16.msra.mxu0 %v1161
      %1306 = vmatpush.bf16.msra.mxu0 %v1157
      %1307 = vmatpush.bf16.msra.mxu0 %v1153
      %1308 = vmatpush.bf16.msra.mxu0 %v1149
      %1309 = vmatmul.bf16.gmra.mxu0 %v847
      %v1310 = vpop.f32.mrf.mxu0
      %v1311 = vadd.f32 %v1292, %v1310
      %v1312 = vpop.f32.mrf.mxu0
      %v1313 = vadd.f32 %v1294, %v1312
      %1314 = vmatmul.bf16.gmra.mxu0 %v849
      %v1315 = vpop.f32.mrf.mxu0
      %v1316 = vadd.f32 %v1297, %v1315
      %v1317 = vpop.f32.mrf.mxu0
      %v1318 = vadd.f32 %v1299, %v1317
      %1319 = vdwg.mxu0
      %1320 = vmatpush.bf16.msra.mxu0 %v1146
      %1321 = vmatpush.bf16.msra.mxu0 %v1142
      %1322 = vmatpush.bf16.msra.mxu0 %v1138
      %1323 = vmatpush.bf16.msra.mxu0 %v1134
      %1324 = vmatpush.bf16.msra.mxu0 %v1130
      %1325 = vmatpush.bf16.msra.mxu0 %v1126
      %1326 = vmatpush.bf16.msra.mxu0 %v1122
      %1327 = vmatpush.bf16.msra.mxu0 %v1118
      %1328 = vmatmul.bf16.gmra.mxu0 %v846
      %v1329 = vpop.f32.mrf.mxu0
      %v1330 = vadd.f32 %v918, %v1329
      %v1331 = vpop.f32.mrf.mxu0
      %v1332 = vadd.f32 %v918, %v1331
      %1333 = vmatmul.bf16.gmra.mxu0 %v848
      %v1334 = vpop.f32.mrf.mxu0
      %v1335 = vadd.f32 %v918, %v1334
      %v1336 = vpop.f32.mrf.mxu0
      %v1337 = vadd.f32 %v918, %v1336
      %1338 = vdwg.mxu0
      %1339 = vmatpush.bf16.msra.mxu0 %v1178
      %1340 = vmatpush.bf16.msra.mxu0 %v1174
      %1341 = vmatpush.bf16.msra.mxu0 %v1170
      %1342 = vmatpush.bf16.msra.mxu0 %v1166
      %1343 = vmatpush.bf16.msra.mxu0 %v1162
      %1344 = vmatpush.bf16.msra.mxu0 %v1158
      %1345 = vmatpush.bf16.msra.mxu0 %v1154
      %1346 = vmatpush.bf16.msra.mxu0 %v1150
      %1347 = vmatmul.bf16.gmra.mxu0 %v847
      %v1348 = vpop.f32.mrf.mxu0
      %v1349 = vadd.f32 %v1330, %v1348
      %v1350 = vpop.f32.mrf.mxu0
      %v1351 = vadd.f32 %v1332, %v1350
      %1352 = vmatmul.bf16.gmra.mxu0 %v849
      %v1353 = vpop.f32.mrf.mxu0
      %v1354 = vadd.f32 %v1335, %v1353
      %v1355 = vpop.f32.mrf.mxu0
      %v1356 = vadd.f32 %v1337, %v1355
      %1357 = vdwg.mxu0
      %1358 = vmatpush.bf16.msra.mxu0 %v1147
      %1359 = vmatpush.bf16.msra.mxu0 %v1143
      %1360 = vmatpush.bf16.msra.mxu0 %v1139
      %1361 = vmatpush.bf16.msra.mxu0 %v1135
      %1362 = vmatpush.bf16.msra.mxu0 %v1131
      %1363 = vmatpush.bf16.msra.mxu0 %v1127
      %1364 = vmatpush.bf16.msra.mxu0 %v1123
      %1365 = vmatpush.bf16.msra.mxu0 %v1119
      %1366 = vmatmul.bf16.gmra.mxu0 %v846
      %v1367 = vpop.f32.mrf.mxu0
      %v1368 = vadd.f32 %v919, %v1367
      %v1369 = vpop.f32.mrf.mxu0
      %v1370 = vadd.f32 %v919, %v1369
      %1371 = vmatmul.bf16.gmra.mxu0 %v848
      %v1372 = vpop.f32.mrf.mxu0
      %v1373 = vadd.f32 %v919, %v1372
      %v1374 = vpop.f32.mrf.mxu0
      %v1375 = vadd.f32 %v919, %v1374
      %1376 = vdwg.mxu0
      %1377 = vmatpush.bf16.msra.mxu0 %v1179
      %1378 = vmatpush.bf16.msra.mxu0 %v1175
      %1379 = vmatpush.bf16.msra.mxu0 %v1171
      %1380 = vmatpush.bf16.msra.mxu0 %v1167
      %1381 = vmatpush.bf16.msra.mxu0 %v1163
      %1382 = vmatpush.bf16.msra.mxu0 %v1159
      %1383 = vmatpush.bf16.msra.mxu0 %v1155
      %1384 = vmatpush.bf16.msra.mxu0 %v1151
      %1385 = vmatmul.bf16.gmra.mxu0 %v847
      %v1386 = vpop.f32.mrf.mxu0
      %v1387 = vadd.f32 %v1368, %v1386
      %v1388 = vpop.f32.mrf.mxu0
      %v1389 = vadd.f32 %v1370, %v1388
      %1390 = vmatmul.bf16.gmra.mxu0 %v849
      %v1391 = vpop.f32.mrf.mxu0
      %v1392 = vadd.f32 %v1373, %v1391
      %v1393 = vpop.f32.mrf.mxu0
      %v1394 = vadd.f32 %v1375, %v1393
      %1395 = vdwg.mxu0
      %v1396 = vxor.u32 %v1273, 2147483648
      %v1397 = vxor.u32 %v1311, 2147483648
      %v1398 = vxor.u32 %v1349, 2147483648
      %v1399 = vxor.u32 %v1387, 2147483648
      %v1400 = vxor.u32 %v1275, 2147483648
      %v1401 = vxor.u32 %v1313, 2147483648
      %v1402 = vxor.u32 %v1351, 2147483648
      %v1403 = vxor.u32 %v1389, 2147483648
      %v1404 = vxor.u32 %v1278, 2147483648
      %v1405 = vxor.u32 %v1316, 2147483648
      %v1406 = vxor.u32 %v1354, 2147483648
      %v1407 = vxor.u32 %v1392, 2147483648
      %v1408 = vxor.u32 %v1280, 2147483648
      %v1409 = vxor.u32 %v1318, 2147483648
      %v1410 = vxor.u32 %v1356, 2147483648
      %v1411 = vxor.u32 %v1394, 2147483648
      %v1412 = vmul.f32 %v1396, 1.442695
      %v1413 = vpow.pop %v1412
      %v1414 = vmul.f32 %v1397, 1.442695
      %v1415 = vpow.pop %v1414
      %v1416 = vmul.f32 %v1398, 1.442695
      %v1417 = vpow.pop %v1416
      %v1418 = vmul.f32 %v1399, 1.442695
      %v1419 = vpow.pop %v1418
      %v1420 = vmul.f32 %v1400, 1.442695
      %v1421 = vpow.pop %v1420
      %v1422 = vmul.f32 %v1401, 1.442695
      %v1423 = vpow.pop %v1422
      %v1424 = vmul.f32 %v1402, 1.442695
      %v1425 = vpow.pop %v1424
      %v1426 = vmul.f32 %v1403, 1.442695
      %v1427 = vpow.pop %v1426
      %v1428 = vmul.f32 %v1404, 1.442695
      %v1429 = vpow.pop %v1428
      %v1430 = vmul.f32 %v1405, 1.442695
      %v1431 = vpow.pop %v1430
      %v1432 = vmul.f32 %v1406, 1.442695
      %v1433 = vpow.pop %v1432
      %v1434 = vmul.f32 %v1407, 1.442695
      %v1435 = vpow.pop %v1434
      %v1436 = vmul.f32 %v1408, 1.442695
      %v1437 = vpow.pop %v1436
      %v1438 = vmul.f32 %v1409, 1.442695
      %v1439 = vpow.pop %v1438
      %v1440 = vmul.f32 %v1410, 1.442695
      %v1441 = vpow.pop %v1440
      %v1442 = vmul.f32 %v1411, 1.442695
      %v1443 = vpow.pop %v1442
      %v1444 = vadd.f32 %v1413, 1.0
      %v1445 = vadd.f32 %v1415, 1.0
      %v1446 = vadd.f32 %v1417, 1.0
      %v1447 = vadd.f32 %v1419, 1.0
      %v1448 = vadd.f32 %v1421, 1.0
      %v1449 = vadd.f32 %v1423, 1.0
      %v1450 = vadd.f32 %v1425, 1.0
      %v1451 = vadd.f32 %v1427, 1.0
      %v1452 = vadd.f32 %v1429, 1.0
      %v1453 = vadd.f32 %v1431, 1.0
      %v1454 = vadd.f32 %v1433, 1.0
      %v1455 = vadd.f32 %v1435, 1.0
      %v1456 = vadd.f32 %v1437, 1.0
      %v1457 = vadd.f32 %v1439, 1.0
      %v1458 = vadd.f32 %v1441, 1.0
      %v1459 = vadd.f32 %v1443, 1.0
      %v1460 = vrcp.pop %v1444
      %v1461 = vmul.f32 %v1444, %v1460
      %v1462 = vsub.f32 1.0, %v1461
      %v1463 = vmul.f32 %v1460, %v1462
      %v1464 = vadd.f32 %v1460, %v1463
      %vm1465 = vweird.f32 %v1444
      %vm1466 = vweird.f32 %v1460
      %vm1467 = vmor %vm1465, %vm1466
      %v1468 = vsel %vm1467, %v1460, %v1464
      %v1469 = vand.u32 2147483647, %v1444
      %vm1470 = vcmp.eq.f32.partialorder %v1469, 8.507059e+37
      %v1471 = vand.u32 %v1444, 2147483648
      %v1472 = vor.u32 1.1754944e-38, %v1471
      %v1473 = vsel %vm1470, %v1472, %v1468
      %v1474 = vmul.f32 1.0, %v1473
      %v1475 = vrcp.pop %v1445
      %v1476 = vmul.f32 %v1445, %v1475
      %v1477 = vsub.f32 1.0, %v1476
      %v1478 = vmul.f32 %v1475, %v1477
      %v1479 = vadd.f32 %v1475, %v1478
      %vm1480 = vweird.f32 %v1445
      %vm1481 = vweird.f32 %v1475
      %vm1482 = vmor %vm1480, %vm1481
      %v1483 = vsel %vm1482, %v1475, %v1479
      %v1484 = vand.u32 2147483647, %v1445
      %vm1485 = vcmp.eq.f32.partialorder %v1484, 8.507059e+37
      %v1486 = vand.u32 %v1445, 2147483648
      %v1487 = vor.u32 1.1754944e-38, %v1486
      %v1488 = vsel %vm1485, %v1487, %v1483
      %v1489 = vmul.f32 1.0, %v1488
      %v1490 = vrcp.pop %v1446
      %v1491 = vmul.f32 %v1446, %v1490
      %v1492 = vsub.f32 1.0, %v1491
      %v1493 = vmul.f32 %v1490, %v1492
      %v1494 = vadd.f32 %v1490, %v1493
      %vm1495 = vweird.f32 %v1446
      %vm1496 = vweird.f32 %v1490
      %vm1497 = vmor %vm1495, %vm1496
      %v1498 = vsel %vm1497, %v1490, %v1494
      %v1499 = vand.u32 2147483647, %v1446
      %vm1500 = vcmp.eq.f32.partialorder %v1499, 8.507059e+37
      %v1501 = vand.u32 %v1446, 2147483648
      %v1502 = vor.u32 1.1754944e-38, %v1501
      %v1503 = vsel %vm1500, %v1502, %v1498
      %v1504 = vmul.f32 1.0, %v1503
      %v1505 = vrcp.pop %v1447
      %v1506 = vmul.f32 %v1447, %v1505
      %v1507 = vsub.f32 1.0, %v1506
      %v1508 = vmul.f32 %v1505, %v1507
      %v1509 = vadd.f32 %v1505, %v1508
      %vm1510 = vweird.f32 %v1447
      %vm1511 = vweird.f32 %v1505
      %vm1512 = vmor %vm1510, %vm1511
      %v1513 = vsel %vm1512, %v1505, %v1509
      %v1514 = vand.u32 2147483647, %v1447
      %vm1515 = vcmp.eq.f32.partialorder %v1514, 8.507059e+37
      %v1516 = vand.u32 %v1447, 2147483648
      %v1517 = vor.u32 1.1754944e-38, %v1516
      %v1518 = vsel %vm1515, %v1517, %v1513
      %v1519 = vmul.f32 1.0, %v1518
      %v1520 = vrcp.pop %v1448
      %v1521 = vmul.f32 %v1448, %v1520
      %v1522 = vsub.f32 1.0, %v1521
      %v1523 = vmul.f32 %v1520, %v1522
      %v1524 = vadd.f32 %v1520, %v1523
      %vm1525 = vweird.f32 %v1448
      %vm1526 = vweird.f32 %v1520
      %vm1527 = vmor %vm1525, %vm1526
      %v1528 = vsel %vm1527, %v1520, %v1524
      %v1529 = vand.u32 2147483647, %v1448
      %vm1530 = vcmp.eq.f32.partialorder %v1529, 8.507059e+37
      %v1531 = vand.u32 %v1448, 2147483648
      %v1532 = vor.u32 1.1754944e-38, %v1531
      %v1533 = vsel %vm1530, %v1532, %v1528
      %v1534 = vmul.f32 1.0, %v1533
      %v1535 = vrcp.pop %v1449
      %v1536 = vmul.f32 %v1449, %v1535
      %v1537 = vsub.f32 1.0, %v1536
      %v1538 = vmul.f32 %v1535, %v1537
      %v1539 = vadd.f32 %v1535, %v1538
      %vm1540 = vweird.f32 %v1449
      %vm1541 = vweird.f32 %v1535
      %vm1542 = vmor %vm1540, %vm1541
      %v1543 = vsel %vm1542, %v1535, %v1539
      %v1544 = vand.u32 2147483647, %v1449
      %vm1545 = vcmp.eq.f32.partialorder %v1544, 8.507059e+37
      %v1546 = vand.u32 %v1449, 2147483648
      %v1547 = vor.u32 1.1754944e-38, %v1546
      %v1548 = vsel %vm1545, %v1547, %v1543
      %v1549 = vmul.f32 1.0, %v1548
      %v1550 = vrcp.pop %v1450
      %v1551 = vmul.f32 %v1450, %v1550
      %v1552 = vsub.f32 1.0, %v1551
      %v1553 = vmul.f32 %v1550, %v1552
      %v1554 = vadd.f32 %v1550, %v1553
      %vm1555 = vweird.f32 %v1450
      %vm1556 = vweird.f32 %v1550
      %vm1557 = vmor %vm1555, %vm1556
      %v1558 = vsel %vm1557, %v1550, %v1554
      %v1559 = vand.u32 2147483647, %v1450
      %vm1560 = vcmp.eq.f32.partialorder %v1559, 8.507059e+37
      %v1561 = vand.u32 %v1450, 2147483648
      %v1562 = vor.u32 1.1754944e-38, %v1561
      %v1563 = vsel %vm1560, %v1562, %v1558
      %v1564 = vmul.f32 1.0, %v1563
      %v1565 = vrcp.pop %v1451
      %v1566 = vmul.f32 %v1451, %v1565
      %v1567 = vsub.f32 1.0, %v1566
      %v1568 = vmul.f32 %v1565, %v1567
      %v1569 = vadd.f32 %v1565, %v1568
      %vm1570 = vweird.f32 %v1451
      %vm1571 = vweird.f32 %v1565
      %vm1572 = vmor %vm1570, %vm1571
      %v1573 = vsel %vm1572, %v1565, %v1569
      %v1574 = vand.u32 2147483647, %v1451
      %vm1575 = vcmp.eq.f32.partialorder %v1574, 8.507059e+37
      %v1576 = vand.u32 %v1451, 2147483648
      %v1577 = vor.u32 1.1754944e-38, %v1576
      %v1578 = vsel %vm1575, %v1577, %v1573
      %v1579 = vmul.f32 1.0, %v1578
      %v1580 = vrcp.pop %v1452
      %v1581 = vmul.f32 %v1452, %v1580
      %v1582 = vsub.f32 1.0, %v1581
      %v1583 = vmul.f32 %v1580, %v1582
      %v1584 = vadd.f32 %v1580, %v1583
      %vm1585 = vweird.f32 %v1452
      %vm1586 = vweird.f32 %v1580
      %vm1587 = vmor %vm1585, %vm1586
      %v1588 = vsel %vm1587, %v1580, %v1584
      %v1589 = vand.u32 2147483647, %v1452
      %vm1590 = vcmp.eq.f32.partialorder %v1589, 8.507059e+37
      %v1591 = vand.u32 %v1452, 2147483648
      %v1592 = vor.u32 1.1754944e-38, %v1591
      %v1593 = vsel %vm1590, %v1592, %v1588
      %v1594 = vmul.f32 1.0, %v1593
      %v1595 = vrcp.pop %v1453
      %v1596 = vmul.f32 %v1453, %v1595
      %v1597 = vsub.f32 1.0, %v1596
      %v1598 = vmul.f32 %v1595, %v1597
      %v1599 = vadd.f32 %v1595, %v1598
      %vm1600 = vweird.f32 %v1453
      %vm1601 = vweird.f32 %v1595
      %vm1602 = vmor %vm1600, %vm1601
      %v1603 = vsel %vm1602, %v1595, %v1599
      %v1604 = vand.u32 2147483647, %v1453
      %vm1605 = vcmp.eq.f32.partialorder %v1604, 8.507059e+37
      %v1606 = vand.u32 %v1453, 2147483648
      %v1607 = vor.u32 1.1754944e-38, %v1606
      %v1608 = vsel %vm1605, %v1607, %v1603
      %v1609 = vmul.f32 1.0, %v1608
      %v1610 = vrcp.pop %v1454
      %v1611 = vmul.f32 %v1454, %v1610
      %v1612 = vsub.f32 1.0, %v1611
      %v1613 = vmul.f32 %v1610, %v1612
      %v1614 = vadd.f32 %v1610, %v1613
      %vm1615 = vweird.f32 %v1454
      %vm1616 = vweird.f32 %v1610
      %vm1617 = vmor %vm1615, %vm1616
      %v1618 = vsel %vm1617, %v1610, %v1614
      %v1619 = vand.u32 2147483647, %v1454
      %vm1620 = vcmp.eq.f32.partialorder %v1619, 8.507059e+37
      %v1621 = vand.u32 %v1454, 2147483648
      %v1622 = vor.u32 1.1754944e-38, %v1621
      %v1623 = vsel %vm1620, %v1622, %v1618
      %v1624 = vmul.f32 1.0, %v1623
      %v1625 = vrcp.pop %v1455
      %v1626 = vmul.f32 %v1455, %v1625
      %v1627 = vsub.f32 1.0, %v1626
      %v1628 = vmul.f32 %v1625, %v1627
      %v1629 = vadd.f32 %v1625, %v1628
      %vm1630 = vweird.f32 %v1455
      %vm1631 = vweird.f32 %v1625
      %vm1632 = vmor %vm1630, %vm1631
      %v1633 = vsel %vm1632, %v1625, %v1629
      %v1634 = vand.u32 2147483647, %v1455
      %vm1635 = vcmp.eq.f32.partialorder %v1634, 8.507059e+37
      %v1636 = vand.u32 %v1455, 2147483648
      %v1637 = vor.u32 1.1754944e-38, %v1636
      %v1638 = vsel %vm1635, %v1637, %v1633
      %v1639 = vmul.f32 1.0, %v1638
      %v1640 = vrcp.pop %v1456
      %v1641 = vmul.f32 %v1456, %v1640
      %v1642 = vsub.f32 1.0, %v1641
      %v1643 = vmul.f32 %v1640, %v1642
      %v1644 = vadd.f32 %v1640, %v1643
      %vm1645 = vweird.f32 %v1456
      %vm1646 = vweird.f32 %v1640
      %vm1647 = vmor %vm1645, %vm1646
      %v1648 = vsel %vm1647, %v1640, %v1644
      %v1649 = vand.u32 2147483647, %v1456
      %vm1650 = vcmp.eq.f32.partialorder %v1649, 8.507059e+37
      %v1651 = vand.u32 %v1456, 2147483648
      %v1652 = vor.u32 1.1754944e-38, %v1651
      %v1653 = vsel %vm1650, %v1652, %v1648
      %v1654 = vmul.f32 1.0, %v1653
      %v1655 = vrcp.pop %v1457
      %v1656 = vmul.f32 %v1457, %v1655
      %v1657 = vsub.f32 1.0, %v1656
      %v1658 = vmul.f32 %v1655, %v1657
      %v1659 = vadd.f32 %v1655, %v1658
      %vm1660 = vweird.f32 %v1457
      %vm1661 = vweird.f32 %v1655
      %vm1662 = vmor %vm1660, %vm1661
      %v1663 = vsel %vm1662, %v1655, %v1659
      %v1664 = vand.u32 2147483647, %v1457
      %vm1665 = vcmp.eq.f32.partialorder %v1664, 8.507059e+37
      %v1666 = vand.u32 %v1457, 2147483648
      %v1667 = vor.u32 1.1754944e-38, %v1666
      %v1668 = vsel %vm1665, %v1667, %v1663
      %v1669 = vmul.f32 1.0, %v1668
      %v1670 = vrcp.pop %v1458
      %v1671 = vmul.f32 %v1458, %v1670
      %v1672 = vsub.f32 1.0, %v1671
      %v1673 = vmul.f32 %v1670, %v1672
      %v1674 = vadd.f32 %v1670, %v1673
      %vm1675 = vweird.f32 %v1458
      %vm1676 = vweird.f32 %v1670
      %vm1677 = vmor %vm1675, %vm1676
      %v1678 = vsel %vm1677, %v1670, %v1674
      %v1679 = vand.u32 2147483647, %v1458
      %vm1680 = vcmp.eq.f32.partialorder %v1679, 8.507059e+37
      %v1681 = vand.u32 %v1458, 2147483648
      %v1682 = vor.u32 1.1754944e-38, %v1681
      %v1683 = vsel %vm1680, %v1682, %v1678
      %v1684 = vmul.f32 1.0, %v1683
      %v1685 = vrcp.pop %v1459
      %v1686 = vmul.f32 %v1459, %v1685
      %v1687 = vsub.f32 1.0, %v1686
      %v1688 = vmul.f32 %v1685, %v1687
      %v1689 = vadd.f32 %v1685, %v1688
      %vm1690 = vweird.f32 %v1459
      %vm1691 = vweird.f32 %v1685
      %vm1692 = vmor %vm1690, %vm1691
      %v1693 = vsel %vm1692, %v1685, %v1689
      %v1694 = vand.u32 2147483647, %v1459
      %vm1695 = vcmp.eq.f32.partialorder %v1694, 8.507059e+37
      %v1696 = vand.u32 %v1459, 2147483648
      %v1697 = vor.u32 1.1754944e-38, %v1696
      %v1698 = vsel %vm1695, %v1697, %v1693
      %v1699 = vmul.f32 1.0, %v1698
      %v1700 = vld [vmem:[%s571] sm:$0xff]
      %v1701 = vld [vmem:[%s571 + $0x8] sm:$0xff]
      %v1702 = vld [vmem:[%s571 + $0x10] sm:$0xff]
      %v1703 = vld [vmem:[%s571 + $0x18] sm:$0xff]
      %v1704 = vld [vmem:[%s571 + $0x20] sm:$0xff]
      %v1705 = vld [vmem:[%s571 + $0x28] sm:$0xff]
      %v1706 = vld [vmem:[%s571 + $0x30] sm:$0xff]
      %v1707 = vld [vmem:[%s571 + $0x38] sm:$0xff]
      %v1708 = vld [vmem:[%s571 + $0x40] sm:$0xff]
      %v1709 = vld [vmem:[%s571 + $0x48] sm:$0xff]
      %v1710 = vld [vmem:[%s571 + $0x50] sm:$0xff]
      %v1711 = vld [vmem:[%s571 + $0x58] sm:$0xff]
      %v1712 = vld [vmem:[%s571 + $0x60] sm:$0xff]
      %v1713 = vld [vmem:[%s571 + $0x68] sm:$0xff]
      %v1714 = vld [vmem:[%s571 + $0x70] sm:$0xff]
      %v1715 = vld [vmem:[%s571 + $0x78] sm:$0xff]
      %v1716 = vmul.f32 %v1700, %v1474
      %v1717 = vmul.f32 %v1701, %v1489
      %v1718 = vmul.f32 %v1702, %v1504
      %v1719 = vmul.f32 %v1703, %v1519
      %v1720 = vmul.f32 %v1704, %v1534
      %v1721 = vmul.f32 %v1705, %v1549
      %v1722 = vmul.f32 %v1706, %v1564
      %v1723 = vmul.f32 %v1707, %v1579
      %v1724 = vmul.f32 %v1708, %v1594
      %v1725 = vmul.f32 %v1709, %v1609
      %v1726 = vmul.f32 %v1710, %v1624
      %v1727 = vmul.f32 %v1711, %v1639
      %v1728 = vmul.f32 %v1712, %v1654
      %v1729 = vmul.f32 %v1713, %v1669
      %v1730 = vmul.f32 %v1714, %v1684
      %v1731 = vmul.f32 %v1715, %v1699
      %v1732 = vpack.c.bf16 %v1720, %v1716
      %v1733 = vpack.c.bf16 %v1721, %v1717
      %v1734 = vpack.c.bf16 %v1722, %v1718
      %v1735 = vpack.c.bf16 %v1723, %v1719
      %v1736 = vpack.c.bf16 %v1728, %v1724
      %v1737 = vpack.c.bf16 %v1729, %v1725
      %v1738 = vpack.c.bf16 %v1730, %v1726
      %v1739 = vpack.c.bf16 %v1731, %v1727
      %v1740 = vld [vmem:[%s8] sm:$0xff]
      %v1741 = vld [vmem:[%s8 + $0x8] sm:$0xff]
      %v1742 = vld [vmem:[%s8 + $0x10] sm:$0xff]
      %v1743 = vld [vmem:[%s8 + $0x18] sm:$0xff]
      %v1744 = vld [vmem:[%s8 + $0x20] sm:$0xff]
      %v1745 = vld [vmem:[%s8 + $0x28] sm:$0xff]
      %v1746 = vld [vmem:[%s8 + $0x30] sm:$0xff]
      %v1747 = vld [vmem:[%s8 + $0x38] sm:$0xff]
      %v1748 = vld [vmem:[%s8 + $0x40] sm:$0xff]
      %v1749 = vld [vmem:[%s8 + $0x48] sm:$0xff]
      %v1750 = vld [vmem:[%s8 + $0x50] sm:$0xff]
      %v1751 = vld [vmem:[%s8 + $0x58] sm:$0xff]
      %v1752 = vld [vmem:[%s8 + $0x60] sm:$0xff]
      %v1753 = vld [vmem:[%s8 + $0x68] sm:$0xff]
      %v1754 = vld [vmem:[%s8 + $0x70] sm:$0xff]
      %v1755 = vld [vmem:[%s8 + $0x78] sm:$0xff]
      %v1756 = vld [vmem:[%s8 + $0x80] sm:$0xff]
      %v1757 = vld [vmem:[%s8 + $0x88] sm:$0xff]
      %v1758 = vld [vmem:[%s8 + $0x90] sm:$0xff]
      %v1759 = vld [vmem:[%s8 + $0x98] sm:$0xff]
      %v1760 = vld [vmem:[%s8 + $0xa0] sm:$0xff]
      %v1761 = vld [vmem:[%s8 + $0xa8] sm:$0xff]
      %v1762 = vld [vmem:[%s8 + $0xb0] sm:$0xff]
      %v1763 = vld [vmem:[%s8 + $0xb8] sm:$0xff]
      %v1764 = vld [vmem:[%s8 + $0xc0] sm:$0xff]
      %v1765 = vld [vmem:[%s8 + $0xc8] sm:$0xff]
      %v1766 = vld [vmem:[%s8 + $0xd0] sm:$0xff]
      %v1767 = vld [vmem:[%s8 + $0xd8] sm:$0xff]
      %v1768 = vld [vmem:[%s8 + $0xe0] sm:$0xff]
      %v1769 = vld [vmem:[%s8 + $0xe8] sm:$0xff]
      %v1770 = vld [vmem:[%s8 + $0xf0] sm:$0xff]
      %v1771 = vld [vmem:[%s8 + $0xf8] sm:$0xff]
      %v1772 = vld [vmem:[%s8 + $0x100] sm:$0xff]
      %v1773 = vld [vmem:[%s8 + $0x108] sm:$0xff]
      %v1774 = vld [vmem:[%s8 + $0x110] sm:$0xff]
      %v1775 = vld [vmem:[%s8 + $0x118] sm:$0xff]
      %v1776 = vld [vmem:[%s8 + $0x120] sm:$0xff]
      %v1777 = vld [vmem:[%s8 + $0x128] sm:$0xff]
      %v1778 = vld [vmem:[%s8 + $0x130] sm:$0xff]
      %v1779 = vld [vmem:[%s8 + $0x138] sm:$0xff]
      %v1780 = vld [vmem:[%s8 + $0x140] sm:$0xff]
      %v1781 = vld [vmem:[%s8 + $0x148] sm:$0xff]
      %v1782 = vld [vmem:[%s8 + $0x150] sm:$0xff]
      %v1783 = vld [vmem:[%s8 + $0x158] sm:$0xff]
      %v1784 = vld [vmem:[%s8 + $0x160] sm:$0xff]
      %v1785 = vld [vmem:[%s8 + $0x168] sm:$0xff]
      %v1786 = vld [vmem:[%s8 + $0x170] sm:$0xff]
      %v1787 = vld [vmem:[%s8 + $0x178] sm:$0xff]
      %v1788 = vld [vmem:[%s8 + $0x180] sm:$0xff]
      %v1789 = vld [vmem:[%s8 + $0x188] sm:$0xff]
      %v1790 = vld [vmem:[%s8 + $0x190] sm:$0xff]
      %v1791 = vld [vmem:[%s8 + $0x198] sm:$0xff]
      %v1792 = vld [vmem:[%s8 + $0x1a0] sm:$0xff]
      %v1793 = vld [vmem:[%s8 + $0x1a8] sm:$0xff]
      %v1794 = vld [vmem:[%s8 + $0x1b0] sm:$0xff]
      %v1795 = vld [vmem:[%s8 + $0x1b8] sm:$0xff]
      %v1796 = vld [vmem:[%s8 + $0x1c0] sm:$0xff]
      %v1797 = vld [vmem:[%s8 + $0x1c8] sm:$0xff]
      %v1798 = vld [vmem:[%s8 + $0x1d0] sm:$0xff]
      %v1799 = vld [vmem:[%s8 + $0x1d8] sm:$0xff]
      %v1800 = vld [vmem:[%s8 + $0x1e0] sm:$0xff]
      %v1801 = vld [vmem:[%s8 + $0x1e8] sm:$0xff]
      %v1802 = vld [vmem:[%s8 + $0x1f0] sm:$0xff]
      %v1803 = vld [vmem:[%s8 + $0x1f8] sm:$0xff]
      %v1804 = vld [vmem:[%s8 + $0x200] sm:$0xff]
      %v1805 = vld [vmem:[%s8 + $0x208] sm:$0xff]
      %v1806 = vld [vmem:[%s8 + $0x210] sm:$0xff]
      %v1807 = vld [vmem:[%s8 + $0x218] sm:$0xff]
      %v1808 = vld [vmem:[%s8 + $0x220] sm:$0xff]
      %v1809 = vld [vmem:[%s8 + $0x228] sm:$0xff]
      %v1810 = vld [vmem:[%s8 + $0x230] sm:$0xff]
      %v1811 = vld [vmem:[%s8 + $0x238] sm:$0xff]
      %v1812 = vld [vmem:[%s8 + $0x240] sm:$0xff]
      %v1813 = vld [vmem:[%s8 + $0x248] sm:$0xff]
      %v1814 = vld [vmem:[%s8 + $0x250] sm:$0xff]
      %v1815 = vld [vmem:[%s8 + $0x258] sm:$0xff]
      %v1816 = vld [vmem:[%s8 + $0x260] sm:$0xff]
      %v1817 = vld [vmem:[%s8 + $0x268] sm:$0xff]
      %v1818 = vld [vmem:[%s8 + $0x270] sm:$0xff]
      %v1819 = vld [vmem:[%s8 + $0x278] sm:$0xff]
      %v1820 = vld [vmem:[%s8 + $0x280] sm:$0xff]
      %v1821 = vld [vmem:[%s8 + $0x288] sm:$0xff]
      %v1822 = vld [vmem:[%s8 + $0x290] sm:$0xff]
      %v1823 = vld [vmem:[%s8 + $0x298] sm:$0xff]
      %v1824 = vld [vmem:[%s8 + $0x2a0] sm:$0xff]
      %v1825 = vld [vmem:[%s8 + $0x2a8] sm:$0xff]
      %v1826 = vld [vmem:[%s8 + $0x2b0] sm:$0xff]
      %v1827 = vld [vmem:[%s8 + $0x2b8] sm:$0xff]
      %v1828 = vld [vmem:[%s8 + $0x2c0] sm:$0xff]
      %v1829 = vld [vmem:[%s8 + $0x2c8] sm:$0xff]
      %v1830 = vld [vmem:[%s8 + $0x2d0] sm:$0xff]
      %v1831 = vld [vmem:[%s8 + $0x2d8] sm:$0xff]
      %v1832 = vld [vmem:[%s8 + $0x2e0] sm:$0xff]
      %v1833 = vld [vmem:[%s8 + $0x2e8] sm:$0xff]
      %v1834 = vld [vmem:[%s8 + $0x2f0] sm:$0xff]
      %v1835 = vld [vmem:[%s8 + $0x2f8] sm:$0xff]
      %v1836 = vld [vmem:[%s8 + $0x300] sm:$0xff]
      %v1837 = vld [vmem:[%s8 + $0x308] sm:$0xff]
      %v1838 = vld [vmem:[%s8 + $0x310] sm:$0xff]
      %v1839 = vld [vmem:[%s8 + $0x318] sm:$0xff]
      %v1840 = vld [vmem:[%s8 + $0x320] sm:$0xff]
      %v1841 = vld [vmem:[%s8 + $0x328] sm:$0xff]
      %v1842 = vld [vmem:[%s8 + $0x330] sm:$0xff]
      %v1843 = vld [vmem:[%s8 + $0x338] sm:$0xff]
      %v1844 = vld [vmem:[%s8 + $0x340] sm:$0xff]
      %v1845 = vld [vmem:[%s8 + $0x348] sm:$0xff]
      %v1846 = vld [vmem:[%s8 + $0x350] sm:$0xff]
      %v1847 = vld [vmem:[%s8 + $0x358] sm:$0xff]
      %v1848 = vld [vmem:[%s8 + $0x360] sm:$0xff]
      %v1849 = vld [vmem:[%s8 + $0x368] sm:$0xff]
      %v1850 = vld [vmem:[%s8 + $0x370] sm:$0xff]
      %v1851 = vld [vmem:[%s8 + $0x378] sm:$0xff]
      %v1852 = vld [vmem:[%s8 + $0x380] sm:$0xff]
      %v1853 = vld [vmem:[%s8 + $0x388] sm:$0xff]
      %v1854 = vld [vmem:[%s8 + $0x390] sm:$0xff]
      %v1855 = vld [vmem:[%s8 + $0x398] sm:$0xff]
      %v1856 = vld [vmem:[%s8 + $0x3a0] sm:$0xff]
      %v1857 = vld [vmem:[%s8 + $0x3a8] sm:$0xff]
      %v1858 = vld [vmem:[%s8 + $0x3b0] sm:$0xff]
      %v1859 = vld [vmem:[%s8 + $0x3b8] sm:$0xff]
      %v1860 = vld [vmem:[%s8 + $0x3c0] sm:$0xff]
      %v1861 = vld [vmem:[%s8 + $0x3c8] sm:$0xff]
      %v1862 = vld [vmem:[%s8 + $0x3d0] sm:$0xff]
      %v1863 = vld [vmem:[%s8 + $0x3d8] sm:$0xff]
      %v1864 = vld [vmem:[%s8 + $0x3e0] sm:$0xff]
      %v1865 = vld [vmem:[%s8 + $0x3e8] sm:$0xff]
      %v1866 = vld [vmem:[%s8 + $0x3f0] sm:$0xff]
      %v1867 = vld [vmem:[%s8 + $0x3f8] sm:$0xff]
      %v1868 = vld [vmem:[%s9] sm:$0xf]
      %v1870 = vperm.slane %v1868, 0
      %v1871 = vperm.slane %v1868, 1
      %v1872 = vperm.slane %v1868, 2
      %v1873 = vperm.slane %v1868, 3
      %v2006 = vunpack.c.l.b16 %v1740
      %v2007 = vunpack.c.h.b16 %v1740
      %v2008 = vunpack.c.l.b16 %v1741
      %v2009 = vunpack.c.h.b16 %v1741
      %v2010 = vunpack.c.l.b16 %v1742
      %v2011 = vunpack.c.h.b16 %v1742
      %v2012 = vunpack.c.l.b16 %v1743
      %v2013 = vunpack.c.h.b16 %v1743
      %v2014 = vunpack.c.l.b16 %v1744
      %v2015 = vunpack.c.h.b16 %v1744
      %v2016 = vunpack.c.l.b16 %v1745
      %v2017 = vunpack.c.h.b16 %v1745
      %v2018 = vunpack.c.l.b16 %v1746
      %v2019 = vunpack.c.h.b16 %v1746
      %v2020 = vunpack.c.l.b16 %v1747
      %v2021 = vunpack.c.h.b16 %v1747
      %v2022 = vunpack.c.l.b16 %v1748
      %v2023 = vunpack.c.h.b16 %v1748
      %v2024 = vunpack.c.l.b16 %v1749
      %v2025 = vunpack.c.h.b16 %v1749
      %v2026 = vunpack.c.l.b16 %v1750
      %v2027 = vunpack.c.h.b16 %v1750
      %v2028 = vunpack.c.l.b16 %v1751
      %v2029 = vunpack.c.h.b16 %v1751
      %v2030 = vunpack.c.l.b16 %v1752
      %v2031 = vunpack.c.h.b16 %v1752
      %v2032 = vunpack.c.l.b16 %v1753
      %v2033 = vunpack.c.h.b16 %v1753
      %v2034 = vunpack.c.l.b16 %v1754
      %v2035 = vunpack.c.h.b16 %v1754
      %v2036 = vunpack.c.l.b16 %v1755
      %v2037 = vunpack.c.h.b16 %v1755
      %v2038 = vunpack.c.l.b16 %v1756
      %v2039 = vunpack.c.h.b16 %v1756
      %v2040 = vunpack.c.l.b16 %v1757
      %v2041 = vunpack.c.h.b16 %v1757
      %v2042 = vunpack.c.l.b16 %v1758
      %v2043 = vunpack.c.h.b16 %v1758
      %v2044 = vunpack.c.l.b16 %v1759
      %v2045 = vunpack.c.h.b16 %v1759
      %v2046 = vunpack.c.l.b16 %v1760
      %v2047 = vunpack.c.h.b16 %v1760
      %v2048 = vunpack.c.l.b16 %v1761
      %v2049 = vunpack.c.h.b16 %v1761
      %v2050 = vunpack.c.l.b16 %v1762
      %v2051 = vunpack.c.h.b16 %v1762
      %v2052 = vunpack.c.l.b16 %v1763
      %v2053 = vunpack.c.h.b16 %v1763
      %v2054 = vunpack.c.l.b16 %v1764
      %v2055 = vunpack.c.h.b16 %v1764
      %v2056 = vunpack.c.l.b16 %v1765
      %v2057 = vunpack.c.h.b16 %v1765
      %v2058 = vunpack.c.l.b16 %v1766
      %v2059 = vunpack.c.h.b16 %v1766
      %v2060 = vunpack.c.l.b16 %v1767
      %v2061 = vunpack.c.h.b16 %v1767
      %v2062 = vunpack.c.l.b16 %v1768
      %v2063 = vunpack.c.h.b16 %v1768
      %v2064 = vunpack.c.l.b16 %v1769
      %v2065 = vunpack.c.h.b16 %v1769
      %v2066 = vunpack.c.l.b16 %v1770
      %v2067 = vunpack.c.h.b16 %v1770
      %v2068 = vunpack.c.l.b16 %v1771
      %v2069 = vunpack.c.h.b16 %v1771
      %v2070 = vunpack.c.l.b16 %v1772
      %v2071 = vunpack.c.h.b16 %v1772
      %v2072 = vunpack.c.l.b16 %v1773
      %v2073 = vunpack.c.h.b16 %v1773
      %v2074 = vunpack.c.l.b16 %v1774
      %v2075 = vunpack.c.h.b16 %v1774
      %v2076 = vunpack.c.l.b16 %v1775
      %v2077 = vunpack.c.h.b16 %v1775
      %v2078 = vunpack.c.l.b16 %v1776
      %v2079 = vunpack.c.h.b16 %v1776
      %v2080 = vunpack.c.l.b16 %v1777
      %v2081 = vunpack.c.h.b16 %v1777
      %v2082 = vunpack.c.l.b16 %v1778
      %v2083 = vunpack.c.h.b16 %v1778
      %v2084 = vunpack.c.l.b16 %v1779
      %v2085 = vunpack.c.h.b16 %v1779
      %v2086 = vunpack.c.l.b16 %v1780
      %v2087 = vunpack.c.h.b16 %v1780
      %v2088 = vunpack.c.l.b16 %v1781
      %v2089 = vunpack.c.h.b16 %v1781
      %v2090 = vunpack.c.l.b16 %v1782
      %v2091 = vunpack.c.h.b16 %v1782
      %v2092 = vunpack.c.l.b16 %v1783
      %v2093 = vunpack.c.h.b16 %v1783
      %v2094 = vunpack.c.l.b16 %v1784
      %v2095 = vunpack.c.h.b16 %v1784
      %v2096 = vunpack.c.l.b16 %v1785
      %v2097 = vunpack.c.h.b16 %v1785
      %v2098 = vunpack.c.l.b16 %v1786
      %v2099 = vunpack.c.h.b16 %v1786
      %v2100 = vunpack.c.l.b16 %v1787
      %v2101 = vunpack.c.h.b16 %v1787
      %v2102 = vunpack.c.l.b16 %v1788
      %v2103 = vunpack.c.h.b16 %v1788
      %v2104 = vunpack.c.l.b16 %v1789
      %v2105 = vunpack.c.h.b16 %v1789
      %v2106 = vunpack.c.l.b16 %v1790
      %v2107 = vunpack.c.h.b16 %v1790
      %v2108 = vunpack.c.l.b16 %v1791
      %v2109 = vunpack.c.h.b16 %v1791
      %v2110 = vunpack.c.l.b16 %v1792
      %v2111 = vunpack.c.h.b16 %v1792
      %v2112 = vunpack.c.l.b16 %v1793
      %v2113 = vunpack.c.h.b16 %v1793
      %v2114 = vunpack.c.l.b16 %v1794
      %v2115 = vunpack.c.h.b16 %v1794
      %v2116 = vunpack.c.l.b16 %v1795
      %v2117 = vunpack.c.h.b16 %v1795
      %v2118 = vunpack.c.l.b16 %v1796
      %v2119 = vunpack.c.h.b16 %v1796
      %v2120 = vunpack.c.l.b16 %v1797
      %v2121 = vunpack.c.h.b16 %v1797
      %v2122 = vunpack.c.l.b16 %v1798
      %v2123 = vunpack.c.h.b16 %v1798
      %v2124 = vunpack.c.l.b16 %v1799
      %v2125 = vunpack.c.h.b16 %v1799
      %v2126 = vunpack.c.l.b16 %v1800
      %v2127 = vunpack.c.h.b16 %v1800
      %v2128 = vunpack.c.l.b16 %v1801
      %v2129 = vunpack.c.h.b16 %v1801
      %v2130 = vunpack.c.l.b16 %v1802
      %v2131 = vunpack.c.h.b16 %v1802
      %v2132 = vunpack.c.l.b16 %v1803
      %v2133 = vunpack.c.h.b16 %v1803
      %v2134 = vunpack.c.l.b16 %v1804
      %v2135 = vunpack.c.h.b16 %v1804
      %v2136 = vunpack.c.l.b16 %v1805
      %v2137 = vunpack.c.h.b16 %v1805
      %v2138 = vunpack.c.l.b16 %v1806
      %v2139 = vunpack.c.h.b16 %v1806
      %v2140 = vunpack.c.l.b16 %v1807
      %v2141 = vunpack.c.h.b16 %v1807
      %v2142 = vunpack.c.l.b16 %v1808
      %v2143 = vunpack.c.h.b16 %v1808
      %v2144 = vunpack.c.l.b16 %v1809
      %v2145 = vunpack.c.h.b16 %v1809
      %v2146 = vunpack.c.l.b16 %v1810
      %v2147 = vunpack.c.h.b16 %v1810
      %v2148 = vunpack.c.l.b16 %v1811
      %v2149 = vunpack.c.h.b16 %v1811
      %v2150 = vunpack.c.l.b16 %v1812
      %v2151 = vunpack.c.h.b16 %v1812
      %v2152 = vunpack.c.l.b16 %v1813
      %v2153 = vunpack.c.h.b16 %v1813
      %v2154 = vunpack.c.l.b16 %v1814
      %v2155 = vunpack.c.h.b16 %v1814
      %v2156 = vunpack.c.l.b16 %v1815
      %v2157 = vunpack.c.h.b16 %v1815
      %v2158 = vunpack.c.l.b16 %v1816
      %v2159 = vunpack.c.h.b16 %v1816
      %v2160 = vunpack.c.l.b16 %v1817
      %v2161 = vunpack.c.h.b16 %v1817
      %v2162 = vunpack.c.l.b16 %v1818
      %v2163 = vunpack.c.h.b16 %v1818
      %v2164 = vunpack.c.l.b16 %v1819
      %v2165 = vunpack.c.h.b16 %v1819
      %v2166 = vunpack.c.l.b16 %v1820
      %v2167 = vunpack.c.h.b16 %v1820
      %v2168 = vunpack.c.l.b16 %v1821
      %v2169 = vunpack.c.h.b16 %v1821
      %v2170 = vunpack.c.l.b16 %v1822
      %v2171 = vunpack.c.h.b16 %v1822
      %v2172 = vunpack.c.l.b16 %v1823
      %v2173 = vunpack.c.h.b16 %v1823
      %v2174 = vunpack.c.l.b16 %v1824
      %v2175 = vunpack.c.h.b16 %v1824
      %v2176 = vunpack.c.l.b16 %v1825
      %v2177 = vunpack.c.h.b16 %v1825
      %v2178 = vunpack.c.l.b16 %v1826
      %v2179 = vunpack.c.h.b16 %v1826
      %v2180 = vunpack.c.l.b16 %v1827
      %v2181 = vunpack.c.h.b16 %v1827
      %v2182 = vunpack.c.l.b16 %v1828
      %v2183 = vunpack.c.h.b16 %v1828
      %v2184 = vunpack.c.l.b16 %v1829
      %v2185 = vunpack.c.h.b16 %v1829
      %v2186 = vunpack.c.l.b16 %v1830
      %v2187 = vunpack.c.h.b16 %v1830
      %v2188 = vunpack.c.l.b16 %v1831
      %v2189 = vunpack.c.h.b16 %v1831
      %v2190 = vunpack.c.l.b16 %v1832
      %v2191 = vunpack.c.h.b16 %v1832
      %v2192 = vunpack.c.l.b16 %v1833
      %v2193 = vunpack.c.h.b16 %v1833
      %v2194 = vunpack.c.l.b16 %v1834
      %v2195 = vunpack.c.h.b16 %v1834
      %v2196 = vunpack.c.l.b16 %v1835
      %v2197 = vunpack.c.h.b16 %v1835
      %v2198 = vunpack.c.l.b16 %v1836
      %v2199 = vunpack.c.h.b16 %v1836
      %v2200 = vunpack.c.l.b16 %v1837
      %v2201 = vunpack.c.h.b16 %v1837
      %v2202 = vunpack.c.l.b16 %v1838
      %v2203 = vunpack.c.h.b16 %v1838
      %v2204 = vunpack.c.l.b16 %v1839
      %v2205 = vunpack.c.h.b16 %v1839
      %v2206 = vunpack.c.l.b16 %v1840
      %v2207 = vunpack.c.h.b16 %v1840
      %v2208 = vunpack.c.l.b16 %v1841
      %v2209 = vunpack.c.h.b16 %v1841
      %v2210 = vunpack.c.l.b16 %v1842
      %v2211 = vunpack.c.h.b16 %v1842
      %v2212 = vunpack.c.l.b16 %v1843
      %v2213 = vunpack.c.h.b16 %v1843
      %v2214 = vunpack.c.l.b16 %v1844
      %v2215 = vunpack.c.h.b16 %v1844
      %v2216 = vunpack.c.l.b16 %v1845
      %v2217 = vunpack.c.h.b16 %v1845
      %v2218 = vunpack.c.l.b16 %v1846
      %v2219 = vunpack.c.h.b16 %v1846
      %v2220 = vunpack.c.l.b16 %v1847
      %v2221 = vunpack.c.h.b16 %v1847
      %v2222 = vunpack.c.l.b16 %v1848
      %v2223 = vunpack.c.h.b16 %v1848
      %v2224 = vunpack.c.l.b16 %v1849
      %v2225 = vunpack.c.h.b16 %v1849
      %v2226 = vunpack.c.l.b16 %v1850
      %v2227 = vunpack.c.h.b16 %v1850
      %v2228 = vunpack.c.l.b16 %v1851
      %v2229 = vunpack.c.h.b16 %v1851
      %v2230 = vunpack.c.l.b16 %v1852
      %v2231 = vunpack.c.h.b16 %v1852
      %v2232 = vunpack.c.l.b16 %v1853
      %v2233 = vunpack.c.h.b16 %v1853
      %v2234 = vunpack.c.l.b16 %v1854
      %v2235 = vunpack.c.h.b16 %v1854
      %v2236 = vunpack.c.l.b16 %v1855
      %v2237 = vunpack.c.h.b16 %v1855
      %v2238 = vunpack.c.l.b16 %v1856
      %v2239 = vunpack.c.h.b16 %v1856
      %v2240 = vunpack.c.l.b16 %v1857
      %v2241 = vunpack.c.h.b16 %v1857
      %v2242 = vunpack.c.l.b16 %v1858
      %v2243 = vunpack.c.h.b16 %v1858
      %v2244 = vunpack.c.l.b16 %v1859
      %v2245 = vunpack.c.h.b16 %v1859
      %v2246 = vunpack.c.l.b16 %v1860
      %v2247 = vunpack.c.h.b16 %v1860
      %v2248 = vunpack.c.l.b16 %v1861
      %v2249 = vunpack.c.h.b16 %v1861
      %v2250 = vunpack.c.l.b16 %v1862
      %v2251 = vunpack.c.h.b16 %v1862
      %v2252 = vunpack.c.l.b16 %v1863
      %v2253 = vunpack.c.h.b16 %v1863
      %v2254 = vunpack.c.l.b16 %v1864
      %v2255 = vunpack.c.h.b16 %v1864
      %v2256 = vunpack.c.l.b16 %v1865
      %v2257 = vunpack.c.h.b16 %v1865
      %v2258 = vunpack.c.l.b16 %v1866
      %v2259 = vunpack.c.h.b16 %v1866
      %v2260 = vunpack.c.l.b16 %v1867
      %v2261 = vunpack.c.h.b16 %v1867
      %v2262 = vpack.c.b16 %v2010, %v2006
      %v2263 = vpack.c.b16 %v2011, %v2007
      %v2264 = vpack.c.b16 %v2012, %v2008
      %v2265 = vpack.c.b16 %v2013, %v2009
      %v2266 = vpack.c.b16 %v2018, %v2014
      %v2267 = vpack.c.b16 %v2019, %v2015
      %v2268 = vpack.c.b16 %v2020, %v2016
      %v2269 = vpack.c.b16 %v2021, %v2017
      %v2270 = vpack.c.b16 %v2026, %v2022
      %v2271 = vpack.c.b16 %v2027, %v2023
      %v2272 = vpack.c.b16 %v2028, %v2024
      %v2273 = vpack.c.b16 %v2029, %v2025
      %v2274 = vpack.c.b16 %v2034, %v2030
      %v2275 = vpack.c.b16 %v2035, %v2031
      %v2276 = vpack.c.b16 %v2036, %v2032
      %v2277 = vpack.c.b16 %v2037, %v2033
      %v2278 = vpack.c.b16 %v2042, %v2038
      %v2279 = vpack.c.b16 %v2043, %v2039
      %v2280 = vpack.c.b16 %v2044, %v2040
      %v2281 = vpack.c.b16 %v2045, %v2041
      %v2282 = vpack.c.b16 %v2050, %v2046
      %v2283 = vpack.c.b16 %v2051, %v2047
      %v2284 = vpack.c.b16 %v2052, %v2048
      %v2285 = vpack.c.b16 %v2053, %v2049
      %v2286 = vpack.c.b16 %v2058, %v2054
      %v2287 = vpack.c.b16 %v2059, %v2055
      %v2288 = vpack.c.b16 %v2060, %v2056
      %v2289 = vpack.c.b16 %v2061, %v2057
      %v2290 = vpack.c.b16 %v2066, %v2062
      %v2291 = vpack.c.b16 %v2067, %v2063
      %v2292 = vpack.c.b16 %v2068, %v2064
      %v2293 = vpack.c.b16 %v2069, %v2065
      %v2294 = vpack.c.b16 %v2074, %v2070
      %v2295 = vpack.c.b16 %v2075, %v2071
      %v2296 = vpack.c.b16 %v2076, %v2072
      %v2297 = vpack.c.b16 %v2077, %v2073
      %v2298 = vpack.c.b16 %v2082, %v2078
      %v2299 = vpack.c.b16 %v2083, %v2079
      %v2300 = vpack.c.b16 %v2084, %v2080
      %v2301 = vpack.c.b16 %v2085, %v2081
      %v2302 = vpack.c.b16 %v2090, %v2086
      %v2303 = vpack.c.b16 %v2091, %v2087
      %v2304 = vpack.c.b16 %v2092, %v2088
      %v2305 = vpack.c.b16 %v2093, %v2089
      %v2306 = vpack.c.b16 %v2098, %v2094
      %v2307 = vpack.c.b16 %v2099, %v2095
      %v2308 = vpack.c.b16 %v2100, %v2096
      %v2309 = vpack.c.b16 %v2101, %v2097
      %v2310 = vpack.c.b16 %v2106, %v2102
      %v2311 = vpack.c.b16 %v2107, %v2103
      %v2312 = vpack.c.b16 %v2108, %v2104
      %v2313 = vpack.c.b16 %v2109, %v2105
      %v2314 = vpack.c.b16 %v2114, %v2110
      %v2315 = vpack.c.b16 %v2115, %v2111
      %v2316 = vpack.c.b16 %v2116, %v2112
      %v2317 = vpack.c.b16 %v2117, %v2113
      %v2318 = vpack.c.b16 %v2122, %v2118
      %v2319 = vpack.c.b16 %v2123, %v2119
      %v2320 = vpack.c.b16 %v2124, %v2120
      %v2321 = vpack.c.b16 %v2125, %v2121
      %v2322 = vpack.c.b16 %v2130, %v2126
      %v2323 = vpack.c.b16 %v2131, %v2127
      %v2324 = vpack.c.b16 %v2132, %v2128
      %v2325 = vpack.c.b16 %v2133, %v2129
      %v2326 = vpack.c.b16 %v2138, %v2134
      %v2327 = vpack.c.b16 %v2139, %v2135
      %v2328 = vpack.c.b16 %v2140, %v2136
      %v2329 = vpack.c.b16 %v2141, %v2137
      %v2330 = vpack.c.b16 %v2146, %v2142
      %v2331 = vpack.c.b16 %v2147, %v2143
      %v2332 = vpack.c.b16 %v2148, %v2144
      %v2333 = vpack.c.b16 %v2149, %v2145
      %v2334 = vpack.c.b16 %v2154, %v2150
      %v2335 = vpack.c.b16 %v2155, %v2151
      %v2336 = vpack.c.b16 %v2156, %v2152
      %v2337 = vpack.c.b16 %v2157, %v2153
      %v2338 = vpack.c.b16 %v2162, %v2158
      %v2339 = vpack.c.b16 %v2163, %v2159
      %v2340 = vpack.c.b16 %v2164, %v2160
      %v2341 = vpack.c.b16 %v2165, %v2161
      %v2342 = vpack.c.b16 %v2170, %v2166
      %v2343 = vpack.c.b16 %v2171, %v2167
      %v2344 = vpack.c.b16 %v2172, %v2168
      %v2345 = vpack.c.b16 %v2173, %v2169
      %v2346 = vpack.c.b16 %v2178, %v2174
      %v2347 = vpack.c.b16 %v2179, %v2175
      %v2348 = vpack.c.b16 %v2180, %v2176
      %v2349 = vpack.c.b16 %v2181, %v2177
      %v2350 = vpack.c.b16 %v2186, %v2182
      %v2351 = vpack.c.b16 %v2187, %v2183
      %v2352 = vpack.c.b16 %v2188, %v2184
      %v2353 = vpack.c.b16 %v2189, %v2185
      %v2354 = vpack.c.b16 %v2194, %v2190
      %v2355 = vpack.c.b16 %v2195, %v2191
      %v2356 = vpack.c.b16 %v2196, %v2192
      %v2357 = vpack.c.b16 %v2197, %v2193
      %v2358 = vpack.c.b16 %v2202, %v2198
      %v2359 = vpack.c.b16 %v2203, %v2199
      %v2360 = vpack.c.b16 %v2204, %v2200
      %v2361 = vpack.c.b16 %v2205, %v2201
      %v2362 = vpack.c.b16 %v2210, %v2206
      %v2363 = vpack.c.b16 %v2211, %v2207
      %v2364 = vpack.c.b16 %v2212, %v2208
      %v2365 = vpack.c.b16 %v2213, %v2209
      %v2366 = vpack.c.b16 %v2218, %v2214
      %v2367 = vpack.c.b16 %v2219, %v2215
      %v2368 = vpack.c.b16 %v2220, %v2216
      %v2369 = vpack.c.b16 %v2221, %v2217
      %v2370 = vpack.c.b16 %v2226, %v2222
      %v2371 = vpack.c.b16 %v2227, %v2223
      %v2372 = vpack.c.b16 %v2228, %v2224
      %v2373 = vpack.c.b16 %v2229, %v2225
      %v2374 = vpack.c.b16 %v2234, %v2230
      %v2375 = vpack.c.b16 %v2235, %v2231
      %v2376 = vpack.c.b16 %v2236, %v2232
      %v2377 = vpack.c.b16 %v2237, %v2233
      %v2378 = vpack.c.b16 %v2242, %v2238
      %v2379 = vpack.c.b16 %v2243, %v2239
      %v2380 = vpack.c.b16 %v2244, %v2240
      %v2381 = vpack.c.b16 %v2245, %v2241
      %v2382 = vpack.c.b16 %v2250, %v2246
      %v2383 = vpack.c.b16 %v2251, %v2247
      %v2384 = vpack.c.b16 %v2252, %v2248
      %v2385 = vpack.c.b16 %v2253, %v2249
      %v2386 = vpack.c.b16 %v2258, %v2254
      %v2387 = vpack.c.b16 %v2259, %v2255
      %v2388 = vpack.c.b16 %v2260, %v2256
      %v2389 = vpack.c.b16 %v2261, %v2257
      %2518 = vmatpush.bf16.msra.mxu0 %v2290
      %2519 = vmatpush.bf16.msra.mxu0 %v2286
      %2520 = vmatpush.bf16.msra.mxu0 %v2282
      %2521 = vmatpush.bf16.msra.mxu0 %v2278
      %2522 = vmatpush.bf16.msra.mxu0 %v2274
      %2523 = vmatpush.bf16.msra.mxu0 %v2270
      %2524 = vmatpush.bf16.msra.mxu0 %v2266
      %2525 = vmatpush.bf16.msra.mxu0 %v2262
      %2526 = vmatmul.bf16.gmra.mxu0 %v1732
      %v2527 = vpop.f32.mrf.mxu0
      %v2528 = vadd.f32 %v1870, %v2527
      %v2529 = vpop.f32.mrf.mxu0
      %v2530 = vadd.f32 %v1870, %v2529
      %2531 = vmatmul.bf16.gmra.mxu0 %v1736
      %v2532 = vpop.f32.mrf.mxu0
      %v2533 = vadd.f32 %v1870, %v2532
      %v2534 = vpop.f32.mrf.mxu0
      %v2535 = vadd.f32 %v1870, %v2534
      %2536 = vdwg.mxu0
      %2537 = vmatpush.bf16.msra.mxu0 %v2322
      %2538 = vmatpush.bf16.msra.mxu0 %v2318
      %2539 = vmatpush.bf16.msra.mxu0 %v2314
      %2540 = vmatpush.bf16.msra.mxu0 %v2310
      %2541 = vmatpush.bf16.msra.mxu0 %v2306
      %2542 = vmatpush.bf16.msra.mxu0 %v2302
      %2543 = vmatpush.bf16.msra.mxu0 %v2298
      %2544 = vmatpush.bf16.msra.mxu0 %v2294
      %2545 = vmatmul.bf16.gmra.mxu0 %v1733
      %v2546 = vpop.f32.mrf.mxu0
      %v2547 = vadd.f32 %v2528, %v2546
      %v2548 = vpop.f32.mrf.mxu0
      %v2549 = vadd.f32 %v2530, %v2548
      %2550 = vmatmul.bf16.gmra.mxu0 %v1737
      %v2551 = vpop.f32.mrf.mxu0
      %v2552 = vadd.f32 %v2533, %v2551
      %v2553 = vpop.f32.mrf.mxu0
      %v2554 = vadd.f32 %v2535, %v2553
      %2555 = vdwg.mxu0
      %2556 = vmatpush.bf16.msra.mxu0 %v2354
      %2557 = vmatpush.bf16.msra.mxu0 %v2350
      %2558 = vmatpush.bf16.msra.mxu0 %v2346
      %2559 = vmatpush.bf16.msra.mxu0 %v2342
      %2560 = vmatpush.bf16.msra.mxu0 %v2338
      %2561 = vmatpush.bf16.msra.mxu0 %v2334
      %2562 = vmatpush.bf16.msra.mxu0 %v2330
      %2563 = vmatpush.bf16.msra.mxu0 %v2326
      %2564 = vmatmul.bf16.gmra.mxu0 %v1734
      %v2565 = vpop.f32.mrf.mxu0
      %v2566 = vadd.f32 %v2547, %v2565
      %v2567 = vpop.f32.mrf.mxu0
      %v2568 = vadd.f32 %v2549, %v2567
      %2569 = vmatmul.bf16.gmra.mxu0 %v1738
      %v2570 = vpop.f32.mrf.mxu0
      %v2571 = vadd.f32 %v2552, %v2570
      %v2572 = vpop.f32.mrf.mxu0
      %v2573 = vadd.f32 %v2554, %v2572
      %2574 = vdwg.mxu0
      %2575 = vmatpush.bf16.msra.mxu0 %v2386
      %2576 = vmatpush.bf16.msra.mxu0 %v2382
      %2577 = vmatpush.bf16.msra.mxu0 %v2378
      %2578 = vmatpush.bf16.msra.mxu0 %v2374
      %2579 = vmatpush.bf16.msra.mxu0 %v2370
      %2580 = vmatpush.bf16.msra.mxu0 %v2366
      %2581 = vmatpush.bf16.msra.mxu0 %v2362
      %2582 = vmatpush.bf16.msra.mxu0 %v2358
      %2583 = vmatmul.bf16.gmra.mxu0 %v1735
      %v2584 = vpop.f32.mrf.mxu0
      %v2585 = vadd.f32 %v2566, %v2584
      %v2586 = vpop.f32.mrf.mxu0
      %v2587 = vadd.f32 %v2568, %v2586
      %2588 = vmatmul.bf16.gmra.mxu0 %v1739
      %v2589 = vpop.f32.mrf.mxu0
      %v2590 = vadd.f32 %v2571, %v2589
      %v2591 = vpop.f32.mrf.mxu0
      %v2592 = vadd.f32 %v2573, %v2591
      %2593 = vdwg.mxu0
      %2594 = vmatpush.bf16.msra.mxu0 %v2291
      %2595 = vmatpush.bf16.msra.mxu0 %v2287
      %2596 = vmatpush.bf16.msra.mxu0 %v2283
      %2597 = vmatpush.bf16.msra.mxu0 %v2279
      %2598 = vmatpush.bf16.msra.mxu0 %v2275
      %2599 = vmatpush.bf16.msra.mxu0 %v2271
      %2600 = vmatpush.bf16.msra.mxu0 %v2267
      %2601 = vmatpush.bf16.msra.mxu0 %v2263
      %2602 = vmatmul.bf16.gmra.mxu0 %v1732
      %v2603 = vpop.f32.mrf.mxu0
      %v2604 = vadd.f32 %v1871, %v2603
      %v2605 = vpop.f32.mrf.mxu0
      %v2606 = vadd.f32 %v1871, %v2605
      %2607 = vmatmul.bf16.gmra.mxu0 %v1736
      %v2608 = vpop.f32.mrf.mxu0
      %v2609 = vadd.f32 %v1871, %v2608
      %v2610 = vpop.f32.mrf.mxu0
      %v2611 = vadd.f32 %v1871, %v2610
      %2612 = vdwg.mxu0
      %2613 = vmatpush.bf16.msra.mxu0 %v2323
      %2614 = vmatpush.bf16.msra.mxu0 %v2319
      %2615 = vmatpush.bf16.msra.mxu0 %v2315
      %2616 = vmatpush.bf16.msra.mxu0 %v2311
      %2617 = vmatpush.bf16.msra.mxu0 %v2307
      %2618 = vmatpush.bf16.msra.mxu0 %v2303
      %2619 = vmatpush.bf16.msra.mxu0 %v2299
      %2620 = vmatpush.bf16.msra.mxu0 %v2295
      %2621 = vmatmul.bf16.gmra.mxu0 %v1733
      %v2622 = vpop.f32.mrf.mxu0
      %v2623 = vadd.f32 %v2604, %v2622
      %v2624 = vpop.f32.mrf.mxu0
      %v2625 = vadd.f32 %v2606, %v2624
      %2626 = vmatmul.bf16.gmra.mxu0 %v1737
      %v2627 = vpop.f32.mrf.mxu0
      %v2628 = vadd.f32 %v2609, %v2627
      %v2629 = vpop.f32.mrf.mxu0
      %v2630 = vadd.f32 %v2611, %v2629
      %2631 = vdwg.mxu0
      %2632 = vmatpush.bf16.msra.mxu0 %v2355
      %2633 = vmatpush.bf16.msra.mxu0 %v2351
      %2634 = vmatpush.bf16.msra.mxu0 %v2347
      %2635 = vmatpush.bf16.msra.mxu0 %v2343
      %2636 = vmatpush.bf16.msra.mxu0 %v2339
      %2637 = vmatpush.bf16.msra.mxu0 %v2335
      %2638 = vmatpush.bf16.msra.mxu0 %v2331
      %2639 = vmatpush.bf16.msra.mxu0 %v2327
      %2640 = vmatmul.bf16.gmra.mxu0 %v1734
      %v2641 = vpop.f32.mrf.mxu0
      %v2642 = vadd.f32 %v2623, %v2641
      %v2643 = vpop.f32.mrf.mxu0
      %v2644 = vadd.f32 %v2625, %v2643
      %2645 = vmatmul.bf16.gmra.mxu0 %v1738
      %v2646 = vpop.f32.mrf.mxu0
      %v2647 = vadd.f32 %v2628, %v2646
      %v2648 = vpop.f32.mrf.mxu0
      %v2649 = vadd.f32 %v2630, %v2648
      %2650 = vdwg.mxu0
      %2651 = vmatpush.bf16.msra.mxu0 %v2387
      %2652 = vmatpush.bf16.msra.mxu0 %v2383
      %2653 = vmatpush.bf16.msra.mxu0 %v2379
      %2654 = vmatpush.bf16.msra.mxu0 %v2375
      %2655 = vmatpush.bf16.msra.mxu0 %v2371
      %2656 = vmatpush.bf16.msra.mxu0 %v2367
      %2657 = vmatpush.bf16.msra.mxu0 %v2363
      %2658 = vmatpush.bf16.msra.mxu0 %v2359
      %2659 = vmatmul.bf16.gmra.mxu0 %v1735
      %v2660 = vpop.f32.mrf.mxu0
      %v2661 = vadd.f32 %v2642, %v2660
      %v2662 = vpop.f32.mrf.mxu0
      %v2663 = vadd.f32 %v2644, %v2662
      %2664 = vmatmul.bf16.gmra.mxu0 %v1739
      %v2665 = vpop.f32.mrf.mxu0
      %v2666 = vadd.f32 %v2647, %v2665
      %v2667 = vpop.f32.mrf.mxu0
      %v2668 = vadd.f32 %v2649, %v2667
      %2669 = vdwg.mxu0
      %2670 = vmatpush.bf16.msra.mxu0 %v2292
      %2671 = vmatpush.bf16.msra.mxu0 %v2288
      %2672 = vmatpush.bf16.msra.mxu0 %v2284
      %2673 = vmatpush.bf16.msra.mxu0 %v2280
      %2674 = vmatpush.bf16.msra.mxu0 %v2276
      %2675 = vmatpush.bf16.msra.mxu0 %v2272
      %2676 = vmatpush.bf16.msra.mxu0 %v2268
      %2677 = vmatpush.bf16.msra.mxu0 %v2264
      %2678 = vmatmul.bf16.gmra.mxu0 %v1732
      %v2679 = vpop.f32.mrf.mxu0
      %v2680 = vadd.f32 %v1872, %v2679
      %v2681 = vpop.f32.mrf.mxu0
      %v2682 = vadd.f32 %v1872, %v2681
      %2683 = vmatmul.bf16.gmra.mxu0 %v1736
      %v2684 = vpop.f32.mrf.mxu0
      %v2685 = vadd.f32 %v1872, %v2684
      %v2686 = vpop.f32.mrf.mxu0
      %v2687 = vadd.f32 %v1872, %v2686
      %2688 = vdwg.mxu0
      %2689 = vmatpush.bf16.msra.mxu0 %v2324
      %2690 = vmatpush.bf16.msra.mxu0 %v2320
      %2691 = vmatpush.bf16.msra.mxu0 %v2316
      %2692 = vmatpush.bf16.msra.mxu0 %v2312
      %2693 = vmatpush.bf16.msra.mxu0 %v2308
      %2694 = vmatpush.bf16.msra.mxu0 %v2304
      %2695 = vmatpush.bf16.msra.mxu0 %v2300
      %2696 = vmatpush.bf16.msra.mxu0 %v2296
      %2697 = vmatmul.bf16.gmra.mxu0 %v1733
      %v2698 = vpop.f32.mrf.mxu0
      %v2699 = vadd.f32 %v2680, %v2698
      %v2700 = vpop.f32.mrf.mxu0
      %v2701 = vadd.f32 %v2682, %v2700
      %2702 = vmatmul.bf16.gmra.mxu0 %v1737
      %v2703 = vpop.f32.mrf.mxu0
      %v2704 = vadd.f32 %v2685, %v2703
      %v2705 = vpop.f32.mrf.mxu0
      %v2706 = vadd.f32 %v2687, %v2705
      %2707 = vdwg.mxu0
      %2708 = vmatpush.bf16.msra.mxu0 %v2356
      %2709 = vmatpush.bf16.msra.mxu0 %v2352
      %2710 = vmatpush.bf16.msra.mxu0 %v2348
      %2711 = vmatpush.bf16.msra.mxu0 %v2344
      %2712 = vmatpush.bf16.msra.mxu0 %v2340
      %2713 = vmatpush.bf16.msra.mxu0 %v2336
      %2714 = vmatpush.bf16.msra.mxu0 %v2332
      %2715 = vmatpush.bf16.msra.mxu0 %v2328
      %2716 = vmatmul.bf16.gmra.mxu0 %v1734
      %v2717 = vpop.f32.mrf.mxu0
      %v2718 = vadd.f32 %v2699, %v2717
      %v2719 = vpop.f32.mrf.mxu0
      %v2720 = vadd.f32 %v2701, %v2719
      %2721 = vmatmul.bf16.gmra.mxu0 %v1738
      %v2722 = vpop.f32.mrf.mxu0
      %v2723 = vadd.f32 %v2704, %v2722
      %v2724 = vpop.f32.mrf.mxu0
      %v2725 = vadd.f32 %v2706, %v2724
      %2726 = vdwg.mxu0
      %2727 = vmatpush.bf16.msra.mxu0 %v2388
      %2728 = vmatpush.bf16.msra.mxu0 %v2384
      %2729 = vmatpush.bf16.msra.mxu0 %v2380
      %2730 = vmatpush.bf16.msra.mxu0 %v2376
      %2731 = vmatpush.bf16.msra.mxu0 %v2372
      %2732 = vmatpush.bf16.msra.mxu0 %v2368
      %2733 = vmatpush.bf16.msra.mxu0 %v2364
      %2734 = vmatpush.bf16.msra.mxu0 %v2360
      %2735 = vmatmul.bf16.gmra.mxu0 %v1735
      %v2736 = vpop.f32.mrf.mxu0
      %v2737 = vadd.f32 %v2718, %v2736
      %v2738 = vpop.f32.mrf.mxu0
      %v2739 = vadd.f32 %v2720, %v2738
      %2740 = vmatmul.bf16.gmra.mxu0 %v1739
      %v2741 = vpop.f32.mrf.mxu0
      %v2742 = vadd.f32 %v2723, %v2741
      %v2743 = vpop.f32.mrf.mxu0
      %v2744 = vadd.f32 %v2725, %v2743
      %2745 = vdwg.mxu0
      %2746 = vmatpush.bf16.msra.mxu0 %v2293
      %2747 = vmatpush.bf16.msra.mxu0 %v2289
      %2748 = vmatpush.bf16.msra.mxu0 %v2285
      %2749 = vmatpush.bf16.msra.mxu0 %v2281
      %2750 = vmatpush.bf16.msra.mxu0 %v2277
      %2751 = vmatpush.bf16.msra.mxu0 %v2273
      %2752 = vmatpush.bf16.msra.mxu0 %v2269
      %2753 = vmatpush.bf16.msra.mxu0 %v2265
      %2754 = vmatmul.bf16.gmra.mxu0 %v1732
      %v2755 = vpop.f32.mrf.mxu0
      %v2756 = vadd.f32 %v1873, %v2755
      %v2757 = vpop.f32.mrf.mxu0
      %v2758 = vadd.f32 %v1873, %v2757
      %2759 = vmatmul.bf16.gmra.mxu0 %v1736
      %v2760 = vpop.f32.mrf.mxu0
      %v2761 = vadd.f32 %v1873, %v2760
      %v2762 = vpop.f32.mrf.mxu0
      %v2763 = vadd.f32 %v1873, %v2762
      %2764 = vdwg.mxu0
      %2765 = vmatpush.bf16.msra.mxu0 %v2325
      %2766 = vmatpush.bf16.msra.mxu0 %v2321
      %2767 = vmatpush.bf16.msra.mxu0 %v2317
      %2768 = vmatpush.bf16.msra.mxu0 %v2313
      %2769 = vmatpush.bf16.msra.mxu0 %v2309
      %2770 = vmatpush.bf16.msra.mxu0 %v2305
      %2771 = vmatpush.bf16.msra.mxu0 %v2301
      %2772 = vmatpush.bf16.msra.mxu0 %v2297
      %2773 = vmatmul.bf16.gmra.mxu0 %v1733
      %v2774 = vpop.f32.mrf.mxu0
      %v2775 = vadd.f32 %v2756, %v2774
      %v2776 = vpop.f32.mrf.mxu0
      %v2777 = vadd.f32 %v2758, %v2776
      %2778 = vmatmul.bf16.gmra.mxu0 %v1737
      %v2779 = vpop.f32.mrf.mxu0
      %v2780 = vadd.f32 %v2761, %v2779
      %v2781 = vpop.f32.mrf.mxu0
      %v2782 = vadd.f32 %v2763, %v2781
      %2783 = vdwg.mxu0
      %2784 = vmatpush.bf16.msra.mxu0 %v2357
      %2785 = vmatpush.bf16.msra.mxu0 %v2353
      %2786 = vmatpush.bf16.msra.mxu0 %v2349
      %2787 = vmatpush.bf16.msra.mxu0 %v2345
      %2788 = vmatpush.bf16.msra.mxu0 %v2341
      %2789 = vmatpush.bf16.msra.mxu0 %v2337
      %2790 = vmatpush.bf16.msra.mxu0 %v2333
      %2791 = vmatpush.bf16.msra.mxu0 %v2329
      %2792 = vmatmul.bf16.gmra.mxu0 %v1734
      %v2793 = vpop.f32.mrf.mxu0
      %v2794 = vadd.f32 %v2775, %v2793
      %v2795 = vpop.f32.mrf.mxu0
      %v2796 = vadd.f32 %v2777, %v2795
      %2797 = vmatmul.bf16.gmra.mxu0 %v1738
      %v2798 = vpop.f32.mrf.mxu0
      %v2799 = vadd.f32 %v2780, %v2798
      %v2800 = vpop.f32.mrf.mxu0
      %v2801 = vadd.f32 %v2782, %v2800
      %2802 = vdwg.mxu0
      %2803 = vmatpush.bf16.msra.mxu0 %v2389
      %2804 = vmatpush.bf16.msra.mxu0 %v2385
      %2805 = vmatpush.bf16.msra.mxu0 %v2381
      %2806 = vmatpush.bf16.msra.mxu0 %v2377
      %2807 = vmatpush.bf16.msra.mxu0 %v2373
      %2808 = vmatpush.bf16.msra.mxu0 %v2369
      %2809 = vmatpush.bf16.msra.mxu0 %v2365
      %2810 = vmatpush.bf16.msra.mxu0 %v2361
      %2811 = vmatmul.bf16.gmra.mxu0 %v1735
      %v2812 = vpop.f32.mrf.mxu0
      %v2813 = vadd.f32 %v2794, %v2812
      %v2814 = vpop.f32.mrf.mxu0
      %v2815 = vadd.f32 %v2796, %v2814
      %2816 = vmatmul.bf16.gmra.mxu0 %v1739
      %v2817 = vpop.f32.mrf.mxu0
      %v2818 = vadd.f32 %v2799, %v2817
      %v2819 = vpop.f32.mrf.mxu0
      %v2820 = vadd.f32 %v2801, %v2819
      %2821 = vdwg.mxu0
      %vm2822 = vcmp.gt.f32.partialorder %v2585, 0.0
      %vm2823 = vcmp.gt.f32.partialorder %v2661, 0.0
      %vm2824 = vcmp.gt.f32.partialorder %v2737, 0.0
      %vm2825 = vcmp.gt.f32.partialorder %v2813, 0.0
      %vm2826 = vcmp.gt.f32.partialorder %v2587, 0.0
      %vm2827 = vcmp.gt.f32.partialorder %v2663, 0.0
      %vm2828 = vcmp.gt.f32.partialorder %v2739, 0.0
      %vm2829 = vcmp.gt.f32.partialorder %v2815, 0.0
      %vm2830 = vcmp.gt.f32.partialorder %v2590, 0.0
      %vm2831 = vcmp.gt.f32.partialorder %v2666, 0.0
      %vm2832 = vcmp.gt.f32.partialorder %v2742, 0.0
      %vm2833 = vcmp.gt.f32.partialorder %v2818, 0.0
      %vm2834 = vcmp.gt.f32.partialorder %v2592, 0.0
      %vm2835 = vcmp.gt.f32.partialorder %v2668, 0.0
      %vm2836 = vcmp.gt.f32.partialorder %v2744, 0.0
      %vm2837 = vcmp.gt.f32.partialorder %v2820, 0.0
      %v2838 = vmul.f32 %v2585, 0.01
      %v2839 = vmul.f32 %v2661, 0.01
      %v2840 = vmul.f32 %v2737, 0.01
      %v2841 = vmul.f32 %v2813, 0.01
      %v2842 = vmul.f32 %v2587, 0.01
      %v2843 = vmul.f32 %v2663, 0.01
      %v2844 = vmul.f32 %v2739, 0.01
      %v2845 = vmul.f32 %v2815, 0.01
      %v2846 = vmul.f32 %v2590, 0.01
      %v2847 = vmul.f32 %v2666, 0.01
      %v2848 = vmul.f32 %v2742, 0.01
      %v2849 = vmul.f32 %v2818, 0.01
      %v2850 = vmul.f32 %v2592, 0.01
      %v2851 = vmul.f32 %v2668, 0.01
      %v2852 = vmul.f32 %v2744, 0.01
      %v2853 = vmul.f32 %v2820, 0.01
      %v2854 = vsel %vm2822, %v2585, %v2838
      %v2855 = vsel %vm2823, %v2661, %v2839
      %v2856 = vsel %vm2824, %v2737, %v2840
      %v2857 = vsel %vm2825, %v2813, %v2841
      %v2858 = vsel %vm2826, %v2587, %v2842
      %v2859 = vsel %vm2827, %v2663, %v2843
      %v2860 = vsel %vm2828, %v2739, %v2844
      %v2861 = vsel %vm2829, %v2815, %v2845
      %v2862 = vsel %vm2830, %v2590, %v2846
      %v2863 = vsel %vm2831, %v2666, %v2847
      %v2864 = vsel %vm2832, %v2742, %v2848
      %v2865 = vsel %vm2833, %v2818, %v2849
      %v2866 = vsel %vm2834, %v2592, %v2850
      %v2867 = vsel %vm2835, %v2668, %v2851
      %v2868 = vsel %vm2836, %v2744, %v2852
      %v2869 = vsel %vm2837, %v2820, %v2853
      %v2870 = vpack.c.bf16 %v2858, %v2854
      %v2871 = vpack.c.bf16 %v2859, %v2855
      %v2872 = vpack.c.bf16 %v2860, %v2856
      %v2873 = vpack.c.bf16 %v2861, %v2857
      %v2874 = vpack.c.bf16 %v2866, %v2862
      %v2875 = vpack.c.bf16 %v2867, %v2863
      %v2876 = vpack.c.bf16 %v2868, %v2864
      %v2877 = vpack.c.bf16 %v2869, %v2865
      %v2878 = vld [vmem:[%s10] sm:$0xf]
      %v2879 = vld [vmem:[%s10 + $0x4] sm:$0xf]
      %v2880 = vld [vmem:[%s10 + $0x8] sm:$0xf]
      %v2881 = vld [vmem:[%s10 + $0xc] sm:$0xf]
      %v2882 = vld [vmem:[%s10 + $0x10] sm:$0xf]
      %v2883 = vld [vmem:[%s10 + $0x14] sm:$0xf]
      %v2884 = vld [vmem:[%s10 + $0x18] sm:$0xf]
      %v2885 = vld [vmem:[%s10 + $0x1c] sm:$0xf]
      %v2886 = vld [vmem:[%s10 + $0x20] sm:$0xf]
      %v2887 = vld [vmem:[%s10 + $0x24] sm:$0xf]
      %v2888 = vld [vmem:[%s10 + $0x28] sm:$0xf]
      %v2889 = vld [vmem:[%s10 + $0x2c] sm:$0xf]
      %v2890 = vld [vmem:[%s10 + $0x30] sm:$0xf]
      %v2891 = vld [vmem:[%s10 + $0x34] sm:$0xf]
      %v2892 = vld [vmem:[%s10 + $0x38] sm:$0xf]
      %v2893 = vld [vmem:[%s10 + $0x3c] sm:$0xf]
      %v2894 = vld [vmem:[%s10 + $0x40] sm:$0xf]
      %v2895 = vld [vmem:[%s10 + $0x44] sm:$0xf]
      %v2896 = vld [vmem:[%s10 + $0x48] sm:$0xf]
      %v2897 = vld [vmem:[%s10 + $0x4c] sm:$0xf]
      %v2898 = vld [vmem:[%s10 + $0x50] sm:$0xf]
      %v2899 = vld [vmem:[%s10 + $0x54] sm:$0xf]
      %v2900 = vld [vmem:[%s10 + $0x58] sm:$0xf]
      %v2901 = vld [vmem:[%s10 + $0x5c] sm:$0xf]
      %v2902 = vld [vmem:[%s10 + $0x60] sm:$0xf]
      %v2903 = vld [vmem:[%s10 + $0x64] sm:$0xf]
      %v2904 = vld [vmem:[%s10 + $0x68] sm:$0xf]
      %v2905 = vld [vmem:[%s10 + $0x6c] sm:$0xf]
      %v2906 = vld [vmem:[%s10 + $0x70] sm:$0xf]
      %v2907 = vld [vmem:[%s10 + $0x74] sm:$0xf]
      %v2908 = vld [vmem:[%s10 + $0x78] sm:$0xf]
      %v2909 = vld [vmem:[%s10 + $0x7c] sm:$0xf]
      %v2910 = vld [vmem:[%s10 + $0x80] sm:$0xf]
      %v2911 = vld [vmem:[%s10 + $0x84] sm:$0xf]
      %v2912 = vld [vmem:[%s10 + $0x88] sm:$0xf]
      %v2913 = vld [vmem:[%s10 + $0x8c] sm:$0xf]
      %v2914 = vld [vmem:[%s10 + $0x90] sm:$0xf]
      %v2915 = vld [vmem:[%s10 + $0x94] sm:$0xf]
      %v2916 = vld [vmem:[%s10 + $0x98] sm:$0xf]
      %v2917 = vld [vmem:[%s10 + $0x9c] sm:$0xf]
      %v2918 = vld [vmem:[%s10 + $0xa0] sm:$0xf]
      %v2919 = vld [vmem:[%s10 + $0xa4] sm:$0xf]
      %v2920 = vld [vmem:[%s10 + $0xa8] sm:$0xf]
      %v2921 = vld [vmem:[%s10 + $0xac] sm:$0xf]
      %v2922 = vld [vmem:[%s10 + $0xb0] sm:$0xf]
      %v2923 = vld [vmem:[%s10 + $0xb4] sm:$0xf]
      %v2924 = vld [vmem:[%s10 + $0xb8] sm:$0xf]
      %v2925 = vld [vmem:[%s10 + $0xbc] sm:$0xf]
      %v2926 = vld [vmem:[%s10 + $0xc0] sm:$0xf]
      %v2927 = vld [vmem:[%s10 + $0xc4] sm:$0xf]
      %v2928 = vld [vmem:[%s10 + $0xc8] sm:$0xf]
      %v2929 = vld [vmem:[%s10 + $0xcc] sm:$0xf]
      %v2930 = vld [vmem:[%s10 + $0xd0] sm:$0xf]
      %v2931 = vld [vmem:[%s10 + $0xd4] sm:$0xf]
      %v2932 = vld [vmem:[%s10 + $0xd8] sm:$0xf]
      %v2933 = vld [vmem:[%s10 + $0xdc] sm:$0xf]
      %v2934 = vld [vmem:[%s10 + $0xe0] sm:$0xf]
      %v2935 = vld [vmem:[%s10 + $0xe4] sm:$0xf]
      %v2936 = vld [vmem:[%s10 + $0xe8] sm:$0xf]
      %v2937 = vld [vmem:[%s10 + $0xec] sm:$0xf]
      %v2938 = vld [vmem:[%s10 + $0xf0] sm:$0xf]
      %v2939 = vld [vmem:[%s10 + $0xf4] sm:$0xf]
      %v2940 = vld [vmem:[%s10 + $0xf8] sm:$0xf]
      %v2941 = vld [vmem:[%s10 + $0xfc] sm:$0xf]
      %v2942 = vld [vmem:[%s11] sm:$0x1]
      %v2944 = vperm.slane %v2942, 0
      %v3010 = vunpack.c.l.b16 %v2878
      %v3011 = vunpack.c.l.b16 %v2879
      %v3012 = vunpack.c.l.b16 %v2880
      %v3013 = vunpack.c.l.b16 %v2881
      %v3014 = vunpack.c.l.b16 %v2882
      %v3015 = vunpack.c.l.b16 %v2883
      %v3016 = vunpack.c.l.b16 %v2884
      %v3017 = vunpack.c.l.b16 %v2885
      %v3018 = vunpack.c.l.b16 %v2886
      %v3019 = vunpack.c.l.b16 %v2887
      %v3020 = vunpack.c.l.b16 %v2888
      %v3021 = vunpack.c.l.b16 %v2889
      %v3022 = vunpack.c.l.b16 %v2890
      %v3023 = vunpack.c.l.b16 %v2891
      %v3024 = vunpack.c.l.b16 %v2892
      %v3025 = vunpack.c.l.b16 %v2893
      %v3026 = vunpack.c.l.b16 %v2894
      %v3027 = vunpack.c.l.b16 %v2895
      %v3028 = vunpack.c.l.b16 %v2896
      %v3029 = vunpack.c.l.b16 %v2897
      %v3030 = vunpack.c.l.b16 %v2898
      %v3031 = vunpack.c.l.b16 %v2899
      %v3032 = vunpack.c.l.b16 %v2900
      %v3033 = vunpack.c.l.b16 %v2901
      %v3034 = vunpack.c.l.b16 %v2902
      %v3035 = vunpack.c.l.b16 %v2903
      %v3036 = vunpack.c.l.b16 %v2904
      %v3037 = vunpack.c.l.b16 %v2905
      %v3038 = vunpack.c.l.b16 %v2906
      %v3039 = vunpack.c.l.b16 %v2907
      %v3040 = vunpack.c.l.b16 %v2908
      %v3041 = vunpack.c.l.b16 %v2909
      %v3042 = vunpack.c.l.b16 %v2910
      %v3043 = vunpack.c.l.b16 %v2911
      %v3044 = vunpack.c.l.b16 %v2912
      %v3045 = vunpack.c.l.b16 %v2913
      %v3046 = vunpack.c.l.b16 %v2914
      %v3047 = vunpack.c.l.b16 %v2915
      %v3048 = vunpack.c.l.b16 %v2916
      %v3049 = vunpack.c.l.b16 %v2917
      %v3050 = vunpack.c.l.b16 %v2918
      %v3051 = vunpack.c.l.b16 %v2919
      %v3052 = vunpack.c.l.b16 %v2920
      %v3053 = vunpack.c.l.b16 %v2921
      %v3054 = vunpack.c.l.b16 %v2922
      %v3055 = vunpack.c.l.b16 %v2923
      %v3056 = vunpack.c.l.b16 %v2924
      %v3057 = vunpack.c.l.b16 %v2925
      %v3058 = vunpack.c.l.b16 %v2926
      %v3059 = vunpack.c.l.b16 %v2927
      %v3060 = vunpack.c.l.b16 %v2928
      %v3061 = vunpack.c.l.b16 %v2929
      %v3062 = vunpack.c.l.b16 %v2930
      %v3063 = vunpack.c.l.b16 %v2931
      %v3064 = vunpack.c.l.b16 %v2932
      %v3065 = vunpack.c.l.b16 %v2933
      %v3066 = vunpack.c.l.b16 %v2934
      %v3067 = vunpack.c.l.b16 %v2935
      %v3068 = vunpack.c.l.b16 %v2936
      %v3069 = vunpack.c.l.b16 %v2937
      %v3070 = vunpack.c.l.b16 %v2938
      %v3071 = vunpack.c.l.b16 %v2939
      %v3072 = vunpack.c.l.b16 %v2940
      %v3073 = vunpack.c.l.b16 %v2941
      %v3074 = vpack.c.b16 %v3011, %v3010
      %v3075 = vpack.c.b16 %v3013, %v3012
      %v3076 = vpack.c.b16 %v3015, %v3014
      %v3077 = vpack.c.b16 %v3017, %v3016
      %v3078 = vpack.c.b16 %v3019, %v3018
      %v3079 = vpack.c.b16 %v3021, %v3020
      %v3080 = vpack.c.b16 %v3023, %v3022
      %v3081 = vpack.c.b16 %v3025, %v3024
      %v3082 = vpack.c.b16 %v3027, %v3026
      %v3083 = vpack.c.b16 %v3029, %v3028
      %v3084 = vpack.c.b16 %v3031, %v3030
      %v3085 = vpack.c.b16 %v3033, %v3032
      %v3086 = vpack.c.b16 %v3035, %v3034
      %v3087 = vpack.c.b16 %v3037, %v3036
      %v3088 = vpack.c.b16 %v3039, %v3038
      %v3089 = vpack.c.b16 %v3041, %v3040
      %v3090 = vpack.c.b16 %v3043, %v3042
      %v3091 = vpack.c.b16 %v3045, %v3044
      %v3092 = vpack.c.b16 %v3047, %v3046
      %v3093 = vpack.c.b16 %v3049, %v3048
      %v3094 = vpack.c.b16 %v3051, %v3050
      %v3095 = vpack.c.b16 %v3053, %v3052
      %v3096 = vpack.c.b16 %v3055, %v3054
      %v3097 = vpack.c.b16 %v3057, %v3056
      %v3098 = vpack.c.b16 %v3059, %v3058
      %v3099 = vpack.c.b16 %v3061, %v3060
      %v3100 = vpack.c.b16 %v3063, %v3062
      %v3101 = vpack.c.b16 %v3065, %v3064
      %v3102 = vpack.c.b16 %v3067, %v3066
      %v3103 = vpack.c.b16 %v3069, %v3068
      %v3104 = vpack.c.b16 %v3071, %v3070
      %v3105 = vpack.c.b16 %v3073, %v3072
      %3138 = vmatpush.bf16.msra.mxu0 %v3081
      %3139 = vmatpush.bf16.msra.mxu0 %v3080
      %3140 = vmatpush.bf16.msra.mxu0 %v3079
      %3141 = vmatpush.bf16.msra.mxu0 %v3078
      %3142 = vmatpush.bf16.msra.mxu0 %v3077
      %3143 = vmatpush.bf16.msra.mxu0 %v3076
      %3144 = vmatpush.bf16.msra.mxu0 %v3075
      %3145 = vmatpush.bf16.msra.mxu0 %v3074
      %3146 = vmatmul.bf16.gmra.mxu0 %v2870
      %v3147 = vpop.f32.mrf.mxu0
      %v3148 = vadd.f32 %v2944, %v3147
      %v3149 = vpop.f32.mrf.mxu0
      %v3150 = vadd.f32 %v2944, %v3149
      %3151 = vmatmul.bf16.gmra.mxu0 %v2874
      %v3152 = vpop.f32.mrf.mxu0
      %v3153 = vadd.f32 %v2944, %v3152
      %v3154 = vpop.f32.mrf.mxu0
      %v3155 = vadd.f32 %v2944, %v3154
      %3156 = vdwg.mxu0
      %3157 = vmatpush.bf16.msra.mxu0 %v3089
      %3158 = vmatpush.bf16.msra.mxu0 %v3088
      %3159 = vmatpush.bf16.msra.mxu0 %v3087
      %3160 = vmatpush.bf16.msra.mxu0 %v3086
      %3161 = vmatpush.bf16.msra.mxu0 %v3085
      %3162 = vmatpush.bf16.msra.mxu0 %v3084
      %3163 = vmatpush.bf16.msra.mxu0 %v3083
      %3164 = vmatpush.bf16.msra.mxu0 %v3082
      %3165 = vmatmul.bf16.gmra.mxu0 %v2871
      %v3166 = vpop.f32.mrf.mxu0
      %v3167 = vadd.f32 %v3148, %v3166
      %v3168 = vpop.f32.mrf.mxu0
      %v3169 = vadd.f32 %v3150, %v3168
      %3170 = vmatmul.bf16.gmra.mxu0 %v2875
      %v3171 = vpop.f32.mrf.mxu0
      %v3172 = vadd.f32 %v3153, %v3171
      %v3173 = vpop.f32.mrf.mxu0
      %v3174 = vadd.f32 %v3155, %v3173
      %3175 = vdwg.mxu0
      %3176 = vmatpush.bf16.msra.mxu0 %v3097
      %3177 = vmatpush.bf16.msra.mxu0 %v3096
      %3178 = vmatpush.bf16.msra.mxu0 %v3095
      %3179 = vmatpush.bf16.msra.mxu0 %v3094
      %3180 = vmatpush.bf16.msra.mxu0 %v3093
      %3181 = vmatpush.bf16.msra.mxu0 %v3092
      %3182 = vmatpush.bf16.msra.mxu0 %v3091
      %3183 = vmatpush.bf16.msra.mxu0 %v3090
      %3184 = vmatmul.bf16.gmra.mxu0 %v2872
      %v3185 = vpop.f32.mrf.mxu0
      %v3186 = vadd.f32 %v3167, %v3185
      %v3187 = vpop.f32.mrf.mxu0
      %v3188 = vadd.f32 %v3169, %v3187
      %3189 = vmatmul.bf16.gmra.mxu0 %v2876
      %v3190 = vpop.f32.mrf.mxu0
      %v3191 = vadd.f32 %v3172, %v3190
      %v3192 = vpop.f32.mrf.mxu0
      %v3193 = vadd.f32 %v3174, %v3192
      %3194 = vdwg.mxu0
      %3195 = vmatpush.bf16.msra.mxu0 %v3105
      %3196 = vmatpush.bf16.msra.mxu0 %v3104
      %3197 = vmatpush.bf16.msra.mxu0 %v3103
      %3198 = vmatpush.bf16.msra.mxu0 %v3102
      %3199 = vmatpush.bf16.msra.mxu0 %v3101
      %3200 = vmatpush.bf16.msra.mxu0 %v3100
      %3201 = vmatpush.bf16.msra.mxu0 %v3099
      %3202 = vmatpush.bf16.msra.mxu0 %v3098
      %3203 = vmatmul.bf16.gmra.mxu0 %v2873
      %v3204 = vpop.f32.mrf.mxu0
      %v3205 = vadd.f32 %v3186, %v3204
      %v3206 = vpop.f32.mrf.mxu0
      %v3207 = vadd.f32 %v3188, %v3206
      %3208 = vmatmul.bf16.gmra.mxu0 %v2877
      %v3209 = vpop.f32.mrf.mxu0
      %v3210 = vadd.f32 %v3191, %v3209
      %v3211 = vpop.f32.mrf.mxu0
      %v3212 = vadd.f32 %v3193, %v3211
      %3213 = vdwg.mxu0
      %3214 = vst [vmem:[%s583] sm:$0xff] %v3205
      %3215 = vst [vmem:[%s583 + $0x8] sm:$0xff] %v3207
      %3216 = vst [vmem:[%s583 + $0x10] sm:$0xff] %v3210
      %3217 = vst [vmem:[%s583 + $0x18] sm:$0xff] %v3212
      %v3218 = vld [vmem:[%s12] sm:$0xff]
      %v3219 = vld [vmem:[%s12 + $0x8] sm:$0xff]
      %v3220 = vld [vmem:[%s12 + $0x10] sm:$0xff]
      %v3221 = vld [vmem:[%s12 + $0x18] sm:$0xff]
      %v3222 = vld [vmem:[%s12 + $0x20] sm:$0xff]
      %v3223 = vld [vmem:[%s12 + $0x28] sm:$0xff]
      %v3224 = vld [vmem:[%s12 + $0x30] sm:$0xff]
      %v3225 = vld [vmem:[%s12 + $0x38] sm:$0xff]
      %v3226 = vld [vmem:[%s12 + $0x40] sm:$0xff]
      %v3227 = vld [vmem:[%s12 + $0x48] sm:$0xff]
      %v3228 = vld [vmem:[%s12 + $0x50] sm:$0xff]
      %v3229 = vld [vmem:[%s12 + $0x58] sm:$0xff]
      %v3230 = vld [vmem:[%s12 + $0x60] sm:$0xff]
      %v3231 = vld [vmem:[%s12 + $0x68] sm:$0xff]
      %v3232 = vld [vmem:[%s12 + $0x70] sm:$0xff]
      %v3233 = vld [vmem:[%s12 + $0x78] sm:$0xff]
      %v3234 = vld [vmem:[%s12 + $0x80] sm:$0xff]
      %v3235 = vld [vmem:[%s12 + $0x88] sm:$0xff]
      %v3236 = vld [vmem:[%s12 + $0x90] sm:$0xff]
      %v3237 = vld [vmem:[%s12 + $0x98] sm:$0xff]
      %v3238 = vld [vmem:[%s12 + $0xa0] sm:$0xff]
      %v3239 = vld [vmem:[%s12 + $0xa8] sm:$0xff]
      %v3240 = vld [vmem:[%s12 + $0xb0] sm:$0xff]
      %v3241 = vld [vmem:[%s12 + $0xb8] sm:$0xff]
      %v3242 = vld [vmem:[%s12 + $0xc0] sm:$0xff]
      %v3243 = vld [vmem:[%s12 + $0xc8] sm:$0xff]
      %v3244 = vld [vmem:[%s12 + $0xd0] sm:$0xff]
      %v3245 = vld [vmem:[%s12 + $0xd8] sm:$0xff]
      %v3246 = vld [vmem:[%s12 + $0xe0] sm:$0xff]
      %v3247 = vld [vmem:[%s12 + $0xe8] sm:$0xff]
      %v3248 = vld [vmem:[%s12 + $0xf0] sm:$0xff]
      %v3249 = vld [vmem:[%s12 + $0xf8] sm:$0xff]
      %v3250 = vld [vmem:[%s12 + $0x100] sm:$0xff]
      %v3251 = vld [vmem:[%s12 + $0x108] sm:$0xff]
      %v3252 = vld [vmem:[%s12 + $0x110] sm:$0xff]
      %v3253 = vld [vmem:[%s12 + $0x118] sm:$0xff]
      %v3254 = vld [vmem:[%s12 + $0x120] sm:$0xff]
      %v3255 = vld [vmem:[%s12 + $0x128] sm:$0xff]
      %v3256 = vld [vmem:[%s12 + $0x130] sm:$0xff]
      %v3257 = vld [vmem:[%s12 + $0x138] sm:$0xff]
      %v3258 = vld [vmem:[%s12 + $0x140] sm:$0xff]
      %v3259 = vld [vmem:[%s12 + $0x148] sm:$0xff]
      %v3260 = vld [vmem:[%s12 + $0x150] sm:$0xff]
      %v3261 = vld [vmem:[%s12 + $0x158] sm:$0xff]
      %v3262 = vld [vmem:[%s12 + $0x160] sm:$0xff]
      %v3263 = vld [vmem:[%s12 + $0x168] sm:$0xff]
      %v3264 = vld [vmem:[%s12 + $0x170] sm:$0xff]
      %v3265 = vld [vmem:[%s12 + $0x178] sm:$0xff]
      %v3266 = vld [vmem:[%s12 + $0x180] sm:$0xff]
      %v3267 = vld [vmem:[%s12 + $0x188] sm:$0xff]
      %v3268 = vld [vmem:[%s12 + $0x190] sm:$0xff]
      %v3269 = vld [vmem:[%s12 + $0x198] sm:$0xff]
      %v3270 = vld [vmem:[%s12 + $0x1a0] sm:$0xff]
      %v3271 = vld [vmem:[%s12 + $0x1a8] sm:$0xff]
      %v3272 = vld [vmem:[%s12 + $0x1b0] sm:$0xff]
      %v3273 = vld [vmem:[%s12 + $0x1b8] sm:$0xff]
      %v3274 = vld [vmem:[%s12 + $0x1c0] sm:$0xff]
      %v3275 = vld [vmem:[%s12 + $0x1c8] sm:$0xff]
      %v3276 = vld [vmem:[%s12 + $0x1d0] sm:$0xff]
      %v3277 = vld [vmem:[%s12 + $0x1d8] sm:$0xff]
      %v3278 = vld [vmem:[%s12 + $0x1e0] sm:$0xff]
      %v3279 = vld [vmem:[%s12 + $0x1e8] sm:$0xff]
      %v3280 = vld [vmem:[%s12 + $0x1f0] sm:$0xff]
      %v3281 = vld [vmem:[%s12 + $0x1f8] sm:$0xff]
      %v3282 = vld [vmem:[%s12 + $0x200] sm:$0xff]
      %v3283 = vld [vmem:[%s12 + $0x208] sm:$0xff]
      %v3284 = vld [vmem:[%s12 + $0x210] sm:$0xff]
      %v3285 = vld [vmem:[%s12 + $0x218] sm:$0xff]
      %v3286 = vld [vmem:[%s12 + $0x220] sm:$0xff]
      %v3287 = vld [vmem:[%s12 + $0x228] sm:$0xff]
      %v3288 = vld [vmem:[%s12 + $0x230] sm:$0xff]
      %v3289 = vld [vmem:[%s12 + $0x238] sm:$0xff]
      %v3290 = vld [vmem:[%s12 + $0x240] sm:$0xff]
      %v3291 = vld [vmem:[%s12 + $0x248] sm:$0xff]
      %v3292 = vld [vmem:[%s12 + $0x250] sm:$0xff]
      %v3293 = vld [vmem:[%s12 + $0x258] sm:$0xff]
      %v3294 = vld [vmem:[%s12 + $0x260] sm:$0xff]
      %v3295 = vld [vmem:[%s12 + $0x268] sm:$0xff]
      %v3296 = vld [vmem:[%s12 + $0x270] sm:$0xff]
      %v3297 = vld [vmem:[%s12 + $0x278] sm:$0xff]
      %v3298 = vld [vmem:[%s12 + $0x280] sm:$0xff]
      %v3299 = vld [vmem:[%s12 + $0x288] sm:$0xff]
      %v3300 = vld [vmem:[%s12 + $0x290] sm:$0xff]
      %v3301 = vld [vmem:[%s12 + $0x298] sm:$0xff]
      %v3302 = vld [vmem:[%s12 + $0x2a0] sm:$0xff]
      %v3303 = vld [vmem:[%s12 + $0x2a8] sm:$0xff]
      %v3304 = vld [vmem:[%s12 + $0x2b0] sm:$0xff]
      %v3305 = vld [vmem:[%s12 + $0x2b8] sm:$0xff]
      %v3306 = vld [vmem:[%s12 + $0x2c0] sm:$0xff]
      %v3307 = vld [vmem:[%s12 + $0x2c8] sm:$0xff]
      %v3308 = vld [vmem:[%s12 + $0x2d0] sm:$0xff]
      %v3309 = vld [vmem:[%s12 + $0x2d8] sm:$0xff]
      %v3310 = vld [vmem:[%s12 + $0x2e0] sm:$0xff]
      %v3311 = vld [vmem:[%s12 + $0x2e8] sm:$0xff]
      %v3312 = vld [vmem:[%s12 + $0x2f0] sm:$0xff]
      %v3313 = vld [vmem:[%s12 + $0x2f8] sm:$0xff]
      %v3314 = vld [vmem:[%s12 + $0x300] sm:$0xff]
      %v3315 = vld [vmem:[%s12 + $0x308] sm:$0xff]
      %v3316 = vld [vmem:[%s12 + $0x310] sm:$0xff]
      %v3317 = vld [vmem:[%s12 + $0x318] sm:$0xff]
      %v3318 = vld [vmem:[%s12 + $0x320] sm:$0xff]
      %v3319 = vld [vmem:[%s12 + $0x328] sm:$0xff]
      %v3320 = vld [vmem:[%s12 + $0x330] sm:$0xff]
      %v3321 = vld [vmem:[%s12 + $0x338] sm:$0xff]
      %v3322 = vld [vmem:[%s12 + $0x340] sm:$0xff]
      %v3323 = vld [vmem:[%s12 + $0x348] sm:$0xff]
      %v3324 = vld [vmem:[%s12 + $0x350] sm:$0xff]
      %v3325 = vld [vmem:[%s12 + $0x358] sm:$0xff]
      %v3326 = vld [vmem:[%s12 + $0x360] sm:$0xff]
      %v3327 = vld [vmem:[%s12 + $0x368] sm:$0xff]
      %v3328 = vld [vmem:[%s12 + $0x370] sm:$0xff]
      %v3329 = vld [vmem:[%s12 + $0x378] sm:$0xff]
      %v3330 = vld [vmem:[%s12 + $0x380] sm:$0xff]
      %v3331 = vld [vmem:[%s12 + $0x388] sm:$0xff]
      %v3332 = vld [vmem:[%s12 + $0x390] sm:$0xff]
      %v3333 = vld [vmem:[%s12 + $0x398] sm:$0xff]
      %v3334 = vld [vmem:[%s12 + $0x3a0] sm:$0xff]
      %v3335 = vld [vmem:[%s12 + $0x3a8] sm:$0xff]
      %v3336 = vld [vmem:[%s12 + $0x3b0] sm:$0xff]
      %v3337 = vld [vmem:[%s12 + $0x3b8] sm:$0xff]
      %v3338 = vld [vmem:[%s12 + $0x3c0] sm:$0xff]
      %v3339 = vld [vmem:[%s12 + $0x3c8] sm:$0xff]
      %v3340 = vld [vmem:[%s12 + $0x3d0] sm:$0xff]
      %v3341 = vld [vmem:[%s12 + $0x3d8] sm:$0xff]
      %v3342 = vld [vmem:[%s12 + $0x3e0] sm:$0xff]
      %v3343 = vld [vmem:[%s12 + $0x3e8] sm:$0xff]
      %v3344 = vld [vmem:[%s12 + $0x3f0] sm:$0xff]
      %v3345 = vld [vmem:[%s12 + $0x3f8] sm:$0xff]
      %v3346 = vld [vmem:[%s13] sm:$0xf]
      %v3348 = vperm.slane %v3346, 0
      %v3349 = vperm.slane %v3346, 1
      %v3350 = vperm.slane %v3346, 2
      %v3351 = vperm.slane %v3346, 3
      %v3484 = vunpack.c.l.b16 %v3218
      %v3485 = vunpack.c.h.b16 %v3218
      %v3486 = vunpack.c.l.b16 %v3219
      %v3487 = vunpack.c.h.b16 %v3219
      %v3488 = vunpack.c.l.b16 %v3220
      %v3489 = vunpack.c.h.b16 %v3220
      %v3490 = vunpack.c.l.b16 %v3221
      %v3491 = vunpack.c.h.b16 %v3221
      %v3492 = vunpack.c.l.b16 %v3222
      %v3493 = vunpack.c.h.b16 %v3222
      %v3494 = vunpack.c.l.b16 %v3223
      %v3495 = vunpack.c.h.b16 %v3223
      %v3496 = vunpack.c.l.b16 %v3224
      %v3497 = vunpack.c.h.b16 %v3224
      %v3498 = vunpack.c.l.b16 %v3225
      %v3499 = vunpack.c.h.b16 %v3225
      %v3500 = vunpack.c.l.b16 %v3226
      %v3501 = vunpack.c.h.b16 %v3226
      %v3502 = vunpack.c.l.b16 %v3227
      %v3503 = vunpack.c.h.b16 %v3227
      %v3504 = vunpack.c.l.b16 %v3228
      %v3505 = vunpack.c.h.b16 %v3228
      %v3506 = vunpack.c.l.b16 %v3229
      %v3507 = vunpack.c.h.b16 %v3229
      %v3508 = vunpack.c.l.b16 %v3230
      %v3509 = vunpack.c.h.b16 %v3230
      %v3510 = vunpack.c.l.b16 %v3231
      %v3511 = vunpack.c.h.b16 %v3231
      %v3512 = vunpack.c.l.b16 %v3232
      %v3513 = vunpack.c.h.b16 %v3232
      %v3514 = vunpack.c.l.b16 %v3233
      %v3515 = vunpack.c.h.b16 %v3233
      %v3516 = vunpack.c.l.b16 %v3234
      %v3517 = vunpack.c.h.b16 %v3234
      %v3518 = vunpack.c.l.b16 %v3235
      %v3519 = vunpack.c.h.b16 %v3235
      %v3520 = vunpack.c.l.b16 %v3236
      %v3521 = vunpack.c.h.b16 %v3236
      %v3522 = vunpack.c.l.b16 %v3237
      %v3523 = vunpack.c.h.b16 %v3237
      %v3524 = vunpack.c.l.b16 %v3238
      %v3525 = vunpack.c.h.b16 %v3238
      %v3526 = vunpack.c.l.b16 %v3239
      %v3527 = vunpack.c.h.b16 %v3239
      %v3528 = vunpack.c.l.b16 %v3240
      %v3529 = vunpack.c.h.b16 %v3240
      %v3530 = vunpack.c.l.b16 %v3241
      %v3531 = vunpack.c.h.b16 %v3241
      %v3532 = vunpack.c.l.b16 %v3242
      %v3533 = vunpack.c.h.b16 %v3242
      %v3534 = vunpack.c.l.b16 %v3243
      %v3535 = vunpack.c.h.b16 %v3243
      %v3536 = vunpack.c.l.b16 %v3244
      %v3537 = vunpack.c.h.b16 %v3244
      %v3538 = vunpack.c.l.b16 %v3245
      %v3539 = vunpack.c.h.b16 %v3245
      %v3540 = vunpack.c.l.b16 %v3246
      %v3541 = vunpack.c.h.b16 %v3246
      %v3542 = vunpack.c.l.b16 %v3247
      %v3543 = vunpack.c.h.b16 %v3247
      %v3544 = vunpack.c.l.b16 %v3248
      %v3545 = vunpack.c.h.b16 %v3248
      %v3546 = vunpack.c.l.b16 %v3249
      %v3547 = vunpack.c.h.b16 %v3249
      %v3548 = vunpack.c.l.b16 %v3250
      %v3549 = vunpack.c.h.b16 %v3250
      %v3550 = vunpack.c.l.b16 %v3251
      %v3551 = vunpack.c.h.b16 %v3251
      %v3552 = vunpack.c.l.b16 %v3252
      %v3553 = vunpack.c.h.b16 %v3252
      %v3554 = vunpack.c.l.b16 %v3253
      %v3555 = vunpack.c.h.b16 %v3253
      %v3556 = vunpack.c.l.b16 %v3254
      %v3557 = vunpack.c.h.b16 %v3254
      %v3558 = vunpack.c.l.b16 %v3255
      %v3559 = vunpack.c.h.b16 %v3255
      %v3560 = vunpack.c.l.b16 %v3256
      %v3561 = vunpack.c.h.b16 %v3256
      %v3562 = vunpack.c.l.b16 %v3257
      %v3563 = vunpack.c.h.b16 %v3257
      %v3564 = vunpack.c.l.b16 %v3258
      %v3565 = vunpack.c.h.b16 %v3258
      %v3566 = vunpack.c.l.b16 %v3259
      %v3567 = vunpack.c.h.b16 %v3259
      %v3568 = vunpack.c.l.b16 %v3260
      %v3569 = vunpack.c.h.b16 %v3260
      %v3570 = vunpack.c.l.b16 %v3261
      %v3571 = vunpack.c.h.b16 %v3261
      %v3572 = vunpack.c.l.b16 %v3262
      %v3573 = vunpack.c.h.b16 %v3262
      %v3574 = vunpack.c.l.b16 %v3263
      %v3575 = vunpack.c.h.b16 %v3263
      %v3576 = vunpack.c.l.b16 %v3264
      %v3577 = vunpack.c.h.b16 %v3264
      %v3578 = vunpack.c.l.b16 %v3265
      %v3579 = vunpack.c.h.b16 %v3265
      %v3580 = vunpack.c.l.b16 %v3266
      %v3581 = vunpack.c.h.b16 %v3266
      %v3582 = vunpack.c.l.b16 %v3267
      %v3583 = vunpack.c.h.b16 %v3267
      %v3584 = vunpack.c.l.b16 %v3268
      %v3585 = vunpack.c.h.b16 %v3268
      %v3586 = vunpack.c.l.b16 %v3269
      %v3587 = vunpack.c.h.b16 %v3269
      %v3588 = vunpack.c.l.b16 %v3270
      %v3589 = vunpack.c.h.b16 %v3270
      %v3590 = vunpack.c.l.b16 %v3271
      %v3591 = vunpack.c.h.b16 %v3271
      %v3592 = vunpack.c.l.b16 %v3272
      %v3593 = vunpack.c.h.b16 %v3272
      %v3594 = vunpack.c.l.b16 %v3273
      %v3595 = vunpack.c.h.b16 %v3273
      %v3596 = vunpack.c.l.b16 %v3274
      %v3597 = vunpack.c.h.b16 %v3274
      %v3598 = vunpack.c.l.b16 %v3275
      %v3599 = vunpack.c.h.b16 %v3275
      %v3600 = vunpack.c.l.b16 %v3276
      %v3601 = vunpack.c.h.b16 %v3276
      %v3602 = vunpack.c.l.b16 %v3277
      %v3603 = vunpack.c.h.b16 %v3277
      %v3604 = vunpack.c.l.b16 %v3278
      %v3605 = vunpack.c.h.b16 %v3278
      %v3606 = vunpack.c.l.b16 %v3279
      %v3607 = vunpack.c.h.b16 %v3279
      %v3608 = vunpack.c.l.b16 %v3280
      %v3609 = vunpack.c.h.b16 %v3280
      %v3610 = vunpack.c.l.b16 %v3281
      %v3611 = vunpack.c.h.b16 %v3281
      %v3612 = vunpack.c.l.b16 %v3282
      %v3613 = vunpack.c.h.b16 %v3282
      %v3614 = vunpack.c.l.b16 %v3283
      %v3615 = vunpack.c.h.b16 %v3283
      %v3616 = vunpack.c.l.b16 %v3284
      %v3617 = vunpack.c.h.b16 %v3284
      %v3618 = vunpack.c.l.b16 %v3285
      %v3619 = vunpack.c.h.b16 %v3285
      %v3620 = vunpack.c.l.b16 %v3286
      %v3621 = vunpack.c.h.b16 %v3286
      %v3622 = vunpack.c.l.b16 %v3287
      %v3623 = vunpack.c.h.b16 %v3287
      %v3624 = vunpack.c.l.b16 %v3288
      %v3625 = vunpack.c.h.b16 %v3288
      %v3626 = vunpack.c.l.b16 %v3289
      %v3627 = vunpack.c.h.b16 %v3289
      %v3628 = vunpack.c.l.b16 %v3290
      %v3629 = vunpack.c.h.b16 %v3290
      %v3630 = vunpack.c.l.b16 %v3291
      %v3631 = vunpack.c.h.b16 %v3291
      %v3632 = vunpack.c.l.b16 %v3292
      %v3633 = vunpack.c.h.b16 %v3292
      %v3634 = vunpack.c.l.b16 %v3293
      %v3635 = vunpack.c.h.b16 %v3293
      %v3636 = vunpack.c.l.b16 %v3294
      %v3637 = vunpack.c.h.b16 %v3294
      %v3638 = vunpack.c.l.b16 %v3295
      %v3639 = vunpack.c.h.b16 %v3295
      %v3640 = vunpack.c.l.b16 %v3296
      %v3641 = vunpack.c.h.b16 %v3296
      %v3642 = vunpack.c.l.b16 %v3297
      %v3643 = vunpack.c.h.b16 %v3297
      %v3644 = vunpack.c.l.b16 %v3298
      %v3645 = vunpack.c.h.b16 %v3298
      %v3646 = vunpack.c.l.b16 %v3299
      %v3647 = vunpack.c.h.b16 %v3299
      %v3648 = vunpack.c.l.b16 %v3300
      %v3649 = vunpack.c.h.b16 %v3300
      %v3650 = vunpack.c.l.b16 %v3301
      %v3651 = vunpack.c.h.b16 %v3301
      %v3652 = vunpack.c.l.b16 %v3302
      %v3653 = vunpack.c.h.b16 %v3302
      %v3654 = vunpack.c.l.b16 %v3303
      %v3655 = vunpack.c.h.b16 %v3303
      %v3656 = vunpack.c.l.b16 %v3304
      %v3657 = vunpack.c.h.b16 %v3304
      %v3658 = vunpack.c.l.b16 %v3305
      %v3659 = vunpack.c.h.b16 %v3305
      %v3660 = vunpack.c.l.b16 %v3306
      %v3661 = vunpack.c.h.b16 %v3306
      %v3662 = vunpack.c.l.b16 %v3307
      %v3663 = vunpack.c.h.b16 %v3307
      %v3664 = vunpack.c.l.b16 %v3308
      %v3665 = vunpack.c.h.b16 %v3308
      %v3666 = vunpack.c.l.b16 %v3309
      %v3667 = vunpack.c.h.b16 %v3309
      %v3668 = vunpack.c.l.b16 %v3310
      %v3669 = vunpack.c.h.b16 %v3310
      %v3670 = vunpack.c.l.b16 %v3311
      %v3671 = vunpack.c.h.b16 %v3311
      %v3672 = vunpack.c.l.b16 %v3312
      %v3673 = vunpack.c.h.b16 %v3312
      %v3674 = vunpack.c.l.b16 %v3313
      %v3675 = vunpack.c.h.b16 %v3313
      %v3676 = vunpack.c.l.b16 %v3314
      %v3677 = vunpack.c.h.b16 %v3314
      %v3678 = vunpack.c.l.b16 %v3315
      %v3679 = vunpack.c.h.b16 %v3315
      %v3680 = vunpack.c.l.b16 %v3316
      %v3681 = vunpack.c.h.b16 %v3316
      %v3682 = vunpack.c.l.b16 %v3317
      %v3683 = vunpack.c.h.b16 %v3317
      %v3684 = vunpack.c.l.b16 %v3318
      %v3685 = vunpack.c.h.b16 %v3318
      %v3686 = vunpack.c.l.b16 %v3319
      %v3687 = vunpack.c.h.b16 %v3319
      %v3688 = vunpack.c.l.b16 %v3320
      %v3689 = vunpack.c.h.b16 %v3320
      %v3690 = vunpack.c.l.b16 %v3321
      %v3691 = vunpack.c.h.b16 %v3321
      %v3692 = vunpack.c.l.b16 %v3322
      %v3693 = vunpack.c.h.b16 %v3322
      %v3694 = vunpack.c.l.b16 %v3323
      %v3695 = vunpack.c.h.b16 %v3323
      %v3696 = vunpack.c.l.b16 %v3324
      %v3697 = vunpack.c.h.b16 %v3324
      %v3698 = vunpack.c.l.b16 %v3325
      %v3699 = vunpack.c.h.b16 %v3325
      %v3700 = vunpack.c.l.b16 %v3326
      %v3701 = vunpack.c.h.b16 %v3326
      %v3702 = vunpack.c.l.b16 %v3327
      %v3703 = vunpack.c.h.b16 %v3327
      %v3704 = vunpack.c.l.b16 %v3328
      %v3705 = vunpack.c.h.b16 %v3328
      %v3706 = vunpack.c.l.b16 %v3329
      %v3707 = vunpack.c.h.b16 %v3329
      %v3708 = vunpack.c.l.b16 %v3330
      %v3709 = vunpack.c.h.b16 %v3330
      %v3710 = vunpack.c.l.b16 %v3331
      %v3711 = vunpack.c.h.b16 %v3331
      %v3712 = vunpack.c.l.b16 %v3332
      %v3713 = vunpack.c.h.b16 %v3332
      %v3714 = vunpack.c.l.b16 %v3333
      %v3715 = vunpack.c.h.b16 %v3333
      %v3716 = vunpack.c.l.b16 %v3334
      %v3717 = vunpack.c.h.b16 %v3334
      %v3718 = vunpack.c.l.b16 %v3335
      %v3719 = vunpack.c.h.b16 %v3335
      %v3720 = vunpack.c.l.b16 %v3336
      %v3721 = vunpack.c.h.b16 %v3336
      %v3722 = vunpack.c.l.b16 %v3337
      %v3723 = vunpack.c.h.b16 %v3337
      %v3724 = vunpack.c.l.b16 %v3338
      %v3725 = vunpack.c.h.b16 %v3338
      %v3726 = vunpack.c.l.b16 %v3339
      %v3727 = vunpack.c.h.b16 %v3339
      %v3728 = vunpack.c.l.b16 %v3340
      %v3729 = vunpack.c.h.b16 %v3340
      %v3730 = vunpack.c.l.b16 %v3341
      %v3731 = vunpack.c.h.b16 %v3341
      %v3732 = vunpack.c.l.b16 %v3342
      %v3733 = vunpack.c.h.b16 %v3342
      %v3734 = vunpack.c.l.b16 %v3343
      %v3735 = vunpack.c.h.b16 %v3343
      %v3736 = vunpack.c.l.b16 %v3344
      %v3737 = vunpack.c.h.b16 %v3344
      %v3738 = vunpack.c.l.b16 %v3345
      %v3739 = vunpack.c.h.b16 %v3345
      %v3740 = vpack.c.b16 %v3488, %v3484
      %v3741 = vpack.c.b16 %v3489, %v3485
      %v3742 = vpack.c.b16 %v3490, %v3486
      %v3743 = vpack.c.b16 %v3491, %v3487
      %v3744 = vpack.c.b16 %v3496, %v3492
      %v3745 = vpack.c.b16 %v3497, %v3493
      %v3746 = vpack.c.b16 %v3498, %v3494
      %v3747 = vpack.c.b16 %v3499, %v3495
      %v3748 = vpack.c.b16 %v3504, %v3500
      %v3749 = vpack.c.b16 %v3505, %v3501
      %v3750 = vpack.c.b16 %v3506, %v3502
      %v3751 = vpack.c.b16 %v3507, %v3503
      %v3752 = vpack.c.b16 %v3512, %v3508
      %v3753 = vpack.c.b16 %v3513, %v3509
      %v3754 = vpack.c.b16 %v3514, %v3510
      %v3755 = vpack.c.b16 %v3515, %v3511
      %v3756 = vpack.c.b16 %v3520, %v3516
      %v3757 = vpack.c.b16 %v3521, %v3517
      %v3758 = vpack.c.b16 %v3522, %v3518
      %v3759 = vpack.c.b16 %v3523, %v3519
      %v3760 = vpack.c.b16 %v3528, %v3524
      %v3761 = vpack.c.b16 %v3529, %v3525
      %v3762 = vpack.c.b16 %v3530, %v3526
      %v3763 = vpack.c.b16 %v3531, %v3527
      %v3764 = vpack.c.b16 %v3536, %v3532
      %v3765 = vpack.c.b16 %v3537, %v3533
      %v3766 = vpack.c.b16 %v3538, %v3534
      %v3767 = vpack.c.b16 %v3539, %v3535
      %v3768 = vpack.c.b16 %v3544, %v3540
      %v3769 = vpack.c.b16 %v3545, %v3541
      %v3770 = vpack.c.b16 %v3546, %v3542
      %v3771 = vpack.c.b16 %v3547, %v3543
      %v3772 = vpack.c.b16 %v3552, %v3548
      %v3773 = vpack.c.b16 %v3553, %v3549
      %v3774 = vpack.c.b16 %v3554, %v3550
      %v3775 = vpack.c.b16 %v3555, %v3551
      %v3776 = vpack.c.b16 %v3560, %v3556
      %v3777 = vpack.c.b16 %v3561, %v3557
      %v3778 = vpack.c.b16 %v3562, %v3558
      %v3779 = vpack.c.b16 %v3563, %v3559
      %v3780 = vpack.c.b16 %v3568, %v3564
      %v3781 = vpack.c.b16 %v3569, %v3565
      %v3782 = vpack.c.b16 %v3570, %v3566
      %v3783 = vpack.c.b16 %v3571, %v3567
      %v3784 = vpack.c.b16 %v3576, %v3572
      %v3785 = vpack.c.b16 %v3577, %v3573
      %v3786 = vpack.c.b16 %v3578, %v3574
      %v3787 = vpack.c.b16 %v3579, %v3575
      %v3788 = vpack.c.b16 %v3584, %v3580
      %v3789 = vpack.c.b16 %v3585, %v3581
      %v3790 = vpack.c.b16 %v3586, %v3582
      %v3791 = vpack.c.b16 %v3587, %v3583
      %v3792 = vpack.c.b16 %v3592, %v3588
      %v3793 = vpack.c.b16 %v3593, %v3589
      %v3794 = vpack.c.b16 %v3594, %v3590
      %v3795 = vpack.c.b16 %v3595, %v3591
      %v3796 = vpack.c.b16 %v3600, %v3596
      %v3797 = vpack.c.b16 %v3601, %v3597
      %v3798 = vpack.c.b16 %v3602, %v3598
      %v3799 = vpack.c.b16 %v3603, %v3599
      %v3800 = vpack.c.b16 %v3608, %v3604
      %v3801 = vpack.c.b16 %v3609, %v3605
      %v3802 = vpack.c.b16 %v3610, %v3606
      %v3803 = vpack.c.b16 %v3611, %v3607
      %v3804 = vpack.c.b16 %v3616, %v3612
      %v3805 = vpack.c.b16 %v3617, %v3613
      %v3806 = vpack.c.b16 %v3618, %v3614
      %v3807 = vpack.c.b16 %v3619, %v3615
      %v3808 = vpack.c.b16 %v3624, %v3620
      %v3809 = vpack.c.b16 %v3625, %v3621
      %v3810 = vpack.c.b16 %v3626, %v3622
      %v3811 = vpack.c.b16 %v3627, %v3623
      %v3812 = vpack.c.b16 %v3632, %v3628
      %v3813 = vpack.c.b16 %v3633, %v3629
      %v3814 = vpack.c.b16 %v3634, %v3630
      %v3815 = vpack.c.b16 %v3635, %v3631
      %v3816 = vpack.c.b16 %v3640, %v3636
      %v3817 = vpack.c.b16 %v3641, %v3637
      %v3818 = vpack.c.b16 %v3642, %v3638
      %v3819 = vpack.c.b16 %v3643, %v3639
      %v3820 = vpack.c.b16 %v3648, %v3644
      %v3821 = vpack.c.b16 %v3649, %v3645
      %v3822 = vpack.c.b16 %v3650, %v3646
      %v3823 = vpack.c.b16 %v3651, %v3647
      %v3824 = vpack.c.b16 %v3656, %v3652
      %v3825 = vpack.c.b16 %v3657, %v3653
      %v3826 = vpack.c.b16 %v3658, %v3654
      %v3827 = vpack.c.b16 %v3659, %v3655
      %v3828 = vpack.c.b16 %v3664, %v3660
      %v3829 = vpack.c.b16 %v3665, %v3661
      %v3830 = vpack.c.b16 %v3666, %v3662
      %v3831 = vpack.c.b16 %v3667, %v3663
      %v3832 = vpack.c.b16 %v3672, %v3668
      %v3833 = vpack.c.b16 %v3673, %v3669
      %v3834 = vpack.c.b16 %v3674, %v3670
      %v3835 = vpack.c.b16 %v3675, %v3671
      %v3836 = vpack.c.b16 %v3680, %v3676
      %v3837 = vpack.c.b16 %v3681, %v3677
      %v3838 = vpack.c.b16 %v3682, %v3678
      %v3839 = vpack.c.b16 %v3683, %v3679
      %v3840 = vpack.c.b16 %v3688, %v3684
      %v3841 = vpack.c.b16 %v3689, %v3685
      %v3842 = vpack.c.b16 %v3690, %v3686
      %v3843 = vpack.c.b16 %v3691, %v3687
      %v3844 = vpack.c.b16 %v3696, %v3692
      %v3845 = vpack.c.b16 %v3697, %v3693
      %v3846 = vpack.c.b16 %v3698, %v3694
      %v3847 = vpack.c.b16 %v3699, %v3695
      %v3848 = vpack.c.b16 %v3704, %v3700
      %v3849 = vpack.c.b16 %v3705, %v3701
      %v3850 = vpack.c.b16 %v3706, %v3702
      %v3851 = vpack.c.b16 %v3707, %v3703
      %v3852 = vpack.c.b16 %v3712, %v3708
      %v3853 = vpack.c.b16 %v3713, %v3709
      %v3854 = vpack.c.b16 %v3714, %v3710
      %v3855 = vpack.c.b16 %v3715, %v3711
      %v3856 = vpack.c.b16 %v3720, %v3716
      %v3857 = vpack.c.b16 %v3721, %v3717
      %v3858 = vpack.c.b16 %v3722, %v3718
      %v3859 = vpack.c.b16 %v3723, %v3719
      %v3860 = vpack.c.b16 %v3728, %v3724
      %v3861 = vpack.c.b16 %v3729, %v3725
      %v3862 = vpack.c.b16 %v3730, %v3726
      %v3863 = vpack.c.b16 %v3731, %v3727
      %v3864 = vpack.c.b16 %v3736, %v3732
      %v3865 = vpack.c.b16 %v3737, %v3733
      %v3866 = vpack.c.b16 %v3738, %v3734
      %v3867 = vpack.c.b16 %v3739, %v3735
      %3996 = vmatpush.bf16.msra.mxu0 %v3768
      %3997 = vmatpush.bf16.msra.mxu0 %v3764
      %3998 = vmatpush.bf16.msra.mxu0 %v3760
      %3999 = vmatpush.bf16.msra.mxu0 %v3756
      %4000 = vmatpush.bf16.msra.mxu0 %v3752
      %4001 = vmatpush.bf16.msra.mxu0 %v3748
      %4002 = vmatpush.bf16.msra.mxu0 %v3744
      %4003 = vmatpush.bf16.msra.mxu0 %v3740
      %4004 = vmatmul.bf16.gmra.mxu0 %v1732
      %v4005 = vpop.f32.mrf.mxu0
      %v4006 = vadd.f32 %v3348, %v4005
      %v4007 = vpop.f32.mrf.mxu0
      %v4008 = vadd.f32 %v3348, %v4007
      %4009 = vmatmul.bf16.gmra.mxu0 %v1736
      %v4010 = vpop.f32.mrf.mxu0
      %v4011 = vadd.f32 %v3348, %v4010
      %v4012 = vpop.f32.mrf.mxu0
      %v4013 = vadd.f32 %v3348, %v4012
      %4014 = vdwg.mxu0
      %4015 = vmatpush.bf16.msra.mxu0 %v3800
      %4016 = vmatpush.bf16.msra.mxu0 %v3796
      %4017 = vmatpush.bf16.msra.mxu0 %v3792
      %4018 = vmatpush.bf16.msra.mxu0 %v3788
      %4019 = vmatpush.bf16.msra.mxu0 %v3784
      %4020 = vmatpush.bf16.msra.mxu0 %v3780
      %4021 = vmatpush.bf16.msra.mxu0 %v3776
      %4022 = vmatpush.bf16.msra.mxu0 %v3772
      %4023 = vmatmul.bf16.gmra.mxu0 %v1733
      %v4024 = vpop.f32.mrf.mxu0
      %v4025 = vadd.f32 %v4006, %v4024
      %v4026 = vpop.f32.mrf.mxu0
      %v4027 = vadd.f32 %v4008, %v4026
      %4028 = vmatmul.bf16.gmra.mxu0 %v1737
      %v4029 = vpop.f32.mrf.mxu0
      %v4030 = vadd.f32 %v4011, %v4029
      %v4031 = vpop.f32.mrf.mxu0
      %v4032 = vadd.f32 %v4013, %v4031
      %4033 = vdwg.mxu0
      %4034 = vmatpush.bf16.msra.mxu0 %v3832
      %4035 = vmatpush.bf16.msra.mxu0 %v3828
      %4036 = vmatpush.bf16.msra.mxu0 %v3824
      %4037 = vmatpush.bf16.msra.mxu0 %v3820
      %4038 = vmatpush.bf16.msra.mxu0 %v3816
      %4039 = vmatpush.bf16.msra.mxu0 %v3812
      %4040 = vmatpush.bf16.msra.mxu0 %v3808
      %4041 = vmatpush.bf16.msra.mxu0 %v3804
      %4042 = vmatmul.bf16.gmra.mxu0 %v1734
      %v4043 = vpop.f32.mrf.mxu0
      %v4044 = vadd.f32 %v4025, %v4043
      %v4045 = vpop.f32.mrf.mxu0
      %v4046 = vadd.f32 %v4027, %v4045
      %4047 = vmatmul.bf16.gmra.mxu0 %v1738
      %v4048 = vpop.f32.mrf.mxu0
      %v4049 = vadd.f32 %v4030, %v4048
      %v4050 = vpop.f32.mrf.mxu0
      %v4051 = vadd.f32 %v4032, %v4050
      %4052 = vdwg.mxu0
      %4053 = vmatpush.bf16.msra.mxu0 %v3864
      %4054 = vmatpush.bf16.msra.mxu0 %v3860
      %4055 = vmatpush.bf16.msra.mxu0 %v3856
      %4056 = vmatpush.bf16.msra.mxu0 %v3852
      %4057 = vmatpush.bf16.msra.mxu0 %v3848
      %4058 = vmatpush.bf16.msra.mxu0 %v3844
      %4059 = vmatpush.bf16.msra.mxu0 %v3840
      %4060 = vmatpush.bf16.msra.mxu0 %v3836
      %4061 = vmatmul.bf16.gmra.mxu0 %v1735
      %v4062 = vpop.f32.mrf.mxu0
      %v4063 = vadd.f32 %v4044, %v4062
      %v4064 = vpop.f32.mrf.mxu0
      %v4065 = vadd.f32 %v4046, %v4064
      %4066 = vmatmul.bf16.gmra.mxu0 %v1739
      %v4067 = vpop.f32.mrf.mxu0
      %v4068 = vadd.f32 %v4049, %v4067
      %v4069 = vpop.f32.mrf.mxu0
      %v4070 = vadd.f32 %v4051, %v4069
      %4071 = vdwg.mxu0
      %4072 = vmatpush.bf16.msra.mxu0 %v3769
      %4073 = vmatpush.bf16.msra.mxu0 %v3765
      %4074 = vmatpush.bf16.msra.mxu0 %v3761
      %4075 = vmatpush.bf16.msra.mxu0 %v3757
      %4076 = vmatpush.bf16.msra.mxu0 %v3753
      %4077 = vmatpush.bf16.msra.mxu0 %v3749
      %4078 = vmatpush.bf16.msra.mxu0 %v3745
      %4079 = vmatpush.bf16.msra.mxu0 %v3741
      %4080 = vmatmul.bf16.gmra.mxu0 %v1732
      %v4081 = vpop.f32.mrf.mxu0
      %v4082 = vadd.f32 %v3349, %v4081
      %v4083 = vpop.f32.mrf.mxu0
      %v4084 = vadd.f32 %v3349, %v4083
      %4085 = vmatmul.bf16.gmra.mxu0 %v1736
      %v4086 = vpop.f32.mrf.mxu0
      %v4087 = vadd.f32 %v3349, %v4086
      %v4088 = vpop.f32.mrf.mxu0
      %v4089 = vadd.f32 %v3349, %v4088
      %4090 = vdwg.mxu0
      %4091 = vmatpush.bf16.msra.mxu0 %v3801
      %4092 = vmatpush.bf16.msra.mxu0 %v3797
      %4093 = vmatpush.bf16.msra.mxu0 %v3793
      %4094 = vmatpush.bf16.msra.mxu0 %v3789
      %4095 = vmatpush.bf16.msra.mxu0 %v3785
      %4096 = vmatpush.bf16.msra.mxu0 %v3781
      %4097 = vmatpush.bf16.msra.mxu0 %v3777
      %4098 = vmatpush.bf16.msra.mxu0 %v3773
      %4099 = vmatmul.bf16.gmra.mxu0 %v1733
      %v4100 = vpop.f32.mrf.mxu0
      %v4101 = vadd.f32 %v4082, %v4100
      %v4102 = vpop.f32.mrf.mxu0
      %v4103 = vadd.f32 %v4084, %v4102
      %4104 = vmatmul.bf16.gmra.mxu0 %v1737
      %v4105 = vpop.f32.mrf.mxu0
      %v4106 = vadd.f32 %v4087, %v4105
      %v4107 = vpop.f32.mrf.mxu0
      %v4108 = vadd.f32 %v4089, %v4107
      %4109 = vdwg.mxu0
      %4110 = vmatpush.bf16.msra.mxu0 %v3833
      %4111 = vmatpush.bf16.msra.mxu0 %v3829
      %4112 = vmatpush.bf16.msra.mxu0 %v3825
      %4113 = vmatpush.bf16.msra.mxu0 %v3821
      %4114 = vmatpush.bf16.msra.mxu0 %v3817
      %4115 = vmatpush.bf16.msra.mxu0 %v3813
      %4116 = vmatpush.bf16.msra.mxu0 %v3809
      %4117 = vmatpush.bf16.msra.mxu0 %v3805
      %4118 = vmatmul.bf16.gmra.mxu0 %v1734
      %v4119 = vpop.f32.mrf.mxu0
      %v4120 = vadd.f32 %v4101, %v4119
      %v4121 = vpop.f32.mrf.mxu0
      %v4122 = vadd.f32 %v4103, %v4121
      %4123 = vmatmul.bf16.gmra.mxu0 %v1738
      %v4124 = vpop.f32.mrf.mxu0
      %v4125 = vadd.f32 %v4106, %v4124
      %v4126 = vpop.f32.mrf.mxu0
      %v4127 = vadd.f32 %v4108, %v4126
      %4128 = vdwg.mxu0
      %4129 = vmatpush.bf16.msra.mxu0 %v3865
      %4130 = vmatpush.bf16.msra.mxu0 %v3861
      %4131 = vmatpush.bf16.msra.mxu0 %v3857
      %4132 = vmatpush.bf16.msra.mxu0 %v3853
      %4133 = vmatpush.bf16.msra.mxu0 %v3849
      %4134 = vmatpush.bf16.msra.mxu0 %v3845
      %4135 = vmatpush.bf16.msra.mxu0 %v3841
      %4136 = vmatpush.bf16.msra.mxu0 %v3837
      %4137 = vmatmul.bf16.gmra.mxu0 %v1735
      %v4138 = vpop.f32.mrf.mxu0
      %v4139 = vadd.f32 %v4120, %v4138
      %v4140 = vpop.f32.mrf.mxu0
      %v4141 = vadd.f32 %v4122, %v4140
      %4142 = vmatmul.bf16.gmra.mxu0 %v1739
      %v4143 = vpop.f32.mrf.mxu0
      %v4144 = vadd.f32 %v4125, %v4143
      %v4145 = vpop.f32.mrf.mxu0
      %v4146 = vadd.f32 %v4127, %v4145
      %4147 = vdwg.mxu0
      %4148 = vmatpush.bf16.msra.mxu0 %v3770
      %4149 = vmatpush.bf16.msra.mxu0 %v3766
      %4150 = vmatpush.bf16.msra.mxu0 %v3762
      %4151 = vmatpush.bf16.msra.mxu0 %v3758
      %4152 = vmatpush.bf16.msra.mxu0 %v3754
      %4153 = vmatpush.bf16.msra.mxu0 %v3750
      %4154 = vmatpush.bf16.msra.mxu0 %v3746
      %4155 = vmatpush.bf16.msra.mxu0 %v3742
      %4156 = vmatmul.bf16.gmra.mxu0 %v1732
      %v4157 = vpop.f32.mrf.mxu0
      %v4158 = vadd.f32 %v3350, %v4157
      %v4159 = vpop.f32.mrf.mxu0
      %v4160 = vadd.f32 %v3350, %v4159
      %4161 = vmatmul.bf16.gmra.mxu0 %v1736
      %v4162 = vpop.f32.mrf.mxu0
      %v4163 = vadd.f32 %v3350, %v4162
      %v4164 = vpop.f32.mrf.mxu0
      %v4165 = vadd.f32 %v3350, %v4164
      %4166 = vdwg.mxu0
      %4167 = vmatpush.bf16.msra.mxu0 %v3802
      %4168 = vmatpush.bf16.msra.mxu0 %v3798
      %4169 = vmatpush.bf16.msra.mxu0 %v3794
      %4170 = vmatpush.bf16.msra.mxu0 %v3790
      %4171 = vmatpush.bf16.msra.mxu0 %v3786
      %4172 = vmatpush.bf16.msra.mxu0 %v3782
      %4173 = vmatpush.bf16.msra.mxu0 %v3778
      %4174 = vmatpush.bf16.msra.mxu0 %v3774
      %4175 = vmatmul.bf16.gmra.mxu0 %v1733
      %v4176 = vpop.f32.mrf.mxu0
      %v4177 = vadd.f32 %v4158, %v4176
      %v4178 = vpop.f32.mrf.mxu0
      %v4179 = vadd.f32 %v4160, %v4178
      %4180 = vmatmul.bf16.gmra.mxu0 %v1737
      %v4181 = vpop.f32.mrf.mxu0
      %v4182 = vadd.f32 %v4163, %v4181
      %v4183 = vpop.f32.mrf.mxu0
      %v4184 = vadd.f32 %v4165, %v4183
      %4185 = vdwg.mxu0
      %4186 = vmatpush.bf16.msra.mxu0 %v3834
      %4187 = vmatpush.bf16.msra.mxu0 %v3830
      %4188 = vmatpush.bf16.msra.mxu0 %v3826
      %4189 = vmatpush.bf16.msra.mxu0 %v3822
      %4190 = vmatpush.bf16.msra.mxu0 %v3818
      %4191 = vmatpush.bf16.msra.mxu0 %v3814
      %4192 = vmatpush.bf16.msra.mxu0 %v3810
      %4193 = vmatpush.bf16.msra.mxu0 %v3806
      %4194 = vmatmul.bf16.gmra.mxu0 %v1734
      %v4195 = vpop.f32.mrf.mxu0
      %v4196 = vadd.f32 %v4177, %v4195
      %v4197 = vpop.f32.mrf.mxu0
      %v4198 = vadd.f32 %v4179, %v4197
      %4199 = vmatmul.bf16.gmra.mxu0 %v1738
      %v4200 = vpop.f32.mrf.mxu0
      %v4201 = vadd.f32 %v4182, %v4200
      %v4202 = vpop.f32.mrf.mxu0
      %v4203 = vadd.f32 %v4184, %v4202
      %4204 = vdwg.mxu0
      %4205 = vmatpush.bf16.msra.mxu0 %v3866
      %4206 = vmatpush.bf16.msra.mxu0 %v3862
      %4207 = vmatpush.bf16.msra.mxu0 %v3858
      %4208 = vmatpush.bf16.msra.mxu0 %v3854
      %4209 = vmatpush.bf16.msra.mxu0 %v3850
      %4210 = vmatpush.bf16.msra.mxu0 %v3846
      %4211 = vmatpush.bf16.msra.mxu0 %v3842
      %4212 = vmatpush.bf16.msra.mxu0 %v3838
      %4213 = vmatmul.bf16.gmra.mxu0 %v1735
      %v4214 = vpop.f32.mrf.mxu0
      %v4215 = vadd.f32 %v4196, %v4214
      %v4216 = vpop.f32.mrf.mxu0
      %v4217 = vadd.f32 %v4198, %v4216
      %4218 = vmatmul.bf16.gmra.mxu0 %v1739
      %v4219 = vpop.f32.mrf.mxu0
      %v4220 = vadd.f32 %v4201, %v4219
      %v4221 = vpop.f32.mrf.mxu0
      %v4222 = vadd.f32 %v4203, %v4221
      %4223 = vdwg.mxu0
      %4224 = vmatpush.bf16.msra.mxu0 %v3771
      %4225 = vmatpush.bf16.msra.mxu0 %v3767
      %4226 = vmatpush.bf16.msra.mxu0 %v3763
      %4227 = vmatpush.bf16.msra.mxu0 %v3759
      %4228 = vmatpush.bf16.msra.mxu0 %v3755
      %4229 = vmatpush.bf16.msra.mxu0 %v3751
      %4230 = vmatpush.bf16.msra.mxu0 %v3747
      %4231 = vmatpush.bf16.msra.mxu0 %v3743
      %4232 = vmatmul.bf16.gmra.mxu0 %v1732
      %v4233 = vpop.f32.mrf.mxu0
      %v4234 = vadd.f32 %v3351, %v4233
      %v4235 = vpop.f32.mrf.mxu0
      %v4236 = vadd.f32 %v3351, %v4235
      %4237 = vmatmul.bf16.gmra.mxu0 %v1736
      %v4238 = vpop.f32.mrf.mxu0
      %v4239 = vadd.f32 %v3351, %v4238
      %v4240 = vpop.f32.mrf.mxu0
      %v4241 = vadd.f32 %v3351, %v4240
      %4242 = vdwg.mxu0
      %4243 = vmatpush.bf16.msra.mxu0 %v3803
      %4244 = vmatpush.bf16.msra.mxu0 %v3799
      %4245 = vmatpush.bf16.msra.mxu0 %v3795
      %4246 = vmatpush.bf16.msra.mxu0 %v3791
      %4247 = vmatpush.bf16.msra.mxu0 %v3787
      %4248 = vmatpush.bf16.msra.mxu0 %v3783
      %4249 = vmatpush.bf16.msra.mxu0 %v3779
      %4250 = vmatpush.bf16.msra.mxu0 %v3775
      %4251 = vmatmul.bf16.gmra.mxu0 %v1733
      %v4252 = vpop.f32.mrf.mxu0
      %v4253 = vadd.f32 %v4234, %v4252
      %v4254 = vpop.f32.mrf.mxu0
      %v4255 = vadd.f32 %v4236, %v4254
      %4256 = vmatmul.bf16.gmra.mxu0 %v1737
      %v4257 = vpop.f32.mrf.mxu0
      %v4258 = vadd.f32 %v4239, %v4257
      %v4259 = vpop.f32.mrf.mxu0
      %v4260 = vadd.f32 %v4241, %v4259
      %4261 = vdwg.mxu0
      %4262 = vmatpush.bf16.msra.mxu0 %v3835
      %4263 = vmatpush.bf16.msra.mxu0 %v3831
      %4264 = vmatpush.bf16.msra.mxu0 %v3827
      %4265 = vmatpush.bf16.msra.mxu0 %v3823
      %4266 = vmatpush.bf16.msra.mxu0 %v3819
      %4267 = vmatpush.bf16.msra.mxu0 %v3815
      %4268 = vmatpush.bf16.msra.mxu0 %v3811
      %4269 = vmatpush.bf16.msra.mxu0 %v3807
      %4270 = vmatmul.bf16.gmra.mxu0 %v1734
      %v4271 = vpop.f32.mrf.mxu0
      %v4272 = vadd.f32 %v4253, %v4271
      %v4273 = vpop.f32.mrf.mxu0
      %v4274 = vadd.f32 %v4255, %v4273
      %4275 = vmatmul.bf16.gmra.mxu0 %v1738
      %v4276 = vpop.f32.mrf.mxu0
      %v4277 = vadd.f32 %v4258, %v4276
      %v4278 = vpop.f32.mrf.mxu0
      %v4279 = vadd.f32 %v4260, %v4278
      %4280 = vdwg.mxu0
      %4281 = vmatpush.bf16.msra.mxu0 %v3867
      %4282 = vmatpush.bf16.msra.mxu0 %v3863
      %4283 = vmatpush.bf16.msra.mxu0 %v3859
      %4284 = vmatpush.bf16.msra.mxu0 %v3855
      %4285 = vmatpush.bf16.msra.mxu0 %v3851
      %4286 = vmatpush.bf16.msra.mxu0 %v3847
      %4287 = vmatpush.bf16.msra.mxu0 %v3843
      %4288 = vmatpush.bf16.msra.mxu0 %v3839
      %4289 = vmatmul.bf16.gmra.mxu0 %v1735
      %v4290 = vpop.f32.mrf.mxu0
      %v4291 = vadd.f32 %v4272, %v4290
      %v4292 = vpop.f32.mrf.mxu0
      %v4293 = vadd.f32 %v4274, %v4292
      %4294 = vmatmul.bf16.gmra.mxu0 %v1739
      %v4295 = vpop.f32.mrf.mxu0
      %v4296 = vadd.f32 %v4277, %v4295
      %v4297 = vpop.f32.mrf.mxu0
      %v4298 = vadd.f32 %v4279, %v4297
      %4299 = vdwg.mxu0
      %vm4300 = vcmp.gt.f32.partialorder %v4063, 0.0
      %vm4301 = vcmp.gt.f32.partialorder %v4139, 0.0
      %vm4302 = vcmp.gt.f32.partialorder %v4215, 0.0
      %vm4303 = vcmp.gt.f32.partialorder %v4291, 0.0
      %vm4304 = vcmp.gt.f32.partialorder %v4065, 0.0
      %vm4305 = vcmp.gt.f32.partialorder %v4141, 0.0
      %vm4306 = vcmp.gt.f32.partialorder %v4217, 0.0
      %vm4307 = vcmp.gt.f32.partialorder %v4293, 0.0
      %vm4308 = vcmp.gt.f32.partialorder %v4068, 0.0
      %vm4309 = vcmp.gt.f32.partialorder %v4144, 0.0
      %vm4310 = vcmp.gt.f32.partialorder %v4220, 0.0
      %vm4311 = vcmp.gt.f32.partialorder %v4296, 0.0
      %vm4312 = vcmp.gt.f32.partialorder %v4070, 0.0
      %vm4313 = vcmp.gt.f32.partialorder %v4146, 0.0
      %vm4314 = vcmp.gt.f32.partialorder %v4222, 0.0
      %vm4315 = vcmp.gt.f32.partialorder %v4298, 0.0
      %v4316 = vmul.f32 %v4063, 0.01
      %v4317 = vmul.f32 %v4139, 0.01
      %v4318 = vmul.f32 %v4215, 0.01
      %v4319 = vmul.f32 %v4291, 0.01
      %v4320 = vmul.f32 %v4065, 0.01
      %v4321 = vmul.f32 %v4141, 0.01
      %v4322 = vmul.f32 %v4217, 0.01
      %v4323 = vmul.f32 %v4293, 0.01
      %v4324 = vmul.f32 %v4068, 0.01
      %v4325 = vmul.f32 %v4144, 0.01
      %v4326 = vmul.f32 %v4220, 0.01
      %v4327 = vmul.f32 %v4296, 0.01
      %v4328 = vmul.f32 %v4070, 0.01
      %v4329 = vmul.f32 %v4146, 0.01
      %v4330 = vmul.f32 %v4222, 0.01
      %v4331 = vmul.f32 %v4298, 0.01
      %v4332 = vsel %vm4300, %v4063, %v4316
      %v4333 = vsel %vm4301, %v4139, %v4317
      %v4334 = vsel %vm4302, %v4215, %v4318
      %v4335 = vsel %vm4303, %v4291, %v4319
      %v4336 = vsel %vm4304, %v4065, %v4320
      %v4337 = vsel %vm4305, %v4141, %v4321
      %v4338 = vsel %vm4306, %v4217, %v4322
      %v4339 = vsel %vm4307, %v4293, %v4323
      %v4340 = vsel %vm4308, %v4068, %v4324
      %v4341 = vsel %vm4309, %v4144, %v4325
      %v4342 = vsel %vm4310, %v4220, %v4326
      %v4343 = vsel %vm4311, %v4296, %v4327
      %v4344 = vsel %vm4312, %v4070, %v4328
      %v4345 = vsel %vm4313, %v4146, %v4329
      %v4346 = vsel %vm4314, %v4222, %v4330
      %v4347 = vsel %vm4315, %v4298, %v4331
      %v4348 = vpack.c.bf16 %v4336, %v4332
      %v4349 = vpack.c.bf16 %v4337, %v4333
      %v4350 = vpack.c.bf16 %v4338, %v4334
      %v4351 = vpack.c.bf16 %v4339, %v4335
      %v4352 = vpack.c.bf16 %v4344, %v4340
      %v4353 = vpack.c.bf16 %v4345, %v4341
      %v4354 = vpack.c.bf16 %v4346, %v4342
      %v4355 = vpack.c.bf16 %v4347, %v4343
      %v4356 = vld [vmem:[%s14] sm:$0xf]
      %v4357 = vld [vmem:[%s14 + $0x4] sm:$0xf]
      %v4358 = vld [vmem:[%s14 + $0x8] sm:$0xf]
      %v4359 = vld [vmem:[%s14 + $0xc] sm:$0xf]
      %v4360 = vld [vmem:[%s14 + $0x10] sm:$0xf]
      %v4361 = vld [vmem:[%s14 + $0x14] sm:$0xf]
      %v4362 = vld [vmem:[%s14 + $0x18] sm:$0xf]
      %v4363 = vld [vmem:[%s14 + $0x1c] sm:$0xf]
      %v4364 = vld [vmem:[%s14 + $0x20] sm:$0xf]
      %v4365 = vld [vmem:[%s14 + $0x24] sm:$0xf]
      %v4366 = vld [vmem:[%s14 + $0x28] sm:$0xf]
      %v4367 = vld [vmem:[%s14 + $0x2c] sm:$0xf]
      %v4368 = vld [vmem:[%s14 + $0x30] sm:$0xf]
      %v4369 = vld [vmem:[%s14 + $0x34] sm:$0xf]
      %v4370 = vld [vmem:[%s14 + $0x38] sm:$0xf]
      %v4371 = vld [vmem:[%s14 + $0x3c] sm:$0xf]
      %v4372 = vld [vmem:[%s14 + $0x40] sm:$0xf]
      %v4373 = vld [vmem:[%s14 + $0x44] sm:$0xf]
      %v4374 = vld [vmem:[%s14 + $0x48] sm:$0xf]
      %v4375 = vld [vmem:[%s14 + $0x4c] sm:$0xf]
      %v4376 = vld [vmem:[%s14 + $0x50] sm:$0xf]
      %v4377 = vld [vmem:[%s14 + $0x54] sm:$0xf]
      %v4378 = vld [vmem:[%s14 + $0x58] sm:$0xf]
      %v4379 = vld [vmem:[%s14 + $0x5c] sm:$0xf]
      %v4380 = vld [vmem:[%s14 + $0x60] sm:$0xf]
      %v4381 = vld [vmem:[%s14 + $0x64] sm:$0xf]
      %v4382 = vld [vmem:[%s14 + $0x68] sm:$0xf]
      %v4383 = vld [vmem:[%s14 + $0x6c] sm:$0xf]
      %v4384 = vld [vmem:[%s14 + $0x70] sm:$0xf]
      %v4385 = vld [vmem:[%s14 + $0x74] sm:$0xf]
      %v4386 = vld [vmem:[%s14 + $0x78] sm:$0xf]
      %v4387 = vld [vmem:[%s14 + $0x7c] sm:$0xf]
      %v4388 = vld [vmem:[%s14 + $0x80] sm:$0xf]
      %v4389 = vld [vmem:[%s14 + $0x84] sm:$0xf]
      %v4390 = vld [vmem:[%s14 + $0x88] sm:$0xf]
      %v4391 = vld [vmem:[%s14 + $0x8c] sm:$0xf]
      %v4392 = vld [vmem:[%s14 + $0x90] sm:$0xf]
      %v4393 = vld [vmem:[%s14 + $0x94] sm:$0xf]
      %v4394 = vld [vmem:[%s14 + $0x98] sm:$0xf]
      %v4395 = vld [vmem:[%s14 + $0x9c] sm:$0xf]
      %v4396 = vld [vmem:[%s14 + $0xa0] sm:$0xf]
      %v4397 = vld [vmem:[%s14 + $0xa4] sm:$0xf]
      %v4398 = vld [vmem:[%s14 + $0xa8] sm:$0xf]
      %v4399 = vld [vmem:[%s14 + $0xac] sm:$0xf]
      %v4400 = vld [vmem:[%s14 + $0xb0] sm:$0xf]
      %v4401 = vld [vmem:[%s14 + $0xb4] sm:$0xf]
      %v4402 = vld [vmem:[%s14 + $0xb8] sm:$0xf]
      %v4403 = vld [vmem:[%s14 + $0xbc] sm:$0xf]
      %v4404 = vld [vmem:[%s14 + $0xc0] sm:$0xf]
      %v4405 = vld [vmem:[%s14 + $0xc4] sm:$0xf]
      %v4406 = vld [vmem:[%s14 + $0xc8] sm:$0xf]
      %v4407 = vld [vmem:[%s14 + $0xcc] sm:$0xf]
      %v4408 = vld [vmem:[%s14 + $0xd0] sm:$0xf]
      %v4409 = vld [vmem:[%s14 + $0xd4] sm:$0xf]
      %v4410 = vld [vmem:[%s14 + $0xd8] sm:$0xf]
      %v4411 = vld [vmem:[%s14 + $0xdc] sm:$0xf]
      %v4412 = vld [vmem:[%s14 + $0xe0] sm:$0xf]
      %v4413 = vld [vmem:[%s14 + $0xe4] sm:$0xf]
      %v4414 = vld [vmem:[%s14 + $0xe8] sm:$0xf]
      %v4415 = vld [vmem:[%s14 + $0xec] sm:$0xf]
      %v4416 = vld [vmem:[%s14 + $0xf0] sm:$0xf]
      %v4417 = vld [vmem:[%s14 + $0xf4] sm:$0xf]
      %v4418 = vld [vmem:[%s14 + $0xf8] sm:$0xf]
      %v4419 = vld [vmem:[%s14 + $0xfc] sm:$0xf]
      %v4420 = vld [vmem:[%s15] sm:$0x1]
      %v4422 = vperm.slane %v4420, 0
      %v4488 = vunpack.c.l.b16 %v4356
      %v4489 = vunpack.c.l.b16 %v4357
      %v4490 = vunpack.c.l.b16 %v4358
      %v4491 = vunpack.c.l.b16 %v4359
      %v4492 = vunpack.c.l.b16 %v4360
      %v4493 = vunpack.c.l.b16 %v4361
      %v4494 = vunpack.c.l.b16 %v4362
      %v4495 = vunpack.c.l.b16 %v4363
      %v4496 = vunpack.c.l.b16 %v4364
      %v4497 = vunpack.c.l.b16 %v4365
      %v4498 = vunpack.c.l.b16 %v4366
      %v4499 = vunpack.c.l.b16 %v4367
      %v4500 = vunpack.c.l.b16 %v4368
      %v4501 = vunpack.c.l.b16 %v4369
      %v4502 = vunpack.c.l.b16 %v4370
      %v4503 = vunpack.c.l.b16 %v4371
      %v4504 = vunpack.c.l.b16 %v4372
      %v4505 = vunpack.c.l.b16 %v4373
      %v4506 = vunpack.c.l.b16 %v4374
      %v4507 = vunpack.c.l.b16 %v4375
      %v4508 = vunpack.c.l.b16 %v4376
      %v4509 = vunpack.c.l.b16 %v4377
      %v4510 = vunpack.c.l.b16 %v4378
      %v4511 = vunpack.c.l.b16 %v4379
      %v4512 = vunpack.c.l.b16 %v4380
      %v4513 = vunpack.c.l.b16 %v4381
      %v4514 = vunpack.c.l.b16 %v4382
      %v4515 = vunpack.c.l.b16 %v4383
      %v4516 = vunpack.c.l.b16 %v4384
      %v4517 = vunpack.c.l.b16 %v4385
      %v4518 = vunpack.c.l.b16 %v4386
      %v4519 = vunpack.c.l.b16 %v4387
      %v4520 = vunpack.c.l.b16 %v4388
      %v4521 = vunpack.c.l.b16 %v4389
      %v4522 = vunpack.c.l.b16 %v4390
      %v4523 = vunpack.c.l.b16 %v4391
      %v4524 = vunpack.c.l.b16 %v4392
      %v4525 = vunpack.c.l.b16 %v4393
      %v4526 = vunpack.c.l.b16 %v4394
      %v4527 = vunpack.c.l.b16 %v4395
      %v4528 = vunpack.c.l.b16 %v4396
      %v4529 = vunpack.c.l.b16 %v4397
      %v4530 = vunpack.c.l.b16 %v4398
      %v4531 = vunpack.c.l.b16 %v4399
      %v4532 = vunpack.c.l.b16 %v4400
      %v4533 = vunpack.c.l.b16 %v4401
      %v4534 = vunpack.c.l.b16 %v4402
      %v4535 = vunpack.c.l.b16 %v4403
      %v4536 = vunpack.c.l.b16 %v4404
      %v4537 = vunpack.c.l.b16 %v4405
      %v4538 = vunpack.c.l.b16 %v4406
      %v4539 = vunpack.c.l.b16 %v4407
      %v4540 = vunpack.c.l.b16 %v4408
      %v4541 = vunpack.c.l.b16 %v4409
      %v4542 = vunpack.c.l.b16 %v4410
      %v4543 = vunpack.c.l.b16 %v4411
      %v4544 = vunpack.c.l.b16 %v4412
      %v4545 = vunpack.c.l.b16 %v4413
      %v4546 = vunpack.c.l.b16 %v4414
      %v4547 = vunpack.c.l.b16 %v4415
      %v4548 = vunpack.c.l.b16 %v4416
      %v4549 = vunpack.c.l.b16 %v4417
      %v4550 = vunpack.c.l.b16 %v4418
      %v4551 = vunpack.c.l.b16 %v4419
      %v4552 = vpack.c.b16 %v4489, %v4488
      %v4553 = vpack.c.b16 %v4491, %v4490
      %v4554 = vpack.c.b16 %v4493, %v4492
      %v4555 = vpack.c.b16 %v4495, %v4494
      %v4556 = vpack.c.b16 %v4497, %v4496
      %v4557 = vpack.c.b16 %v4499, %v4498
      %v4558 = vpack.c.b16 %v4501, %v4500
      %v4559 = vpack.c.b16 %v4503, %v4502
      %v4560 = vpack.c.b16 %v4505, %v4504
      %v4561 = vpack.c.b16 %v4507, %v4506
      %v4562 = vpack.c.b16 %v4509, %v4508
      %v4563 = vpack.c.b16 %v4511, %v4510
      %v4564 = vpack.c.b16 %v4513, %v4512
      %v4565 = vpack.c.b16 %v4515, %v4514
      %v4566 = vpack.c.b16 %v4517, %v4516
      %v4567 = vpack.c.b16 %v4519, %v4518
      %v4568 = vpack.c.b16 %v4521, %v4520
      %v4569 = vpack.c.b16 %v4523, %v4522
      %v4570 = vpack.c.b16 %v4525, %v4524
      %v4571 = vpack.c.b16 %v4527, %v4526
      %v4572 = vpack.c.b16 %v4529, %v4528
      %v4573 = vpack.c.b16 %v4531, %v4530
      %v4574 = vpack.c.b16 %v4533, %v4532
      %v4575 = vpack.c.b16 %v4535, %v4534
      %v4576 = vpack.c.b16 %v4537, %v4536
      %v4577 = vpack.c.b16 %v4539, %v4538
      %v4578 = vpack.c.b16 %v4541, %v4540
      %v4579 = vpack.c.b16 %v4543, %v4542
      %v4580 = vpack.c.b16 %v4545, %v4544
      %v4581 = vpack.c.b16 %v4547, %v4546
      %v4582 = vpack.c.b16 %v4549, %v4548
      %v4583 = vpack.c.b16 %v4551, %v4550
      %4616 = vmatpush.bf16.msra.mxu0 %v4559
      %4617 = vmatpush.bf16.msra.mxu0 %v4558
      %4618 = vmatpush.bf16.msra.mxu0 %v4557
      %4619 = vmatpush.bf16.msra.mxu0 %v4556
      %4620 = vmatpush.bf16.msra.mxu0 %v4555
      %4621 = vmatpush.bf16.msra.mxu0 %v4554
      %4622 = vmatpush.bf16.msra.mxu0 %v4553
      %4623 = vmatpush.bf16.msra.mxu0 %v4552
      %4624 = vmatmul.bf16.gmra.mxu0 %v4348
      %v4625 = vpop.f32.mrf.mxu0
      %v4626 = vadd.f32 %v4422, %v4625
      %v4627 = vpop.f32.mrf.mxu0
      %v4628 = vadd.f32 %v4422, %v4627
      %4629 = vmatmul.bf16.gmra.mxu0 %v4352
      %v4630 = vpop.f32.mrf.mxu0
      %v4631 = vadd.f32 %v4422, %v4630
      %v4632 = vpop.f32.mrf.mxu0
      %v4633 = vadd.f32 %v4422, %v4632
      %4634 = vdwg.mxu0
      %4635 = vmatpush.bf16.msra.mxu0 %v4567
      %4636 = vmatpush.bf16.msra.mxu0 %v4566
      %4637 = vmatpush.bf16.msra.mxu0 %v4565
      %4638 = vmatpush.bf16.msra.mxu0 %v4564
      %4639 = vmatpush.bf16.msra.mxu0 %v4563
      %4640 = vmatpush.bf16.msra.mxu0 %v4562
      %4641 = vmatpush.bf16.msra.mxu0 %v4561
      %4642 = vmatpush.bf16.msra.mxu0 %v4560
      %4643 = vmatmul.bf16.gmra.mxu0 %v4349
      %v4644 = vpop.f32.mrf.mxu0
      %v4645 = vadd.f32 %v4626, %v4644
      %v4646 = vpop.f32.mrf.mxu0
      %v4647 = vadd.f32 %v4628, %v4646
      %4648 = vmatmul.bf16.gmra.mxu0 %v4353
      %v4649 = vpop.f32.mrf.mxu0
      %v4650 = vadd.f32 %v4631, %v4649
      %v4651 = vpop.f32.mrf.mxu0
      %v4652 = vadd.f32 %v4633, %v4651
      %4653 = vdwg.mxu0
      %4654 = vmatpush.bf16.msra.mxu0 %v4575
      %4655 = vmatpush.bf16.msra.mxu0 %v4574
      %4656 = vmatpush.bf16.msra.mxu0 %v4573
      %4657 = vmatpush.bf16.msra.mxu0 %v4572
      %4658 = vmatpush.bf16.msra.mxu0 %v4571
      %4659 = vmatpush.bf16.msra.mxu0 %v4570
      %4660 = vmatpush.bf16.msra.mxu0 %v4569
      %4661 = vmatpush.bf16.msra.mxu0 %v4568
      %4662 = vmatmul.bf16.gmra.mxu0 %v4350
      %v4663 = vpop.f32.mrf.mxu0
      %v4664 = vadd.f32 %v4645, %v4663
      %v4665 = vpop.f32.mrf.mxu0
      %v4666 = vadd.f32 %v4647, %v4665
      %4667 = vmatmul.bf16.gmra.mxu0 %v4354
      %v4668 = vpop.f32.mrf.mxu0
      %v4669 = vadd.f32 %v4650, %v4668
      %v4670 = vpop.f32.mrf.mxu0
      %v4671 = vadd.f32 %v4652, %v4670
      %4672 = vdwg.mxu0
      %4673 = vmatpush.bf16.msra.mxu0 %v4583
      %4674 = vmatpush.bf16.msra.mxu0 %v4582
      %4675 = vmatpush.bf16.msra.mxu0 %v4581
      %4676 = vmatpush.bf16.msra.mxu0 %v4580
      %4677 = vmatpush.bf16.msra.mxu0 %v4579
      %4678 = vmatpush.bf16.msra.mxu0 %v4578
      %4679 = vmatpush.bf16.msra.mxu0 %v4577
      %4680 = vmatpush.bf16.msra.mxu0 %v4576
      %4681 = vmatmul.bf16.gmra.mxu0 %v4351
      %v4682 = vpop.f32.mrf.mxu0
      %v4683 = vadd.f32 %v4664, %v4682
      %v4684 = vpop.f32.mrf.mxu0
      %v4685 = vadd.f32 %v4666, %v4684
      %4686 = vmatmul.bf16.gmra.mxu0 %v4355
      %v4687 = vpop.f32.mrf.mxu0
      %v4688 = vadd.f32 %v4669, %v4687
      %v4689 = vpop.f32.mrf.mxu0
      %v4690 = vadd.f32 %v4671, %v4689
      %4691 = vdwg.mxu0
      %4692 = vst [vmem:[%s589] sm:$0xff] %v4683
      %4693 = vst [vmem:[%s589 + $0x8] sm:$0xff] %v4685
      %4694 = vst [vmem:[%s589 + $0x10] sm:$0xff] %v4688
      %4695 = vst [vmem:[%s589 + $0x18] sm:$0xff] %v4690
      %s4696 = smul.u32 4, %s29
      %p4697 = scmp.lt.s32.totalorder %s4696, 7
      %s4698 = scalar_select %p4697, %s4696, 7
      %s4699 = smul.addr %s4698, 8
      %s4700 = scalar_lea.vmem %s16, %s4699
      %s4701 = smul.u32 4, %s29
      %p4702 = scmp.lt.s32.totalorder %s4701, 7
      %s4703 = scalar_select %p4702, %s4701, 7
      %s4704 = smul.addr %s4703, 8
      %s4705 = scalar_lea.vmem %s17, %s4704
      // Predicated region
      $region85: #{sag_forward.3} parent=83 // pred_check
        %p4706 = pneg %p393
      $region86: #{sag_forward.3} parent=83 // pred_check_branch
        %4708 = sbr.rel (%p4706) target = $region88
      $region87: #{sag_forward.3} parent=83 // pred_region
        %s4709 = smul.u32 4, %s29
      $region88: #{sag_forward.3} parent=83 // pred_fallthru
        _
      // Predicated region
      $region89: #{sag_forward.3} parent=83 // pred_check
        %p4710 = pneg %p419
      $region90: #{sag_forward.3} parent=83 // pred_check_branch
        %4712 = sbr.rel (%p4710) target = $region92
      $region91: #{sag_forward.3} parent=83 // pred_region
        %s4713 = smul.u32 4, %s29
      $region92: #{sag_forward.3} parent=83 // pred_fallthru
        _
    $region84: #{sag_forward.3} parent=5 // pred_fallthru
      _
    %p4714 = scmp.le.s32.totalorder 2, %s24
    // Predicated region
    $region93: #{sag_forward.3} parent=5 // pred_check
      %p4715 = pneg %p4714
    $region94: #{sag_forward.3} parent=5 // pred_check_branch
      %4717 = sbr.rel (%p4715) target = $region96
    $region95: #{sag_forward.3} parent=5 // pred_region
      %s4718 = ssub.s32 %s24, 2
      // Predicated region
      $region97: #{sag_forward.3} parent=95 // pred_check
        %p4719 = pneg %p399
      $region98: #{sag_forward.3} parent=95 // pred_check_branch
        %4721 = sbr.rel (%p4719) target = $region100
      $region99: #{sag_forward.3} parent=95 // pred_region
        %s4722 = smul.u32 4, %s30
        %p4723 = scmp.lt.s32.totalorder %s4722, 7
        %s4724 = scalar_select %p4723, %s4722, 7
        %s4725 = smul.addr %s4724, 8
        %s4726 = scalar_lea.vmem %s16, %s4725
      $region100: #{sag_forward.3} parent=95 // pred_fallthru
        _
      // Predicated region
      $region101: #{sag_forward.3} parent=95 // pred_check
        %p4727 = pneg %p425
      $region102: #{sag_forward.3} parent=95 // pred_check_branch
        %4729 = sbr.rel (%p4727) target = $region104
      $region103: #{sag_forward.3} parent=95 // pred_region
        %s4730 = smul.u32 4, %s30
        %p4731 = scmp.lt.s32.totalorder %s4730, 7
        %s4732 = scalar_select %p4731, %s4730, 7
        %s4733 = smul.addr %s4732, 8
        %s4734 = scalar_lea.vmem %s17, %s4733
      $region104: #{sag_forward.3} parent=95 // pred_fallthru
        _
    $region96: #{sag_forward.3} parent=5 // pred_fallthru
      _
  $region6: #{sag_forward.3} parent=0 // loop_footer
    %s28 = sadd.s32 1, %s24
  $region7: #{sag_forward.3} parent=0 // loop_footer_branch
    %23 = sbr.rel target = $region3
  $region8: #{sag_forward.3} parent=0 // loop_exit
    _

// kernel: sag_forward.2
$region0: #{sag_forward.2}
  #allocation0 [shape = 'u32[]', space=smem, size = 0x4, offset = 0x4, fixed_abs, tag = 'smem constant byte address 0x4 - core index']
  #allocation1 [shape = 'u32[72,128]{1,0:T(1,128)}', space=vmem, size = 0x9000, scoped, tag = 'internal scratch']
  %s0 = inlined_call_operand.vmem [shape: bf16[64,256,27], index: 0, kind: input, shape index: {}]
  %s1 = inlined_call_operand.vmem [shape: bf16[27,32], index: 1, kind: input, shape index: {}]
  %s2 = inlined_call_operand.vmem [shape: f32[1,32], index: 2, kind: input, shape index: {}]
  %s3 = inlined_call_operand.vmem [shape: bf16[32,512], index: 3, kind: input, shape index: {}]
  %s4 = inlined_call_operand.vmem [shape: f32[1,512], index: 4, kind: input, shape index: {}]
  %s5 = inlined_call_operand.vmem [shape: f32[64,512], index: 5, kind: output, shape index: {}]
  %s6 = sld [smem:[#allocation0]]
  $region53: #{sag_forward.2} parent=0
    _
  %s8 = ssub.s32 1, %s6
  %s9 = scalar_select 0, %s8, %s6
  loop: start=0, step=1, limit=6
  $region2: #{sag_forward.2} parent=0 // loop_pre_header
    _
  $region3: #{sag_forward.2} parent=0 // loop_header
    %s11 = sphi 0, %s15
    %p12 = scmp.ge.s32.totalorder %s11, 6
    %s21 = sphi 0, %s23
    %s24 = sphi 0, %s21
    %s25 = sphi 0, %s24
    %s41 = sphi 0, %s25
    %s45 = sphi 0, %s45
    %s47 = sphi 0, %s45
    %s48 = sphi 0, %s47
    %s62 = sphi 0, %s48
    %s66 = sphi 0, %s66
    %s68 = sphi 0, %s66
    %s69 = sphi 0, %s68
    %s83 = sphi 0, %s69
    %s87 = sphi 0, %s87
    %s89 = sphi 0, %s87
    %s90 = sphi 0, %s89
    %s104 = sphi 0, %s90
    %s108 = sphi 0, %s108
    %s110 = sphi 0, %s108
    %s111 = sphi 0, %s110
    %s125 = sphi 0, %s111
    %s131 = sphi 0, %s133
    %s134 = sphi 0, %s131
    %s135 = sphi 0, %s134
    %s151 = sphi 0, %s135
  $region4: #{sag_forward.2} parent=0 // loop_header_branch
    %14 = sbr.rel (%p12) target = $region8
  $region5: #{sag_forward.2} parent=0 // loop_body
    %s16 = ssub.s32 %s11, 1
    %s17 = ssub.s32 %s11, 2
    %s18 = sadd.s32 %s11, 1
    %s19 = ssub.s32 %s11, %s18
    %p20 = scmp.eq.s32.totalorder %s19, 0
    %s22 = sadd.s32 %s21, 1
    %s23 = scalar_select %p20, %s21, %s22
    %p26 = pneg %p20
    %p27 = scmp.eq.s32.totalorder %s11, 3
    %p28 = por %p26, %p27
    %p29 = scmp.ne.s32.totalorder %s21, %s24
    %p30 = scmp.eq.s32.totalorder %s11, 0
    %p31 = por %p29, %p30
    %p32 = scmp.ne.s32.totalorder %s21, %s24
    %p33 = scmp.eq.s32.totalorder %s16, 3
    %p34 = por %p32, %p33
    %p35 = scmp.ne.s32.totalorder %s24, %s25
    %p36 = scmp.eq.s32.totalorder %s16, 0
    %p37 = por %p35, %p36
    %p38 = scmp.ne.s32.totalorder %s24, %s25
    %p39 = scmp.eq.s32.totalorder %s17, 3
    %p40 = por %p38, %p39
    %p42 = scmp.ne.s32.totalorder %s25, %s41
    %p43 = scmp.eq.s32.totalorder %s17, 0
    %p44 = por %p42, %p43
    %s46 = sadd.s32 %s45, 1
    %p49 = scmp.eq.s32.totalorder %s11, 3
    %p50 = scmp.ne.s32.totalorder %s45, %s47
    %p51 = scmp.eq.s32.totalorder %s11, 0
    %p52 = por %p50, %p51
    %p53 = scmp.ne.s32.totalorder %s45, %s47
    %p54 = scmp.eq.s32.totalorder %s16, 3
    %p55 = por %p53, %p54
    %p56 = scmp.ne.s32.totalorder %s47, %s48
    %p57 = scmp.eq.s32.totalorder %s16, 0
    %p58 = por %p56, %p57
    %p59 = scmp.ne.s32.totalorder %s47, %s48
    %p60 = scmp.eq.s32.totalorder %s17, 3
    %p61 = por %p59, %p60
    %p63 = scmp.ne.s32.totalorder %s48, %s62
    %p64 = scmp.eq.s32.totalorder %s17, 0
    %p65 = por %p63, %p64
    %s67 = sadd.s32 %s66, 1
    %p70 = scmp.eq.s32.totalorder %s11, 3
    %p71 = scmp.ne.s32.totalorder %s66, %s68
    %p72 = scmp.eq.s32.totalorder %s11, 0
    %p73 = por %p71, %p72
    %p74 = scmp.ne.s32.totalorder %s66, %s68
    %p75 = scmp.eq.s32.totalorder %s16, 3
    %p76 = por %p74, %p75
    %p77 = scmp.ne.s32.totalorder %s68, %s69
    %p78 = scmp.eq.s32.totalorder %s16, 0
    %p79 = por %p77, %p78
    %p80 = scmp.ne.s32.totalorder %s68, %s69
    %p81 = scmp.eq.s32.totalorder %s17, 3
    %p82 = por %p80, %p81
    %p84 = scmp.ne.s32.totalorder %s69, %s83
    %p85 = scmp.eq.s32.totalorder %s17, 0
    %p86 = por %p84, %p85
    %s88 = sadd.s32 %s87, 1
    %p91 = scmp.eq.s32.totalorder %s11, 3
    %p92 = scmp.ne.s32.totalorder %s87, %s89
    %p93 = scmp.eq.s32.totalorder %s11, 0
    %p94 = por %p92, %p93
    %p95 = scmp.ne.s32.totalorder %s87, %s89
    %p96 = scmp.eq.s32.totalorder %s16, 3
    %p97 = por %p95, %p96
    %p98 = scmp.ne.s32.totalorder %s89, %s90
    %p99 = scmp.eq.s32.totalorder %s16, 0
    %p100 = por %p98, %p99
    %p101 = scmp.ne.s32.totalorder %s89, %s90
    %p102 = scmp.eq.s32.totalorder %s17, 3
    %p103 = por %p101, %p102
    %p105 = scmp.ne.s32.totalorder %s90, %s104
    %p106 = scmp.eq.s32.totalorder %s17, 0
    %p107 = por %p105, %p106
    %s109 = sadd.s32 %s108, 1
    %p112 = scmp.eq.s32.totalorder %s11, 3
    %p113 = scmp.ne.s32.totalorder %s108, %s110
    %p114 = scmp.eq.s32.totalorder %s11, 0
    %p115 = por %p113, %p114
    %p116 = scmp.ne.s32.totalorder %s108, %s110
    %p117 = scmp.eq.s32.totalorder %s16, 3
    %p118 = por %p116, %p117
    %p119 = scmp.ne.s32.totalorder %s110, %s111
    %p120 = scmp.eq.s32.totalorder %s16, 0
    %p121 = por %p119, %p120
    %p122 = scmp.ne.s32.totalorder %s110, %s111
    %p123 = scmp.eq.s32.totalorder %s17, 3
    %p124 = por %p122, %p123
    %p126 = scmp.ne.s32.totalorder %s111, %s125
    %p127 = scmp.eq.s32.totalorder %s17, 0
    %p128 = por %p126, %p127
    %s129 = ssub.s32 %s11, %s18
    %p130 = scmp.eq.s32.totalorder %s129, 0
    %s132 = sadd.s32 %s131, 1
    %s133 = scalar_select %p130, %s131, %s132
    %p136 = pneg %p130
    %p137 = scmp.eq.s32.totalorder %s11, 3
    %p138 = por %p136, %p137
    %p139 = scmp.ne.s32.totalorder %s131, %s134
    %p140 = scmp.eq.s32.totalorder %s11, 0
    %p141 = por %p139, %p140
    %p142 = scmp.ne.s32.totalorder %s131, %s134
    %p143 = scmp.eq.s32.totalorder %s16, 3
    %p144 = por %p142, %p143
    %p145 = scmp.ne.s32.totalorder %s134, %s135
    %p146 = scmp.eq.s32.totalorder %s16, 0
    %p147 = por %p145, %p146
    %p148 = scmp.ne.s32.totalorder %s134, %s135
    %p149 = scmp.eq.s32.totalorder %s17, 3
    %p150 = por %p148, %p149
    %p152 = scmp.ne.s32.totalorder %s135, %s151
    %p153 = scmp.eq.s32.totalorder %s17, 0
    %p154 = por %p152, %p153
    %p155 = scmp.le.s32.totalorder 1, %s11
    %p156 = scmp.lt.s32.totalorder %s11, 5
    %p157 = pnand %p155, %p156
    %p158 = pneg %p157
    // Predicated region
    $region9: #{sag_forward.2} parent=5 // pred_check
      _
    $region10: #{sag_forward.2} parent=5 // pred_check_branch
      %160 = sbr.rel (%p157) target = $region12
    $region11: #{sag_forward.2} parent=5 // pred_region
      %s161 = ssub.s32 %s11, 1
      // Predicated region
      $region13: #{sag_forward.2} parent=11 // pred_check
        %p162 = pneg %p58
      $region14: #{sag_forward.2} parent=11 // pred_check_branch
        %164 = sbr.rel (%p162) target = $region16
      $region15: #{sag_forward.2} parent=11 // pred_region
        _
      $region16: #{sag_forward.2} parent=11 // pred_fallthru
        _
      // Predicated region
      $region17: #{sag_forward.2} parent=11 // pred_check
        %p165 = pneg %p79
      $region18: #{sag_forward.2} parent=11 // pred_check_branch
        %167 = sbr.rel (%p165) target = $region20
      $region19: #{sag_forward.2} parent=11 // pred_region
        _
      $region20: #{sag_forward.2} parent=11 // pred_fallthru
        _
      // Predicated region
      $region21: #{sag_forward.2} parent=11 // pred_check
        %p168 = pneg %p100
      $region22: #{sag_forward.2} parent=11 // pred_check_branch
        %170 = sbr.rel (%p168) target = $region24
      $region23: #{sag_forward.2} parent=11 // pred_region
        _
      $region24: #{sag_forward.2} parent=11 // pred_fallthru
        _
      // Predicated region
      $region25: #{sag_forward.2} parent=11 // pred_check
        %p171 = pneg %p121
      $region26: #{sag_forward.2} parent=11 // pred_check_branch
        %173 = sbr.rel (%p171) target = $region28
      $region27: #{sag_forward.2} parent=11 // pred_region
        _
      $region28: #{sag_forward.2} parent=11 // pred_fallthru
        _
    $region12: #{sag_forward.2} parent=5 // pred_fallthru
      _
    %p174 = scmp.lt.s32.totalorder %s11, 4
    // Predicated region
    $region29: #{sag_forward.2} parent=5 // pred_check
      %p175 = pneg %p174
    $region30: #{sag_forward.2} parent=5 // pred_check_branch
      %177 = sbr.rel (%p175) target = $region32
    $region31: #{sag_forward.2} parent=5 // pred_region
      // Predicated region
      $region33: #{sag_forward.2} parent=31 // pred_check
        %p178 = pneg %p31
      $region34: #{sag_forward.2} parent=31 // pred_check_branch
        %180 = sbr.rel (%p178) target = $region36
      $region35: #{sag_forward.2} parent=31 // pred_region
        %s181 = smul.u32 16, %s11
        %p182 = scmp.lt.s32.totalorder %s181, 63
        %s183 = scalar_select %p182, %s181, 63
        %s184 = smul.addr %s183, 32
        %s185 = smul.addr %s184, 4
        %s186 = scalar_lea.vmem %s0, %s185
        %s187 = smul.u32 16, %s11
      $region36: #{sag_forward.2} parent=31 // pred_fallthru
        _
    $region32: #{sag_forward.2} parent=5 // pred_fallthru
      _
    %p188 = scmp.le.s32.totalorder 1, %s11
    %p189 = scmp.lt.s32.totalorder %s11, 5
    %p190 = pnand %p188, %p189
    %p191 = pneg %p190
    // Predicated region
    $region37: #{sag_forward.2} parent=5 // pred_check
      _
    $region38: #{sag_forward.2} parent=5 // pred_check_branch
      %193 = sbr.rel (%p190) target = $region40
    $region39: #{sag_forward.2} parent=5 // pred_region
      %s194 = ssub.s32 %s11, 1
      %s195 = smul.u32 16, %s16
      %p196 = scmp.lt.s32.totalorder %s195, 63
      %s197 = scalar_select %p196, %s195, 63
      %s198 = smul.addr %s197, 32
      %s199 = smul.addr %s198, 4
      %s200 = scalar_lea.vmem %s0, %s199
      %p201 = pneg %p37
      %p202 = pneg %p34
      %p203 = pneg %p58
      %p204 = pneg %p55
      %p205 = pneg %p79
      %p206 = pneg %p76
      %p207 = pneg %p100
      %p208 = pneg %p97
      %p209 = pneg %p121
      %p210 = pneg %p118
      %p211 = pneg %p147
      %p212 = pneg %p144
      %s213 = smul.u32 2, %s16
      %p214 = scmp.lt.s32.totalorder %s213, 7
      %s215 = scalar_select %p214, %s213, 7
      %s216 = smul.addr %s215, 4
      %s217 = smul.addr %s216, 8
      %s218 = scalar_lea.vmem %s5, %s217
      %s219 = smul.u32 16, %s16
      %p220 = scmp.lt.s32.totalorder %s219, 63
      %s221 = scalar_select %p220, %s219, 63
      %s222 = smul.addr %s221, 32
      %s223 = smul.addr %s222, 4
      %s224 = scalar_lea.vmem %s0, %s223
      %s225 = smul.u32 16, %s16
      %s226 = smul.u32 2, %s16
      %p227 = scmp.lt.s32.totalorder %s226, 7
      %s228 = scalar_select %p227, %s226, 7
      %s229 = smul.addr %s228, 4
      %s230 = smul.addr %s229, 8
      %s231 = scalar_lea.vmem %s5, %s230
      %s232 = smul.u32 2, %s16
      %v234 = vld [vmem:[%s224] sm:$0xf]
      %v235 = vld [vmem:[%s224 + $0x4] sm:$0xf]
      %v236 = vld [vmem:[%s224 + $0x8] sm:$0xf]
      %v237 = vld [vmem:[%s224 + $0xc] sm:$0xf]
      %v238 = vld [vmem:[%s224 + $0x10] sm:$0xf]
      %v239 = vld [vmem:[%s224 + $0x14] sm:$0xf]
      %v240 = vld [vmem:[%s224 + $0x18] sm:$0xf]
      %v241 = vld [vmem:[%s224 + $0x1c] sm:$0xf]
      %v242 = vld [vmem:[%s224 + $0x20] sm:$0xf]
      %v243 = vld [vmem:[%s224 + $0x24] sm:$0xf]
      %v244 = vld [vmem:[%s224 + $0x28] sm:$0xf]
      %v245 = vld [vmem:[%s224 + $0x2c] sm:$0xf]
      %v246 = vld [vmem:[%s224 + $0x30] sm:$0xf]
      %v247 = vld [vmem:[%s224 + $0x34] sm:$0xf]
      %v248 = vld [vmem:[%s224 + $0x38] sm:$0xf]
      %v249 = vld [vmem:[%s224 + $0x3c] sm:$0xf]
      %v250 = vld [vmem:[%s224 + $0x40] sm:$0xf]
      %v251 = vld [vmem:[%s224 + $0x44] sm:$0xf]
      %v252 = vld [vmem:[%s224 + $0x48] sm:$0xf]
      %v253 = vld [vmem:[%s224 + $0x4c] sm:$0xf]
      %v254 = vld [vmem:[%s224 + $0x50] sm:$0xf]
      %v255 = vld [vmem:[%s224 + $0x54] sm:$0xf]
      %v256 = vld [vmem:[%s224 + $0x58] sm:$0xf]
      %v257 = vld [vmem:[%s224 + $0x5c] sm:$0xf]
      %v258 = vld [vmem:[%s224 + $0x60] sm:$0xf]
      %v259 = vld [vmem:[%s224 + $0x64] sm:$0xf]
      %v260 = vld [vmem:[%s224 + $0x68] sm:$0xf]
      %v261 = vld [vmem:[%s224 + $0x6c] sm:$0xf]
      %v262 = vld [vmem:[%s224 + $0x70] sm:$0xf]
      %v263 = vld [vmem:[%s224 + $0x74] sm:$0xf]
      %v264 = vld [vmem:[%s224 + $0x78] sm:$0xf]
      %v265 = vld [vmem:[%s224 + $0x7c] sm:$0xf]
      %v266 = vld [vmem:[%s224 + $0x80] sm:$0xf]
      %v267 = vld [vmem:[%s224 + $0x84] sm:$0xf]
      %v268 = vld [vmem:[%s224 + $0x88] sm:$0xf]
      %v269 = vld [vmem:[%s224 + $0x8c] sm:$0xf]
      %v270 = vld [vmem:[%s224 + $0x90] sm:$0xf]
      %v271 = vld [vmem:[%s224 + $0x94] sm:$0xf]
      %v272 = vld [vmem:[%s224 + $0x98] sm:$0xf]
      %v273 = vld [vmem:[%s224 + $0x9c] sm:$0xf]
      %v274 = vld [vmem:[%s224 + $0xa0] sm:$0xf]
      %v275 = vld [vmem:[%s224 + $0xa4] sm:$0xf]
      %v276 = vld [vmem:[%s224 + $0xa8] sm:$0xf]
      %v277 = vld [vmem:[%s224 + $0xac] sm:$0xf]
      %v278 = vld [vmem:[%s224 + $0xb0] sm:$0xf]
      %v279 = vld [vmem:[%s224 + $0xb4] sm:$0xf]
      %v280 = vld [vmem:[%s224 + $0xb8] sm:$0xf]
      %v281 = vld [vmem:[%s224 + $0xbc] sm:$0xf]
      %v282 = vld [vmem:[%s224 + $0xc0] sm:$0xf]
      %v283 = vld [vmem:[%s224 + $0xc4] sm:$0xf]
      %v284 = vld [vmem:[%s224 + $0xc8] sm:$0xf]
      %v285 = vld [vmem:[%s224 + $0xcc] sm:$0xf]
      %v286 = vld [vmem:[%s224 + $0xd0] sm:$0xf]
      %v287 = vld [vmem:[%s224 + $0xd4] sm:$0xf]
      %v288 = vld [vmem:[%s224 + $0xd8] sm:$0xf]
      %v289 = vld [vmem:[%s224 + $0xdc] sm:$0xf]
      %v290 = vld [vmem:[%s224 + $0xe0] sm:$0xf]
      %v291 = vld [vmem:[%s224 + $0xe4] sm:$0xf]
      %v292 = vld [vmem:[%s224 + $0xe8] sm:$0xf]
      %v293 = vld [vmem:[%s224 + $0xec] sm:$0xf]
      %v294 = vld [vmem:[%s224 + $0xf0] sm:$0xf]
      %v295 = vld [vmem:[%s224 + $0xf4] sm:$0xf]
      %v296 = vld [vmem:[%s224 + $0xf8] sm:$0xf]
      %v297 = vld [vmem:[%s224 + $0xfc] sm:$0xf]
      %v298 = vld [vmem:[%s224 + $0x100] sm:$0xf]
      %v299 = vld [vmem:[%s224 + $0x104] sm:$0xf]
      %v300 = vld [vmem:[%s224 + $0x108] sm:$0xf]
      %v301 = vld [vmem:[%s224 + $0x10c] sm:$0xf]
      %v302 = vld [vmem:[%s224 + $0x110] sm:$0xf]
      %v303 = vld [vmem:[%s224 + $0x114] sm:$0xf]
      %v304 = vld [vmem:[%s224 + $0x118] sm:$0xf]
      %v305 = vld [vmem:[%s224 + $0x11c] sm:$0xf]
      %v306 = vld [vmem:[%s224 + $0x120] sm:$0xf]
      %v307 = vld [vmem:[%s224 + $0x124] sm:$0xf]
      %v308 = vld [vmem:[%s224 + $0x128] sm:$0xf]
      %v309 = vld [vmem:[%s224 + $0x12c] sm:$0xf]
      %v310 = vld [vmem:[%s224 + $0x130] sm:$0xf]
      %v311 = vld [vmem:[%s224 + $0x134] sm:$0xf]
      %v312 = vld [vmem:[%s224 + $0x138] sm:$0xf]
      %v313 = vld [vmem:[%s224 + $0x13c] sm:$0xf]
      %v314 = vld [vmem:[%s224 + $0x140] sm:$0xf]
      %v315 = vld [vmem:[%s224 + $0x144] sm:$0xf]
      %v316 = vld [vmem:[%s224 + $0x148] sm:$0xf]
      %v317 = vld [vmem:[%s224 + $0x14c] sm:$0xf]
      %v318 = vld [vmem:[%s224 + $0x150] sm:$0xf]
      %v319 = vld [vmem:[%s224 + $0x154] sm:$0xf]
      %v320 = vld [vmem:[%s224 + $0x158] sm:$0xf]
      %v321 = vld [vmem:[%s224 + $0x15c] sm:$0xf]
      %v322 = vld [vmem:[%s224 + $0x160] sm:$0xf]
      %v323 = vld [vmem:[%s224 + $0x164] sm:$0xf]
      %v324 = vld [vmem:[%s224 + $0x168] sm:$0xf]
      %v325 = vld [vmem:[%s224 + $0x16c] sm:$0xf]
      %v326 = vld [vmem:[%s224 + $0x170] sm:$0xf]
      %v327 = vld [vmem:[%s224 + $0x174] sm:$0xf]
      %v328 = vld [vmem:[%s224 + $0x178] sm:$0xf]
      %v329 = vld [vmem:[%s224 + $0x17c] sm:$0xf]
      %v330 = vld [vmem:[%s224 + $0x180] sm:$0xf]
      %v331 = vld [vmem:[%s224 + $0x184] sm:$0xf]
      %v332 = vld [vmem:[%s224 + $0x188] sm:$0xf]
      %v333 = vld [vmem:[%s224 + $0x18c] sm:$0xf]
      %v334 = vld [vmem:[%s224 + $0x190] sm:$0xf]
      %v335 = vld [vmem:[%s224 + $0x194] sm:$0xf]
      %v336 = vld [vmem:[%s224 + $0x198] sm:$0xf]
      %v337 = vld [vmem:[%s224 + $0x19c] sm:$0xf]
      %v338 = vld [vmem:[%s224 + $0x1a0] sm:$0xf]
      %v339 = vld [vmem:[%s224 + $0x1a4] sm:$0xf]
      %v340 = vld [vmem:[%s224 + $0x1a8] sm:$0xf]
      %v341 = vld [vmem:[%s224 + $0x1ac] sm:$0xf]
      %v342 = vld [vmem:[%s224 + $0x1b0] sm:$0xf]
      %v343 = vld [vmem:[%s224 + $0x1b4] sm:$0xf]
      %v344 = vld [vmem:[%s224 + $0x1b8] sm:$0xf]
      %v345 = vld [vmem:[%s224 + $0x1bc] sm:$0xf]
      %v346 = vld [vmem:[%s224 + $0x1c0] sm:$0xf]
      %v347 = vld [vmem:[%s224 + $0x1c4] sm:$0xf]
      %v348 = vld [vmem:[%s224 + $0x1c8] sm:$0xf]
      %v349 = vld [vmem:[%s224 + $0x1cc] sm:$0xf]
      %v350 = vld [vmem:[%s224 + $0x1d0] sm:$0xf]
      %v351 = vld [vmem:[%s224 + $0x1d4] sm:$0xf]
      %v352 = vld [vmem:[%s224 + $0x1d8] sm:$0xf]
      %v353 = vld [vmem:[%s224 + $0x1dc] sm:$0xf]
      %v354 = vld [vmem:[%s224 + $0x1e0] sm:$0xf]
      %v355 = vld [vmem:[%s224 + $0x1e4] sm:$0xf]
      %v356 = vld [vmem:[%s224 + $0x1e8] sm:$0xf]
      %v357 = vld [vmem:[%s224 + $0x1ec] sm:$0xf]
      %v358 = vld [vmem:[%s224 + $0x1f0] sm:$0xf]
      %v359 = vld [vmem:[%s224 + $0x1f4] sm:$0xf]
      %v360 = vld [vmem:[%s224 + $0x1f8] sm:$0xf]
      %v361 = vld [vmem:[%s224 + $0x1fc] sm:$0xf]
      %v362 = vld [vmem:[%s224 + $0x200] sm:$0xf]
      %v363 = vld [vmem:[%s224 + $0x204] sm:$0xf]
      %v364 = vld [vmem:[%s224 + $0x208] sm:$0xf]
      %v365 = vld [vmem:[%s224 + $0x20c] sm:$0xf]
      %v366 = vld [vmem:[%s224 + $0x210] sm:$0xf]
      %v367 = vld [vmem:[%s224 + $0x214] sm:$0xf]
      %v368 = vld [vmem:[%s224 + $0x218] sm:$0xf]
      %v369 = vld [vmem:[%s224 + $0x21c] sm:$0xf]
      %v370 = vld [vmem:[%s224 + $0x220] sm:$0xf]
      %v371 = vld [vmem:[%s224 + $0x224] sm:$0xf]
      %v372 = vld [vmem:[%s224 + $0x228] sm:$0xf]
      %v373 = vld [vmem:[%s224 + $0x22c] sm:$0xf]
      %v374 = vld [vmem:[%s224 + $0x230] sm:$0xf]
      %v375 = vld [vmem:[%s224 + $0x234] sm:$0xf]
      %v376 = vld [vmem:[%s224 + $0x238] sm:$0xf]
      %v377 = vld [vmem:[%s224 + $0x23c] sm:$0xf]
      %v378 = vld [vmem:[%s224 + $0x240] sm:$0xf]
      %v379 = vld [vmem:[%s224 + $0x244] sm:$0xf]
      %v380 = vld [vmem:[%s224 + $0x248] sm:$0xf]
      %v381 = vld [vmem:[%s224 + $0x24c] sm:$0xf]
      %v382 = vld [vmem:[%s224 + $0x250] sm:$0xf]
      %v383 = vld [vmem:[%s224 + $0x254] sm:$0xf]
      %v384 = vld [vmem:[%s224 + $0x258] sm:$0xf]
      %v385 = vld [vmem:[%s224 + $0x25c] sm:$0xf]
      %v386 = vld [vmem:[%s224 + $0x260] sm:$0xf]
      %v387 = vld [vmem:[%s224 + $0x264] sm:$0xf]
      %v388 = vld [vmem:[%s224 + $0x268] sm:$0xf]
      %v389 = vld [vmem:[%s224 + $0x26c] sm:$0xf]
      %v390 = vld [vmem:[%s224 + $0x270] sm:$0xf]
      %v391 = vld [vmem:[%s224 + $0x274] sm:$0xf]
      %v392 = vld [vmem:[%s224 + $0x278] sm:$0xf]
      %v393 = vld [vmem:[%s224 + $0x27c] sm:$0xf]
      %v394 = vld [vmem:[%s224 + $0x280] sm:$0xf]
      %v395 = vld [vmem:[%s224 + $0x284] sm:$0xf]
      %v396 = vld [vmem:[%s224 + $0x288] sm:$0xf]
      %v397 = vld [vmem:[%s224 + $0x28c] sm:$0xf]
      %v398 = vld [vmem:[%s224 + $0x290] sm:$0xf]
      %v399 = vld [vmem:[%s224 + $0x294] sm:$0xf]
      %v400 = vld [vmem:[%s224 + $0x298] sm:$0xf]
      %v401 = vld [vmem:[%s224 + $0x29c] sm:$0xf]
      %v402 = vld [vmem:[%s224 + $0x2a0] sm:$0xf]
      %v403 = vld [vmem:[%s224 + $0x2a4] sm:$0xf]
      %v404 = vld [vmem:[%s224 + $0x2a8] sm:$0xf]
      %v405 = vld [vmem:[%s224 + $0x2ac] sm:$0xf]
      %v406 = vld [vmem:[%s224 + $0x2b0] sm:$0xf]
      %v407 = vld [vmem:[%s224 + $0x2b4] sm:$0xf]
      %v408 = vld [vmem:[%s224 + $0x2b8] sm:$0xf]
      %v409 = vld [vmem:[%s224 + $0x2bc] sm:$0xf]
      %v410 = vld [vmem:[%s224 + $0x2c0] sm:$0xf]
      %v411 = vld [vmem:[%s224 + $0x2c4] sm:$0xf]
      %v412 = vld [vmem:[%s224 + $0x2c8] sm:$0xf]
      %v413 = vld [vmem:[%s224 + $0x2cc] sm:$0xf]
      %v414 = vld [vmem:[%s224 + $0x2d0] sm:$0xf]
      %v415 = vld [vmem:[%s224 + $0x2d4] sm:$0xf]
      %v416 = vld [vmem:[%s224 + $0x2d8] sm:$0xf]
      %v417 = vld [vmem:[%s224 + $0x2dc] sm:$0xf]
      %v418 = vld [vmem:[%s224 + $0x2e0] sm:$0xf]
      %v419 = vld [vmem:[%s224 + $0x2e4] sm:$0xf]
      %v420 = vld [vmem:[%s224 + $0x2e8] sm:$0xf]
      %v421 = vld [vmem:[%s224 + $0x2ec] sm:$0xf]
      %v422 = vld [vmem:[%s224 + $0x2f0] sm:$0xf]
      %v423 = vld [vmem:[%s224 + $0x2f4] sm:$0xf]
      %v424 = vld [vmem:[%s224 + $0x2f8] sm:$0xf]
      %v425 = vld [vmem:[%s224 + $0x2fc] sm:$0xf]
      %v426 = vld [vmem:[%s224 + $0x300] sm:$0xf]
      %v427 = vld [vmem:[%s224 + $0x304] sm:$0xf]
      %v428 = vld [vmem:[%s224 + $0x308] sm:$0xf]
      %v429 = vld [vmem:[%s224 + $0x30c] sm:$0xf]
      %v430 = vld [vmem:[%s224 + $0x310] sm:$0xf]
      %v431 = vld [vmem:[%s224 + $0x314] sm:$0xf]
      %v432 = vld [vmem:[%s224 + $0x318] sm:$0xf]
      %v433 = vld [vmem:[%s224 + $0x31c] sm:$0xf]
      %v434 = vld [vmem:[%s224 + $0x320] sm:$0xf]
      %v435 = vld [vmem:[%s224 + $0x324] sm:$0xf]
      %v436 = vld [vmem:[%s224 + $0x328] sm:$0xf]
      %v437 = vld [vmem:[%s224 + $0x32c] sm:$0xf]
      %v438 = vld [vmem:[%s224 + $0x330] sm:$0xf]
      %v439 = vld [vmem:[%s224 + $0x334] sm:$0xf]
      %v440 = vld [vmem:[%s224 + $0x338] sm:$0xf]
      %v441 = vld [vmem:[%s224 + $0x33c] sm:$0xf]
      %v442 = vld [vmem:[%s224 + $0x340] sm:$0xf]
      %v443 = vld [vmem:[%s224 + $0x344] sm:$0xf]
      %v444 = vld [vmem:[%s224 + $0x348] sm:$0xf]
      %v445 = vld [vmem:[%s224 + $0x34c] sm:$0xf]
      %v446 = vld [vmem:[%s224 + $0x350] sm:$0xf]
      %v447 = vld [vmem:[%s224 + $0x354] sm:$0xf]
      %v448 = vld [vmem:[%s224 + $0x358] sm:$0xf]
      %v449 = vld [vmem:[%s224 + $0x35c] sm:$0xf]
      %v450 = vld [vmem:[%s224 + $0x360] sm:$0xf]
      %v451 = vld [vmem:[%s224 + $0x364] sm:$0xf]
      %v452 = vld [vmem:[%s224 + $0x368] sm:$0xf]
      %v453 = vld [vmem:[%s224 + $0x36c] sm:$0xf]
      %v454 = vld [vmem:[%s224 + $0x370] sm:$0xf]
      %v455 = vld [vmem:[%s224 + $0x374] sm:$0xf]
      %v456 = vld [vmem:[%s224 + $0x378] sm:$0xf]
      %v457 = vld [vmem:[%s224 + $0x37c] sm:$0xf]
      %v458 = vld [vmem:[%s224 + $0x380] sm:$0xf]
      %v459 = vld [vmem:[%s224 + $0x384] sm:$0xf]
      %v460 = vld [vmem:[%s224 + $0x388] sm:$0xf]
      %v461 = vld [vmem:[%s224 + $0x38c] sm:$0xf]
      %v462 = vld [vmem:[%s224 + $0x390] sm:$0xf]
      %v463 = vld [vmem:[%s224 + $0x394] sm:$0xf]
      %v464 = vld [vmem:[%s224 + $0x398] sm:$0xf]
      %v465 = vld [vmem:[%s224 + $0x39c] sm:$0xf]
      %v466 = vld [vmem:[%s224 + $0x3a0] sm:$0xf]
      %v467 = vld [vmem:[%s224 + $0x3a4] sm:$0xf]
      %v468 = vld [vmem:[%s224 + $0x3a8] sm:$0xf]
      %v469 = vld [vmem:[%s224 + $0x3ac] sm:$0xf]
      %v470 = vld [vmem:[%s224 + $0x3b0] sm:$0xf]
      %v471 = vld [vmem:[%s224 + $0x3b4] sm:$0xf]
      %v472 = vld [vmem:[%s224 + $0x3b8] sm:$0xf]
      %v473 = vld [vmem:[%s224 + $0x3bc] sm:$0xf]
      %v474 = vld [vmem:[%s224 + $0x3c0] sm:$0xf]
      %v475 = vld [vmem:[%s224 + $0x3c4] sm:$0xf]
      %v476 = vld [vmem:[%s224 + $0x3c8] sm:$0xf]
      %v477 = vld [vmem:[%s224 + $0x3cc] sm:$0xf]
      %v478 = vld [vmem:[%s224 + $0x3d0] sm:$0xf]
      %v479 = vld [vmem:[%s224 + $0x3d4] sm:$0xf]
      %v480 = vld [vmem:[%s224 + $0x3d8] sm:$0xf]
      %v481 = vld [vmem:[%s224 + $0x3dc] sm:$0xf]
      %v482 = vld [vmem:[%s224 + $0x3e0] sm:$0xf]
      %v483 = vld [vmem:[%s224 + $0x3e4] sm:$0xf]
      %v484 = vld [vmem:[%s224 + $0x3e8] sm:$0xf]
      %v485 = vld [vmem:[%s224 + $0x3ec] sm:$0xf]
      %v486 = vld [vmem:[%s224 + $0x3f0] sm:$0xf]
      %v487 = vld [vmem:[%s224 + $0x3f4] sm:$0xf]
      %v488 = vld [vmem:[%s224 + $0x3f8] sm:$0xf]
      %v489 = vld [vmem:[%s224 + $0x3fc] sm:$0xf]
      %v490 = vld [vmem:[%s224 + $0x400] sm:$0xf]
      %v491 = vld [vmem:[%s224 + $0x404] sm:$0xf]
      %v492 = vld [vmem:[%s224 + $0x408] sm:$0xf]
      %v493 = vld [vmem:[%s224 + $0x40c] sm:$0xf]
      %v494 = vld [vmem:[%s224 + $0x410] sm:$0xf]
      %v495 = vld [vmem:[%s224 + $0x414] sm:$0xf]
      %v496 = vld [vmem:[%s224 + $0x418] sm:$0xf]
      %v497 = vld [vmem:[%s224 + $0x41c] sm:$0xf]
      %v498 = vld [vmem:[%s224 + $0x420] sm:$0xf]
      %v499 = vld [vmem:[%s224 + $0x424] sm:$0xf]
      %v500 = vld [vmem:[%s224 + $0x428] sm:$0xf]
      %v501 = vld [vmem:[%s224 + $0x42c] sm:$0xf]
      %v502 = vld [vmem:[%s224 + $0x430] sm:$0xf]
      %v503 = vld [vmem:[%s224 + $0x434] sm:$0xf]
      %v504 = vld [vmem:[%s224 + $0x438] sm:$0xf]
      %v505 = vld [vmem:[%s224 + $0x43c] sm:$0xf]
      %v506 = vld [vmem:[%s224 + $0x440] sm:$0xf]
      %v507 = vld [vmem:[%s224 + $0x444] sm:$0xf]
      %v508 = vld [vmem:[%s224 + $0x448] sm:$0xf]
      %v509 = vld [vmem:[%s224 + $0x44c] sm:$0xf]
      %v510 = vld [vmem:[%s224 + $0x450] sm:$0xf]
      %v511 = vld [vmem:[%s224 + $0x454] sm:$0xf]
      %v512 = vld [vmem:[%s224 + $0x458] sm:$0xf]
      %v513 = vld [vmem:[%s224 + $0x45c] sm:$0xf]
      %v514 = vld [vmem:[%s224 + $0x460] sm:$0xf]
      %v515 = vld [vmem:[%s224 + $0x464] sm:$0xf]
      %v516 = vld [vmem:[%s224 + $0x468] sm:$0xf]
      %v517 = vld [vmem:[%s224 + $0x46c] sm:$0xf]
      %v518 = vld [vmem:[%s224 + $0x470] sm:$0xf]
      %v519 = vld [vmem:[%s224 + $0x474] sm:$0xf]
      %v520 = vld [vmem:[%s224 + $0x478] sm:$0xf]
      %v521 = vld [vmem:[%s224 + $0x47c] sm:$0xf]
      %v522 = vld [vmem:[%s224 + $0x480] sm:$0xf]
      %v523 = vld [vmem:[%s224 + $0x484] sm:$0xf]
      %v524 = vld [vmem:[%s224 + $0x488] sm:$0xf]
      %v525 = vld [vmem:[%s224 + $0x48c] sm:$0xf]
      %v526 = vld [vmem:[%s224 + $0x490] sm:$0xf]
      %v527 = vld [vmem:[%s224 + $0x494] sm:$0xf]
      %v528 = vld [vmem:[%s224 + $0x498] sm:$0xf]
      %v529 = vld [vmem:[%s224 + $0x49c] sm:$0xf]
      %v530 = vld [vmem:[%s224 + $0x4a0] sm:$0xf]
      %v531 = vld [vmem:[%s224 + $0x4a4] sm:$0xf]
      %v532 = vld [vmem:[%s224 + $0x4a8] sm:$0xf]
      %v533 = vld [vmem:[%s224 + $0x4ac] sm:$0xf]
      %v534 = vld [vmem:[%s224 + $0x4b0] sm:$0xf]
      %v535 = vld [vmem:[%s224 + $0x4b4] sm:$0xf]
      %v536 = vld [vmem:[%s224 + $0x4b8] sm:$0xf]
      %v537 = vld [vmem:[%s224 + $0x4bc] sm:$0xf]
      %v538 = vld [vmem:[%s224 + $0x4c0] sm:$0xf]
      %v539 = vld [vmem:[%s224 + $0x4c4] sm:$0xf]
      %v540 = vld [vmem:[%s224 + $0x4c8] sm:$0xf]
      %v541 = vld [vmem:[%s224 + $0x4cc] sm:$0xf]
      %v542 = vld [vmem:[%s224 + $0x4d0] sm:$0xf]
      %v543 = vld [vmem:[%s224 + $0x4d4] sm:$0xf]
      %v544 = vld [vmem:[%s224 + $0x4d8] sm:$0xf]
      %v545 = vld [vmem:[%s224 + $0x4dc] sm:$0xf]
      %v546 = vld [vmem:[%s224 + $0x4e0] sm:$0xf]
      %v547 = vld [vmem:[%s224 + $0x4e4] sm:$0xf]
      %v548 = vld [vmem:[%s224 + $0x4e8] sm:$0xf]
      %v549 = vld [vmem:[%s224 + $0x4ec] sm:$0xf]
      %v550 = vld [vmem:[%s224 + $0x4f0] sm:$0xf]
      %v551 = vld [vmem:[%s224 + $0x4f4] sm:$0xf]
      %v552 = vld [vmem:[%s224 + $0x4f8] sm:$0xf]
      %v553 = vld [vmem:[%s224 + $0x4fc] sm:$0xf]
      %v554 = vld [vmem:[%s224 + $0x500] sm:$0xf]
      %v555 = vld [vmem:[%s224 + $0x504] sm:$0xf]
      %v556 = vld [vmem:[%s224 + $0x508] sm:$0xf]
      %v557 = vld [vmem:[%s224 + $0x50c] sm:$0xf]
      %v558 = vld [vmem:[%s224 + $0x510] sm:$0xf]
      %v559 = vld [vmem:[%s224 + $0x514] sm:$0xf]
      %v560 = vld [vmem:[%s224 + $0x518] sm:$0xf]
      %v561 = vld [vmem:[%s224 + $0x51c] sm:$0xf]
      %v562 = vld [vmem:[%s224 + $0x520] sm:$0xf]
      %v563 = vld [vmem:[%s224 + $0x524] sm:$0xf]
      %v564 = vld [vmem:[%s224 + $0x528] sm:$0xf]
      %v565 = vld [vmem:[%s224 + $0x52c] sm:$0xf]
      %v566 = vld [vmem:[%s224 + $0x530] sm:$0xf]
      %v567 = vld [vmem:[%s224 + $0x534] sm:$0xf]
      %v568 = vld [vmem:[%s224 + $0x538] sm:$0xf]
      %v569 = vld [vmem:[%s224 + $0x53c] sm:$0xf]
      %v570 = vld [vmem:[%s224 + $0x540] sm:$0xf]
      %v571 = vld [vmem:[%s224 + $0x544] sm:$0xf]
      %v572 = vld [vmem:[%s224 + $0x548] sm:$0xf]
      %v573 = vld [vmem:[%s224 + $0x54c] sm:$0xf]
      %v574 = vld [vmem:[%s224 + $0x550] sm:$0xf]
      %v575 = vld [vmem:[%s224 + $0x554] sm:$0xf]
      %v576 = vld [vmem:[%s224 + $0x558] sm:$0xf]
      %v577 = vld [vmem:[%s224 + $0x55c] sm:$0xf]
      %v578 = vld [vmem:[%s224 + $0x560] sm:$0xf]
      %v579 = vld [vmem:[%s224 + $0x564] sm:$0xf]
      %v580 = vld [vmem:[%s224 + $0x568] sm:$0xf]
      %v581 = vld [vmem:[%s224 + $0x56c] sm:$0xf]
      %v582 = vld [vmem:[%s224 + $0x570] sm:$0xf]
      %v583 = vld [vmem:[%s224 + $0x574] sm:$0xf]
      %v584 = vld [vmem:[%s224 + $0x578] sm:$0xf]
      %v585 = vld [vmem:[%s224 + $0x57c] sm:$0xf]
      %v586 = vld [vmem:[%s224 + $0x580] sm:$0xf]
      %v587 = vld [vmem:[%s224 + $0x584] sm:$0xf]
      %v588 = vld [vmem:[%s224 + $0x588] sm:$0xf]
      %v589 = vld [vmem:[%s224 + $0x58c] sm:$0xf]
      %v590 = vld [vmem:[%s224 + $0x590] sm:$0xf]
      %v591 = vld [vmem:[%s224 + $0x594] sm:$0xf]
      %v592 = vld [vmem:[%s224 + $0x598] sm:$0xf]
      %v593 = vld [vmem:[%s224 + $0x59c] sm:$0xf]
      %v594 = vld [vmem:[%s224 + $0x5a0] sm:$0xf]
      %v595 = vld [vmem:[%s224 + $0x5a4] sm:$0xf]
      %v596 = vld [vmem:[%s224 + $0x5a8] sm:$0xf]
      %v597 = vld [vmem:[%s224 + $0x5ac] sm:$0xf]
      %v598 = vld [vmem:[%s224 + $0x5b0] sm:$0xf]
      %v599 = vld [vmem:[%s224 + $0x5b4] sm:$0xf]
      %v600 = vld [vmem:[%s224 + $0x5b8] sm:$0xf]
      %v601 = vld [vmem:[%s224 + $0x5bc] sm:$0xf]
      %v602 = vld [vmem:[%s224 + $0x5c0] sm:$0xf]
      %v603 = vld [vmem:[%s224 + $0x5c4] sm:$0xf]
      %v604 = vld [vmem:[%s224 + $0x5c8] sm:$0xf]
      %v605 = vld [vmem:[%s224 + $0x5cc] sm:$0xf]
      %v606 = vld [vmem:[%s224 + $0x5d0] sm:$0xf]
      %v607 = vld [vmem:[%s224 + $0x5d4] sm:$0xf]
      %v608 = vld [vmem:[%s224 + $0x5d8] sm:$0xf]
      %v609 = vld [vmem:[%s224 + $0x5dc] sm:$0xf]
      %v610 = vld [vmem:[%s224 + $0x5e0] sm:$0xf]
      %v611 = vld [vmem:[%s224 + $0x5e4] sm:$0xf]
      %v612 = vld [vmem:[%s224 + $0x5e8] sm:$0xf]
      %v613 = vld [vmem:[%s224 + $0x5ec] sm:$0xf]
      %v614 = vld [vmem:[%s224 + $0x5f0] sm:$0xf]
      %v615 = vld [vmem:[%s224 + $0x5f4] sm:$0xf]
      %v616 = vld [vmem:[%s224 + $0x5f8] sm:$0xf]
      %v617 = vld [vmem:[%s224 + $0x5fc] sm:$0xf]
      %v618 = vld [vmem:[%s224 + $0x600] sm:$0xf]
      %v619 = vld [vmem:[%s224 + $0x604] sm:$0xf]
      %v620 = vld [vmem:[%s224 + $0x608] sm:$0xf]
      %v621 = vld [vmem:[%s224 + $0x60c] sm:$0xf]
      %v622 = vld [vmem:[%s224 + $0x610] sm:$0xf]
      %v623 = vld [vmem:[%s224 + $0x614] sm:$0xf]
      %v624 = vld [vmem:[%s224 + $0x618] sm:$0xf]
      %v625 = vld [vmem:[%s224 + $0x61c] sm:$0xf]
      %v626 = vld [vmem:[%s224 + $0x620] sm:$0xf]
      %v627 = vld [vmem:[%s224 + $0x624] sm:$0xf]
      %v628 = vld [vmem:[%s224 + $0x628] sm:$0xf]
      %v629 = vld [vmem:[%s224 + $0x62c] sm:$0xf]
      %v630 = vld [vmem:[%s224 + $0x630] sm:$0xf]
      %v631 = vld [vmem:[%s224 + $0x634] sm:$0xf]
      %v632 = vld [vmem:[%s224 + $0x638] sm:$0xf]
      %v633 = vld [vmem:[%s224 + $0x63c] sm:$0xf]
      %v634 = vld [vmem:[%s224 + $0x640] sm:$0xf]
      %v635 = vld [vmem:[%s224 + $0x644] sm:$0xf]
      %v636 = vld [vmem:[%s224 + $0x648] sm:$0xf]
      %v637 = vld [vmem:[%s224 + $0x64c] sm:$0xf]
      %v638 = vld [vmem:[%s224 + $0x650] sm:$0xf]
      %v639 = vld [vmem:[%s224 + $0x654] sm:$0xf]
      %v640 = vld [vmem:[%s224 + $0x658] sm:$0xf]
      %v641 = vld [vmem:[%s224 + $0x65c] sm:$0xf]
      %v642 = vld [vmem:[%s224 + $0x660] sm:$0xf]
      %v643 = vld [vmem:[%s224 + $0x664] sm:$0xf]
      %v644 = vld [vmem:[%s224 + $0x668] sm:$0xf]
      %v645 = vld [vmem:[%s224 + $0x66c] sm:$0xf]
      %v646 = vld [vmem:[%s224 + $0x670] sm:$0xf]
      %v647 = vld [vmem:[%s224 + $0x674] sm:$0xf]
      %v648 = vld [vmem:[%s224 + $0x678] sm:$0xf]
      %v649 = vld [vmem:[%s224 + $0x67c] sm:$0xf]
      %v650 = vld [vmem:[%s224 + $0x680] sm:$0xf]
      %v651 = vld [vmem:[%s224 + $0x684] sm:$0xf]
      %v652 = vld [vmem:[%s224 + $0x688] sm:$0xf]
      %v653 = vld [vmem:[%s224 + $0x68c] sm:$0xf]
      %v654 = vld [vmem:[%s224 + $0x690] sm:$0xf]
      %v655 = vld [vmem:[%s224 + $0x694] sm:$0xf]
      %v656 = vld [vmem:[%s224 + $0x698] sm:$0xf]
      %v657 = vld [vmem:[%s224 + $0x69c] sm:$0xf]
      %v658 = vld [vmem:[%s224 + $0x6a0] sm:$0xf]
      %v659 = vld [vmem:[%s224 + $0x6a4] sm:$0xf]
      %v660 = vld [vmem:[%s224 + $0x6a8] sm:$0xf]
      %v661 = vld [vmem:[%s224 + $0x6ac] sm:$0xf]
      %v662 = vld [vmem:[%s224 + $0x6b0] sm:$0xf]
      %v663 = vld [vmem:[%s224 + $0x6b4] sm:$0xf]
      %v664 = vld [vmem:[%s224 + $0x6b8] sm:$0xf]
      %v665 = vld [vmem:[%s224 + $0x6bc] sm:$0xf]
      %v666 = vld [vmem:[%s224 + $0x6c0] sm:$0xf]
      %v667 = vld [vmem:[%s224 + $0x6c4] sm:$0xf]
      %v668 = vld [vmem:[%s224 + $0x6c8] sm:$0xf]
      %v669 = vld [vmem:[%s224 + $0x6cc] sm:$0xf]
      %v670 = vld [vmem:[%s224 + $0x6d0] sm:$0xf]
      %v671 = vld [vmem:[%s224 + $0x6d4] sm:$0xf]
      %v672 = vld [vmem:[%s224 + $0x6d8] sm:$0xf]
      %v673 = vld [vmem:[%s224 + $0x6dc] sm:$0xf]
      %v674 = vld [vmem:[%s224 + $0x6e0] sm:$0xf]
      %v675 = vld [vmem:[%s224 + $0x6e4] sm:$0xf]
      %v676 = vld [vmem:[%s224 + $0x6e8] sm:$0xf]
      %v677 = vld [vmem:[%s224 + $0x6ec] sm:$0xf]
      %v678 = vld [vmem:[%s224 + $0x6f0] sm:$0xf]
      %v679 = vld [vmem:[%s224 + $0x6f4] sm:$0xf]
      %v680 = vld [vmem:[%s224 + $0x6f8] sm:$0xf]
      %v681 = vld [vmem:[%s224 + $0x6fc] sm:$0xf]
      %v682 = vld [vmem:[%s224 + $0x700] sm:$0xf]
      %v683 = vld [vmem:[%s224 + $0x704] sm:$0xf]
      %v684 = vld [vmem:[%s224 + $0x708] sm:$0xf]
      %v685 = vld [vmem:[%s224 + $0x70c] sm:$0xf]
      %v686 = vld [vmem:[%s224 + $0x710] sm:$0xf]
      %v687 = vld [vmem:[%s224 + $0x714] sm:$0xf]
      %v688 = vld [vmem:[%s224 + $0x718] sm:$0xf]
      %v689 = vld [vmem:[%s224 + $0x71c] sm:$0xf]
      %v690 = vld [vmem:[%s224 + $0x720] sm:$0xf]
      %v691 = vld [vmem:[%s224 + $0x724] sm:$0xf]
      %v692 = vld [vmem:[%s224 + $0x728] sm:$0xf]
      %v693 = vld [vmem:[%s224 + $0x72c] sm:$0xf]
      %v694 = vld [vmem:[%s224 + $0x730] sm:$0xf]
      %v695 = vld [vmem:[%s224 + $0x734] sm:$0xf]
      %v696 = vld [vmem:[%s224 + $0x738] sm:$0xf]
      %v697 = vld [vmem:[%s224 + $0x73c] sm:$0xf]
      %v698 = vld [vmem:[%s224 + $0x740] sm:$0xf]
      %v699 = vld [vmem:[%s224 + $0x744] sm:$0xf]
      %v700 = vld [vmem:[%s224 + $0x748] sm:$0xf]
      %v701 = vld [vmem:[%s224 + $0x74c] sm:$0xf]
      %v702 = vld [vmem:[%s224 + $0x750] sm:$0xf]
      %v703 = vld [vmem:[%s224 + $0x754] sm:$0xf]
      %v704 = vld [vmem:[%s224 + $0x758] sm:$0xf]
      %v705 = vld [vmem:[%s224 + $0x75c] sm:$0xf]
      %v706 = vld [vmem:[%s224 + $0x760] sm:$0xf]
      %v707 = vld [vmem:[%s224 + $0x764] sm:$0xf]
      %v708 = vld [vmem:[%s224 + $0x768] sm:$0xf]
      %v709 = vld [vmem:[%s224 + $0x76c] sm:$0xf]
      %v710 = vld [vmem:[%s224 + $0x770] sm:$0xf]
      %v711 = vld [vmem:[%s224 + $0x774] sm:$0xf]
      %v712 = vld [vmem:[%s224 + $0x778] sm:$0xf]
      %v713 = vld [vmem:[%s224 + $0x77c] sm:$0xf]
      %v714 = vld [vmem:[%s224 + $0x780] sm:$0xf]
      %v715 = vld [vmem:[%s224 + $0x784] sm:$0xf]
      %v716 = vld [vmem:[%s224 + $0x788] sm:$0xf]
      %v717 = vld [vmem:[%s224 + $0x78c] sm:$0xf]
      %v718 = vld [vmem:[%s224 + $0x790] sm:$0xf]
      %v719 = vld [vmem:[%s224 + $0x794] sm:$0xf]
      %v720 = vld [vmem:[%s224 + $0x798] sm:$0xf]
      %v721 = vld [vmem:[%s224 + $0x79c] sm:$0xf]
      %v722 = vld [vmem:[%s224 + $0x7a0] sm:$0xf]
      %v723 = vld [vmem:[%s224 + $0x7a4] sm:$0xf]
      %v724 = vld [vmem:[%s224 + $0x7a8] sm:$0xf]
      %v725 = vld [vmem:[%s224 + $0x7ac] sm:$0xf]
      %v726 = vld [vmem:[%s224 + $0x7b0] sm:$0xf]
      %v727 = vld [vmem:[%s224 + $0x7b4] sm:$0xf]
      %v728 = vld [vmem:[%s224 + $0x7b8] sm:$0xf]
      %v729 = vld [vmem:[%s224 + $0x7bc] sm:$0xf]
      %v730 = vld [vmem:[%s224 + $0x7c0] sm:$0xf]
      %v731 = vld [vmem:[%s224 + $0x7c4] sm:$0xf]
      %v732 = vld [vmem:[%s224 + $0x7c8] sm:$0xf]
      %v733 = vld [vmem:[%s224 + $0x7cc] sm:$0xf]
      %v734 = vld [vmem:[%s224 + $0x7d0] sm:$0xf]
      %v735 = vld [vmem:[%s224 + $0x7d4] sm:$0xf]
      %v736 = vld [vmem:[%s224 + $0x7d8] sm:$0xf]
      %v737 = vld [vmem:[%s224 + $0x7dc] sm:$0xf]
      %v738 = vld [vmem:[%s224 + $0x7e0] sm:$0xf]
      %v739 = vld [vmem:[%s224 + $0x7e4] sm:$0xf]
      %v740 = vld [vmem:[%s224 + $0x7e8] sm:$0xf]
      %v741 = vld [vmem:[%s224 + $0x7ec] sm:$0xf]
      %v742 = vld [vmem:[%s224 + $0x7f0] sm:$0xf]
      %v743 = vld [vmem:[%s224 + $0x7f4] sm:$0xf]
      %v744 = vld [vmem:[%s224 + $0x7f8] sm:$0xf]
      %v745 = vld [vmem:[%s224 + $0x7fc] sm:$0xf]
      %v746 = vld [vmem:[%s1] sm:$0xf]
      %v747 = vld [vmem:[%s1 + $0x4] sm:$0xf]
      %v748 = vld [vmem:[%s1 + $0x8] sm:$0xf]
      %v749 = vld [vmem:[%s1 + $0xc] sm:$0x3]
      %v750 = vld [vmem:[%s2] sm:$0x1]
      %v752 = vperm.slane %v750, 0
      %v1266 = vunpack.c.l.b16 %v234
      %v1267 = vunpack.c.l.b16 %v235
      %v1268 = vunpack.c.l.b16 %v236
      %v1269 = vunpack.c.l.b16 %v237
      %v1270 = vunpack.c.l.b16 %v238
      %v1271 = vunpack.c.l.b16 %v239
      %v1272 = vunpack.c.l.b16 %v240
      %v1273 = vunpack.c.l.b16 %v241
      %v1274 = vunpack.c.l.b16 %v242
      %v1275 = vunpack.c.l.b16 %v243
      %v1276 = vunpack.c.l.b16 %v244
      %v1277 = vunpack.c.l.b16 %v245
      %v1278 = vunpack.c.l.b16 %v246
      %v1279 = vunpack.c.l.b16 %v247
      %v1280 = vunpack.c.l.b16 %v248
      %v1281 = vunpack.c.l.b16 %v249
      %v1282 = vunpack.c.l.b16 %v250
      %v1283 = vunpack.c.l.b16 %v251
      %v1284 = vunpack.c.l.b16 %v252
      %v1285 = vunpack.c.l.b16 %v253
      %v1286 = vunpack.c.l.b16 %v254
      %v1287 = vunpack.c.l.b16 %v255
      %v1288 = vunpack.c.l.b16 %v256
      %v1289 = vunpack.c.l.b16 %v257
      %v1290 = vunpack.c.l.b16 %v258
      %v1291 = vunpack.c.l.b16 %v259
      %v1292 = vunpack.c.l.b16 %v260
      %v1293 = vunpack.c.l.b16 %v261
      %v1294 = vunpack.c.l.b16 %v262
      %v1295 = vunpack.c.l.b16 %v263
      %v1296 = vunpack.c.l.b16 %v264
      %v1297 = vunpack.c.l.b16 %v265
      %v1298 = vunpack.c.l.b16 %v266
      %v1299 = vunpack.c.l.b16 %v267
      %v1300 = vunpack.c.l.b16 %v268
      %v1301 = vunpack.c.l.b16 %v269
      %v1302 = vunpack.c.l.b16 %v270
      %v1303 = vunpack.c.l.b16 %v271
      %v1304 = vunpack.c.l.b16 %v272
      %v1305 = vunpack.c.l.b16 %v273
      %v1306 = vunpack.c.l.b16 %v274
      %v1307 = vunpack.c.l.b16 %v275
      %v1308 = vunpack.c.l.b16 %v276
      %v1309 = vunpack.c.l.b16 %v277
      %v1310 = vunpack.c.l.b16 %v278
      %v1311 = vunpack.c.l.b16 %v279
      %v1312 = vunpack.c.l.b16 %v280
      %v1313 = vunpack.c.l.b16 %v281
      %v1314 = vunpack.c.l.b16 %v282
      %v1315 = vunpack.c.l.b16 %v283
      %v1316 = vunpack.c.l.b16 %v284
      %v1317 = vunpack.c.l.b16 %v285
      %v1318 = vunpack.c.l.b16 %v286
      %v1319 = vunpack.c.l.b16 %v287
      %v1320 = vunpack.c.l.b16 %v288
      %v1321 = vunpack.c.l.b16 %v289
      %v1322 = vunpack.c.l.b16 %v290
      %v1323 = vunpack.c.l.b16 %v291
      %v1324 = vunpack.c.l.b16 %v292
      %v1325 = vunpack.c.l.b16 %v293
      %v1326 = vunpack.c.l.b16 %v294
      %v1327 = vunpack.c.l.b16 %v295
      %v1328 = vunpack.c.l.b16 %v296
      %v1329 = vunpack.c.l.b16 %v297
      %v1330 = vunpack.c.l.b16 %v298
      %v1331 = vunpack.c.l.b16 %v299
      %v1332 = vunpack.c.l.b16 %v300
      %v1333 = vunpack.c.l.b16 %v301
      %v1334 = vunpack.c.l.b16 %v302
      %v1335 = vunpack.c.l.b16 %v303
      %v1336 = vunpack.c.l.b16 %v304
      %v1337 = vunpack.c.l.b16 %v305
      %v1338 = vunpack.c.l.b16 %v306
      %v1339 = vunpack.c.l.b16 %v307
      %v1340 = vunpack.c.l.b16 %v308
      %v1341 = vunpack.c.l.b16 %v309
      %v1342 = vunpack.c.l.b16 %v310
      %v1343 = vunpack.c.l.b16 %v311
      %v1344 = vunpack.c.l.b16 %v312
      %v1345 = vunpack.c.l.b16 %v313
      %v1346 = vunpack.c.l.b16 %v314
      %v1347 = vunpack.c.l.b16 %v315
      %v1348 = vunpack.c.l.b16 %v316
      %v1349 = vunpack.c.l.b16 %v317
      %v1350 = vunpack.c.l.b16 %v318
      %v1351 = vunpack.c.l.b16 %v319
      %v1352 = vunpack.c.l.b16 %v320
      %v1353 = vunpack.c.l.b16 %v321
      %v1354 = vunpack.c.l.b16 %v322
      %v1355 = vunpack.c.l.b16 %v323
      %v1356 = vunpack.c.l.b16 %v324
      %v1357 = vunpack.c.l.b16 %v325
      %v1358 = vunpack.c.l.b16 %v326
      %v1359 = vunpack.c.l.b16 %v327
      %v1360 = vunpack.c.l.b16 %v328
      %v1361 = vunpack.c.l.b16 %v329
      %v1362 = vunpack.c.l.b16 %v330
      %v1363 = vunpack.c.l.b16 %v331
      %v1364 = vunpack.c.l.b16 %v332
      %v1365 = vunpack.c.l.b16 %v333
      %v1366 = vunpack.c.l.b16 %v334
      %v1367 = vunpack.c.l.b16 %v335
      %v1368 = vunpack.c.l.b16 %v336
      %v1369 = vunpack.c.l.b16 %v337
      %v1370 = vunpack.c.l.b16 %v338
      %v1371 = vunpack.c.l.b16 %v339
      %v1372 = vunpack.c.l.b16 %v340
      %v1373 = vunpack.c.l.b16 %v341
      %v1374 = vunpack.c.l.b16 %v342
      %v1375 = vunpack.c.l.b16 %v343
      %v1376 = vunpack.c.l.b16 %v344
      %v1377 = vunpack.c.l.b16 %v345
      %v1378 = vunpack.c.l.b16 %v346
      %v1379 = vunpack.c.l.b16 %v347
      %v1380 = vunpack.c.l.b16 %v348
      %v1381 = vunpack.c.l.b16 %v349
      %v1382 = vunpack.c.l.b16 %v350
      %v1383 = vunpack.c.l.b16 %v351
      %v1384 = vunpack.c.l.b16 %v352
      %v1385 = vunpack.c.l.b16 %v353
      %v1386 = vunpack.c.l.b16 %v354
      %v1387 = vunpack.c.l.b16 %v355
      %v1388 = vunpack.c.l.b16 %v356
      %v1389 = vunpack.c.l.b16 %v357
      %v1390 = vunpack.c.l.b16 %v358
      %v1391 = vunpack.c.l.b16 %v359
      %v1392 = vunpack.c.l.b16 %v360
      %v1393 = vunpack.c.l.b16 %v361
      %v1394 = vunpack.c.l.b16 %v362
      %v1395 = vunpack.c.l.b16 %v363
      %v1396 = vunpack.c.l.b16 %v364
      %v1397 = vunpack.c.l.b16 %v365
      %v1398 = vunpack.c.l.b16 %v366
      %v1399 = vunpack.c.l.b16 %v367
      %v1400 = vunpack.c.l.b16 %v368
      %v1401 = vunpack.c.l.b16 %v369
      %v1402 = vunpack.c.l.b16 %v370
      %v1403 = vunpack.c.l.b16 %v371
      %v1404 = vunpack.c.l.b16 %v372
      %v1405 = vunpack.c.l.b16 %v373
      %v1406 = vunpack.c.l.b16 %v374
      %v1407 = vunpack.c.l.b16 %v375
      %v1408 = vunpack.c.l.b16 %v376
      %v1409 = vunpack.c.l.b16 %v377
      %v1410 = vunpack.c.l.b16 %v378
      %v1411 = vunpack.c.l.b16 %v379
      %v1412 = vunpack.c.l.b16 %v380
      %v1413 = vunpack.c.l.b16 %v381
      %v1414 = vunpack.c.l.b16 %v382
      %v1415 = vunpack.c.l.b16 %v383
      %v1416 = vunpack.c.l.b16 %v384
      %v1417 = vunpack.c.l.b16 %v385
      %v1418 = vunpack.c.l.b16 %v386
      %v1419 = vunpack.c.l.b16 %v387
      %v1420 = vunpack.c.l.b16 %v388
      %v1421 = vunpack.c.l.b16 %v389
      %v1422 = vunpack.c.l.b16 %v390
      %v1423 = vunpack.c.l.b16 %v391
      %v1424 = vunpack.c.l.b16 %v392
      %v1425 = vunpack.c.l.b16 %v393
      %v1426 = vunpack.c.l.b16 %v394
      %v1427 = vunpack.c.l.b16 %v395
      %v1428 = vunpack.c.l.b16 %v396
      %v1429 = vunpack.c.l.b16 %v397
      %v1430 = vunpack.c.l.b16 %v398
      %v1431 = vunpack.c.l.b16 %v399
      %v1432 = vunpack.c.l.b16 %v400
      %v1433 = vunpack.c.l.b16 %v401
      %v1434 = vunpack.c.l.b16 %v402
      %v1435 = vunpack.c.l.b16 %v403
      %v1436 = vunpack.c.l.b16 %v404
      %v1437 = vunpack.c.l.b16 %v405
      %v1438 = vunpack.c.l.b16 %v406
      %v1439 = vunpack.c.l.b16 %v407
      %v1440 = vunpack.c.l.b16 %v408
      %v1441 = vunpack.c.l.b16 %v409
      %v1442 = vunpack.c.l.b16 %v410
      %v1443 = vunpack.c.l.b16 %v411
      %v1444 = vunpack.c.l.b16 %v412
      %v1445 = vunpack.c.l.b16 %v413
      %v1446 = vunpack.c.l.b16 %v414
      %v1447 = vunpack.c.l.b16 %v415
      %v1448 = vunpack.c.l.b16 %v416
      %v1449 = vunpack.c.l.b16 %v417
      %v1450 = vunpack.c.l.b16 %v418
      %v1451 = vunpack.c.l.b16 %v419
      %v1452 = vunpack.c.l.b16 %v420
      %v1453 = vunpack.c.l.b16 %v421
      %v1454 = vunpack.c.l.b16 %v422
      %v1455 = vunpack.c.l.b16 %v423
      %v1456 = vunpack.c.l.b16 %v424
      %v1457 = vunpack.c.l.b16 %v425
      %v1458 = vunpack.c.l.b16 %v426
      %v1459 = vunpack.c.l.b16 %v427
      %v1460 = vunpack.c.l.b16 %v428
      %v1461 = vunpack.c.l.b16 %v429
      %v1462 = vunpack.c.l.b16 %v430
      %v1463 = vunpack.c.l.b16 %v431
      %v1464 = vunpack.c.l.b16 %v432
      %v1465 = vunpack.c.l.b16 %v433
      %v1466 = vunpack.c.l.b16 %v434
      %v1467 = vunpack.c.l.b16 %v435
      %v1468 = vunpack.c.l.b16 %v436
      %v1469 = vunpack.c.l.b16 %v437
      %v1470 = vunpack.c.l.b16 %v438
      %v1471 = vunpack.c.l.b16 %v439
      %v1472 = vunpack.c.l.b16 %v440
      %v1473 = vunpack.c.l.b16 %v441
      %v1474 = vunpack.c.l.b16 %v442
      %v1475 = vunpack.c.l.b16 %v443
      %v1476 = vunpack.c.l.b16 %v444
      %v1477 = vunpack.c.l.b16 %v445
      %v1478 = vunpack.c.l.b16 %v446
      %v1479 = vunpack.c.l.b16 %v447
      %v1480 = vunpack.c.l.b16 %v448
      %v1481 = vunpack.c.l.b16 %v449
      %v1482 = vunpack.c.l.b16 %v450
      %v1483 = vunpack.c.l.b16 %v451
      %v1484 = vunpack.c.l.b16 %v452
      %v1485 = vunpack.c.l.b16 %v453
      %v1486 = vunpack.c.l.b16 %v454
      %v1487 = vunpack.c.l.b16 %v455
      %v1488 = vunpack.c.l.b16 %v456
      %v1489 = vunpack.c.l.b16 %v457
      %v1490 = vunpack.c.l.b16 %v458
      %v1491 = vunpack.c.l.b16 %v459
      %v1492 = vunpack.c.l.b16 %v460
      %v1493 = vunpack.c.l.b16 %v461
      %v1494 = vunpack.c.l.b16 %v462
      %v1495 = vunpack.c.l.b16 %v463
      %v1496 = vunpack.c.l.b16 %v464
      %v1497 = vunpack.c.l.b16 %v465
      %v1498 = vunpack.c.l.b16 %v466
      %v1499 = vunpack.c.l.b16 %v467
      %v1500 = vunpack.c.l.b16 %v468
      %v1501 = vunpack.c.l.b16 %v469
      %v1502 = vunpack.c.l.b16 %v470
      %v1503 = vunpack.c.l.b16 %v471
      %v1504 = vunpack.c.l.b16 %v472
      %v1505 = vunpack.c.l.b16 %v473
      %v1506 = vunpack.c.l.b16 %v474
      %v1507 = vunpack.c.l.b16 %v475
      %v1508 = vunpack.c.l.b16 %v476
      %v1509 = vunpack.c.l.b16 %v477
      %v1510 = vunpack.c.l.b16 %v478
      %v1511 = vunpack.c.l.b16 %v479
      %v1512 = vunpack.c.l.b16 %v480
      %v1513 = vunpack.c.l.b16 %v481
      %v1514 = vunpack.c.l.b16 %v482
      %v1515 = vunpack.c.l.b16 %v483
      %v1516 = vunpack.c.l.b16 %v484
      %v1517 = vunpack.c.l.b16 %v485
      %v1518 = vunpack.c.l.b16 %v486
      %v1519 = vunpack.c.l.b16 %v487
      %v1520 = vunpack.c.l.b16 %v488
      %v1521 = vunpack.c.l.b16 %v489
      %v1522 = vunpack.c.l.b16 %v490
      %v1523 = vunpack.c.l.b16 %v491
      %v1524 = vunpack.c.l.b16 %v492
      %v1525 = vunpack.c.l.b16 %v493
      %v1526 = vunpack.c.l.b16 %v494
      %v1527 = vunpack.c.l.b16 %v495
      %v1528 = vunpack.c.l.b16 %v496
      %v1529 = vunpack.c.l.b16 %v497
      %v1530 = vunpack.c.l.b16 %v498
      %v1531 = vunpack.c.l.b16 %v499
      %v1532 = vunpack.c.l.b16 %v500
      %v1533 = vunpack.c.l.b16 %v501
      %v1534 = vunpack.c.l.b16 %v502
      %v1535 = vunpack.c.l.b16 %v503
      %v1536 = vunpack.c.l.b16 %v504
      %v1537 = vunpack.c.l.b16 %v505
      %v1538 = vunpack.c.l.b16 %v506
      %v1539 = vunpack.c.l.b16 %v507
      %v1540 = vunpack.c.l.b16 %v508
      %v1541 = vunpack.c.l.b16 %v509
      %v1542 = vunpack.c.l.b16 %v510
      %v1543 = vunpack.c.l.b16 %v511
      %v1544 = vunpack.c.l.b16 %v512
      %v1545 = vunpack.c.l.b16 %v513
      %v1546 = vunpack.c.l.b16 %v514
      %v1547 = vunpack.c.l.b16 %v515
      %v1548 = vunpack.c.l.b16 %v516
      %v1549 = vunpack.c.l.b16 %v517
      %v1550 = vunpack.c.l.b16 %v518
      %v1551 = vunpack.c.l.b16 %v519
      %v1552 = vunpack.c.l.b16 %v520
      %v1553 = vunpack.c.l.b16 %v521
      %v1554 = vunpack.c.l.b16 %v522
      %v1555 = vunpack.c.l.b16 %v523
      %v1556 = vunpack.c.l.b16 %v524
      %v1557 = vunpack.c.l.b16 %v525
      %v1558 = vunpack.c.l.b16 %v526
      %v1559 = vunpack.c.l.b16 %v527
      %v1560 = vunpack.c.l.b16 %v528
      %v1561 = vunpack.c.l.b16 %v529
      %v1562 = vunpack.c.l.b16 %v530
      %v1563 = vunpack.c.l.b16 %v531
      %v1564 = vunpack.c.l.b16 %v532
      %v1565 = vunpack.c.l.b16 %v533
      %v1566 = vunpack.c.l.b16 %v534
      %v1567 = vunpack.c.l.b16 %v535
      %v1568 = vunpack.c.l.b16 %v536
      %v1569 = vunpack.c.l.b16 %v537
      %v1570 = vunpack.c.l.b16 %v538
      %v1571 = vunpack.c.l.b16 %v539
      %v1572 = vunpack.c.l.b16 %v540
      %v1573 = vunpack.c.l.b16 %v541
      %v1574 = vunpack.c.l.b16 %v542
      %v1575 = vunpack.c.l.b16 %v543
      %v1576 = vunpack.c.l.b16 %v544
      %v1577 = vunpack.c.l.b16 %v545
      %v1578 = vunpack.c.l.b16 %v546
      %v1579 = vunpack.c.l.b16 %v547
      %v1580 = vunpack.c.l.b16 %v548
      %v1581 = vunpack.c.l.b16 %v549
      %v1582 = vunpack.c.l.b16 %v550
      %v1583 = vunpack.c.l.b16 %v551
      %v1584 = vunpack.c.l.b16 %v552
      %v1585 = vunpack.c.l.b16 %v553
      %v1586 = vunpack.c.l.b16 %v554
      %v1587 = vunpack.c.l.b16 %v555
      %v1588 = vunpack.c.l.b16 %v556
      %v1589 = vunpack.c.l.b16 %v557
      %v1590 = vunpack.c.l.b16 %v558
      %v1591 = vunpack.c.l.b16 %v559
      %v1592 = vunpack.c.l.b16 %v560
      %v1593 = vunpack.c.l.b16 %v561
      %v1594 = vunpack.c.l.b16 %v562
      %v1595 = vunpack.c.l.b16 %v563
      %v1596 = vunpack.c.l.b16 %v564
      %v1597 = vunpack.c.l.b16 %v565
      %v1598 = vunpack.c.l.b16 %v566
      %v1599 = vunpack.c.l.b16 %v567
      %v1600 = vunpack.c.l.b16 %v568
      %v1601 = vunpack.c.l.b16 %v569
      %v1602 = vunpack.c.l.b16 %v570
      %v1603 = vunpack.c.l.b16 %v571
      %v1604 = vunpack.c.l.b16 %v572
      %v1605 = vunpack.c.l.b16 %v573
      %v1606 = vunpack.c.l.b16 %v574
      %v1607 = vunpack.c.l.b16 %v575
      %v1608 = vunpack.c.l.b16 %v576
      %v1609 = vunpack.c.l.b16 %v577
      %v1610 = vunpack.c.l.b16 %v578
      %v1611 = vunpack.c.l.b16 %v579
      %v1612 = vunpack.c.l.b16 %v580
      %v1613 = vunpack.c.l.b16 %v581
      %v1614 = vunpack.c.l.b16 %v582
      %v1615 = vunpack.c.l.b16 %v583
      %v1616 = vunpack.c.l.b16 %v584
      %v1617 = vunpack.c.l.b16 %v585
      %v1618 = vunpack.c.l.b16 %v586
      %v1619 = vunpack.c.l.b16 %v587
      %v1620 = vunpack.c.l.b16 %v588
      %v1621 = vunpack.c.l.b16 %v589
      %v1622 = vunpack.c.l.b16 %v590
      %v1623 = vunpack.c.l.b16 %v591
      %v1624 = vunpack.c.l.b16 %v592
      %v1625 = vunpack.c.l.b16 %v593
      %v1626 = vunpack.c.l.b16 %v594
      %v1627 = vunpack.c.l.b16 %v595
      %v1628 = vunpack.c.l.b16 %v596
      %v1629 = vunpack.c.l.b16 %v597
      %v1630 = vunpack.c.l.b16 %v598
      %v1631 = vunpack.c.l.b16 %v599
      %v1632 = vunpack.c.l.b16 %v600
      %v1633 = vunpack.c.l.b16 %v601
      %v1634 = vunpack.c.l.b16 %v602
      %v1635 = vunpack.c.l.b16 %v603
      %v1636 = vunpack.c.l.b16 %v604
      %v1637 = vunpack.c.l.b16 %v605
      %v1638 = vunpack.c.l.b16 %v606
      %v1639 = vunpack.c.l.b16 %v607
      %v1640 = vunpack.c.l.b16 %v608
      %v1641 = vunpack.c.l.b16 %v609
      %v1642 = vunpack.c.l.b16 %v610
      %v1643 = vunpack.c.l.b16 %v611
      %v1644 = vunpack.c.l.b16 %v612
      %v1645 = vunpack.c.l.b16 %v613
      %v1646 = vunpack.c.l.b16 %v614
      %v1647 = vunpack.c.l.b16 %v615
      %v1648 = vunpack.c.l.b16 %v616
      %v1649 = vunpack.c.l.b16 %v617
      %v1650 = vunpack.c.l.b16 %v618
      %v1651 = vunpack.c.l.b16 %v619
      %v1652 = vunpack.c.l.b16 %v620
      %v1653 = vunpack.c.l.b16 %v621
      %v1654 = vunpack.c.l.b16 %v622
      %v1655 = vunpack.c.l.b16 %v623
      %v1656 = vunpack.c.l.b16 %v624
      %v1657 = vunpack.c.l.b16 %v625
      %v1658 = vunpack.c.l.b16 %v626
      %v1659 = vunpack.c.l.b16 %v627
      %v1660 = vunpack.c.l.b16 %v628
      %v1661 = vunpack.c.l.b16 %v629
      %v1662 = vunpack.c.l.b16 %v630
      %v1663 = vunpack.c.l.b16 %v631
      %v1664 = vunpack.c.l.b16 %v632
      %v1665 = vunpack.c.l.b16 %v633
      %v1666 = vunpack.c.l.b16 %v634
      %v1667 = vunpack.c.l.b16 %v635
      %v1668 = vunpack.c.l.b16 %v636
      %v1669 = vunpack.c.l.b16 %v637
      %v1670 = vunpack.c.l.b16 %v638
      %v1671 = vunpack.c.l.b16 %v639
      %v1672 = vunpack.c.l.b16 %v640
      %v1673 = vunpack.c.l.b16 %v641
      %v1674 = vunpack.c.l.b16 %v642
      %v1675 = vunpack.c.l.b16 %v643
      %v1676 = vunpack.c.l.b16 %v644
      %v1677 = vunpack.c.l.b16 %v645
      %v1678 = vunpack.c.l.b16 %v646
      %v1679 = vunpack.c.l.b16 %v647
      %v1680 = vunpack.c.l.b16 %v648
      %v1681 = vunpack.c.l.b16 %v649
      %v1682 = vunpack.c.l.b16 %v650
      %v1683 = vunpack.c.l.b16 %v651
      %v1684 = vunpack.c.l.b16 %v652
      %v1685 = vunpack.c.l.b16 %v653
      %v1686 = vunpack.c.l.b16 %v654
      %v1687 = vunpack.c.l.b16 %v655
      %v1688 = vunpack.c.l.b16 %v656
      %v1689 = vunpack.c.l.b16 %v657
      %v1690 = vunpack.c.l.b16 %v658
      %v1691 = vunpack.c.l.b16 %v659
      %v1692 = vunpack.c.l.b16 %v660
      %v1693 = vunpack.c.l.b16 %v661
      %v1694 = vunpack.c.l.b16 %v662
      %v1695 = vunpack.c.l.b16 %v663
      %v1696 = vunpack.c.l.b16 %v664
      %v1697 = vunpack.c.l.b16 %v665
      %v1698 = vunpack.c.l.b16 %v666
      %v1699 = vunpack.c.l.b16 %v667
      %v1700 = vunpack.c.l.b16 %v668
      %v1701 = vunpack.c.l.b16 %v669
      %v1702 = vunpack.c.l.b16 %v670
      %v1703 = vunpack.c.l.b16 %v671
      %v1704 = vunpack.c.l.b16 %v672
      %v1705 = vunpack.c.l.b16 %v673
      %v1706 = vunpack.c.l.b16 %v674
      %v1707 = vunpack.c.l.b16 %v675
      %v1708 = vunpack.c.l.b16 %v676
      %v1709 = vunpack.c.l.b16 %v677
      %v1710 = vunpack.c.l.b16 %v678
      %v1711 = vunpack.c.l.b16 %v679
      %v1712 = vunpack.c.l.b16 %v680
      %v1713 = vunpack.c.l.b16 %v681
      %v1714 = vunpack.c.l.b16 %v682
      %v1715 = vunpack.c.l.b16 %v683
      %v1716 = vunpack.c.l.b16 %v684
      %v1717 = vunpack.c.l.b16 %v685
      %v1718 = vunpack.c.l.b16 %v686
      %v1719 = vunpack.c.l.b16 %v687
      %v1720 = vunpack.c.l.b16 %v688
      %v1721 = vunpack.c.l.b16 %v689
      %v1722 = vunpack.c.l.b16 %v690
      %v1723 = vunpack.c.l.b16 %v691
      %v1724 = vunpack.c.l.b16 %v692
      %v1725 = vunpack.c.l.b16 %v693
      %v1726 = vunpack.c.l.b16 %v694
      %v1727 = vunpack.c.l.b16 %v695
      %v1728 = vunpack.c.l.b16 %v696
      %v1729 = vunpack.c.l.b16 %v697
      %v1730 = vunpack.c.l.b16 %v698
      %v1731 = vunpack.c.l.b16 %v699
      %v1732 = vunpack.c.l.b16 %v700
      %v1733 = vunpack.c.l.b16 %v701
      %v1734 = vunpack.c.l.b16 %v702
      %v1735 = vunpack.c.l.b16 %v703
      %v1736 = vunpack.c.l.b16 %v704
      %v1737 = vunpack.c.l.b16 %v705
      %v1738 = vunpack.c.l.b16 %v706
      %v1739 = vunpack.c.l.b16 %v707
      %v1740 = vunpack.c.l.b16 %v708
      %v1741 = vunpack.c.l.b16 %v709
      %v1742 = vunpack.c.l.b16 %v710
      %v1743 = vunpack.c.l.b16 %v711
      %v1744 = vunpack.c.l.b16 %v712
      %v1745 = vunpack.c.l.b16 %v713
      %v1746 = vunpack.c.l.b16 %v714
      %v1747 = vunpack.c.l.b16 %v715
      %v1748 = vunpack.c.l.b16 %v716
      %v1749 = vunpack.c.l.b16 %v717
      %v1750 = vunpack.c.l.b16 %v718
      %v1751 = vunpack.c.l.b16 %v719
      %v1752 = vunpack.c.l.b16 %v720
      %v1753 = vunpack.c.l.b16 %v721
      %v1754 = vunpack.c.l.b16 %v722
      %v1755 = vunpack.c.l.b16 %v723
      %v1756 = vunpack.c.l.b16 %v724
      %v1757 = vunpack.c.l.b16 %v725
      %v1758 = vunpack.c.l.b16 %v726
      %v1759 = vunpack.c.l.b16 %v727
      %v1760 = vunpack.c.l.b16 %v728
      %v1761 = vunpack.c.l.b16 %v729
      %v1762 = vunpack.c.l.b16 %v730
      %v1763 = vunpack.c.l.b16 %v731
      %v1764 = vunpack.c.l.b16 %v732
      %v1765 = vunpack.c.l.b16 %v733
      %v1766 = vunpack.c.l.b16 %v734
      %v1767 = vunpack.c.l.b16 %v735
      %v1768 = vunpack.c.l.b16 %v736
      %v1769 = vunpack.c.l.b16 %v737
      %v1770 = vunpack.c.l.b16 %v738
      %v1771 = vunpack.c.l.b16 %v739
      %v1772 = vunpack.c.l.b16 %v740
      %v1773 = vunpack.c.l.b16 %v741
      %v1774 = vunpack.c.l.b16 %v742
      %v1775 = vunpack.c.l.b16 %v743
      %v1776 = vunpack.c.l.b16 %v744
      %v1777 = vunpack.c.l.b16 %v745
      %v1778 = vpack.c.b16 %v1267, %v1266
      %v1779 = vpack.c.b16 %v1269, %v1268
      %v1780 = vpack.c.b16 %v1271, %v1270
      %v1781 = vpack.c.b16 %v1273, %v1272
      %v1782 = vpack.c.b16 %v1275, %v1274
      %v1783 = vpack.c.b16 %v1277, %v1276
      %v1784 = vpack.c.b16 %v1279, %v1278
      %v1785 = vpack.c.b16 %v1281, %v1280
      %v1786 = vpack.c.b16 %v1283, %v1282
      %v1787 = vpack.c.b16 %v1285, %v1284
      %v1788 = vpack.c.b16 %v1287, %v1286
      %v1789 = vpack.c.b16 %v1289, %v1288
      %v1790 = vpack.c.b16 %v1291, %v1290
      %v1791 = vpack.c.b16 %v1293, %v1292
      %v1792 = vpack.c.b16 %v1295, %v1294
      %v1793 = vpack.c.b16 %v1297, %v1296
      %v1794 = vpack.c.b16 %v1299, %v1298
      %v1795 = vpack.c.b16 %v1301, %v1300
      %v1796 = vpack.c.b16 %v1303, %v1302
      %v1797 = vpack.c.b16 %v1305, %v1304
      %v1798 = vpack.c.b16 %v1307, %v1306
      %v1799 = vpack.c.b16 %v1309, %v1308
      %v1800 = vpack.c.b16 %v1311, %v1310
      %v1801 = vpack.c.b16 %v1313, %v1312
      %v1802 = vpack.c.b16 %v1315, %v1314
      %v1803 = vpack.c.b16 %v1317, %v1316
      %v1804 = vpack.c.b16 %v1319, %v1318
      %v1805 = vpack.c.b16 %v1321, %v1320
      %v1806 = vpack.c.b16 %v1323, %v1322
      %v1807 = vpack.c.b16 %v1325, %v1324
      %v1808 = vpack.c.b16 %v1327, %v1326
      %v1809 = vpack.c.b16 %v1329, %v1328
      %v1810 = vpack.c.b16 %v1331, %v1330
      %v1811 = vpack.c.b16 %v1333, %v1332
      %v1812 = vpack.c.b16 %v1335, %v1334
      %v1813 = vpack.c.b16 %v1337, %v1336
      %v1814 = vpack.c.b16 %v1339, %v1338
      %v1815 = vpack.c.b16 %v1341, %v1340
      %v1816 = vpack.c.b16 %v1343, %v1342
      %v1817 = vpack.c.b16 %v1345, %v1344
      %v1818 = vpack.c.b16 %v1347, %v1346
      %v1819 = vpack.c.b16 %v1349, %v1348
      %v1820 = vpack.c.b16 %v1351, %v1350
      %v1821 = vpack.c.b16 %v1353, %v1352
      %v1822 = vpack.c.b16 %v1355, %v1354
      %v1823 = vpack.c.b16 %v1357, %v1356
      %v1824 = vpack.c.b16 %v1359, %v1358
      %v1825 = vpack.c.b16 %v1361, %v1360
      %v1826 = vpack.c.b16 %v1363, %v1362
      %v1827 = vpack.c.b16 %v1365, %v1364
      %v1828 = vpack.c.b16 %v1367, %v1366
      %v1829 = vpack.c.b16 %v1369, %v1368
      %v1830 = vpack.c.b16 %v1371, %v1370
      %v1831 = vpack.c.b16 %v1373, %v1372
      %v1832 = vpack.c.b16 %v1375, %v1374
      %v1833 = vpack.c.b16 %v1377, %v1376
      %v1834 = vpack.c.b16 %v1379, %v1378
      %v1835 = vpack.c.b16 %v1381, %v1380
      %v1836 = vpack.c.b16 %v1383, %v1382
      %v1837 = vpack.c.b16 %v1385, %v1384
      %v1838 = vpack.c.b16 %v1387, %v1386
      %v1839 = vpack.c.b16 %v1389, %v1388
      %v1840 = vpack.c.b16 %v1391, %v1390
      %v1841 = vpack.c.b16 %v1393, %v1392
      %v1842 = vpack.c.b16 %v1395, %v1394
      %v1843 = vpack.c.b16 %v1397, %v1396
      %v1844 = vpack.c.b16 %v1399, %v1398
      %v1845 = vpack.c.b16 %v1401, %v1400
      %v1846 = vpack.c.b16 %v1403, %v1402
      %v1847 = vpack.c.b16 %v1405, %v1404
      %v1848 = vpack.c.b16 %v1407, %v1406
      %v1849 = vpack.c.b16 %v1409, %v1408
      %v1850 = vpack.c.b16 %v1411, %v1410
      %v1851 = vpack.c.b16 %v1413, %v1412
      %v1852 = vpack.c.b16 %v1415, %v1414
      %v1853 = vpack.c.b16 %v1417, %v1416
      %v1854 = vpack.c.b16 %v1419, %v1418
      %v1855 = vpack.c.b16 %v1421, %v1420
      %v1856 = vpack.c.b16 %v1423, %v1422
      %v1857 = vpack.c.b16 %v1425, %v1424
      %v1858 = vpack.c.b16 %v1427, %v1426
      %v1859 = vpack.c.b16 %v1429, %v1428
      %v1860 = vpack.c.b16 %v1431, %v1430
      %v1861 = vpack.c.b16 %v1433, %v1432
      %v1862 = vpack.c.b16 %v1435, %v1434
      %v1863 = vpack.c.b16 %v1437, %v1436
      %v1864 = vpack.c.b16 %v1439, %v1438
      %v1865 = vpack.c.b16 %v1441, %v1440
      %v1866 = vpack.c.b16 %v1443, %v1442
      %v1867 = vpack.c.b16 %v1445, %v1444
      %v1868 = vpack.c.b16 %v1447, %v1446
      %v1869 = vpack.c.b16 %v1449, %v1448
      %v1870 = vpack.c.b16 %v1451, %v1450
      %v1871 = vpack.c.b16 %v1453, %v1452
      %v1872 = vpack.c.b16 %v1455, %v1454
      %v1873 = vpack.c.b16 %v1457, %v1456
      %v1874 = vpack.c.b16 %v1459, %v1458
      %v1875 = vpack.c.b16 %v1461, %v1460
      %v1876 = vpack.c.b16 %v1463, %v1462
      %v1877 = vpack.c.b16 %v1465, %v1464
      %v1878 = vpack.c.b16 %v1467, %v1466
      %v1879 = vpack.c.b16 %v1469, %v1468
      %v1880 = vpack.c.b16 %v1471, %v1470
      %v1881 = vpack.c.b16 %v1473, %v1472
      %v1882 = vpack.c.b16 %v1475, %v1474
      %v1883 = vpack.c.b16 %v1477, %v1476
      %v1884 = vpack.c.b16 %v1479, %v1478
      %v1885 = vpack.c.b16 %v1481, %v1480
      %v1886 = vpack.c.b16 %v1483, %v1482
      %v1887 = vpack.c.b16 %v1485, %v1484
      %v1888 = vpack.c.b16 %v1487, %v1486
      %v1889 = vpack.c.b16 %v1489, %v1488
      %v1890 = vpack.c.b16 %v1491, %v1490
      %v1891 = vpack.c.b16 %v1493, %v1492
      %v1892 = vpack.c.b16 %v1495, %v1494
      %v1893 = vpack.c.b16 %v1497, %v1496
      %v1894 = vpack.c.b16 %v1499, %v1498
      %v1895 = vpack.c.b16 %v1501, %v1500
      %v1896 = vpack.c.b16 %v1503, %v1502
      %v1897 = vpack.c.b16 %v1505, %v1504
      %v1898 = vpack.c.b16 %v1507, %v1506
      %v1899 = vpack.c.b16 %v1509, %v1508
      %v1900 = vpack.c.b16 %v1511, %v1510
      %v1901 = vpack.c.b16 %v1513, %v1512
      %v1902 = vpack.c.b16 %v1515, %v1514
      %v1903 = vpack.c.b16 %v1517, %v1516
      %v1904 = vpack.c.b16 %v1519, %v1518
      %v1905 = vpack.c.b16 %v1521, %v1520
      %v1906 = vpack.c.b16 %v1523, %v1522
      %v1907 = vpack.c.b16 %v1525, %v1524
      %v1908 = vpack.c.b16 %v1527, %v1526
      %v1909 = vpack.c.b16 %v1529, %v1528
      %v1910 = vpack.c.b16 %v1531, %v1530
      %v1911 = vpack.c.b16 %v1533, %v1532
      %v1912 = vpack.c.b16 %v1535, %v1534
      %v1913 = vpack.c.b16 %v1537, %v1536
      %v1914 = vpack.c.b16 %v1539, %v1538
      %v1915 = vpack.c.b16 %v1541, %v1540
      %v1916 = vpack.c.b16 %v1543, %v1542
      %v1917 = vpack.c.b16 %v1545, %v1544
      %v1918 = vpack.c.b16 %v1547, %v1546
      %v1919 = vpack.c.b16 %v1549, %v1548
      %v1920 = vpack.c.b16 %v1551, %v1550
      %v1921 = vpack.c.b16 %v1553, %v1552
      %v1922 = vpack.c.b16 %v1555, %v1554
      %v1923 = vpack.c.b16 %v1557, %v1556
      %v1924 = vpack.c.b16 %v1559, %v1558
      %v1925 = vpack.c.b16 %v1561, %v1560
      %v1926 = vpack.c.b16 %v1563, %v1562
      %v1927 = vpack.c.b16 %v1565, %v1564
      %v1928 = vpack.c.b16 %v1567, %v1566
      %v1929 = vpack.c.b16 %v1569, %v1568
      %v1930 = vpack.c.b16 %v1571, %v1570
      %v1931 = vpack.c.b16 %v1573, %v1572
      %v1932 = vpack.c.b16 %v1575, %v1574
      %v1933 = vpack.c.b16 %v1577, %v1576
      %v1934 = vpack.c.b16 %v1579, %v1578
      %v1935 = vpack.c.b16 %v1581, %v1580
      %v1936 = vpack.c.b16 %v1583, %v1582
      %v1937 = vpack.c.b16 %v1585, %v1584
      %v1938 = vpack.c.b16 %v1587, %v1586
      %v1939 = vpack.c.b16 %v1589, %v1588
      %v1940 = vpack.c.b16 %v1591, %v1590
      %v1941 = vpack.c.b16 %v1593, %v1592
      %v1942 = vpack.c.b16 %v1595, %v1594
      %v1943 = vpack.c.b16 %v1597, %v1596
      %v1944 = vpack.c.b16 %v1599, %v1598
      %v1945 = vpack.c.b16 %v1601, %v1600
      %v1946 = vpack.c.b16 %v1603, %v1602
      %v1947 = vpack.c.b16 %v1605, %v1604
      %v1948 = vpack.c.b16 %v1607, %v1606
      %v1949 = vpack.c.b16 %v1609, %v1608
      %v1950 = vpack.c.b16 %v1611, %v1610
      %v1951 = vpack.c.b16 %v1613, %v1612
      %v1952 = vpack.c.b16 %v1615, %v1614
      %v1953 = vpack.c.b16 %v1617, %v1616
      %v1954 = vpack.c.b16 %v1619, %v1618
      %v1955 = vpack.c.b16 %v1621, %v1620
      %v1956 = vpack.c.b16 %v1623, %v1622
      %v1957 = vpack.c.b16 %v1625, %v1624
      %v1958 = vpack.c.b16 %v1627, %v1626
      %v1959 = vpack.c.b16 %v1629, %v1628
      %v1960 = vpack.c.b16 %v1631, %v1630
      %v1961 = vpack.c.b16 %v1633, %v1632
      %v1962 = vpack.c.b16 %v1635, %v1634
      %v1963 = vpack.c.b16 %v1637, %v1636
      %v1964 = vpack.c.b16 %v1639, %v1638
      %v1965 = vpack.c.b16 %v1641, %v1640
      %v1966 = vpack.c.b16 %v1643, %v1642
      %v1967 = vpack.c.b16 %v1645, %v1644
      %v1968 = vpack.c.b16 %v1647, %v1646
      %v1969 = vpack.c.b16 %v1649, %v1648
      %v1970 = vpack.c.b16 %v1651, %v1650
      %v1971 = vpack.c.b16 %v1653, %v1652
      %v1972 = vpack.c.b16 %v1655, %v1654
      %v1973 = vpack.c.b16 %v1657, %v1656
      %v1974 = vpack.c.b16 %v1659, %v1658
      %v1975 = vpack.c.b16 %v1661, %v1660
      %v1976 = vpack.c.b16 %v1663, %v1662
      %v1977 = vpack.c.b16 %v1665, %v1664
      %v1978 = vpack.c.b16 %v1667, %v1666
      %v1979 = vpack.c.b16 %v1669, %v1668
      %v1980 = vpack.c.b16 %v1671, %v1670
      %v1981 = vpack.c.b16 %v1673, %v1672
      %v1982 = vpack.c.b16 %v1675, %v1674
      %v1983 = vpack.c.b16 %v1677, %v1676
      %v1984 = vpack.c.b16 %v1679, %v1678
      %v1985 = vpack.c.b16 %v1681, %v1680
      %v1986 = vpack.c.b16 %v1683, %v1682
      %v1987 = vpack.c.b16 %v1685, %v1684
      %v1988 = vpack.c.b16 %v1687, %v1686
      %v1989 = vpack.c.b16 %v1689, %v1688
      %v1990 = vpack.c.b16 %v1691, %v1690
      %v1991 = vpack.c.b16 %v1693, %v1692
      %v1992 = vpack.c.b16 %v1695, %v1694
      %v1993 = vpack.c.b16 %v1697, %v1696
      %v1994 = vpack.c.b16 %v1699, %v1698
      %v1995 = vpack.c.b16 %v1701, %v1700
      %v1996 = vpack.c.b16 %v1703, %v1702
      %v1997 = vpack.c.b16 %v1705, %v1704
      %v1998 = vpack.c.b16 %v1707, %v1706
      %v1999 = vpack.c.b16 %v1709, %v1708
      %v2000 = vpack.c.b16 %v1711, %v1710
      %v2001 = vpack.c.b16 %v1713, %v1712
      %v2002 = vpack.c.b16 %v1715, %v1714
      %v2003 = vpack.c.b16 %v1717, %v1716
      %v2004 = vpack.c.b16 %v1719, %v1718
      %v2005 = vpack.c.b16 %v1721, %v1720
      %v2006 = vpack.c.b16 %v1723, %v1722
      %v2007 = vpack.c.b16 %v1725, %v1724
      %v2008 = vpack.c.b16 %v1727, %v1726
      %v2009 = vpack.c.b16 %v1729, %v1728
      %v2010 = vpack.c.b16 %v1731, %v1730
      %v2011 = vpack.c.b16 %v1733, %v1732
      %v2012 = vpack.c.b16 %v1735, %v1734
      %v2013 = vpack.c.b16 %v1737, %v1736
      %v2014 = vpack.c.b16 %v1739, %v1738
      %v2015 = vpack.c.b16 %v1741, %v1740
      %v2016 = vpack.c.b16 %v1743, %v1742
      %v2017 = vpack.c.b16 %v1745, %v1744
      %v2018 = vpack.c.b16 %v1747, %v1746
      %v2019 = vpack.c.b16 %v1749, %v1748
      %v2020 = vpack.c.b16 %v1751, %v1750
      %v2021 = vpack.c.b16 %v1753, %v1752
      %v2022 = vpack.c.b16 %v1755, %v1754
      %v2023 = vpack.c.b16 %v1757, %v1756
      %v2024 = vpack.c.b16 %v1759, %v1758
      %v2025 = vpack.c.b16 %v1761, %v1760
      %v2026 = vpack.c.b16 %v1763, %v1762
      %v2027 = vpack.c.b16 %v1765, %v1764
      %v2028 = vpack.c.b16 %v1767, %v1766
      %v2029 = vpack.c.b16 %v1769, %v1768
      %v2030 = vpack.c.b16 %v1771, %v1770
      %v2031 = vpack.c.b16 %v1773, %v1772
      %v2032 = vpack.c.b16 %v1775, %v1774
      %v2033 = vpack.c.b16 %v1777, %v1776
      %v2038 = vunpack.c.l.b16 %v746
      %v2039 = vunpack.c.l.b16 %v747
      %v2040 = vunpack.c.l.b16 %v748
      %v2041 = vunpack.c.l.b16 %v749
      %v2042 = vpack.c.b16 %v2039, %v2038
      %v2043 = vpack.c.b16 %v2041, %v2040
      %vm2045 = vcmask 220160
      %v2047 = vsel %vm2045, %v1778, 0
      %v2050 = vsel %vm2045, %v1779, 0
      %v2053 = vsel %vm2045, %v1780, 0
      %v2056 = vsel %vm2045, %v1781, 0
      %v2059 = vsel %vm2045, %v1782, 0
      %v2062 = vsel %vm2045, %v1783, 0
      %v2065 = vsel %vm2045, %v1784, 0
      %v2068 = vsel %vm2045, %v1785, 0
      %v2071 = vsel %vm2045, %v1786, 0
      %v2074 = vsel %vm2045, %v1787, 0
      %v2077 = vsel %vm2045, %v1788, 0
      %v2080 = vsel %vm2045, %v1789, 0
      %v2083 = vsel %vm2045, %v1790, 0
      %v2086 = vsel %vm2045, %v1791, 0
      %v2089 = vsel %vm2045, %v1792, 0
      %v2092 = vsel %vm2045, %v1793, 0
      %v2095 = vsel %vm2045, %v1794, 0
      %v2098 = vsel %vm2045, %v1795, 0
      %v2101 = vsel %vm2045, %v1796, 0
      %v2104 = vsel %vm2045, %v1797, 0
      %v2107 = vsel %vm2045, %v1798, 0
      %v2110 = vsel %vm2045, %v1799, 0
      %v2113 = vsel %vm2045, %v1800, 0
      %v2116 = vsel %vm2045, %v1801, 0
      %v2119 = vsel %vm2045, %v1802, 0
      %v2122 = vsel %vm2045, %v1803, 0
      %v2125 = vsel %vm2045, %v1804, 0
      %v2128 = vsel %vm2045, %v1805, 0
      %v2131 = vsel %vm2045, %v1806, 0
      %v2134 = vsel %vm2045, %v1807, 0
      %v2137 = vsel %vm2045, %v1808, 0
      %v2140 = vsel %vm2045, %v1809, 0
      %v2143 = vsel %vm2045, %v1810, 0
      %v2146 = vsel %vm2045, %v1811, 0
      %v2149 = vsel %vm2045, %v1812, 0
      %v2152 = vsel %vm2045, %v1813, 0
      %v2155 = vsel %vm2045, %v1814, 0
      %v2158 = vsel %vm2045, %v1815, 0
      %v2161 = vsel %vm2045, %v1816, 0
      %v2164 = vsel %vm2045, %v1817, 0
      %v2167 = vsel %vm2045, %v1818, 0
      %v2170 = vsel %vm2045, %v1819, 0
      %v2173 = vsel %vm2045, %v1820, 0
      %v2176 = vsel %vm2045, %v1821, 0
      %v2179 = vsel %vm2045, %v1822, 0
      %v2182 = vsel %vm2045, %v1823, 0
      %v2185 = vsel %vm2045, %v1824, 0
      %v2188 = vsel %vm2045, %v1825, 0
      %v2191 = vsel %vm2045, %v1826, 0
      %v2194 = vsel %vm2045, %v1827, 0
      %v2197 = vsel %vm2045, %v1828, 0
      %v2200 = vsel %vm2045, %v1829, 0
      %v2203 = vsel %vm2045, %v1830, 0
      %v2206 = vsel %vm2045, %v1831, 0
      %v2209 = vsel %vm2045, %v1832, 0
      %v2212 = vsel %vm2045, %v1833, 0
      %v2215 = vsel %vm2045, %v1834, 0
      %v2218 = vsel %vm2045, %v1835, 0
      %v2221 = vsel %vm2045, %v1836, 0
      %v2224 = vsel %vm2045, %v1837, 0
      %v2227 = vsel %vm2045, %v1838, 0
      %v2230 = vsel %vm2045, %v1839, 0
      %v2233 = vsel %vm2045, %v1840, 0
      %v2236 = vsel %vm2045, %v1841, 0
      %v2239 = vsel %vm2045, %v1842, 0
      %v2242 = vsel %vm2045, %v1843, 0
      %v2245 = vsel %vm2045, %v1844, 0
      %v2248 = vsel %vm2045, %v1845, 0
      %v2251 = vsel %vm2045, %v1846, 0
      %v2254 = vsel %vm2045, %v1847, 0
      %v2257 = vsel %vm2045, %v1848, 0
      %v2260 = vsel %vm2045, %v1849, 0
      %v2263 = vsel %vm2045, %v1850, 0
      %v2266 = vsel %vm2045, %v1851, 0
      %v2269 = vsel %vm2045, %v1852, 0
      %v2272 = vsel %vm2045, %v1853, 0
      %v2275 = vsel %vm2045, %v1854, 0
      %v2278 = vsel %vm2045, %v1855, 0
      %v2281 = vsel %vm2045, %v1856, 0
      %v2284 = vsel %vm2045, %v1857, 0
      %v2287 = vsel %vm2045, %v1858, 0
      %v2290 = vsel %vm2045, %v1859, 0
      %v2293 = vsel %vm2045, %v1860, 0
      %v2296 = vsel %vm2045, %v1861, 0
      %v2299 = vsel %vm2045, %v1862, 0
      %v2302 = vsel %vm2045, %v1863, 0
      %v2305 = vsel %vm2045, %v1864, 0
      %v2308 = vsel %vm2045, %v1865, 0
      %v2311 = vsel %vm2045, %v1866, 0
      %v2314 = vsel %vm2045, %v1867, 0
      %v2317 = vsel %vm2045, %v1868, 0
      %v2320 = vsel %vm2045, %v1869, 0
      %v2323 = vsel %vm2045, %v1870, 0
      %v2326 = vsel %vm2045, %v1871, 0
      %v2329 = vsel %vm2045, %v1872, 0
      %v2332 = vsel %vm2045, %v1873, 0
      %v2335 = vsel %vm2045, %v1874, 0
      %v2338 = vsel %vm2045, %v1875, 0
      %v2341 = vsel %vm2045, %v1876, 0
      %v2344 = vsel %vm2045, %v1877, 0
      %v2347 = vsel %vm2045, %v1878, 0
      %v2350 = vsel %vm2045, %v1879, 0
      %v2353 = vsel %vm2045, %v1880, 0
      %v2356 = vsel %vm2045, %v1881, 0
      %v2359 = vsel %vm2045, %v1882, 0
      %v2362 = vsel %vm2045, %v1883, 0
      %v2365 = vsel %vm2045, %v1884, 0
      %v2368 = vsel %vm2045, %v1885, 0
      %v2371 = vsel %vm2045, %v1886, 0
      %v2374 = vsel %vm2045, %v1887, 0
      %v2377 = vsel %vm2045, %v1888, 0
      %v2380 = vsel %vm2045, %v1889, 0
      %v2383 = vsel %vm2045, %v1890, 0
      %v2386 = vsel %vm2045, %v1891, 0
      %v2389 = vsel %vm2045, %v1892, 0
      %v2392 = vsel %vm2045, %v1893, 0
      %v2395 = vsel %vm2045, %v1894, 0
      %v2398 = vsel %vm2045, %v1895, 0
      %v2401 = vsel %vm2045, %v1896, 0
      %v2404 = vsel %vm2045, %v1897, 0
      %v2407 = vsel %vm2045, %v1898, 0
      %v2410 = vsel %vm2045, %v1899, 0
      %v2413 = vsel %vm2045, %v1900, 0
      %v2416 = vsel %vm2045, %v1901, 0
      %v2419 = vsel %vm2045, %v1902, 0
      %v2422 = vsel %vm2045, %v1903, 0
      %v2425 = vsel %vm2045, %v1904, 0
      %v2428 = vsel %vm2045, %v1905, 0
      %v2431 = vsel %vm2045, %v1906, 0
      %v2434 = vsel %vm2045, %v1907, 0
      %v2437 = vsel %vm2045, %v1908, 0
      %v2440 = vsel %vm2045, %v1909, 0
      %v2443 = vsel %vm2045, %v1910, 0
      %v2446 = vsel %vm2045, %v1911, 0
      %v2449 = vsel %vm2045, %v1912, 0
      %v2452 = vsel %vm2045, %v1913, 0
      %v2455 = vsel %vm2045, %v1914, 0
      %v2458 = vsel %vm2045, %v1915, 0
      %v2461 = vsel %vm2045, %v1916, 0
      %v2464 = vsel %vm2045, %v1917, 0
      %v2467 = vsel %vm2045, %v1918, 0
      %v2470 = vsel %vm2045, %v1919, 0
      %v2473 = vsel %vm2045, %v1920, 0
      %v2476 = vsel %vm2045, %v1921, 0
      %v2479 = vsel %vm2045, %v1922, 0
      %v2482 = vsel %vm2045, %v1923, 0
      %v2485 = vsel %vm2045, %v1924, 0
      %v2488 = vsel %vm2045, %v1925, 0
      %v2491 = vsel %vm2045, %v1926, 0
      %v2494 = vsel %vm2045, %v1927, 0
      %v2497 = vsel %vm2045, %v1928, 0
      %v2500 = vsel %vm2045, %v1929, 0
      %v2503 = vsel %vm2045, %v1930, 0
      %v2506 = vsel %vm2045, %v1931, 0
      %v2509 = vsel %vm2045, %v1932, 0
      %v2512 = vsel %vm2045, %v1933, 0
      %v2515 = vsel %vm2045, %v1934, 0
      %v2518 = vsel %vm2045, %v1935, 0
      %v2521 = vsel %vm2045, %v1936, 0
      %v2524 = vsel %vm2045, %v1937, 0
      %v2527 = vsel %vm2045, %v1938, 0
      %v2530 = vsel %vm2045, %v1939, 0
      %v2533 = vsel %vm2045, %v1940, 0
      %v2536 = vsel %vm2045, %v1941, 0
      %v2539 = vsel %vm2045, %v1942, 0
      %v2542 = vsel %vm2045, %v1943, 0
      %v2545 = vsel %vm2045, %v1944, 0
      %v2548 = vsel %vm2045, %v1945, 0
      %v2551 = vsel %vm2045, %v1946, 0
      %v2554 = vsel %vm2045, %v1947, 0
      %v2557 = vsel %vm2045, %v1948, 0
      %v2560 = vsel %vm2045, %v1949, 0
      %v2563 = vsel %vm2045, %v1950, 0
      %v2566 = vsel %vm2045, %v1951, 0
      %v2569 = vsel %vm2045, %v1952, 0
      %v2572 = vsel %vm2045, %v1953, 0
      %v2575 = vsel %vm2045, %v1954, 0
      %v2578 = vsel %vm2045, %v1955, 0
      %v2581 = vsel %vm2045, %v1956, 0
      %v2584 = vsel %vm2045, %v1957, 0
      %v2587 = vsel %vm2045, %v1958, 0
      %v2590 = vsel %vm2045, %v1959, 0
      %v2593 = vsel %vm2045, %v1960, 0
      %v2596 = vsel %vm2045, %v1961, 0
      %v2599 = vsel %vm2045, %v1962, 0
      %v2602 = vsel %vm2045, %v1963, 0
      %v2605 = vsel %vm2045, %v1964, 0
      %v2608 = vsel %vm2045, %v1965, 0
      %v2611 = vsel %vm2045, %v1966, 0
      %v2614 = vsel %vm2045, %v1967, 0
      %v2617 = vsel %vm2045, %v1968, 0
      %v2620 = vsel %vm2045, %v1969, 0
      %v2623 = vsel %vm2045, %v1970, 0
      %v2626 = vsel %vm2045, %v1971, 0
      %v2629 = vsel %vm2045, %v1972, 0
      %v2632 = vsel %vm2045, %v1973, 0
      %v2635 = vsel %vm2045, %v1974, 0
      %v2638 = vsel %vm2045, %v1975, 0
      %v2641 = vsel %vm2045, %v1976, 0
      %v2644 = vsel %vm2045, %v1977, 0
      %v2647 = vsel %vm2045, %v1978, 0
      %v2650 = vsel %vm2045, %v1979, 0
      %v2653 = vsel %vm2045, %v1980, 0
      %v2656 = vsel %vm2045, %v1981, 0
      %v2659 = vsel %vm2045, %v1982, 0
      %v2662 = vsel %vm2045, %v1983, 0
      %v2665 = vsel %vm2045, %v1984, 0
      %v2668 = vsel %vm2045, %v1985, 0
      %v2671 = vsel %vm2045, %v1986, 0
      %v2674 = vsel %vm2045, %v1987, 0
      %v2677 = vsel %vm2045, %v1988, 0
      %v2680 = vsel %vm2045, %v1989, 0
      %v2683 = vsel %vm2045, %v1990, 0
      %v2686 = vsel %vm2045, %v1991, 0
      %v2689 = vsel %vm2045, %v1992, 0
      %v2692 = vsel %vm2045, %v1993, 0
      %v2695 = vsel %vm2045, %v1994, 0
      %v2698 = vsel %vm2045, %v1995, 0
      %v2701 = vsel %vm2045, %v1996, 0
      %v2704 = vsel %vm2045, %v1997, 0
      %v2707 = vsel %vm2045, %v1998, 0
      %v2710 = vsel %vm2045, %v1999, 0
      %v2713 = vsel %vm2045, %v2000, 0
      %v2716 = vsel %vm2045, %v2001, 0
      %v2719 = vsel %vm2045, %v2002, 0
      %v2722 = vsel %vm2045, %v2003, 0
      %v2725 = vsel %vm2045, %v2004, 0
      %v2728 = vsel %vm2045, %v2005, 0
      %v2731 = vsel %vm2045, %v2006, 0
      %v2734 = vsel %vm2045, %v2007, 0
      %v2737 = vsel %vm2045, %v2008, 0
      %v2740 = vsel %vm2045, %v2009, 0
      %v2743 = vsel %vm2045, %v2010, 0
      %v2746 = vsel %vm2045, %v2011, 0
      %v2749 = vsel %vm2045, %v2012, 0
      %v2752 = vsel %vm2045, %v2013, 0
      %v2755 = vsel %vm2045, %v2014, 0
      %v2758 = vsel %vm2045, %v2015, 0
      %v2761 = vsel %vm2045, %v2016, 0
      %v2764 = vsel %vm2045, %v2017, 0
      %v2767 = vsel %vm2045, %v2018, 0
      %v2770 = vsel %vm2045, %v2019, 0
      %v2773 = vsel %vm2045, %v2020, 0
      %v2776 = vsel %vm2045, %v2021, 0
      %v2779 = vsel %vm2045, %v2022, 0
      %v2782 = vsel %vm2045, %v2023, 0
      %v2785 = vsel %vm2045, %v2024, 0
      %v2788 = vsel %vm2045, %v2025, 0
      %v2791 = vsel %vm2045, %v2026, 0
      %v2794 = vsel %vm2045, %v2027, 0
      %v2797 = vsel %vm2045, %v2028, 0
      %v2800 = vsel %vm2045, %v2029, 0
      %v2803 = vsel %vm2045, %v2030, 0
      %v2806 = vsel %vm2045, %v2031, 0
      %v2809 = vsel %vm2045, %v2032, 0
      %v2812 = vsel %vm2045, %v2033, 0
      %vm2814 = vcmask 1044480
      %vm2815 = vcmask 1045504
      %v2816 = vsel %vm2814, 4294967295, 65535
      %v2817 = vsel %vm2815, %v2816, 0
      %v2819 = vand.u32 %v2043, %v2817
      %2821 = vmatpush.bf16.msra.mxu0 0
      %2822 = vmatpush.bf16.msra.mxu0 0
      %2823 = vmatpush.bf16.msra.mxu0 0
      %2824 = vmatpush.bf16.msra.mxu0 0
      %2825 = vmatpush.bf16.msra.mxu0 0
      %2826 = vmatpush.bf16.msra.mxu0 0
      %2827 = vmatpush.bf16.msra.mxu0 %v2819
      %2828 = vmatpush.bf16.msra.mxu0 %v2042
      %2829 = vmatmul.bf16.gmra.mxu0 %v2047
      %v2830 = vpop.f32.mrf.mxu0
      %v2831 = vadd.f32 %v752, %v2830
      %v2832 = vpop.f32.mrf.mxu0
      %v2833 = vadd.f32 %v752, %v2832
      %2834 = vmatmul.bf16.gmra.mxu0 %v2050
      %v2835 = vpop.f32.mrf.mxu0
      %v2836 = vadd.f32 %v752, %v2835
      %v2837 = vpop.f32.mrf.mxu0
      %v2838 = vadd.f32 %v752, %v2837
      %2839 = vmatmul.bf16.gmra.mxu0 %v2053
      %v2840 = vpop.f32.mrf.mxu0
      %v2841 = vadd.f32 %v752, %v2840
      %v2842 = vpop.f32.mrf.mxu0
      %v2843 = vadd.f32 %v752, %v2842
      %2844 = vmatmul.bf16.gmra.mxu0 %v2056
      %v2845 = vpop.f32.mrf.mxu0
      %v2846 = vadd.f32 %v752, %v2845
      %v2847 = vpop.f32.mrf.mxu0
      %v2848 = vadd.f32 %v752, %v2847
      %2849 = vmatmul.bf16.gmra.mxu0 %v2059
      %v2850 = vpop.f32.mrf.mxu0
      %v2851 = vadd.f32 %v752, %v2850
      %v2852 = vpop.f32.mrf.mxu0
      %v2853 = vadd.f32 %v752, %v2852
      %2854 = vmatmul.bf16.gmra.mxu0 %v2062
      %v2855 = vpop.f32.mrf.mxu0
      %v2856 = vadd.f32 %v752, %v2855
      %v2857 = vpop.f32.mrf.mxu0
      %v2858 = vadd.f32 %v752, %v2857
      %2859 = vmatmul.bf16.gmra.mxu0 %v2065
      %v2860 = vpop.f32.mrf.mxu0
      %v2861 = vadd.f32 %v752, %v2860
      %v2862 = vpop.f32.mrf.mxu0
      %v2863 = vadd.f32 %v752, %v2862
      %2864 = vmatmul.bf16.gmra.mxu0 %v2068
      %v2865 = vpop.f32.mrf.mxu0
      %v2866 = vadd.f32 %v752, %v2865
      %v2867 = vpop.f32.mrf.mxu0
      %v2868 = vadd.f32 %v752, %v2867
      %2869 = vmatmul.bf16.gmra.mxu0 %v2071
      %v2870 = vpop.f32.mrf.mxu0
      %v2871 = vadd.f32 %v752, %v2870
      %v2872 = vpop.f32.mrf.mxu0
      %v2873 = vadd.f32 %v752, %v2872
      %2874 = vmatmul.bf16.gmra.mxu0 %v2074
      %v2875 = vpop.f32.mrf.mxu0
      %v2876 = vadd.f32 %v752, %v2875
      %v2877 = vpop.f32.mrf.mxu0
      %v2878 = vadd.f32 %v752, %v2877
      %2879 = vmatmul.bf16.gmra.mxu0 %v2077
      %v2880 = vpop.f32.mrf.mxu0
      %v2881 = vadd.f32 %v752, %v2880
      %v2882 = vpop.f32.mrf.mxu0
      %v2883 = vadd.f32 %v752, %v2882
      %2884 = vmatmul.bf16.gmra.mxu0 %v2080
      %v2885 = vpop.f32.mrf.mxu0
      %v2886 = vadd.f32 %v752, %v2885
      %v2887 = vpop.f32.mrf.mxu0
      %v2888 = vadd.f32 %v752, %v2887
      %2889 = vmatmul.bf16.gmra.mxu0 %v2083
      %v2890 = vpop.f32.mrf.mxu0
      %v2891 = vadd.f32 %v752, %v2890
      %v2892 = vpop.f32.mrf.mxu0
      %v2893 = vadd.f32 %v752, %v2892
      %2894 = vmatmul.bf16.gmra.mxu0 %v2086
      %v2895 = vpop.f32.mrf.mxu0
      %v2896 = vadd.f32 %v752, %v2895
      %v2897 = vpop.f32.mrf.mxu0
      %v2898 = vadd.f32 %v752, %v2897
      %2899 = vmatmul.bf16.gmra.mxu0 %v2089
      %v2900 = vpop.f32.mrf.mxu0
      %v2901 = vadd.f32 %v752, %v2900
      %v2902 = vpop.f32.mrf.mxu0
      %v2903 = vadd.f32 %v752, %v2902
      %2904 = vmatmul.bf16.gmra.mxu0 %v2092
      %v2905 = vpop.f32.mrf.mxu0
      %v2906 = vadd.f32 %v752, %v2905
      %v2907 = vpop.f32.mrf.mxu0
      %v2908 = vadd.f32 %v752, %v2907
      %2909 = vmatmul.bf16.gmra.mxu0 %v2095
      %v2910 = vpop.f32.mrf.mxu0
      %v2911 = vadd.f32 %v752, %v2910
      %v2912 = vpop.f32.mrf.mxu0
      %v2913 = vadd.f32 %v752, %v2912
      %2914 = vmatmul.bf16.gmra.mxu0 %v2098
      %v2915 = vpop.f32.mrf.mxu0
      %v2916 = vadd.f32 %v752, %v2915
      %v2917 = vpop.f32.mrf.mxu0
      %v2918 = vadd.f32 %v752, %v2917
      %2919 = vmatmul.bf16.gmra.mxu0 %v2101
      %v2920 = vpop.f32.mrf.mxu0
      %v2921 = vadd.f32 %v752, %v2920
      %v2922 = vpop.f32.mrf.mxu0
      %v2923 = vadd.f32 %v752, %v2922
      %2924 = vmatmul.bf16.gmra.mxu0 %v2104
      %v2925 = vpop.f32.mrf.mxu0
      %v2926 = vadd.f32 %v752, %v2925
      %v2927 = vpop.f32.mrf.mxu0
      %v2928 = vadd.f32 %v752, %v2927
      %2929 = vmatmul.bf16.gmra.mxu0 %v2107
      %v2930 = vpop.f32.mrf.mxu0
      %v2931 = vadd.f32 %v752, %v2930
      %v2932 = vpop.f32.mrf.mxu0
      %v2933 = vadd.f32 %v752, %v2932
      %2934 = vmatmul.bf16.gmra.mxu0 %v2110
      %v2935 = vpop.f32.mrf.mxu0
      %v2936 = vadd.f32 %v752, %v2935
      %v2937 = vpop.f32.mrf.mxu0
      %v2938 = vadd.f32 %v752, %v2937
      %2939 = vmatmul.bf16.gmra.mxu0 %v2113
      %v2940 = vpop.f32.mrf.mxu0
      %v2941 = vadd.f32 %v752, %v2940
      %v2942 = vpop.f32.mrf.mxu0
      %v2943 = vadd.f32 %v752, %v2942
      %2944 = vmatmul.bf16.gmra.mxu0 %v2116
      %v2945 = vpop.f32.mrf.mxu0
      %v2946 = vadd.f32 %v752, %v2945
      %v2947 = vpop.f32.mrf.mxu0
      %v2948 = vadd.f32 %v752, %v2947
      %2949 = vmatmul.bf16.gmra.mxu0 %v2119
      %v2950 = vpop.f32.mrf.mxu0
      %v2951 = vadd.f32 %v752, %v2950
      %v2952 = vpop.f32.mrf.mxu0
      %v2953 = vadd.f32 %v752, %v2952
      %2954 = vmatmul.bf16.gmra.mxu0 %v2122
      %v2955 = vpop.f32.mrf.mxu0
      %v2956 = vadd.f32 %v752, %v2955
      %v2957 = vpop.f32.mrf.mxu0
      %v2958 = vadd.f32 %v752, %v2957
      %2959 = vmatmul.bf16.gmra.mxu0 %v2125
      %v2960 = vpop.f32.mrf.mxu0
      %v2961 = vadd.f32 %v752, %v2960
      %v2962 = vpop.f32.mrf.mxu0
      %v2963 = vadd.f32 %v752, %v2962
      %2964 = vmatmul.bf16.gmra.mxu0 %v2128
      %v2965 = vpop.f32.mrf.mxu0
      %v2966 = vadd.f32 %v752, %v2965
      %v2967 = vpop.f32.mrf.mxu0
      %v2968 = vadd.f32 %v752, %v2967
      %2969 = vmatmul.bf16.gmra.mxu0 %v2131
      %v2970 = vpop.f32.mrf.mxu0
      %v2971 = vadd.f32 %v752, %v2970
      %v2972 = vpop.f32.mrf.mxu0
      %v2973 = vadd.f32 %v752, %v2972
      %2974 = vmatmul.bf16.gmra.mxu0 %v2134
      %v2975 = vpop.f32.mrf.mxu0
      %v2976 = vadd.f32 %v752, %v2975
      %v2977 = vpop.f32.mrf.mxu0
      %v2978 = vadd.f32 %v752, %v2977
      %2979 = vmatmul.bf16.gmra.mxu0 %v2137
      %v2980 = vpop.f32.mrf.mxu0
      %v2981 = vadd.f32 %v752, %v2980
      %v2982 = vpop.f32.mrf.mxu0
      %v2983 = vadd.f32 %v752, %v2982
      %2984 = vmatmul.bf16.gmra.mxu0 %v2140
      %v2985 = vpop.f32.mrf.mxu0
      %v2986 = vadd.f32 %v752, %v2985
      %v2987 = vpop.f32.mrf.mxu0
      %v2988 = vadd.f32 %v752, %v2987
      %2989 = vmatmul.bf16.gmra.mxu0 %v2143
      %v2990 = vpop.f32.mrf.mxu0
      %v2991 = vadd.f32 %v752, %v2990
      %v2992 = vpop.f32.mrf.mxu0
      %v2993 = vadd.f32 %v752, %v2992
      %2994 = vmatmul.bf16.gmra.mxu0 %v2146
      %v2995 = vpop.f32.mrf.mxu0
      %v2996 = vadd.f32 %v752, %v2995
      %v2997 = vpop.f32.mrf.mxu0
      %v2998 = vadd.f32 %v752, %v2997
      %2999 = vmatmul.bf16.gmra.mxu0 %v2149
      %v3000 = vpop.f32.mrf.mxu0
      %v3001 = vadd.f32 %v752, %v3000
      %v3002 = vpop.f32.mrf.mxu0
      %v3003 = vadd.f32 %v752, %v3002
      %3004 = vmatmul.bf16.gmra.mxu0 %v2152
      %v3005 = vpop.f32.mrf.mxu0
      %v3006 = vadd.f32 %v752, %v3005
      %v3007 = vpop.f32.mrf.mxu0
      %v3008 = vadd.f32 %v752, %v3007
      %3009 = vmatmul.bf16.gmra.mxu0 %v2155
      %v3010 = vpop.f32.mrf.mxu0
      %v3011 = vadd.f32 %v752, %v3010
      %v3012 = vpop.f32.mrf.mxu0
      %v3013 = vadd.f32 %v752, %v3012
      %3014 = vmatmul.bf16.gmra.mxu0 %v2158
      %v3015 = vpop.f32.mrf.mxu0
      %v3016 = vadd.f32 %v752, %v3015
      %v3017 = vpop.f32.mrf.mxu0
      %v3018 = vadd.f32 %v752, %v3017
      %3019 = vmatmul.bf16.gmra.mxu0 %v2161
      %v3020 = vpop.f32.mrf.mxu0
      %v3021 = vadd.f32 %v752, %v3020
      %v3022 = vpop.f32.mrf.mxu0
      %v3023 = vadd.f32 %v752, %v3022
      %3024 = vmatmul.bf16.gmra.mxu0 %v2164
      %v3025 = vpop.f32.mrf.mxu0
      %v3026 = vadd.f32 %v752, %v3025
      %v3027 = vpop.f32.mrf.mxu0
      %v3028 = vadd.f32 %v752, %v3027
      %3029 = vmatmul.bf16.gmra.mxu0 %v2167
      %v3030 = vpop.f32.mrf.mxu0
      %v3031 = vadd.f32 %v752, %v3030
      %v3032 = vpop.f32.mrf.mxu0
      %v3033 = vadd.f32 %v752, %v3032
      %3034 = vmatmul.bf16.gmra.mxu0 %v2170
      %v3035 = vpop.f32.mrf.mxu0
      %v3036 = vadd.f32 %v752, %v3035
      %v3037 = vpop.f32.mrf.mxu0
      %v3038 = vadd.f32 %v752, %v3037
      %3039 = vmatmul.bf16.gmra.mxu0 %v2173
      %v3040 = vpop.f32.mrf.mxu0
      %v3041 = vadd.f32 %v752, %v3040
      %v3042 = vpop.f32.mrf.mxu0
      %v3043 = vadd.f32 %v752, %v3042
      %3044 = vmatmul.bf16.gmra.mxu0 %v2176
      %v3045 = vpop.f32.mrf.mxu0
      %v3046 = vadd.f32 %v752, %v3045
      %v3047 = vpop.f32.mrf.mxu0
      %v3048 = vadd.f32 %v752, %v3047
      %3049 = vmatmul.bf16.gmra.mxu0 %v2179
      %v3050 = vpop.f32.mrf.mxu0
      %v3051 = vadd.f32 %v752, %v3050
      %v3052 = vpop.f32.mrf.mxu0
      %v3053 = vadd.f32 %v752, %v3052
      %3054 = vmatmul.bf16.gmra.mxu0 %v2182
      %v3055 = vpop.f32.mrf.mxu0
      %v3056 = vadd.f32 %v752, %v3055
      %v3057 = vpop.f32.mrf.mxu0
      %v3058 = vadd.f32 %v752, %v3057
      %3059 = vmatmul.bf16.gmra.mxu0 %v2185
      %v3060 = vpop.f32.mrf.mxu0
      %v3061 = vadd.f32 %v752, %v3060
      %v3062 = vpop.f32.mrf.mxu0
      %v3063 = vadd.f32 %v752, %v3062
      %3064 = vmatmul.bf16.gmra.mxu0 %v2188
      %v3065 = vpop.f32.mrf.mxu0
      %v3066 = vadd.f32 %v752, %v3065
      %v3067 = vpop.f32.mrf.mxu0
      %v3068 = vadd.f32 %v752, %v3067
      %3069 = vmatmul.bf16.gmra.mxu0 %v2191
      %v3070 = vpop.f32.mrf.mxu0
      %v3071 = vadd.f32 %v752, %v3070
      %v3072 = vpop.f32.mrf.mxu0
      %v3073 = vadd.f32 %v752, %v3072
      %3074 = vmatmul.bf16.gmra.mxu0 %v2194
      %v3075 = vpop.f32.mrf.mxu0
      %v3076 = vadd.f32 %v752, %v3075
      %v3077 = vpop.f32.mrf.mxu0
      %v3078 = vadd.f32 %v752, %v3077
      %3079 = vmatmul.bf16.gmra.mxu0 %v2197
      %v3080 = vpop.f32.mrf.mxu0
      %v3081 = vadd.f32 %v752, %v3080
      %v3082 = vpop.f32.mrf.mxu0
      %v3083 = vadd.f32 %v752, %v3082
      %3084 = vmatmul.bf16.gmra.mxu0 %v2200
      %v3085 = vpop.f32.mrf.mxu0
      %v3086 = vadd.f32 %v752, %v3085
      %v3087 = vpop.f32.mrf.mxu0
      %v3088 = vadd.f32 %v752, %v3087
      %3089 = vmatmul.bf16.gmra.mxu0 %v2203
      %v3090 = vpop.f32.mrf.mxu0
      %v3091 = vadd.f32 %v752, %v3090
      %v3092 = vpop.f32.mrf.mxu0
      %v3093 = vadd.f32 %v752, %v3092
      %3094 = vmatmul.bf16.gmra.mxu0 %v2206
      %v3095 = vpop.f32.mrf.mxu0
      %v3096 = vadd.f32 %v752, %v3095
      %v3097 = vpop.f32.mrf.mxu0
      %v3098 = vadd.f32 %v752, %v3097
      %3099 = vmatmul.bf16.gmra.mxu0 %v2209
      %v3100 = vpop.f32.mrf.mxu0
      %v3101 = vadd.f32 %v752, %v3100
      %v3102 = vpop.f32.mrf.mxu0
      %v3103 = vadd.f32 %v752, %v3102
      %3104 = vmatmul.bf16.gmra.mxu0 %v2212
      %v3105 = vpop.f32.mrf.mxu0
      %v3106 = vadd.f32 %v752, %v3105
      %v3107 = vpop.f32.mrf.mxu0
      %v3108 = vadd.f32 %v752, %v3107
      %3109 = vmatmul.bf16.gmra.mxu0 %v2215
      %v3110 = vpop.f32.mrf.mxu0
      %v3111 = vadd.f32 %v752, %v3110
      %v3112 = vpop.f32.mrf.mxu0
      %v3113 = vadd.f32 %v752, %v3112
      %3114 = vmatmul.bf16.gmra.mxu0 %v2218
      %v3115 = vpop.f32.mrf.mxu0
      %v3116 = vadd.f32 %v752, %v3115
      %v3117 = vpop.f32.mrf.mxu0
      %v3118 = vadd.f32 %v752, %v3117
      %3119 = vmatmul.bf16.gmra.mxu0 %v2221
      %v3120 = vpop.f32.mrf.mxu0
      %v3121 = vadd.f32 %v752, %v3120
      %v3122 = vpop.f32.mrf.mxu0
      %v3123 = vadd.f32 %v752, %v3122
      %3124 = vmatmul.bf16.gmra.mxu0 %v2224
      %v3125 = vpop.f32.mrf.mxu0
      %v3126 = vadd.f32 %v752, %v3125
      %v3127 = vpop.f32.mrf.mxu0
      %v3128 = vadd.f32 %v752, %v3127
      %3129 = vmatmul.bf16.gmra.mxu0 %v2227
      %v3130 = vpop.f32.mrf.mxu0
      %v3131 = vadd.f32 %v752, %v3130
      %v3132 = vpop.f32.mrf.mxu0
      %v3133 = vadd.f32 %v752, %v3132
      %3134 = vmatmul.bf16.gmra.mxu0 %v2230
      %v3135 = vpop.f32.mrf.mxu0
      %v3136 = vadd.f32 %v752, %v3135
      %v3137 = vpop.f32.mrf.mxu0
      %v3138 = vadd.f32 %v752, %v3137
      %3139 = vmatmul.bf16.gmra.mxu0 %v2233
      %v3140 = vpop.f32.mrf.mxu0
      %v3141 = vadd.f32 %v752, %v3140
      %v3142 = vpop.f32.mrf.mxu0
      %v3143 = vadd.f32 %v752, %v3142
      %3144 = vmatmul.bf16.gmra.mxu0 %v2236
      %v3145 = vpop.f32.mrf.mxu0
      %v3146 = vadd.f32 %v752, %v3145
      %v3147 = vpop.f32.mrf.mxu0
      %v3148 = vadd.f32 %v752, %v3147
      %3149 = vmatmul.bf16.gmra.mxu0 %v2239
      %v3150 = vpop.f32.mrf.mxu0
      %v3151 = vadd.f32 %v752, %v3150
      %v3152 = vpop.f32.mrf.mxu0
      %v3153 = vadd.f32 %v752, %v3152
      %3154 = vmatmul.bf16.gmra.mxu0 %v2242
      %v3155 = vpop.f32.mrf.mxu0
      %v3156 = vadd.f32 %v752, %v3155
      %v3157 = vpop.f32.mrf.mxu0
      %v3158 = vadd.f32 %v752, %v3157
      %3159 = vmatmul.bf16.gmra.mxu0 %v2245
      %v3160 = vpop.f32.mrf.mxu0
      %v3161 = vadd.f32 %v752, %v3160
      %v3162 = vpop.f32.mrf.mxu0
      %v3163 = vadd.f32 %v752, %v3162
      %3164 = vmatmul.bf16.gmra.mxu0 %v2248
      %v3165 = vpop.f32.mrf.mxu0
      %v3166 = vadd.f32 %v752, %v3165
      %v3167 = vpop.f32.mrf.mxu0
      %v3168 = vadd.f32 %v752, %v3167
      %3169 = vmatmul.bf16.gmra.mxu0 %v2251
      %v3170 = vpop.f32.mrf.mxu0
      %v3171 = vadd.f32 %v752, %v3170
      %v3172 = vpop.f32.mrf.mxu0
      %v3173 = vadd.f32 %v752, %v3172
      %3174 = vmatmul.bf16.gmra.mxu0 %v2254
      %v3175 = vpop.f32.mrf.mxu0
      %v3176 = vadd.f32 %v752, %v3175
      %v3177 = vpop.f32.mrf.mxu0
      %v3178 = vadd.f32 %v752, %v3177
      %3179 = vmatmul.bf16.gmra.mxu0 %v2257
      %v3180 = vpop.f32.mrf.mxu0
      %v3181 = vadd.f32 %v752, %v3180
      %v3182 = vpop.f32.mrf.mxu0
      %v3183 = vadd.f32 %v752, %v3182
      %3184 = vmatmul.bf16.gmra.mxu0 %v2260
      %v3185 = vpop.f32.mrf.mxu0
      %v3186 = vadd.f32 %v752, %v3185
      %v3187 = vpop.f32.mrf.mxu0
      %v3188 = vadd.f32 %v752, %v3187
      %3189 = vmatmul.bf16.gmra.mxu0 %v2263
      %v3190 = vpop.f32.mrf.mxu0
      %v3191 = vadd.f32 %v752, %v3190
      %v3192 = vpop.f32.mrf.mxu0
      %v3193 = vadd.f32 %v752, %v3192
      %3194 = vmatmul.bf16.gmra.mxu0 %v2266
      %v3195 = vpop.f32.mrf.mxu0
      %v3196 = vadd.f32 %v752, %v3195
      %v3197 = vpop.f32.mrf.mxu0
      %v3198 = vadd.f32 %v752, %v3197
      %3199 = vmatmul.bf16.gmra.mxu0 %v2269
      %v3200 = vpop.f32.mrf.mxu0
      %v3201 = vadd.f32 %v752, %v3200
      %v3202 = vpop.f32.mrf.mxu0
      %v3203 = vadd.f32 %v752, %v3202
      %3204 = vmatmul.bf16.gmra.mxu0 %v2272
      %v3205 = vpop.f32.mrf.mxu0
      %v3206 = vadd.f32 %v752, %v3205
      %v3207 = vpop.f32.mrf.mxu0
      %v3208 = vadd.f32 %v752, %v3207
      %3209 = vmatmul.bf16.gmra.mxu0 %v2275
      %v3210 = vpop.f32.mrf.mxu0
      %v3211 = vadd.f32 %v752, %v3210
      %v3212 = vpop.f32.mrf.mxu0
      %v3213 = vadd.f32 %v752, %v3212
      %3214 = vmatmul.bf16.gmra.mxu0 %v2278
      %v3215 = vpop.f32.mrf.mxu0
      %v3216 = vadd.f32 %v752, %v3215
      %v3217 = vpop.f32.mrf.mxu0
      %v3218 = vadd.f32 %v752, %v3217
      %3219 = vmatmul.bf16.gmra.mxu0 %v2281
      %v3220 = vpop.f32.mrf.mxu0
      %v3221 = vadd.f32 %v752, %v3220
      %v3222 = vpop.f32.mrf.mxu0
      %v3223 = vadd.f32 %v752, %v3222
      %3224 = vmatmul.bf16.gmra.mxu0 %v2284
      %v3225 = vpop.f32.mrf.mxu0
      %v3226 = vadd.f32 %v752, %v3225
      %v3227 = vpop.f32.mrf.mxu0
      %v3228 = vadd.f32 %v752, %v3227
      %3229 = vmatmul.bf16.gmra.mxu0 %v2287
      %v3230 = vpop.f32.mrf.mxu0
      %v3231 = vadd.f32 %v752, %v3230
      %v3232 = vpop.f32.mrf.mxu0
      %v3233 = vadd.f32 %v752, %v3232
      %3234 = vmatmul.bf16.gmra.mxu0 %v2290
      %v3235 = vpop.f32.mrf.mxu0
      %v3236 = vadd.f32 %v752, %v3235
      %v3237 = vpop.f32.mrf.mxu0
      %v3238 = vadd.f32 %v752, %v3237
      %3239 = vmatmul.bf16.gmra.mxu0 %v2293
      %v3240 = vpop.f32.mrf.mxu0
      %v3241 = vadd.f32 %v752, %v3240
      %v3242 = vpop.f32.mrf.mxu0
      %v3243 = vadd.f32 %v752, %v3242
      %3244 = vmatmul.bf16.gmra.mxu0 %v2296
      %v3245 = vpop.f32.mrf.mxu0
      %v3246 = vadd.f32 %v752, %v3245
      %v3247 = vpop.f32.mrf.mxu0
      %v3248 = vadd.f32 %v752, %v3247
      %3249 = vmatmul.bf16.gmra.mxu0 %v2299
      %v3250 = vpop.f32.mrf.mxu0
      %v3251 = vadd.f32 %v752, %v3250
      %v3252 = vpop.f32.mrf.mxu0
      %v3253 = vadd.f32 %v752, %v3252
      %3254 = vmatmul.bf16.gmra.mxu0 %v2302
      %v3255 = vpop.f32.mrf.mxu0
      %v3256 = vadd.f32 %v752, %v3255
      %v3257 = vpop.f32.mrf.mxu0
      %v3258 = vadd.f32 %v752, %v3257
      %3259 = vmatmul.bf16.gmra.mxu0 %v2305
      %v3260 = vpop.f32.mrf.mxu0
      %v3261 = vadd.f32 %v752, %v3260
      %v3262 = vpop.f32.mrf.mxu0
      %v3263 = vadd.f32 %v752, %v3262
      %3264 = vmatmul.bf16.gmra.mxu0 %v2308
      %v3265 = vpop.f32.mrf.mxu0
      %v3266 = vadd.f32 %v752, %v3265
      %v3267 = vpop.f32.mrf.mxu0
      %v3268 = vadd.f32 %v752, %v3267
      %3269 = vmatmul.bf16.gmra.mxu0 %v2311
      %v3270 = vpop.f32.mrf.mxu0
      %v3271 = vadd.f32 %v752, %v3270
      %v3272 = vpop.f32.mrf.mxu0
      %v3273 = vadd.f32 %v752, %v3272
      %3274 = vmatmul.bf16.gmra.mxu0 %v2314
      %v3275 = vpop.f32.mrf.mxu0
      %v3276 = vadd.f32 %v752, %v3275
      %v3277 = vpop.f32.mrf.mxu0
      %v3278 = vadd.f32 %v752, %v3277
      %3279 = vmatmul.bf16.gmra.mxu0 %v2317
      %v3280 = vpop.f32.mrf.mxu0
      %v3281 = vadd.f32 %v752, %v3280
      %v3282 = vpop.f32.mrf.mxu0
      %v3283 = vadd.f32 %v752, %v3282
      %3284 = vmatmul.bf16.gmra.mxu0 %v2320
      %v3285 = vpop.f32.mrf.mxu0
      %v3286 = vadd.f32 %v752, %v3285
      %v3287 = vpop.f32.mrf.mxu0
      %v3288 = vadd.f32 %v752, %v3287
      %3289 = vmatmul.bf16.gmra.mxu0 %v2323
      %v3290 = vpop.f32.mrf.mxu0
      %v3291 = vadd.f32 %v752, %v3290
      %v3292 = vpop.f32.mrf.mxu0
      %v3293 = vadd.f32 %v752, %v3292
      %3294 = vmatmul.bf16.gmra.mxu0 %v2326
      %v3295 = vpop.f32.mrf.mxu0
      %v3296 = vadd.f32 %v752, %v3295
      %v3297 = vpop.f32.mrf.mxu0
      %v3298 = vadd.f32 %v752, %v3297
      %3299 = vmatmul.bf16.gmra.mxu0 %v2329
      %v3300 = vpop.f32.mrf.mxu0
      %v3301 = vadd.f32 %v752, %v3300
      %v3302 = vpop.f32.mrf.mxu0
      %v3303 = vadd.f32 %v752, %v3302
      %3304 = vmatmul.bf16.gmra.mxu0 %v2332
      %v3305 = vpop.f32.mrf.mxu0
      %v3306 = vadd.f32 %v752, %v3305
      %v3307 = vpop.f32.mrf.mxu0
      %v3308 = vadd.f32 %v752, %v3307
      %3309 = vmatmul.bf16.gmra.mxu0 %v2335
      %v3310 = vpop.f32.mrf.mxu0
      %v3311 = vadd.f32 %v752, %v3310
      %v3312 = vpop.f32.mrf.mxu0
      %v3313 = vadd.f32 %v752, %v3312
      %3314 = vmatmul.bf16.gmra.mxu0 %v2338
      %v3315 = vpop.f32.mrf.mxu0
      %v3316 = vadd.f32 %v752, %v3315
      %v3317 = vpop.f32.mrf.mxu0
      %v3318 = vadd.f32 %v752, %v3317
      %3319 = vmatmul.bf16.gmra.mxu0 %v2341
      %v3320 = vpop.f32.mrf.mxu0
      %v3321 = vadd.f32 %v752, %v3320
      %v3322 = vpop.f32.mrf.mxu0
      %v3323 = vadd.f32 %v752, %v3322
      %3324 = vmatmul.bf16.gmra.mxu0 %v2344
      %v3325 = vpop.f32.mrf.mxu0
      %v3326 = vadd.f32 %v752, %v3325
      %v3327 = vpop.f32.mrf.mxu0
      %v3328 = vadd.f32 %v752, %v3327
      %3329 = vmatmul.bf16.gmra.mxu0 %v2347
      %v3330 = vpop.f32.mrf.mxu0
      %v3331 = vadd.f32 %v752, %v3330
      %v3332 = vpop.f32.mrf.mxu0
      %v3333 = vadd.f32 %v752, %v3332
      %3334 = vmatmul.bf16.gmra.mxu0 %v2350
      %v3335 = vpop.f32.mrf.mxu0
      %v3336 = vadd.f32 %v752, %v3335
      %v3337 = vpop.f32.mrf.mxu0
      %v3338 = vadd.f32 %v752, %v3337
      %3339 = vmatmul.bf16.gmra.mxu0 %v2353
      %v3340 = vpop.f32.mrf.mxu0
      %v3341 = vadd.f32 %v752, %v3340
      %v3342 = vpop.f32.mrf.mxu0
      %v3343 = vadd.f32 %v752, %v3342
      %3344 = vmatmul.bf16.gmra.mxu0 %v2356
      %v3345 = vpop.f32.mrf.mxu0
      %v3346 = vadd.f32 %v752, %v3345
      %v3347 = vpop.f32.mrf.mxu0
      %v3348 = vadd.f32 %v752, %v3347
      %3349 = vmatmul.bf16.gmra.mxu0 %v2359
      %v3350 = vpop.f32.mrf.mxu0
      %v3351 = vadd.f32 %v752, %v3350
      %v3352 = vpop.f32.mrf.mxu0
      %v3353 = vadd.f32 %v752, %v3352
      %3354 = vmatmul.bf16.gmra.mxu0 %v2362
      %v3355 = vpop.f32.mrf.mxu0
      %v3356 = vadd.f32 %v752, %v3355
      %v3357 = vpop.f32.mrf.mxu0
      %v3358 = vadd.f32 %v752, %v3357
      %3359 = vmatmul.bf16.gmra.mxu0 %v2365
      %v3360 = vpop.f32.mrf.mxu0
      %v3361 = vadd.f32 %v752, %v3360
      %v3362 = vpop.f32.mrf.mxu0
      %v3363 = vadd.f32 %v752, %v3362
      %3364 = vmatmul.bf16.gmra.mxu0 %v2368
      %v3365 = vpop.f32.mrf.mxu0
      %v3366 = vadd.f32 %v752, %v3365
      %v3367 = vpop.f32.mrf.mxu0
      %v3368 = vadd.f32 %v752, %v3367
      %3369 = vmatmul.bf16.gmra.mxu0 %v2371
      %v3370 = vpop.f32.mrf.mxu0
      %v3371 = vadd.f32 %v752, %v3370
      %v3372 = vpop.f32.mrf.mxu0
      %v3373 = vadd.f32 %v752, %v3372
      %3374 = vmatmul.bf16.gmra.mxu0 %v2374
      %v3375 = vpop.f32.mrf.mxu0
      %v3376 = vadd.f32 %v752, %v3375
      %v3377 = vpop.f32.mrf.mxu0
      %v3378 = vadd.f32 %v752, %v3377
      %3379 = vmatmul.bf16.gmra.mxu0 %v2377
      %v3380 = vpop.f32.mrf.mxu0
      %v3381 = vadd.f32 %v752, %v3380
      %v3382 = vpop.f32.mrf.mxu0
      %v3383 = vadd.f32 %v752, %v3382
      %3384 = vmatmul.bf16.gmra.mxu0 %v2380
      %v3385 = vpop.f32.mrf.mxu0
      %v3386 = vadd.f32 %v752, %v3385
      %v3387 = vpop.f32.mrf.mxu0
      %v3388 = vadd.f32 %v752, %v3387
      %3389 = vmatmul.bf16.gmra.mxu0 %v2383
      %v3390 = vpop.f32.mrf.mxu0
      %v3391 = vadd.f32 %v752, %v3390
      %v3392 = vpop.f32.mrf.mxu0
      %v3393 = vadd.f32 %v752, %v3392
      %3394 = vmatmul.bf16.gmra.mxu0 %v2386
      %v3395 = vpop.f32.mrf.mxu0
      %v3396 = vadd.f32 %v752, %v3395
      %v3397 = vpop.f32.mrf.mxu0
      %v3398 = vadd.f32 %v752, %v3397
      %3399 = vmatmul.bf16.gmra.mxu0 %v2389
      %v3400 = vpop.f32.mrf.mxu0
      %v3401 = vadd.f32 %v752, %v3400
      %v3402 = vpop.f32.mrf.mxu0
      %v3403 = vadd.f32 %v752, %v3402
      %3404 = vmatmul.bf16.gmra.mxu0 %v2392
      %v3405 = vpop.f32.mrf.mxu0
      %v3406 = vadd.f32 %v752, %v3405
      %v3407 = vpop.f32.mrf.mxu0
      %v3408 = vadd.f32 %v752, %v3407
      %3409 = vmatmul.bf16.gmra.mxu0 %v2395
      %v3410 = vpop.f32.mrf.mxu0
      %v3411 = vadd.f32 %v752, %v3410
      %v3412 = vpop.f32.mrf.mxu0
      %v3413 = vadd.f32 %v752, %v3412
      %3414 = vmatmul.bf16.gmra.mxu0 %v2398
      %v3415 = vpop.f32.mrf.mxu0
      %v3416 = vadd.f32 %v752, %v3415
      %v3417 = vpop.f32.mrf.mxu0
      %v3418 = vadd.f32 %v752, %v3417
      %3419 = vmatmul.bf16.gmra.mxu0 %v2401
      %v3420 = vpop.f32.mrf.mxu0
      %v3421 = vadd.f32 %v752, %v3420
      %v3422 = vpop.f32.mrf.mxu0
      %v3423 = vadd.f32 %v752, %v3422
      %3424 = vmatmul.bf16.gmra.mxu0 %v2404
      %v3425 = vpop.f32.mrf.mxu0
      %v3426 = vadd.f32 %v752, %v3425
      %v3427 = vpop.f32.mrf.mxu0
      %v3428 = vadd.f32 %v752, %v3427
      %3429 = vmatmul.bf16.gmra.mxu0 %v2407
      %v3430 = vpop.f32.mrf.mxu0
      %v3431 = vadd.f32 %v752, %v3430
      %v3432 = vpop.f32.mrf.mxu0
      %v3433 = vadd.f32 %v752, %v3432
      %3434 = vmatmul.bf16.gmra.mxu0 %v2410
      %v3435 = vpop.f32.mrf.mxu0
      %v3436 = vadd.f32 %v752, %v3435
      %v3437 = vpop.f32.mrf.mxu0
      %v3438 = vadd.f32 %v752, %v3437
      %3439 = vmatmul.bf16.gmra.mxu0 %v2413
      %v3440 = vpop.f32.mrf.mxu0
      %v3441 = vadd.f32 %v752, %v3440
      %v3442 = vpop.f32.mrf.mxu0
      %v3443 = vadd.f32 %v752, %v3442
      %3444 = vmatmul.bf16.gmra.mxu0 %v2416
      %v3445 = vpop.f32.mrf.mxu0
      %v3446 = vadd.f32 %v752, %v3445
      %v3447 = vpop.f32.mrf.mxu0
      %v3448 = vadd.f32 %v752, %v3447
      %3449 = vmatmul.bf16.gmra.mxu0 %v2419
      %v3450 = vpop.f32.mrf.mxu0
      %v3451 = vadd.f32 %v752, %v3450
      %v3452 = vpop.f32.mrf.mxu0
      %v3453 = vadd.f32 %v752, %v3452
      %3454 = vmatmul.bf16.gmra.mxu0 %v2422
      %v3455 = vpop.f32.mrf.mxu0
      %v3456 = vadd.f32 %v752, %v3455
      %v3457 = vpop.f32.mrf.mxu0
      %v3458 = vadd.f32 %v752, %v3457
      %3459 = vmatmul.bf16.gmra.mxu0 %v2425
      %v3460 = vpop.f32.mrf.mxu0
      %v3461 = vadd.f32 %v752, %v3460
      %v3462 = vpop.f32.mrf.mxu0
      %v3463 = vadd.f32 %v752, %v3462
      %3464 = vmatmul.bf16.gmra.mxu0 %v2428
      %v3465 = vpop.f32.mrf.mxu0
      %v3466 = vadd.f32 %v752, %v3465
      %v3467 = vpop.f32.mrf.mxu0
      %v3468 = vadd.f32 %v752, %v3467
      %3469 = vmatmul.bf16.gmra.mxu0 %v2431
      %v3470 = vpop.f32.mrf.mxu0
      %v3471 = vadd.f32 %v752, %v3470
      %v3472 = vpop.f32.mrf.mxu0
      %v3473 = vadd.f32 %v752, %v3472
      %3474 = vmatmul.bf16.gmra.mxu0 %v2434
      %v3475 = vpop.f32.mrf.mxu0
      %v3476 = vadd.f32 %v752, %v3475
      %v3477 = vpop.f32.mrf.mxu0
      %v3478 = vadd.f32 %v752, %v3477
      %3479 = vmatmul.bf16.gmra.mxu0 %v2437
      %v3480 = vpop.f32.mrf.mxu0
      %v3481 = vadd.f32 %v752, %v3480
      %v3482 = vpop.f32.mrf.mxu0
      %v3483 = vadd.f32 %v752, %v3482
      %3484 = vmatmul.bf16.gmra.mxu0 %v2440
      %v3485 = vpop.f32.mrf.mxu0
      %v3486 = vadd.f32 %v752, %v3485
      %v3487 = vpop.f32.mrf.mxu0
      %v3488 = vadd.f32 %v752, %v3487
      %3489 = vmatmul.bf16.gmra.mxu0 %v2443
      %v3490 = vpop.f32.mrf.mxu0
      %v3491 = vadd.f32 %v752, %v3490
      %v3492 = vpop.f32.mrf.mxu0
      %v3493 = vadd.f32 %v752, %v3492
      %3494 = vmatmul.bf16.gmra.mxu0 %v2446
      %v3495 = vpop.f32.mrf.mxu0
      %v3496 = vadd.f32 %v752, %v3495
      %v3497 = vpop.f32.mrf.mxu0
      %v3498 = vadd.f32 %v752, %v3497
      %3499 = vmatmul.bf16.gmra.mxu0 %v2449
      %v3500 = vpop.f32.mrf.mxu0
      %v3501 = vadd.f32 %v752, %v3500
      %v3502 = vpop.f32.mrf.mxu0
      %v3503 = vadd.f32 %v752, %v3502
      %3504 = vmatmul.bf16.gmra.mxu0 %v2452
      %v3505 = vpop.f32.mrf.mxu0
      %v3506 = vadd.f32 %v752, %v3505
      %v3507 = vpop.f32.mrf.mxu0
      %v3508 = vadd.f32 %v752, %v3507
      %3509 = vmatmul.bf16.gmra.mxu0 %v2455
      %v3510 = vpop.f32.mrf.mxu0
      %v3511 = vadd.f32 %v752, %v3510
      %v3512 = vpop.f32.mrf.mxu0
      %v3513 = vadd.f32 %v752, %v3512
      %3514 = vmatmul.bf16.gmra.mxu0 %v2458
      %v3515 = vpop.f32.mrf.mxu0
      %v3516 = vadd.f32 %v752, %v3515
      %v3517 = vpop.f32.mrf.mxu0
      %v3518 = vadd.f32 %v752, %v3517
      %3519 = vmatmul.bf16.gmra.mxu0 %v2461
      %v3520 = vpop.f32.mrf.mxu0
      %v3521 = vadd.f32 %v752, %v3520
      %v3522 = vpop.f32.mrf.mxu0
      %v3523 = vadd.f32 %v752, %v3522
      %3524 = vmatmul.bf16.gmra.mxu0 %v2464
      %v3525 = vpop.f32.mrf.mxu0
      %v3526 = vadd.f32 %v752, %v3525
      %v3527 = vpop.f32.mrf.mxu0
      %v3528 = vadd.f32 %v752, %v3527
      %3529 = vmatmul.bf16.gmra.mxu0 %v2467
      %v3530 = vpop.f32.mrf.mxu0
      %v3531 = vadd.f32 %v752, %v3530
      %v3532 = vpop.f32.mrf.mxu0
      %v3533 = vadd.f32 %v752, %v3532
      %3534 = vmatmul.bf16.gmra.mxu0 %v2470
      %v3535 = vpop.f32.mrf.mxu0
      %v3536 = vadd.f32 %v752, %v3535
      %v3537 = vpop.f32.mrf.mxu0
      %v3538 = vadd.f32 %v752, %v3537
      %3539 = vmatmul.bf16.gmra.mxu0 %v2473
      %v3540 = vpop.f32.mrf.mxu0
      %v3541 = vadd.f32 %v752, %v3540
      %v3542 = vpop.f32.mrf.mxu0
      %v3543 = vadd.f32 %v752, %v3542
      %3544 = vmatmul.bf16.gmra.mxu0 %v2476
      %v3545 = vpop.f32.mrf.mxu0
      %v3546 = vadd.f32 %v752, %v3545
      %v3547 = vpop.f32.mrf.mxu0
      %v3548 = vadd.f32 %v752, %v3547
      %3549 = vmatmul.bf16.gmra.mxu0 %v2479
      %v3550 = vpop.f32.mrf.mxu0
      %v3551 = vadd.f32 %v752, %v3550
      %v3552 = vpop.f32.mrf.mxu0
      %v3553 = vadd.f32 %v752, %v3552
      %3554 = vmatmul.bf16.gmra.mxu0 %v2482
      %v3555 = vpop.f32.mrf.mxu0
      %v3556 = vadd.f32 %v752, %v3555
      %v3557 = vpop.f32.mrf.mxu0
      %v3558 = vadd.f32 %v752, %v3557
      %3559 = vmatmul.bf16.gmra.mxu0 %v2485
      %v3560 = vpop.f32.mrf.mxu0
      %v3561 = vadd.f32 %v752, %v3560
      %v3562 = vpop.f32.mrf.mxu0
      %v3563 = vadd.f32 %v752, %v3562
      %3564 = vmatmul.bf16.gmra.mxu0 %v2488
      %v3565 = vpop.f32.mrf.mxu0
      %v3566 = vadd.f32 %v752, %v3565
      %v3567 = vpop.f32.mrf.mxu0
      %v3568 = vadd.f32 %v752, %v3567
      %3569 = vmatmul.bf16.gmra.mxu0 %v2491
      %v3570 = vpop.f32.mrf.mxu0
      %v3571 = vadd.f32 %v752, %v3570
      %v3572 = vpop.f32.mrf.mxu0
      %v3573 = vadd.f32 %v752, %v3572
      %3574 = vmatmul.bf16.gmra.mxu0 %v2494
      %v3575 = vpop.f32.mrf.mxu0
      %v3576 = vadd.f32 %v752, %v3575
      %v3577 = vpop.f32.mrf.mxu0
      %v3578 = vadd.f32 %v752, %v3577
      %3579 = vmatmul.bf16.gmra.mxu0 %v2497
      %v3580 = vpop.f32.mrf.mxu0
      %v3581 = vadd.f32 %v752, %v3580
      %v3582 = vpop.f32.mrf.mxu0
      %v3583 = vadd.f32 %v752, %v3582
      %3584 = vmatmul.bf16.gmra.mxu0 %v2500
      %v3585 = vpop.f32.mrf.mxu0
      %v3586 = vadd.f32 %v752, %v3585
      %v3587 = vpop.f32.mrf.mxu0
      %v3588 = vadd.f32 %v752, %v3587
      %3589 = vmatmul.bf16.gmra.mxu0 %v2503
      %v3590 = vpop.f32.mrf.mxu0
      %v3591 = vadd.f32 %v752, %v3590
      %v3592 = vpop.f32.mrf.mxu0
      %v3593 = vadd.f32 %v752, %v3592
      %3594 = vmatmul.bf16.gmra.mxu0 %v2506
      %v3595 = vpop.f32.mrf.mxu0
      %v3596 = vadd.f32 %v752, %v3595
      %v3597 = vpop.f32.mrf.mxu0
      %v3598 = vadd.f32 %v752, %v3597
      %3599 = vmatmul.bf16.gmra.mxu0 %v2509
      %v3600 = vpop.f32.mrf.mxu0
      %v3601 = vadd.f32 %v752, %v3600
      %v3602 = vpop.f32.mrf.mxu0
      %v3603 = vadd.f32 %v752, %v3602
      %3604 = vmatmul.bf16.gmra.mxu0 %v2512
      %v3605 = vpop.f32.mrf.mxu0
      %v3606 = vadd.f32 %v752, %v3605
      %v3607 = vpop.f32.mrf.mxu0
      %v3608 = vadd.f32 %v752, %v3607
      %3609 = vmatmul.bf16.gmra.mxu0 %v2515
      %v3610 = vpop.f32.mrf.mxu0
      %v3611 = vadd.f32 %v752, %v3610
      %v3612 = vpop.f32.mrf.mxu0
      %v3613 = vadd.f32 %v752, %v3612
      %3614 = vmatmul.bf16.gmra.mxu0 %v2518
      %v3615 = vpop.f32.mrf.mxu0
      %v3616 = vadd.f32 %v752, %v3615
      %v3617 = vpop.f32.mrf.mxu0
      %v3618 = vadd.f32 %v752, %v3617
      %3619 = vmatmul.bf16.gmra.mxu0 %v2521
      %v3620 = vpop.f32.mrf.mxu0
      %v3621 = vadd.f32 %v752, %v3620
      %v3622 = vpop.f32.mrf.mxu0
      %v3623 = vadd.f32 %v752, %v3622
      %3624 = vmatmul.bf16.gmra.mxu0 %v2524
      %v3625 = vpop.f32.mrf.mxu0
      %v3626 = vadd.f32 %v752, %v3625
      %v3627 = vpop.f32.mrf.mxu0
      %v3628 = vadd.f32 %v752, %v3627
      %3629 = vmatmul.bf16.gmra.mxu0 %v2527
      %v3630 = vpop.f32.mrf.mxu0
      %v3631 = vadd.f32 %v752, %v3630
      %v3632 = vpop.f32.mrf.mxu0
      %v3633 = vadd.f32 %v752, %v3632
      %3634 = vmatmul.bf16.gmra.mxu0 %v2530
      %v3635 = vpop.f32.mrf.mxu0
      %v3636 = vadd.f32 %v752, %v3635
      %v3637 = vpop.f32.mrf.mxu0
      %v3638 = vadd.f32 %v752, %v3637
      %3639 = vmatmul.bf16.gmra.mxu0 %v2533
      %v3640 = vpop.f32.mrf.mxu0
      %v3641 = vadd.f32 %v752, %v3640
      %v3642 = vpop.f32.mrf.mxu0
      %v3643 = vadd.f32 %v752, %v3642
      %3644 = vmatmul.bf16.gmra.mxu0 %v2536
      %v3645 = vpop.f32.mrf.mxu0
      %v3646 = vadd.f32 %v752, %v3645
      %v3647 = vpop.f32.mrf.mxu0
      %v3648 = vadd.f32 %v752, %v3647
      %3649 = vmatmul.bf16.gmra.mxu0 %v2539
      %v3650 = vpop.f32.mrf.mxu0
      %v3651 = vadd.f32 %v752, %v3650
      %v3652 = vpop.f32.mrf.mxu0
      %v3653 = vadd.f32 %v752, %v3652
      %3654 = vmatmul.bf16.gmra.mxu0 %v2542
      %v3655 = vpop.f32.mrf.mxu0
      %v3656 = vadd.f32 %v752, %v3655
      %v3657 = vpop.f32.mrf.mxu0
      %v3658 = vadd.f32 %v752, %v3657
      %3659 = vmatmul.bf16.gmra.mxu0 %v2545
      %v3660 = vpop.f32.mrf.mxu0
      %v3661 = vadd.f32 %v752, %v3660
      %v3662 = vpop.f32.mrf.mxu0
      %v3663 = vadd.f32 %v752, %v3662
      %3664 = vmatmul.bf16.gmra.mxu0 %v2548
      %v3665 = vpop.f32.mrf.mxu0
      %v3666 = vadd.f32 %v752, %v3665
      %v3667 = vpop.f32.mrf.mxu0
      %v3668 = vadd.f32 %v752, %v3667
      %3669 = vmatmul.bf16.gmra.mxu0 %v2551
      %v3670 = vpop.f32.mrf.mxu0
      %v3671 = vadd.f32 %v752, %v3670
      %v3672 = vpop.f32.mrf.mxu0
      %v3673 = vadd.f32 %v752, %v3672
      %3674 = vmatmul.bf16.gmra.mxu0 %v2554
      %v3675 = vpop.f32.mrf.mxu0
      %v3676 = vadd.f32 %v752, %v3675
      %v3677 = vpop.f32.mrf.mxu0
      %v3678 = vadd.f32 %v752, %v3677
      %3679 = vmatmul.bf16.gmra.mxu0 %v2557
      %v3680 = vpop.f32.mrf.mxu0
      %v3681 = vadd.f32 %v752, %v3680
      %v3682 = vpop.f32.mrf.mxu0
      %v3683 = vadd.f32 %v752, %v3682
      %3684 = vmatmul.bf16.gmra.mxu0 %v2560
      %v3685 = vpop.f32.mrf.mxu0
      %v3686 = vadd.f32 %v752, %v3685
      %v3687 = vpop.f32.mrf.mxu0
      %v3688 = vadd.f32 %v752, %v3687
      %3689 = vmatmul.bf16.gmra.mxu0 %v2563
      %v3690 = vpop.f32.mrf.mxu0
      %v3691 = vadd.f32 %v752, %v3690
      %v3692 = vpop.f32.mrf.mxu0
      %v3693 = vadd.f32 %v752, %v3692
      %3694 = vmatmul.bf16.gmra.mxu0 %v2566
      %v3695 = vpop.f32.mrf.mxu0
      %v3696 = vadd.f32 %v752, %v3695
      %v3697 = vpop.f32.mrf.mxu0
      %v3698 = vadd.f32 %v752, %v3697
      %3699 = vmatmul.bf16.gmra.mxu0 %v2569
      %v3700 = vpop.f32.mrf.mxu0
      %v3701 = vadd.f32 %v752, %v3700
      %v3702 = vpop.f32.mrf.mxu0
      %v3703 = vadd.f32 %v752, %v3702
      %3704 = vmatmul.bf16.gmra.mxu0 %v2572
      %v3705 = vpop.f32.mrf.mxu0
      %v3706 = vadd.f32 %v752, %v3705
      %v3707 = vpop.f32.mrf.mxu0
      %v3708 = vadd.f32 %v752, %v3707
      %3709 = vmatmul.bf16.gmra.mxu0 %v2575
      %v3710 = vpop.f32.mrf.mxu0
      %v3711 = vadd.f32 %v752, %v3710
      %v3712 = vpop.f32.mrf.mxu0
      %v3713 = vadd.f32 %v752, %v3712
      %3714 = vmatmul.bf16.gmra.mxu0 %v2578
      %v3715 = vpop.f32.mrf.mxu0
      %v3716 = vadd.f32 %v752, %v3715
      %v3717 = vpop.f32.mrf.mxu0
      %v3718 = vadd.f32 %v752, %v3717
      %3719 = vmatmul.bf16.gmra.mxu0 %v2581
      %v3720 = vpop.f32.mrf.mxu0
      %v3721 = vadd.f32 %v752, %v3720
      %v3722 = vpop.f32.mrf.mxu0
      %v3723 = vadd.f32 %v752, %v3722
      %3724 = vmatmul.bf16.gmra.mxu0 %v2584
      %v3725 = vpop.f32.mrf.mxu0
      %v3726 = vadd.f32 %v752, %v3725
      %v3727 = vpop.f32.mrf.mxu0
      %v3728 = vadd.f32 %v752, %v3727
      %3729 = vmatmul.bf16.gmra.mxu0 %v2587
      %v3730 = vpop.f32.mrf.mxu0
      %v3731 = vadd.f32 %v752, %v3730
      %v3732 = vpop.f32.mrf.mxu0
      %v3733 = vadd.f32 %v752, %v3732
      %3734 = vmatmul.bf16.gmra.mxu0 %v2590
      %v3735 = vpop.f32.mrf.mxu0
      %v3736 = vadd.f32 %v752, %v3735
      %v3737 = vpop.f32.mrf.mxu0
      %v3738 = vadd.f32 %v752, %v3737
      %3739 = vmatmul.bf16.gmra.mxu0 %v2593
      %v3740 = vpop.f32.mrf.mxu0
      %v3741 = vadd.f32 %v752, %v3740
      %v3742 = vpop.f32.mrf.mxu0
      %v3743 = vadd.f32 %v752, %v3742
      %3744 = vmatmul.bf16.gmra.mxu0 %v2596
      %v3745 = vpop.f32.mrf.mxu0
      %v3746 = vadd.f32 %v752, %v3745
      %v3747 = vpop.f32.mrf.mxu0
      %v3748 = vadd.f32 %v752, %v3747
      %3749 = vmatmul.bf16.gmra.mxu0 %v2599
      %v3750 = vpop.f32.mrf.mxu0
      %v3751 = vadd.f32 %v752, %v3750
      %v3752 = vpop.f32.mrf.mxu0
      %v3753 = vadd.f32 %v752, %v3752
      %3754 = vmatmul.bf16.gmra.mxu0 %v2602
      %v3755 = vpop.f32.mrf.mxu0
      %v3756 = vadd.f32 %v752, %v3755
      %v3757 = vpop.f32.mrf.mxu0
      %v3758 = vadd.f32 %v752, %v3757
      %3759 = vmatmul.bf16.gmra.mxu0 %v2605
      %v3760 = vpop.f32.mrf.mxu0
      %v3761 = vadd.f32 %v752, %v3760
      %v3762 = vpop.f32.mrf.mxu0
      %v3763 = vadd.f32 %v752, %v3762
      %3764 = vmatmul.bf16.gmra.mxu0 %v2608
      %v3765 = vpop.f32.mrf.mxu0
      %v3766 = vadd.f32 %v752, %v3765
      %v3767 = vpop.f32.mrf.mxu0
      %v3768 = vadd.f32 %v752, %v3767
      %3769 = vmatmul.bf16.gmra.mxu0 %v2611
      %v3770 = vpop.f32.mrf.mxu0
      %v3771 = vadd.f32 %v752, %v3770
      %v3772 = vpop.f32.mrf.mxu0
      %v3773 = vadd.f32 %v752, %v3772
      %3774 = vmatmul.bf16.gmra.mxu0 %v2614
      %v3775 = vpop.f32.mrf.mxu0
      %v3776 = vadd.f32 %v752, %v3775
      %v3777 = vpop.f32.mrf.mxu0
      %v3778 = vadd.f32 %v752, %v3777
      %3779 = vmatmul.bf16.gmra.mxu0 %v2617
      %v3780 = vpop.f32.mrf.mxu0
      %v3781 = vadd.f32 %v752, %v3780
      %v3782 = vpop.f32.mrf.mxu0
      %v3783 = vadd.f32 %v752, %v3782
      %3784 = vmatmul.bf16.gmra.mxu0 %v2620
      %v3785 = vpop.f32.mrf.mxu0
      %v3786 = vadd.f32 %v752, %v3785
      %v3787 = vpop.f32.mrf.mxu0
      %v3788 = vadd.f32 %v752, %v3787
      %3789 = vmatmul.bf16.gmra.mxu0 %v2623
      %v3790 = vpop.f32.mrf.mxu0
      %v3791 = vadd.f32 %v752, %v3790
      %v3792 = vpop.f32.mrf.mxu0
      %v3793 = vadd.f32 %v752, %v3792
      %3794 = vmatmul.bf16.gmra.mxu0 %v2626
      %v3795 = vpop.f32.mrf.mxu0
      %v3796 = vadd.f32 %v752, %v3795
      %v3797 = vpop.f32.mrf.mxu0
      %v3798 = vadd.f32 %v752, %v3797
      %3799 = vmatmul.bf16.gmra.mxu0 %v2629
      %v3800 = vpop.f32.mrf.mxu0
      %v3801 = vadd.f32 %v752, %v3800
      %v3802 = vpop.f32.mrf.mxu0
      %v3803 = vadd.f32 %v752, %v3802
      %3804 = vmatmul.bf16.gmra.mxu0 %v2632
      %v3805 = vpop.f32.mrf.mxu0
      %v3806 = vadd.f32 %v752, %v3805
      %v3807 = vpop.f32.mrf.mxu0
      %v3808 = vadd.f32 %v752, %v3807
      %3809 = vmatmul.bf16.gmra.mxu0 %v2635
      %v3810 = vpop.f32.mrf.mxu0
      %v3811 = vadd.f32 %v752, %v3810
      %v3812 = vpop.f32.mrf.mxu0
      %v3813 = vadd.f32 %v752, %v3812
      %3814 = vmatmul.bf16.gmra.mxu0 %v2638
      %v3815 = vpop.f32.mrf.mxu0
      %v3816 = vadd.f32 %v752, %v3815
      %v3817 = vpop.f32.mrf.mxu0
      %v3818 = vadd.f32 %v752, %v3817
      %3819 = vmatmul.bf16.gmra.mxu0 %v2641
      %v3820 = vpop.f32.mrf.mxu0
      %v3821 = vadd.f32 %v752, %v3820
      %v3822 = vpop.f32.mrf.mxu0
      %v3823 = vadd.f32 %v752, %v3822
      %3824 = vmatmul.bf16.gmra.mxu0 %v2644
      %v3825 = vpop.f32.mrf.mxu0
      %v3826 = vadd.f32 %v752, %v3825
      %v3827 = vpop.f32.mrf.mxu0
      %v3828 = vadd.f32 %v752, %v3827
      %3829 = vmatmul.bf16.gmra.mxu0 %v2647
      %v3830 = vpop.f32.mrf.mxu0
      %v3831 = vadd.f32 %v752, %v3830
      %v3832 = vpop.f32.mrf.mxu0
      %v3833 = vadd.f32 %v752, %v3832
      %3834 = vmatmul.bf16.gmra.mxu0 %v2650
      %v3835 = vpop.f32.mrf.mxu0
      %v3836 = vadd.f32 %v752, %v3835
      %v3837 = vpop.f32.mrf.mxu0
      %v3838 = vadd.f32 %v752, %v3837
      %3839 = vmatmul.bf16.gmra.mxu0 %v2653
      %v3840 = vpop.f32.mrf.mxu0
      %v3841 = vadd.f32 %v752, %v3840
      %v3842 = vpop.f32.mrf.mxu0
      %v3843 = vadd.f32 %v752, %v3842
      %3844 = vmatmul.bf16.gmra.mxu0 %v2656
      %v3845 = vpop.f32.mrf.mxu0
      %v3846 = vadd.f32 %v752, %v3845
      %v3847 = vpop.f32.mrf.mxu0
      %v3848 = vadd.f32 %v752, %v3847
      %3849 = vmatmul.bf16.gmra.mxu0 %v2659
      %v3850 = vpop.f32.mrf.mxu0
      %v3851 = vadd.f32 %v752, %v3850
      %v3852 = vpop.f32.mrf.mxu0
      %v3853 = vadd.f32 %v752, %v3852
      %3854 = vmatmul.bf16.gmra.mxu0 %v2662
      %v3855 = vpop.f32.mrf.mxu0
      %v3856 = vadd.f32 %v752, %v3855
      %v3857 = vpop.f32.mrf.mxu0
      %v3858 = vadd.f32 %v752, %v3857
      %3859 = vmatmul.bf16.gmra.mxu0 %v2665
      %v3860 = vpop.f32.mrf.mxu0
      %v3861 = vadd.f32 %v752, %v3860
      %v3862 = vpop.f32.mrf.mxu0
      %v3863 = vadd.f32 %v752, %v3862
      %3864 = vmatmul.bf16.gmra.mxu0 %v2668
      %v3865 = vpop.f32.mrf.mxu0
      %v3866 = vadd.f32 %v752, %v3865
      %v3867 = vpop.f32.mrf.mxu0
      %v3868 = vadd.f32 %v752, %v3867
      %3869 = vmatmul.bf16.gmra.mxu0 %v2671
      %v3870 = vpop.f32.mrf.mxu0
      %v3871 = vadd.f32 %v752, %v3870
      %v3872 = vpop.f32.mrf.mxu0
      %v3873 = vadd.f32 %v752, %v3872
      %3874 = vmatmul.bf16.gmra.mxu0 %v2674
      %v3875 = vpop.f32.mrf.mxu0
      %v3876 = vadd.f32 %v752, %v3875
      %v3877 = vpop.f32.mrf.mxu0
      %v3878 = vadd.f32 %v752, %v3877
      %3879 = vmatmul.bf16.gmra.mxu0 %v2677
      %v3880 = vpop.f32.mrf.mxu0
      %v3881 = vadd.f32 %v752, %v3880
      %v3882 = vpop.f32.mrf.mxu0
      %v3883 = vadd.f32 %v752, %v3882
      %3884 = vmatmul.bf16.gmra.mxu0 %v2680
      %v3885 = vpop.f32.mrf.mxu0
      %v3886 = vadd.f32 %v752, %v3885
      %v3887 = vpop.f32.mrf.mxu0
      %v3888 = vadd.f32 %v752, %v3887
      %3889 = vmatmul.bf16.gmra.mxu0 %v2683
      %v3890 = vpop.f32.mrf.mxu0
      %v3891 = vadd.f32 %v752, %v3890
      %v3892 = vpop.f32.mrf.mxu0
      %v3893 = vadd.f32 %v752, %v3892
      %3894 = vmatmul.bf16.gmra.mxu0 %v2686
      %v3895 = vpop.f32.mrf.mxu0
      %v3896 = vadd.f32 %v752, %v3895
      %v3897 = vpop.f32.mrf.mxu0
      %v3898 = vadd.f32 %v752, %v3897
      %3899 = vmatmul.bf16.gmra.mxu0 %v2689
      %v3900 = vpop.f32.mrf.mxu0
      %v3901 = vadd.f32 %v752, %v3900
      %v3902 = vpop.f32.mrf.mxu0
      %v3903 = vadd.f32 %v752, %v3902
      %3904 = vmatmul.bf16.gmra.mxu0 %v2692
      %v3905 = vpop.f32.mrf.mxu0
      %v3906 = vadd.f32 %v752, %v3905
      %v3907 = vpop.f32.mrf.mxu0
      %v3908 = vadd.f32 %v752, %v3907
      %3909 = vmatmul.bf16.gmra.mxu0 %v2695
      %v3910 = vpop.f32.mrf.mxu0
      %v3911 = vadd.f32 %v752, %v3910
      %v3912 = vpop.f32.mrf.mxu0
      %v3913 = vadd.f32 %v752, %v3912
      %3914 = vmatmul.bf16.gmra.mxu0 %v2698
      %v3915 = vpop.f32.mrf.mxu0
      %v3916 = vadd.f32 %v752, %v3915
      %v3917 = vpop.f32.mrf.mxu0
      %v3918 = vadd.f32 %v752, %v3917
      %3919 = vmatmul.bf16.gmra.mxu0 %v2701
      %v3920 = vpop.f32.mrf.mxu0
      %v3921 = vadd.f32 %v752, %v3920
      %v3922 = vpop.f32.mrf.mxu0
      %v3923 = vadd.f32 %v752, %v3922
      %3924 = vmatmul.bf16.gmra.mxu0 %v2704
      %v3925 = vpop.f32.mrf.mxu0
      %v3926 = vadd.f32 %v752, %v3925
      %v3927 = vpop.f32.mrf.mxu0
      %v3928 = vadd.f32 %v752, %v3927
      %3929 = vmatmul.bf16.gmra.mxu0 %v2707
      %v3930 = vpop.f32.mrf.mxu0
      %v3931 = vadd.f32 %v752, %v3930
      %v3932 = vpop.f32.mrf.mxu0
      %v3933 = vadd.f32 %v752, %v3932
      %3934 = vmatmul.bf16.gmra.mxu0 %v2710
      %v3935 = vpop.f32.mrf.mxu0
      %v3936 = vadd.f32 %v752, %v3935
      %v3937 = vpop.f32.mrf.mxu0
      %v3938 = vadd.f32 %v752, %v3937
      %3939 = vmatmul.bf16.gmra.mxu0 %v2713
      %v3940 = vpop.f32.mrf.mxu0
      %v3941 = vadd.f32 %v752, %v3940
      %v3942 = vpop.f32.mrf.mxu0
      %v3943 = vadd.f32 %v752, %v3942
      %3944 = vmatmul.bf16.gmra.mxu0 %v2716
      %v3945 = vpop.f32.mrf.mxu0
      %v3946 = vadd.f32 %v752, %v3945
      %v3947 = vpop.f32.mrf.mxu0
      %v3948 = vadd.f32 %v752, %v3947
      %3949 = vmatmul.bf16.gmra.mxu0 %v2719
      %v3950 = vpop.f32.mrf.mxu0
      %v3951 = vadd.f32 %v752, %v3950
      %v3952 = vpop.f32.mrf.mxu0
      %v3953 = vadd.f32 %v752, %v3952
      %3954 = vmatmul.bf16.gmra.mxu0 %v2722
      %v3955 = vpop.f32.mrf.mxu0
      %v3956 = vadd.f32 %v752, %v3955
      %v3957 = vpop.f32.mrf.mxu0
      %v3958 = vadd.f32 %v752, %v3957
      %3959 = vmatmul.bf16.gmra.mxu0 %v2725
      %v3960 = vpop.f32.mrf.mxu0
      %v3961 = vadd.f32 %v752, %v3960
      %v3962 = vpop.f32.mrf.mxu0
      %v3963 = vadd.f32 %v752, %v3962
      %3964 = vmatmul.bf16.gmra.mxu0 %v2728
      %v3965 = vpop.f32.mrf.mxu0
      %v3966 = vadd.f32 %v752, %v3965
      %v3967 = vpop.f32.mrf.mxu0
      %v3968 = vadd.f32 %v752, %v3967
      %3969 = vmatmul.bf16.gmra.mxu0 %v2731
      %v3970 = vpop.f32.mrf.mxu0
      %v3971 = vadd.f32 %v752, %v3970
      %v3972 = vpop.f32.mrf.mxu0
      %v3973 = vadd.f32 %v752, %v3972
      %3974 = vmatmul.bf16.gmra.mxu0 %v2734
      %v3975 = vpop.f32.mrf.mxu0
      %v3976 = vadd.f32 %v752, %v3975
      %v3977 = vpop.f32.mrf.mxu0
      %v3978 = vadd.f32 %v752, %v3977
      %3979 = vmatmul.bf16.gmra.mxu0 %v2737
      %v3980 = vpop.f32.mrf.mxu0
      %v3981 = vadd.f32 %v752, %v3980
      %v3982 = vpop.f32.mrf.mxu0
      %v3983 = vadd.f32 %v752, %v3982
      %3984 = vmatmul.bf16.gmra.mxu0 %v2740
      %v3985 = vpop.f32.mrf.mxu0
      %v3986 = vadd.f32 %v752, %v3985
      %v3987 = vpop.f32.mrf.mxu0
      %v3988 = vadd.f32 %v752, %v3987
      %3989 = vmatmul.bf16.gmra.mxu0 %v2743
      %v3990 = vpop.f32.mrf.mxu0
      %v3991 = vadd.f32 %v752, %v3990
      %v3992 = vpop.f32.mrf.mxu0
      %v3993 = vadd.f32 %v752, %v3992
      %3994 = vmatmul.bf16.gmra.mxu0 %v2746
      %v3995 = vpop.f32.mrf.mxu0
      %v3996 = vadd.f32 %v752, %v3995
      %v3997 = vpop.f32.mrf.mxu0
      %v3998 = vadd.f32 %v752, %v3997
      %3999 = vmatmul.bf16.gmra.mxu0 %v2749
      %v4000 = vpop.f32.mrf.mxu0
      %v4001 = vadd.f32 %v752, %v4000
      %v4002 = vpop.f32.mrf.mxu0
      %v4003 = vadd.f32 %v752, %v4002
      %4004 = vmatmul.bf16.gmra.mxu0 %v2752
      %v4005 = vpop.f32.mrf.mxu0
      %v4006 = vadd.f32 %v752, %v4005
      %v4007 = vpop.f32.mrf.mxu0
      %v4008 = vadd.f32 %v752, %v4007
      %4009 = vmatmul.bf16.gmra.mxu0 %v2755
      %v4010 = vpop.f32.mrf.mxu0
      %v4011 = vadd.f32 %v752, %v4010
      %v4012 = vpop.f32.mrf.mxu0
      %v4013 = vadd.f32 %v752, %v4012
      %4014 = vmatmul.bf16.gmra.mxu0 %v2758
      %v4015 = vpop.f32.mrf.mxu0
      %v4016 = vadd.f32 %v752, %v4015
      %v4017 = vpop.f32.mrf.mxu0
      %v4018 = vadd.f32 %v752, %v4017
      %4019 = vmatmul.bf16.gmra.mxu0 %v2761
      %v4020 = vpop.f32.mrf.mxu0
      %v4021 = vadd.f32 %v752, %v4020
      %v4022 = vpop.f32.mrf.mxu0
      %v4023 = vadd.f32 %v752, %v4022
      %4024 = vmatmul.bf16.gmra.mxu0 %v2764
      %v4025 = vpop.f32.mrf.mxu0
      %v4026 = vadd.f32 %v752, %v4025
      %v4027 = vpop.f32.mrf.mxu0
      %v4028 = vadd.f32 %v752, %v4027
      %4029 = vmatmul.bf16.gmra.mxu0 %v2767
      %v4030 = vpop.f32.mrf.mxu0
      %v4031 = vadd.f32 %v752, %v4030
      %v4032 = vpop.f32.mrf.mxu0
      %v4033 = vadd.f32 %v752, %v4032
      %4034 = vmatmul.bf16.gmra.mxu0 %v2770
      %v4035 = vpop.f32.mrf.mxu0
      %v4036 = vadd.f32 %v752, %v4035
      %v4037 = vpop.f32.mrf.mxu0
      %v4038 = vadd.f32 %v752, %v4037
      %4039 = vmatmul.bf16.gmra.mxu0 %v2773
      %v4040 = vpop.f32.mrf.mxu0
      %v4041 = vadd.f32 %v752, %v4040
      %v4042 = vpop.f32.mrf.mxu0
      %v4043 = vadd.f32 %v752, %v4042
      %4044 = vmatmul.bf16.gmra.mxu0 %v2776
      %v4045 = vpop.f32.mrf.mxu0
      %v4046 = vadd.f32 %v752, %v4045
      %v4047 = vpop.f32.mrf.mxu0
      %v4048 = vadd.f32 %v752, %v4047
      %4049 = vmatmul.bf16.gmra.mxu0 %v2779
      %v4050 = vpop.f32.mrf.mxu0
      %v4051 = vadd.f32 %v752, %v4050
      %v4052 = vpop.f32.mrf.mxu0
      %v4053 = vadd.f32 %v752, %v4052
      %4054 = vmatmul.bf16.gmra.mxu0 %v2782
      %v4055 = vpop.f32.mrf.mxu0
      %v4056 = vadd.f32 %v752, %v4055
      %v4057 = vpop.f32.mrf.mxu0
      %v4058 = vadd.f32 %v752, %v4057
      %4059 = vmatmul.bf16.gmra.mxu0 %v2785
      %v4060 = vpop.f32.mrf.mxu0
      %v4061 = vadd.f32 %v752, %v4060
      %v4062 = vpop.f32.mrf.mxu0
      %v4063 = vadd.f32 %v752, %v4062
      %4064 = vmatmul.bf16.gmra.mxu0 %v2788
      %v4065 = vpop.f32.mrf.mxu0
      %v4066 = vadd.f32 %v752, %v4065
      %v4067 = vpop.f32.mrf.mxu0
      %v4068 = vadd.f32 %v752, %v4067
      %4069 = vmatmul.bf16.gmra.mxu0 %v2791
      %v4070 = vpop.f32.mrf.mxu0
      %v4071 = vadd.f32 %v752, %v4070
      %v4072 = vpop.f32.mrf.mxu0
      %v4073 = vadd.f32 %v752, %v4072
      %4074 = vmatmul.bf16.gmra.mxu0 %v2794
      %v4075 = vpop.f32.mrf.mxu0
      %v4076 = vadd.f32 %v752, %v4075
      %v4077 = vpop.f32.mrf.mxu0
      %v4078 = vadd.f32 %v752, %v4077
      %4079 = vmatmul.bf16.gmra.mxu0 %v2797
      %v4080 = vpop.f32.mrf.mxu0
      %v4081 = vadd.f32 %v752, %v4080
      %v4082 = vpop.f32.mrf.mxu0
      %v4083 = vadd.f32 %v752, %v4082
      %4084 = vmatmul.bf16.gmra.mxu0 %v2800
      %v4085 = vpop.f32.mrf.mxu0
      %v4086 = vadd.f32 %v752, %v4085
      %v4087 = vpop.f32.mrf.mxu0
      %v4088 = vadd.f32 %v752, %v4087
      %4089 = vmatmul.bf16.gmra.mxu0 %v2803
      %v4090 = vpop.f32.mrf.mxu0
      %v4091 = vadd.f32 %v752, %v4090
      %v4092 = vpop.f32.mrf.mxu0
      %v4093 = vadd.f32 %v752, %v4092
      %4094 = vmatmul.bf16.gmra.mxu0 %v2806
      %v4095 = vpop.f32.mrf.mxu0
      %v4096 = vadd.f32 %v752, %v4095
      %v4097 = vpop.f32.mrf.mxu0
      %v4098 = vadd.f32 %v752, %v4097
      %4099 = vmatmul.bf16.gmra.mxu0 %v2809
      %v4100 = vpop.f32.mrf.mxu0
      %v4101 = vadd.f32 %v752, %v4100
      %v4102 = vpop.f32.mrf.mxu0
      %v4103 = vadd.f32 %v752, %v4102
      %4104 = vmatmul.bf16.gmra.mxu0 %v2812
      %v4105 = vpop.f32.mrf.mxu0
      %v4106 = vadd.f32 %v752, %v4105
      %v4107 = vpop.f32.mrf.mxu0
      %v4108 = vadd.f32 %v752, %v4107
      %4109 = vdwg.mxu0
      %v4110 = vmax.f32 %v2831, 0.0
      %v4111 = vmax.f32 %v2833, 0.0
      %v4112 = vmax.f32 %v2836, 0.0
      %v4113 = vmax.f32 %v2838, 0.0
      %v4114 = vmax.f32 %v2841, 0.0
      %v4115 = vmax.f32 %v2843, 0.0
      %v4116 = vmax.f32 %v2846, 0.0
      %v4117 = vmax.f32 %v2848, 0.0
      %v4118 = vmax.f32 %v2851, 0.0
      %v4119 = vmax.f32 %v2853, 0.0
      %v4120 = vmax.f32 %v2856, 0.0
      %v4121 = vmax.f32 %v2858, 0.0
      %v4122 = vmax.f32 %v2861, 0.0
      %v4123 = vmax.f32 %v2863, 0.0
      %v4124 = vmax.f32 %v2866, 0.0
      %v4125 = vmax.f32 %v2868, 0.0
      %v4126 = vmax.f32 %v2871, 0.0
      %v4127 = vmax.f32 %v2873, 0.0
      %v4128 = vmax.f32 %v2876, 0.0
      %v4129 = vmax.f32 %v2878, 0.0
      %v4130 = vmax.f32 %v2881, 0.0
      %v4131 = vmax.f32 %v2883, 0.0
      %v4132 = vmax.f32 %v2886, 0.0
      %v4133 = vmax.f32 %v2888, 0.0
      %v4134 = vmax.f32 %v2891, 0.0
      %v4135 = vmax.f32 %v2893, 0.0
      %v4136 = vmax.f32 %v2896, 0.0
      %v4137 = vmax.f32 %v2898, 0.0
      %v4138 = vmax.f32 %v2901, 0.0
      %v4139 = vmax.f32 %v2903, 0.0
      %v4140 = vmax.f32 %v2906, 0.0
      %v4141 = vmax.f32 %v2908, 0.0
      %v4142 = vmax.f32 %v2911, 0.0
      %v4143 = vmax.f32 %v2913, 0.0
      %v4144 = vmax.f32 %v2916, 0.0
      %v4145 = vmax.f32 %v2918, 0.0
      %v4146 = vmax.f32 %v2921, 0.0
      %v4147 = vmax.f32 %v2923, 0.0
      %v4148 = vmax.f32 %v2926, 0.0
      %v4149 = vmax.f32 %v2928, 0.0
      %v4150 = vmax.f32 %v2931, 0.0
      %v4151 = vmax.f32 %v2933, 0.0
      %v4152 = vmax.f32 %v2936, 0.0
      %v4153 = vmax.f32 %v2938, 0.0
      %v4154 = vmax.f32 %v2941, 0.0
      %v4155 = vmax.f32 %v2943, 0.0
      %v4156 = vmax.f32 %v2946, 0.0
      %v4157 = vmax.f32 %v2948, 0.0
      %v4158 = vmax.f32 %v2951, 0.0
      %v4159 = vmax.f32 %v2953, 0.0
      %v4160 = vmax.f32 %v2956, 0.0
      %v4161 = vmax.f32 %v2958, 0.0
      %v4162 = vmax.f32 %v2961, 0.0
      %v4163 = vmax.f32 %v2963, 0.0
      %v4164 = vmax.f32 %v2966, 0.0
      %v4165 = vmax.f32 %v2968, 0.0
      %v4166 = vmax.f32 %v2971, 0.0
      %v4167 = vmax.f32 %v2973, 0.0
      %v4168 = vmax.f32 %v2976, 0.0
      %v4169 = vmax.f32 %v2978, 0.0
      %v4170 = vmax.f32 %v2981, 0.0
      %v4171 = vmax.f32 %v2983, 0.0
      %v4172 = vmax.f32 %v2986, 0.0
      %v4173 = vmax.f32 %v2988, 0.0
      %v4174 = vmax.f32 %v2991, 0.0
      %v4175 = vmax.f32 %v2993, 0.0
      %v4176 = vmax.f32 %v2996, 0.0
      %v4177 = vmax.f32 %v2998, 0.0
      %v4178 = vmax.f32 %v3001, 0.0
      %v4179 = vmax.f32 %v3003, 0.0
      %v4180 = vmax.f32 %v3006, 0.0
      %v4181 = vmax.f32 %v3008, 0.0
      %v4182 = vmax.f32 %v3011, 0.0
      %v4183 = vmax.f32 %v3013, 0.0
      %v4184 = vmax.f32 %v3016, 0.0
      %v4185 = vmax.f32 %v3018, 0.0
      %v4186 = vmax.f32 %v3021, 0.0
      %v4187 = vmax.f32 %v3023, 0.0
      %v4188 = vmax.f32 %v3026, 0.0
      %v4189 = vmax.f32 %v3028, 0.0
      %v4190 = vmax.f32 %v3031, 0.0
      %v4191 = vmax.f32 %v3033, 0.0
      %v4192 = vmax.f32 %v3036, 0.0
      %v4193 = vmax.f32 %v3038, 0.0
      %v4194 = vmax.f32 %v3041, 0.0
      %v4195 = vmax.f32 %v3043, 0.0
      %v4196 = vmax.f32 %v3046, 0.0
      %v4197 = vmax.f32 %v3048, 0.0
      %v4198 = vmax.f32 %v3051, 0.0
      %v4199 = vmax.f32 %v3053, 0.0
      %v4200 = vmax.f32 %v3056, 0.0
      %v4201 = vmax.f32 %v3058, 0.0
      %v4202 = vmax.f32 %v3061, 0.0
      %v4203 = vmax.f32 %v3063, 0.0
      %v4204 = vmax.f32 %v3066, 0.0
      %v4205 = vmax.f32 %v3068, 0.0
      %v4206 = vmax.f32 %v3071, 0.0
      %v4207 = vmax.f32 %v3073, 0.0
      %v4208 = vmax.f32 %v3076, 0.0
      %v4209 = vmax.f32 %v3078, 0.0
      %v4210 = vmax.f32 %v3081, 0.0
      %v4211 = vmax.f32 %v3083, 0.0
      %v4212 = vmax.f32 %v3086, 0.0
      %v4213 = vmax.f32 %v3088, 0.0
      %v4214 = vmax.f32 %v3091, 0.0
      %v4215 = vmax.f32 %v3093, 0.0
      %v4216 = vmax.f32 %v3096, 0.0
      %v4217 = vmax.f32 %v3098, 0.0
      %v4218 = vmax.f32 %v3101, 0.0
      %v4219 = vmax.f32 %v3103, 0.0
      %v4220 = vmax.f32 %v3106, 0.0
      %v4221 = vmax.f32 %v3108, 0.0
      %v4222 = vmax.f32 %v3111, 0.0
      %v4223 = vmax.f32 %v3113, 0.0
      %v4224 = vmax.f32 %v3116, 0.0
      %v4225 = vmax.f32 %v3118, 0.0
      %v4226 = vmax.f32 %v3121, 0.0
      %v4227 = vmax.f32 %v3123, 0.0
      %v4228 = vmax.f32 %v3126, 0.0
      %v4229 = vmax.f32 %v3128, 0.0
      %v4230 = vmax.f32 %v3131, 0.0
      %v4231 = vmax.f32 %v3133, 0.0
      %v4232 = vmax.f32 %v3136, 0.0
      %v4233 = vmax.f32 %v3138, 0.0
      %v4234 = vmax.f32 %v3141, 0.0
      %v4235 = vmax.f32 %v3143, 0.0
      %v4236 = vmax.f32 %v3146, 0.0
      %v4237 = vmax.f32 %v3148, 0.0
      %v4238 = vmax.f32 %v3151, 0.0
      %v4239 = vmax.f32 %v3153, 0.0
      %v4240 = vmax.f32 %v3156, 0.0
      %v4241 = vmax.f32 %v3158, 0.0
      %v4242 = vmax.f32 %v3161, 0.0
      %v4243 = vmax.f32 %v3163, 0.0
      %v4244 = vmax.f32 %v3166, 0.0
      %v4245 = vmax.f32 %v3168, 0.0
      %v4246 = vmax.f32 %v3171, 0.0
      %v4247 = vmax.f32 %v3173, 0.0
      %v4248 = vmax.f32 %v3176, 0.0
      %v4249 = vmax.f32 %v3178, 0.0
      %v4250 = vmax.f32 %v3181, 0.0
      %v4251 = vmax.f32 %v3183, 0.0
      %v4252 = vmax.f32 %v3186, 0.0
      %v4253 = vmax.f32 %v3188, 0.0
      %v4254 = vmax.f32 %v3191, 0.0
      %v4255 = vmax.f32 %v3193, 0.0
      %v4256 = vmax.f32 %v3196, 0.0
      %v4257 = vmax.f32 %v3198, 0.0
      %v4258 = vmax.f32 %v3201, 0.0
      %v4259 = vmax.f32 %v3203, 0.0
      %v4260 = vmax.f32 %v3206, 0.0
      %v4261 = vmax.f32 %v3208, 0.0
      %v4262 = vmax.f32 %v3211, 0.0
      %v4263 = vmax.f32 %v3213, 0.0
      %v4264 = vmax.f32 %v3216, 0.0
      %v4265 = vmax.f32 %v3218, 0.0
      %v4266 = vmax.f32 %v3221, 0.0
      %v4267 = vmax.f32 %v3223, 0.0
      %v4268 = vmax.f32 %v3226, 0.0
      %v4269 = vmax.f32 %v3228, 0.0
      %v4270 = vmax.f32 %v3231, 0.0
      %v4271 = vmax.f32 %v3233, 0.0
      %v4272 = vmax.f32 %v3236, 0.0
      %v4273 = vmax.f32 %v3238, 0.0
      %v4274 = vmax.f32 %v3241, 0.0
      %v4275 = vmax.f32 %v3243, 0.0
      %v4276 = vmax.f32 %v3246, 0.0
      %v4277 = vmax.f32 %v3248, 0.0
      %v4278 = vmax.f32 %v3251, 0.0
      %v4279 = vmax.f32 %v3253, 0.0
      %v4280 = vmax.f32 %v3256, 0.0
      %v4281 = vmax.f32 %v3258, 0.0
      %v4282 = vmax.f32 %v3261, 0.0
      %v4283 = vmax.f32 %v3263, 0.0
      %v4284 = vmax.f32 %v3266, 0.0
      %v4285 = vmax.f32 %v3268, 0.0
      %v4286 = vmax.f32 %v3271, 0.0
      %v4287 = vmax.f32 %v3273, 0.0
      %v4288 = vmax.f32 %v3276, 0.0
      %v4289 = vmax.f32 %v3278, 0.0
      %v4290 = vmax.f32 %v3281, 0.0
      %v4291 = vmax.f32 %v3283, 0.0
      %v4292 = vmax.f32 %v3286, 0.0
      %v4293 = vmax.f32 %v3288, 0.0
      %v4294 = vmax.f32 %v3291, 0.0
      %v4295 = vmax.f32 %v3293, 0.0
      %v4296 = vmax.f32 %v3296, 0.0
      %v4297 = vmax.f32 %v3298, 0.0
      %v4298 = vmax.f32 %v3301, 0.0
      %v4299 = vmax.f32 %v3303, 0.0
      %v4300 = vmax.f32 %v3306, 0.0
      %v4301 = vmax.f32 %v3308, 0.0
      %v4302 = vmax.f32 %v3311, 0.0
      %v4303 = vmax.f32 %v3313, 0.0
      %v4304 = vmax.f32 %v3316, 0.0
      %v4305 = vmax.f32 %v3318, 0.0
      %v4306 = vmax.f32 %v3321, 0.0
      %v4307 = vmax.f32 %v3323, 0.0
      %v4308 = vmax.f32 %v3326, 0.0
      %v4309 = vmax.f32 %v3328, 0.0
      %v4310 = vmax.f32 %v3331, 0.0
      %v4311 = vmax.f32 %v3333, 0.0
      %v4312 = vmax.f32 %v3336, 0.0
      %v4313 = vmax.f32 %v3338, 0.0
      %v4314 = vmax.f32 %v3341, 0.0
      %v4315 = vmax.f32 %v3343, 0.0
      %v4316 = vmax.f32 %v3346, 0.0
      %v4317 = vmax.f32 %v3348, 0.0
      %v4318 = vmax.f32 %v3351, 0.0
      %v4319 = vmax.f32 %v3353, 0.0
      %v4320 = vmax.f32 %v3356, 0.0
      %v4321 = vmax.f32 %v3358, 0.0
      %v4322 = vmax.f32 %v3361, 0.0
      %v4323 = vmax.f32 %v3363, 0.0
      %v4324 = vmax.f32 %v3366, 0.0
      %v4325 = vmax.f32 %v3368, 0.0
      %v4326 = vmax.f32 %v3371, 0.0
      %v4327 = vmax.f32 %v3373, 0.0
      %v4328 = vmax.f32 %v3376, 0.0
      %v4329 = vmax.f32 %v3378, 0.0
      %v4330 = vmax.f32 %v3381, 0.0
      %v4331 = vmax.f32 %v3383, 0.0
      %v4332 = vmax.f32 %v3386, 0.0
      %v4333 = vmax.f32 %v3388, 0.0
      %v4334 = vmax.f32 %v3391, 0.0
      %v4335 = vmax.f32 %v3393, 0.0
      %v4336 = vmax.f32 %v3396, 0.0
      %v4337 = vmax.f32 %v3398, 0.0
      %v4338 = vmax.f32 %v3401, 0.0
      %v4339 = vmax.f32 %v3403, 0.0
      %v4340 = vmax.f32 %v3406, 0.0
      %v4341 = vmax.f32 %v3408, 0.0
      %v4342 = vmax.f32 %v3411, 0.0
      %v4343 = vmax.f32 %v3413, 0.0
      %v4344 = vmax.f32 %v3416, 0.0
      %v4345 = vmax.f32 %v3418, 0.0
      %v4346 = vmax.f32 %v3421, 0.0
      %v4347 = vmax.f32 %v3423, 0.0
      %v4348 = vmax.f32 %v3426, 0.0
      %v4349 = vmax.f32 %v3428, 0.0
      %v4350 = vmax.f32 %v3431, 0.0
      %v4351 = vmax.f32 %v3433, 0.0
      %v4352 = vmax.f32 %v3436, 0.0
      %v4353 = vmax.f32 %v3438, 0.0
      %v4354 = vmax.f32 %v3441, 0.0
      %v4355 = vmax.f32 %v3443, 0.0
      %v4356 = vmax.f32 %v3446, 0.0
      %v4357 = vmax.f32 %v3448, 0.0
      %v4358 = vmax.f32 %v3451, 0.0
      %v4359 = vmax.f32 %v3453, 0.0
      %v4360 = vmax.f32 %v3456, 0.0
      %v4361 = vmax.f32 %v3458, 0.0
      %v4362 = vmax.f32 %v3461, 0.0
      %v4363 = vmax.f32 %v3463, 0.0
      %v4364 = vmax.f32 %v3466, 0.0
      %v4365 = vmax.f32 %v3468, 0.0
      %v4366 = vmax.f32 %v3471, 0.0
      %v4367 = vmax.f32 %v3473, 0.0
      %v4368 = vmax.f32 %v3476, 0.0
      %v4369 = vmax.f32 %v3478, 0.0
      %v4370 = vmax.f32 %v3481, 0.0
      %v4371 = vmax.f32 %v3483, 0.0
      %v4372 = vmax.f32 %v3486, 0.0
      %v4373 = vmax.f32 %v3488, 0.0
      %v4374 = vmax.f32 %v3491, 0.0
      %v4375 = vmax.f32 %v3493, 0.0
      %v4376 = vmax.f32 %v3496, 0.0
      %v4377 = vmax.f32 %v3498, 0.0
      %v4378 = vmax.f32 %v3501, 0.0
      %v4379 = vmax.f32 %v3503, 0.0
      %v4380 = vmax.f32 %v3506, 0.0
      %v4381 = vmax.f32 %v3508, 0.0
      %v4382 = vmax.f32 %v3511, 0.0
      %v4383 = vmax.f32 %v3513, 0.0
      %v4384 = vmax.f32 %v3516, 0.0
      %v4385 = vmax.f32 %v3518, 0.0
      %v4386 = vmax.f32 %v3521, 0.0
      %v4387 = vmax.f32 %v3523, 0.0
      %v4388 = vmax.f32 %v3526, 0.0
      %v4389 = vmax.f32 %v3528, 0.0
      %v4390 = vmax.f32 %v3531, 0.0
      %v4391 = vmax.f32 %v3533, 0.0
      %v4392 = vmax.f32 %v3536, 0.0
      %v4393 = vmax.f32 %v3538, 0.0
      %v4394 = vmax.f32 %v3541, 0.0
      %v4395 = vmax.f32 %v3543, 0.0
      %v4396 = vmax.f32 %v3546, 0.0
      %v4397 = vmax.f32 %v3548, 0.0
      %v4398 = vmax.f32 %v3551, 0.0
      %v4399 = vmax.f32 %v3553, 0.0
      %v4400 = vmax.f32 %v3556, 0.0
      %v4401 = vmax.f32 %v3558, 0.0
      %v4402 = vmax.f32 %v3561, 0.0
      %v4403 = vmax.f32 %v3563, 0.0
      %v4404 = vmax.f32 %v3566, 0.0
      %v4405 = vmax.f32 %v3568, 0.0
      %v4406 = vmax.f32 %v3571, 0.0
      %v4407 = vmax.f32 %v3573, 0.0
      %v4408 = vmax.f32 %v3576, 0.0
      %v4409 = vmax.f32 %v3578, 0.0
      %v4410 = vmax.f32 %v3581, 0.0
      %v4411 = vmax.f32 %v3583, 0.0
      %v4412 = vmax.f32 %v3586, 0.0
      %v4413 = vmax.f32 %v3588, 0.0
      %v4414 = vmax.f32 %v3591, 0.0
      %v4415 = vmax.f32 %v3593, 0.0
      %v4416 = vmax.f32 %v3596, 0.0
      %v4417 = vmax.f32 %v3598, 0.0
      %v4418 = vmax.f32 %v3601, 0.0
      %v4419 = vmax.f32 %v3603, 0.0
      %v4420 = vmax.f32 %v3606, 0.0
      %v4421 = vmax.f32 %v3608, 0.0
      %v4422 = vmax.f32 %v3611, 0.0
      %v4423 = vmax.f32 %v3613, 0.0
      %v4424 = vmax.f32 %v3616, 0.0
      %v4425 = vmax.f32 %v3618, 0.0
      %v4426 = vmax.f32 %v3621, 0.0
      %v4427 = vmax.f32 %v3623, 0.0
      %v4428 = vmax.f32 %v3626, 0.0
      %v4429 = vmax.f32 %v3628, 0.0
      %v4430 = vmax.f32 %v3631, 0.0
      %v4431 = vmax.f32 %v3633, 0.0
      %v4432 = vmax.f32 %v3636, 0.0
      %v4433 = vmax.f32 %v3638, 0.0
      %v4434 = vmax.f32 %v3641, 0.0
      %v4435 = vmax.f32 %v3643, 0.0
      %v4436 = vmax.f32 %v3646, 0.0
      %v4437 = vmax.f32 %v3648, 0.0
      %v4438 = vmax.f32 %v3651, 0.0
      %v4439 = vmax.f32 %v3653, 0.0
      %v4440 = vmax.f32 %v3656, 0.0
      %v4441 = vmax.f32 %v3658, 0.0
      %v4442 = vmax.f32 %v3661, 0.0
      %v4443 = vmax.f32 %v3663, 0.0
      %v4444 = vmax.f32 %v3666, 0.0
      %v4445 = vmax.f32 %v3668, 0.0
      %v4446 = vmax.f32 %v3671, 0.0
      %v4447 = vmax.f32 %v3673, 0.0
      %v4448 = vmax.f32 %v3676, 0.0
      %v4449 = vmax.f32 %v3678, 0.0
      %v4450 = vmax.f32 %v3681, 0.0
      %v4451 = vmax.f32 %v3683, 0.0
      %v4452 = vmax.f32 %v3686, 0.0
      %v4453 = vmax.f32 %v3688, 0.0
      %v4454 = vmax.f32 %v3691, 0.0
      %v4455 = vmax.f32 %v3693, 0.0
      %v4456 = vmax.f32 %v3696, 0.0
      %v4457 = vmax.f32 %v3698, 0.0
      %v4458 = vmax.f32 %v3701, 0.0
      %v4459 = vmax.f32 %v3703, 0.0
      %v4460 = vmax.f32 %v3706, 0.0
      %v4461 = vmax.f32 %v3708, 0.0
      %v4462 = vmax.f32 %v3711, 0.0
      %v4463 = vmax.f32 %v3713, 0.0
      %v4464 = vmax.f32 %v3716, 0.0
      %v4465 = vmax.f32 %v3718, 0.0
      %v4466 = vmax.f32 %v3721, 0.0
      %v4467 = vmax.f32 %v3723, 0.0
      %v4468 = vmax.f32 %v3726, 0.0
      %v4469 = vmax.f32 %v3728, 0.0
      %v4470 = vmax.f32 %v3731, 0.0
      %v4471 = vmax.f32 %v3733, 0.0
      %v4472 = vmax.f32 %v3736, 0.0
      %v4473 = vmax.f32 %v3738, 0.0
      %v4474 = vmax.f32 %v3741, 0.0
      %v4475 = vmax.f32 %v3743, 0.0
      %v4476 = vmax.f32 %v3746, 0.0
      %v4477 = vmax.f32 %v3748, 0.0
      %v4478 = vmax.f32 %v3751, 0.0
      %v4479 = vmax.f32 %v3753, 0.0
      %v4480 = vmax.f32 %v3756, 0.0
      %v4481 = vmax.f32 %v3758, 0.0
      %v4482 = vmax.f32 %v3761, 0.0
      %v4483 = vmax.f32 %v3763, 0.0
      %v4484 = vmax.f32 %v3766, 0.0
      %v4485 = vmax.f32 %v3768, 0.0
      %v4486 = vmax.f32 %v3771, 0.0
      %v4487 = vmax.f32 %v3773, 0.0
      %v4488 = vmax.f32 %v3776, 0.0
      %v4489 = vmax.f32 %v3778, 0.0
      %v4490 = vmax.f32 %v3781, 0.0
      %v4491 = vmax.f32 %v3783, 0.0
      %v4492 = vmax.f32 %v3786, 0.0
      %v4493 = vmax.f32 %v3788, 0.0
      %v4494 = vmax.f32 %v3791, 0.0
      %v4495 = vmax.f32 %v3793, 0.0
      %v4496 = vmax.f32 %v3796, 0.0
      %v4497 = vmax.f32 %v3798, 0.0
      %v4498 = vmax.f32 %v3801, 0.0
      %v4499 = vmax.f32 %v3803, 0.0
      %v4500 = vmax.f32 %v3806, 0.0
      %v4501 = vmax.f32 %v3808, 0.0
      %v4502 = vmax.f32 %v3811, 0.0
      %v4503 = vmax.f32 %v3813, 0.0
      %v4504 = vmax.f32 %v3816, 0.0
      %v4505 = vmax.f32 %v3818, 0.0
      %v4506 = vmax.f32 %v3821, 0.0
      %v4507 = vmax.f32 %v3823, 0.0
      %v4508 = vmax.f32 %v3826, 0.0
      %v4509 = vmax.f32 %v3828, 0.0
      %v4510 = vmax.f32 %v3831, 0.0
      %v4511 = vmax.f32 %v3833, 0.0
      %v4512 = vmax.f32 %v3836, 0.0
      %v4513 = vmax.f32 %v3838, 0.0
      %v4514 = vmax.f32 %v3841, 0.0
      %v4515 = vmax.f32 %v3843, 0.0
      %v4516 = vmax.f32 %v3846, 0.0
      %v4517 = vmax.f32 %v3848, 0.0
      %v4518 = vmax.f32 %v3851, 0.0
      %v4519 = vmax.f32 %v3853, 0.0
      %v4520 = vmax.f32 %v3856, 0.0
      %v4521 = vmax.f32 %v3858, 0.0
      %v4522 = vmax.f32 %v3861, 0.0
      %v4523 = vmax.f32 %v3863, 0.0
      %v4524 = vmax.f32 %v3866, 0.0
      %v4525 = vmax.f32 %v3868, 0.0
      %v4526 = vmax.f32 %v3871, 0.0
      %v4527 = vmax.f32 %v3873, 0.0
      %v4528 = vmax.f32 %v3876, 0.0
      %v4529 = vmax.f32 %v3878, 0.0
      %v4530 = vmax.f32 %v3881, 0.0
      %v4531 = vmax.f32 %v3883, 0.0
      %v4532 = vmax.f32 %v3886, 0.0
      %v4533 = vmax.f32 %v3888, 0.0
      %v4534 = vmax.f32 %v3891, 0.0
      %v4535 = vmax.f32 %v3893, 0.0
      %v4536 = vmax.f32 %v3896, 0.0
      %v4537 = vmax.f32 %v3898, 0.0
      %v4538 = vmax.f32 %v3901, 0.0
      %v4539 = vmax.f32 %v3903, 0.0
      %v4540 = vmax.f32 %v3906, 0.0
      %v4541 = vmax.f32 %v3908, 0.0
      %v4542 = vmax.f32 %v3911, 0.0
      %v4543 = vmax.f32 %v3913, 0.0
      %v4544 = vmax.f32 %v3916, 0.0
      %v4545 = vmax.f32 %v3918, 0.0
      %v4546 = vmax.f32 %v3921, 0.0
      %v4547 = vmax.f32 %v3923, 0.0
      %v4548 = vmax.f32 %v3926, 0.0
      %v4549 = vmax.f32 %v3928, 0.0
      %v4550 = vmax.f32 %v3931, 0.0
      %v4551 = vmax.f32 %v3933, 0.0
      %v4552 = vmax.f32 %v3936, 0.0
      %v4553 = vmax.f32 %v3938, 0.0
      %v4554 = vmax.f32 %v3941, 0.0
      %v4555 = vmax.f32 %v3943, 0.0
      %v4556 = vmax.f32 %v3946, 0.0
      %v4557 = vmax.f32 %v3948, 0.0
      %v4558 = vmax.f32 %v3951, 0.0
      %v4559 = vmax.f32 %v3953, 0.0
      %v4560 = vmax.f32 %v3956, 0.0
      %v4561 = vmax.f32 %v3958, 0.0
      %v4562 = vmax.f32 %v3961, 0.0
      %v4563 = vmax.f32 %v3963, 0.0
      %v4564 = vmax.f32 %v3966, 0.0
      %v4565 = vmax.f32 %v3968, 0.0
      %v4566 = vmax.f32 %v3971, 0.0
      %v4567 = vmax.f32 %v3973, 0.0
      %v4568 = vmax.f32 %v3976, 0.0
      %v4569 = vmax.f32 %v3978, 0.0
      %v4570 = vmax.f32 %v3981, 0.0
      %v4571 = vmax.f32 %v3983, 0.0
      %v4572 = vmax.f32 %v3986, 0.0
      %v4573 = vmax.f32 %v3988, 0.0
      %v4574 = vmax.f32 %v3991, 0.0
      %v4575 = vmax.f32 %v3993, 0.0
      %v4576 = vmax.f32 %v3996, 0.0
      %v4577 = vmax.f32 %v3998, 0.0
      %v4578 = vmax.f32 %v4001, 0.0
      %v4579 = vmax.f32 %v4003, 0.0
      %v4580 = vmax.f32 %v4006, 0.0
      %v4581 = vmax.f32 %v4008, 0.0
      %v4582 = vmax.f32 %v4011, 0.0
      %v4583 = vmax.f32 %v4013, 0.0
      %v4584 = vmax.f32 %v4016, 0.0
      %v4585 = vmax.f32 %v4018, 0.0
      %v4586 = vmax.f32 %v4021, 0.0
      %v4587 = vmax.f32 %v4023, 0.0
      %v4588 = vmax.f32 %v4026, 0.0
      %v4589 = vmax.f32 %v4028, 0.0
      %v4590 = vmax.f32 %v4031, 0.0
      %v4591 = vmax.f32 %v4033, 0.0
      %v4592 = vmax.f32 %v4036, 0.0
      %v4593 = vmax.f32 %v4038, 0.0
      %v4594 = vmax.f32 %v4041, 0.0
      %v4595 = vmax.f32 %v4043, 0.0
      %v4596 = vmax.f32 %v4046, 0.0
      %v4597 = vmax.f32 %v4048, 0.0
      %v4598 = vmax.f32 %v4051, 0.0
      %v4599 = vmax.f32 %v4053, 0.0
      %v4600 = vmax.f32 %v4056, 0.0
      %v4601 = vmax.f32 %v4058, 0.0
      %v4602 = vmax.f32 %v4061, 0.0
      %v4603 = vmax.f32 %v4063, 0.0
      %v4604 = vmax.f32 %v4066, 0.0
      %v4605 = vmax.f32 %v4068, 0.0
      %v4606 = vmax.f32 %v4071, 0.0
      %v4607 = vmax.f32 %v4073, 0.0
      %v4608 = vmax.f32 %v4076, 0.0
      %v4609 = vmax.f32 %v4078, 0.0
      %v4610 = vmax.f32 %v4081, 0.0
      %v4611 = vmax.f32 %v4083, 0.0
      %v4612 = vmax.f32 %v4086, 0.0
      %v4613 = vmax.f32 %v4088, 0.0
      %v4614 = vmax.f32 %v4091, 0.0
      %v4615 = vmax.f32 %v4093, 0.0
      %v4616 = vmax.f32 %v4096, 0.0
      %v4617 = vmax.f32 %v4098, 0.0
      %v4618 = vmax.f32 %v4101, 0.0
      %v4619 = vmax.f32 %v4103, 0.0
      %v4620 = vmax.f32 %v4106, 0.0
      %v4621 = vmax.f32 %v4108, 0.0
      %vm4622 = vcmask 261120
      %v4623 = vsel %vm4622, %v4110, 0.0
      %v4624 = vsel %vm4622, %v4111, 0.0
      %v4625 = vadd.f32 %v4623, %v4624
      %v4626 = vsel %vm4622, %v4112, 0.0
      %v4627 = vadd.f32 %v4625, %v4626
      %v4628 = vsel %vm4622, %v4113, 0.0
      %v4629 = vadd.f32 %v4627, %v4628
      %v4630 = vsel %vm4622, %v4114, 0.0
      %v4631 = vadd.f32 %v4629, %v4630
      %v4632 = vsel %vm4622, %v4115, 0.0
      %v4633 = vadd.f32 %v4631, %v4632
      %v4634 = vsel %vm4622, %v4116, 0.0
      %v4635 = vadd.f32 %v4633, %v4634
      %v4636 = vsel %vm4622, %v4117, 0.0
      %v4637 = vadd.f32 %v4635, %v4636
      %v4638 = vsel %vm4622, %v4118, 0.0
      %v4639 = vadd.f32 %v4637, %v4638
      %v4640 = vsel %vm4622, %v4119, 0.0
      %v4641 = vadd.f32 %v4639, %v4640
      %v4642 = vsel %vm4622, %v4120, 0.0
      %v4643 = vadd.f32 %v4641, %v4642
      %v4644 = vsel %vm4622, %v4121, 0.0
      %v4645 = vadd.f32 %v4643, %v4644
      %v4646 = vsel %vm4622, %v4122, 0.0
      %v4647 = vadd.f32 %v4645, %v4646
      %v4648 = vsel %vm4622, %v4123, 0.0
      %v4649 = vadd.f32 %v4647, %v4648
      %v4650 = vsel %vm4622, %v4124, 0.0
      %v4651 = vadd.f32 %v4649, %v4650
      %v4652 = vsel %vm4622, %v4125, 0.0
      %v4653 = vadd.f32 %v4651, %v4652
      %v4654 = vsel %vm4622, %v4126, 0.0
      %v4655 = vadd.f32 %v4653, %v4654
      %v4656 = vsel %vm4622, %v4127, 0.0
      %v4657 = vadd.f32 %v4655, %v4656
      %v4658 = vsel %vm4622, %v4128, 0.0
      %v4659 = vadd.f32 %v4657, %v4658
      %v4660 = vsel %vm4622, %v4129, 0.0
      %v4661 = vadd.f32 %v4659, %v4660
      %v4662 = vsel %vm4622, %v4130, 0.0
      %v4663 = vadd.f32 %v4661, %v4662
      %v4664 = vsel %vm4622, %v4131, 0.0
      %v4665 = vadd.f32 %v4663, %v4664
      %v4666 = vsel %vm4622, %v4132, 0.0
      %v4667 = vadd.f32 %v4665, %v4666
      %v4668 = vsel %vm4622, %v4133, 0.0
      %v4669 = vadd.f32 %v4667, %v4668
      %v4670 = vsel %vm4622, %v4134, 0.0
      %v4671 = vadd.f32 %v4669, %v4670
      %v4672 = vsel %vm4622, %v4135, 0.0
      %v4673 = vadd.f32 %v4671, %v4672
      %v4674 = vsel %vm4622, %v4136, 0.0
      %v4675 = vadd.f32 %v4673, %v4674
      %v4676 = vsel %vm4622, %v4137, 0.0
      %v4677 = vadd.f32 %v4675, %v4676
      %v4678 = vsel %vm4622, %v4138, 0.0
      %v4679 = vadd.f32 %v4677, %v4678
      %v4680 = vsel %vm4622, %v4139, 0.0
      %v4681 = vadd.f32 %v4679, %v4680
      %v4682 = vsel %vm4622, %v4140, 0.0
      %v4683 = vadd.f32 %v4681, %v4682
      %v4684 = vsel %vm4622, %v4141, 0.0
      %v4685 = vadd.f32 %v4683, %v4684
      %v4686 = vrot.slane %v4685, 4
      %v4687 = vadd.f32 %v4685, %v4686
      %v4688 = vrot.slane %v4687, 2
      %v4689 = vadd.f32 %v4687, %v4688
      %v4690 = vrot.slane %v4689, 1
      %v4691 = vadd.f32 %v4689, %v4690
      %v4692 = vsel %vm4622, %v4142, 0.0
      %v4693 = vsel %vm4622, %v4143, 0.0
      %v4694 = vadd.f32 %v4692, %v4693
      %v4695 = vsel %vm4622, %v4144, 0.0
      %v4696 = vadd.f32 %v4694, %v4695
      %v4697 = vsel %vm4622, %v4145, 0.0
      %v4698 = vadd.f32 %v4696, %v4697
      %v4699 = vsel %vm4622, %v4146, 0.0
      %v4700 = vadd.f32 %v4698, %v4699
      %v4701 = vsel %vm4622, %v4147, 0.0
      %v4702 = vadd.f32 %v4700, %v4701
      %v4703 = vsel %vm4622, %v4148, 0.0
      %v4704 = vadd.f32 %v4702, %v4703
      %v4705 = vsel %vm4622, %v4149, 0.0
      %v4706 = vadd.f32 %v4704, %v4705
      %v4707 = vsel %vm4622, %v4150, 0.0
      %v4708 = vadd.f32 %v4706, %v4707
      %v4709 = vsel %vm4622, %v4151, 0.0
      %v4710 = vadd.f32 %v4708, %v4709
      %v4711 = vsel %vm4622, %v4152, 0.0
      %v4712 = vadd.f32 %v4710, %v4711
      %v4713 = vsel %vm4622, %v4153, 0.0
      %v4714 = vadd.f32 %v4712, %v4713
      %v4715 = vsel %vm4622, %v4154, 0.0
      %v4716 = vadd.f32 %v4714, %v4715
      %v4717 = vsel %vm4622, %v4155, 0.0
      %v4718 = vadd.f32 %v4716, %v4717
      %v4719 = vsel %vm4622, %v4156, 0.0
      %v4720 = vadd.f32 %v4718, %v4719
      %v4721 = vsel %vm4622, %v4157, 0.0
      %v4722 = vadd.f32 %v4720, %v4721
      %v4723 = vsel %vm4622, %v4158, 0.0
      %v4724 = vadd.f32 %v4722, %v4723
      %v4725 = vsel %vm4622, %v4159, 0.0
      %v4726 = vadd.f32 %v4724, %v4725
      %v4727 = vsel %vm4622, %v4160, 0.0
      %v4728 = vadd.f32 %v4726, %v4727
      %v4729 = vsel %vm4622, %v4161, 0.0
      %v4730 = vadd.f32 %v4728, %v4729
      %v4731 = vsel %vm4622, %v4162, 0.0
      %v4732 = vadd.f32 %v4730, %v4731
      %v4733 = vsel %vm4622, %v4163, 0.0
      %v4734 = vadd.f32 %v4732, %v4733
      %v4735 = vsel %vm4622, %v4164, 0.0
      %v4736 = vadd.f32 %v4734, %v4735
      %v4737 = vsel %vm4622, %v4165, 0.0
      %v4738 = vadd.f32 %v4736, %v4737
      %v4739 = vsel %vm4622, %v4166, 0.0
      %v4740 = vadd.f32 %v4738, %v4739
      %v4741 = vsel %vm4622, %v4167, 0.0
      %v4742 = vadd.f32 %v4740, %v4741
      %v4743 = vsel %vm4622, %v4168, 0.0
      %v4744 = vadd.f32 %v4742, %v4743
      %v4745 = vsel %vm4622, %v4169, 0.0
      %v4746 = vadd.f32 %v4744, %v4745
      %v4747 = vsel %vm4622, %v4170, 0.0
      %v4748 = vadd.f32 %v4746, %v4747
      %v4749 = vsel %vm4622, %v4171, 0.0
      %v4750 = vadd.f32 %v4748, %v4749
      %v4751 = vsel %vm4622, %v4172, 0.0
      %v4752 = vadd.f32 %v4750, %v4751
      %v4753 = vsel %vm4622, %v4173, 0.0
      %v4754 = vadd.f32 %v4752, %v4753
      %v4755 = vrot.slane %v4754, 4
      %v4756 = vadd.f32 %v4754, %v4755
      %v4757 = vrot.slane %v4756, 2
      %v4758 = vadd.f32 %v4756, %v4757
      %v4759 = vrot.slane %v4758, 1
      %v4760 = vadd.f32 %v4758, %v4759
      %v4761 = vsel %vm4622, %v4174, 0.0
      %v4762 = vsel %vm4622, %v4175, 0.0
      %v4763 = vadd.f32 %v4761, %v4762
      %v4764 = vsel %vm4622, %v4176, 0.0
      %v4765 = vadd.f32 %v4763, %v4764
      %v4766 = vsel %vm4622, %v4177, 0.0
      %v4767 = vadd.f32 %v4765, %v4766
      %v4768 = vsel %vm4622, %v4178, 0.0
      %v4769 = vadd.f32 %v4767, %v4768
      %v4770 = vsel %vm4622, %v4179, 0.0
      %v4771 = vadd.f32 %v4769, %v4770
      %v4772 = vsel %vm4622, %v4180, 0.0
      %v4773 = vadd.f32 %v4771, %v4772
      %v4774 = vsel %vm4622, %v4181, 0.0
      %v4775 = vadd.f32 %v4773, %v4774
      %v4776 = vsel %vm4622, %v4182, 0.0
      %v4777 = vadd.f32 %v4775, %v4776
      %v4778 = vsel %vm4622, %v4183, 0.0
      %v4779 = vadd.f32 %v4777, %v4778
      %v4780 = vsel %vm4622, %v4184, 0.0
      %v4781 = vadd.f32 %v4779, %v4780
      %v4782 = vsel %vm4622, %v4185, 0.0
      %v4783 = vadd.f32 %v4781, %v4782
      %v4784 = vsel %vm4622, %v4186, 0.0
      %v4785 = vadd.f32 %v4783, %v4784
      %v4786 = vsel %vm4622, %v4187, 0.0
      %v4787 = vadd.f32 %v4785, %v4786
      %v4788 = vsel %vm4622, %v4188, 0.0
      %v4789 = vadd.f32 %v4787, %v4788
      %v4790 = vsel %vm4622, %v4189, 0.0
      %v4791 = vadd.f32 %v4789, %v4790
      %v4792 = vsel %vm4622, %v4190, 0.0
      %v4793 = vadd.f32 %v4791, %v4792
      %v4794 = vsel %vm4622, %v4191, 0.0
      %v4795 = vadd.f32 %v4793, %v4794
      %v4796 = vsel %vm4622, %v4192, 0.0
      %v4797 = vadd.f32 %v4795, %v4796
      %v4798 = vsel %vm4622, %v4193, 0.0
      %v4799 = vadd.f32 %v4797, %v4798
      %v4800 = vsel %vm4622, %v4194, 0.0
      %v4801 = vadd.f32 %v4799, %v4800
      %v4802 = vsel %vm4622, %v4195, 0.0
      %v4803 = vadd.f32 %v4801, %v4802
      %v4804 = vsel %vm4622, %v4196, 0.0
      %v4805 = vadd.f32 %v4803, %v4804
      %v4806 = vsel %vm4622, %v4197, 0.0
      %v4807 = vadd.f32 %v4805, %v4806
      %v4808 = vsel %vm4622, %v4198, 0.0
      %v4809 = vadd.f32 %v4807, %v4808
      %v4810 = vsel %vm4622, %v4199, 0.0
      %v4811 = vadd.f32 %v4809, %v4810
      %v4812 = vsel %vm4622, %v4200, 0.0
      %v4813 = vadd.f32 %v4811, %v4812
      %v4814 = vsel %vm4622, %v4201, 0.0
      %v4815 = vadd.f32 %v4813, %v4814
      %v4816 = vsel %vm4622, %v4202, 0.0
      %v4817 = vadd.f32 %v4815, %v4816
      %v4818 = vsel %vm4622, %v4203, 0.0
      %v4819 = vadd.f32 %v4817, %v4818
      %v4820 = vsel %vm4622, %v4204, 0.0
      %v4821 = vadd.f32 %v4819, %v4820
      %v4822 = vsel %vm4622, %v4205, 0.0
      %v4823 = vadd.f32 %v4821, %v4822
      %v4824 = vrot.slane %v4823, 4
      %v4825 = vadd.f32 %v4823, %v4824
      %v4826 = vrot.slane %v4825, 2
      %v4827 = vadd.f32 %v4825, %v4826
      %v4828 = vrot.slane %v4827, 1
      %v4829 = vadd.f32 %v4827, %v4828
      %v4830 = vsel %vm4622, %v4206, 0.0
      %v4831 = vsel %vm4622, %v4207, 0.0
      %v4832 = vadd.f32 %v4830, %v4831
      %v4833 = vsel %vm4622, %v4208, 0.0
      %v4834 = vadd.f32 %v4832, %v4833
      %v4835 = vsel %vm4622, %v4209, 0.0
      %v4836 = vadd.f32 %v4834, %v4835
      %v4837 = vsel %vm4622, %v4210, 0.0
      %v4838 = vadd.f32 %v4836, %v4837
      %v4839 = vsel %vm4622, %v4211, 0.0
      %v4840 = vadd.f32 %v4838, %v4839
      %v4841 = vsel %vm4622, %v4212, 0.0
      %v4842 = vadd.f32 %v4840, %v4841
      %v4843 = vsel %vm4622, %v4213, 0.0
      %v4844 = vadd.f32 %v4842, %v4843
      %v4845 = vsel %vm4622, %v4214, 0.0
      %v4846 = vadd.f32 %v4844, %v4845
      %v4847 = vsel %vm4622, %v4215, 0.0
      %v4848 = vadd.f32 %v4846, %v4847
      %v4849 = vsel %vm4622, %v4216, 0.0
      %v4850 = vadd.f32 %v4848, %v4849
      %v4851 = vsel %vm4622, %v4217, 0.0
      %v4852 = vadd.f32 %v4850, %v4851
      %v4853 = vsel %vm4622, %v4218, 0.0
      %v4854 = vadd.f32 %v4852, %v4853
      %v4855 = vsel %vm4622, %v4219, 0.0
      %v4856 = vadd.f32 %v4854, %v4855
      %v4857 = vsel %vm4622, %v4220, 0.0
      %v4858 = vadd.f32 %v4856, %v4857
      %v4859 = vsel %vm4622, %v4221, 0.0
      %v4860 = vadd.f32 %v4858, %v4859
      %v4861 = vsel %vm4622, %v4222, 0.0
      %v4862 = vadd.f32 %v4860, %v4861
      %v4863 = vsel %vm4622, %v4223, 0.0
      %v4864 = vadd.f32 %v4862, %v4863
      %v4865 = vsel %vm4622, %v4224, 0.0
      %v4866 = vadd.f32 %v4864, %v4865
      %v4867 = vsel %vm4622, %v4225, 0.0
      %v4868 = vadd.f32 %v4866, %v4867
      %v4869 = vsel %vm4622, %v4226, 0.0
      %v4870 = vadd.f32 %v4868, %v4869
      %v4871 = vsel %vm4622, %v4227, 0.0
      %v4872 = vadd.f32 %v4870, %v4871
      %v4873 = vsel %vm4622, %v4228, 0.0
      %v4874 = vadd.f32 %v4872, %v4873
      %v4875 = vsel %vm4622, %v4229, 0.0
      %v4876 = vadd.f32 %v4874, %v4875
      %v4877 = vsel %vm4622, %v4230, 0.0
      %v4878 = vadd.f32 %v4876, %v4877
      %v4879 = vsel %vm4622, %v4231, 0.0
      %v4880 = vadd.f32 %v4878, %v4879
      %v4881 = vsel %vm4622, %v4232, 0.0
      %v4882 = vadd.f32 %v4880, %v4881
      %v4883 = vsel %vm4622, %v4233, 0.0
      %v4884 = vadd.f32 %v4882, %v4883
      %v4885 = vsel %vm4622, %v4234, 0.0
      %v4886 = vadd.f32 %v4884, %v4885
      %v4887 = vsel %vm4622, %v4235, 0.0
      %v4888 = vadd.f32 %v4886, %v4887
      %v4889 = vsel %vm4622, %v4236, 0.0
      %v4890 = vadd.f32 %v4888, %v4889
      %v4891 = vsel %vm4622, %v4237, 0.0
      %v4892 = vadd.f32 %v4890, %v4891
      %v4893 = vrot.slane %v4892, 4
      %v4894 = vadd.f32 %v4892, %v4893
      %v4895 = vrot.slane %v4894, 2
      %v4896 = vadd.f32 %v4894, %v4895
      %v4897 = vrot.slane %v4896, 1
      %v4898 = vadd.f32 %v4896, %v4897
      %v4899 = vsel %vm4622, %v4238, 0.0
      %v4900 = vsel %vm4622, %v4239, 0.0
      %v4901 = vadd.f32 %v4899, %v4900
      %v4902 = vsel %vm4622, %v4240, 0.0
      %v4903 = vadd.f32 %v4901, %v4902
      %v4904 = vsel %vm4622, %v4241, 0.0
      %v4905 = vadd.f32 %v4903, %v4904
      %v4906 = vsel %vm4622, %v4242, 0.0
      %v4907 = vadd.f32 %v4905, %v4906
      %v4908 = vsel %vm4622, %v4243, 0.0
      %v4909 = vadd.f32 %v4907, %v4908
      %v4910 = vsel %vm4622, %v4244, 0.0
      %v4911 = vadd.f32 %v4909, %v4910
      %v4912 = vsel %vm4622, %v4245, 0.0
      %v4913 = vadd.f32 %v4911, %v4912
      %v4914 = vsel %vm4622, %v4246, 0.0
      %v4915 = vadd.f32 %v4913, %v4914
      %v4916 = vsel %vm4622, %v4247, 0.0
      %v4917 = vadd.f32 %v4915, %v4916
      %v4918 = vsel %vm4622, %v4248, 0.0
      %v4919 = vadd.f32 %v4917, %v4918
      %v4920 = vsel %vm4622, %v4249, 0.0
      %v4921 = vadd.f32 %v4919, %v4920
      %v4922 = vsel %vm4622, %v4250, 0.0
      %v4923 = vadd.f32 %v4921, %v4922
      %v4924 = vsel %vm4622, %v4251, 0.0
      %v4925 = vadd.f32 %v4923, %v4924
      %v4926 = vsel %vm4622, %v4252, 0.0
      %v4927 = vadd.f32 %v4925, %v4926
      %v4928 = vsel %vm4622, %v4253, 0.0
      %v4929 = vadd.f32 %v4927, %v4928
      %v4930 = vsel %vm4622, %v4254, 0.0
      %v4931 = vadd.f32 %v4929, %v4930
      %v4932 = vsel %vm4622, %v4255, 0.0
      %v4933 = vadd.f32 %v4931, %v4932
      %v4934 = vsel %vm4622, %v4256, 0.0
      %v4935 = vadd.f32 %v4933, %v4934
      %v4936 = vsel %vm4622, %v4257, 0.0
      %v4937 = vadd.f32 %v4935, %v4936
      %v4938 = vsel %vm4622, %v4258, 0.0
      %v4939 = vadd.f32 %v4937, %v4938
      %v4940 = vsel %vm4622, %v4259, 0.0
      %v4941 = vadd.f32 %v4939, %v4940
      %v4942 = vsel %vm4622, %v4260, 0.0
      %v4943 = vadd.f32 %v4941, %v4942
      %v4944 = vsel %vm4622, %v4261, 0.0
      %v4945 = vadd.f32 %v4943, %v4944
      %v4946 = vsel %vm4622, %v4262, 0.0
      %v4947 = vadd.f32 %v4945, %v4946
      %v4948 = vsel %vm4622, %v4263, 0.0
      %v4949 = vadd.f32 %v4947, %v4948
      %v4950 = vsel %vm4622, %v4264, 0.0
      %v4951 = vadd.f32 %v4949, %v4950
      %v4952 = vsel %vm4622, %v4265, 0.0
      %v4953 = vadd.f32 %v4951, %v4952
      %v4954 = vsel %vm4622, %v4266, 0.0
      %v4955 = vadd.f32 %v4953, %v4954
      %v4956 = vsel %vm4622, %v4267, 0.0
      %v4957 = vadd.f32 %v4955, %v4956
      %v4958 = vsel %vm4622, %v4268, 0.0
      %v4959 = vadd.f32 %v4957, %v4958
      %v4960 = vsel %vm4622, %v4269, 0.0
      %v4961 = vadd.f32 %v4959, %v4960
      %v4962 = vrot.slane %v4961, 4
      %v4963 = vadd.f32 %v4961, %v4962
      %v4964 = vrot.slane %v4963, 2
      %v4965 = vadd.f32 %v4963, %v4964
      %v4966 = vrot.slane %v4965, 1
      %v4967 = vadd.f32 %v4965, %v4966
      %v4968 = vsel %vm4622, %v4270, 0.0
      %v4969 = vsel %vm4622, %v4271, 0.0
      %v4970 = vadd.f32 %v4968, %v4969
      %v4971 = vsel %vm4622, %v4272, 0.0
      %v4972 = vadd.f32 %v4970, %v4971
      %v4973 = vsel %vm4622, %v4273, 0.0
      %v4974 = vadd.f32 %v4972, %v4973
      %v4975 = vsel %vm4622, %v4274, 0.0
      %v4976 = vadd.f32 %v4974, %v4975
      %v4977 = vsel %vm4622, %v4275, 0.0
      %v4978 = vadd.f32 %v4976, %v4977
      %v4979 = vsel %vm4622, %v4276, 0.0
      %v4980 = vadd.f32 %v4978, %v4979
      %v4981 = vsel %vm4622, %v4277, 0.0
      %v4982 = vadd.f32 %v4980, %v4981
      %v4983 = vsel %vm4622, %v4278, 0.0
      %v4984 = vadd.f32 %v4982, %v4983
      %v4985 = vsel %vm4622, %v4279, 0.0
      %v4986 = vadd.f32 %v4984, %v4985
      %v4987 = vsel %vm4622, %v4280, 0.0
      %v4988 = vadd.f32 %v4986, %v4987
      %v4989 = vsel %vm4622, %v4281, 0.0
      %v4990 = vadd.f32 %v4988, %v4989
      %v4991 = vsel %vm4622, %v4282, 0.0
      %v4992 = vadd.f32 %v4990, %v4991
      %v4993 = vsel %vm4622, %v4283, 0.0
      %v4994 = vadd.f32 %v4992, %v4993
      %v4995 = vsel %vm4622, %v4284, 0.0
      %v4996 = vadd.f32 %v4994, %v4995
      %v4997 = vsel %vm4622, %v4285, 0.0
      %v4998 = vadd.f32 %v4996, %v4997
      %v4999 = vsel %vm4622, %v4286, 0.0
      %v5000 = vadd.f32 %v4998, %v4999
      %v5001 = vsel %vm4622, %v4287, 0.0
      %v5002 = vadd.f32 %v5000, %v5001
      %v5003 = vsel %vm4622, %v4288, 0.0
      %v5004 = vadd.f32 %v5002, %v5003
      %v5005 = vsel %vm4622, %v4289, 0.0
      %v5006 = vadd.f32 %v5004, %v5005
      %v5007 = vsel %vm4622, %v4290, 0.0
      %v5008 = vadd.f32 %v5006, %v5007
      %v5009 = vsel %vm4622, %v4291, 0.0
      %v5010 = vadd.f32 %v5008, %v5009
      %v5011 = vsel %vm4622, %v4292, 0.0
      %v5012 = vadd.f32 %v5010, %v5011
      %v5013 = vsel %vm4622, %v4293, 0.0
      %v5014 = vadd.f32 %v5012, %v5013
      %v5015 = vsel %vm4622, %v4294, 0.0
      %v5016 = vadd.f32 %v5014, %v5015
      %v5017 = vsel %vm4622, %v4295, 0.0
      %v5018 = vadd.f32 %v5016, %v5017
      %v5019 = vsel %vm4622, %v4296, 0.0
      %v5020 = vadd.f32 %v5018, %v5019
      %v5021 = vsel %vm4622, %v4297, 0.0
      %v5022 = vadd.f32 %v5020, %v5021
      %v5023 = vsel %vm4622, %v4298, 0.0
      %v5024 = vadd.f32 %v5022, %v5023
      %v5025 = vsel %vm4622, %v4299, 0.0
      %v5026 = vadd.f32 %v5024, %v5025
      %v5027 = vsel %vm4622, %v4300, 0.0
      %v5028 = vadd.f32 %v5026, %v5027
      %v5029 = vsel %vm4622, %v4301, 0.0
      %v5030 = vadd.f32 %v5028, %v5029
      %v5031 = vrot.slane %v5030, 4
      %v5032 = vadd.f32 %v5030, %v5031
      %v5033 = vrot.slane %v5032, 2
      %v5034 = vadd.f32 %v5032, %v5033
      %v5035 = vrot.slane %v5034, 1
      %v5036 = vadd.f32 %v5034, %v5035
      %v5037 = vsel %vm4622, %v4302, 0.0
      %v5038 = vsel %vm4622, %v4303, 0.0
      %v5039 = vadd.f32 %v5037, %v5038
      %v5040 = vsel %vm4622, %v4304, 0.0
      %v5041 = vadd.f32 %v5039, %v5040
      %v5042 = vsel %vm4622, %v4305, 0.0
      %v5043 = vadd.f32 %v5041, %v5042
      %v5044 = vsel %vm4622, %v4306, 0.0
      %v5045 = vadd.f32 %v5043, %v5044
      %v5046 = vsel %vm4622, %v4307, 0.0
      %v5047 = vadd.f32 %v5045, %v5046
      %v5048 = vsel %vm4622, %v4308, 0.0
      %v5049 = vadd.f32 %v5047, %v5048
      %v5050 = vsel %vm4622, %v4309, 0.0
      %v5051 = vadd.f32 %v5049, %v5050
      %v5052 = vsel %vm4622, %v4310, 0.0
      %v5053 = vadd.f32 %v5051, %v5052
      %v5054 = vsel %vm4622, %v4311, 0.0
      %v5055 = vadd.f32 %v5053, %v5054
      %v5056 = vsel %vm4622, %v4312, 0.0
      %v5057 = vadd.f32 %v5055, %v5056
      %v5058 = vsel %vm4622, %v4313, 0.0
      %v5059 = vadd.f32 %v5057, %v5058
      %v5060 = vsel %vm4622, %v4314, 0.0
      %v5061 = vadd.f32 %v5059, %v5060
      %v5062 = vsel %vm4622, %v4315, 0.0
      %v5063 = vadd.f32 %v5061, %v5062
      %v5064 = vsel %vm4622, %v4316, 0.0
      %v5065 = vadd.f32 %v5063, %v5064
      %v5066 = vsel %vm4622, %v4317, 0.0
      %v5067 = vadd.f32 %v5065, %v5066
      %v5068 = vsel %vm4622, %v4318, 0.0
      %v5069 = vadd.f32 %v5067, %v5068
      %v5070 = vsel %vm4622, %v4319, 0.0
      %v5071 = vadd.f32 %v5069, %v5070
      %v5072 = vsel %vm4622, %v4320, 0.0
      %v5073 = vadd.f32 %v5071, %v5072
      %v5074 = vsel %vm4622, %v4321, 0.0
      %v5075 = vadd.f32 %v5073, %v5074
      %v5076 = vsel %vm4622, %v4322, 0.0
      %v5077 = vadd.f32 %v5075, %v5076
      %v5078 = vsel %vm4622, %v4323, 0.0
      %v5079 = vadd.f32 %v5077, %v5078
      %v5080 = vsel %vm4622, %v4324, 0.0
      %v5081 = vadd.f32 %v5079, %v5080
      %v5082 = vsel %vm4622, %v4325, 0.0
      %v5083 = vadd.f32 %v5081, %v5082
      %v5084 = vsel %vm4622, %v4326, 0.0
      %v5085 = vadd.f32 %v5083, %v5084
      %v5086 = vsel %vm4622, %v4327, 0.0
      %v5087 = vadd.f32 %v5085, %v5086
      %v5088 = vsel %vm4622, %v4328, 0.0
      %v5089 = vadd.f32 %v5087, %v5088
      %v5090 = vsel %vm4622, %v4329, 0.0
      %v5091 = vadd.f32 %v5089, %v5090
      %v5092 = vsel %vm4622, %v4330, 0.0
      %v5093 = vadd.f32 %v5091, %v5092
      %v5094 = vsel %vm4622, %v4331, 0.0
      %v5095 = vadd.f32 %v5093, %v5094
      %v5096 = vsel %vm4622, %v4332, 0.0
      %v5097 = vadd.f32 %v5095, %v5096
      %v5098 = vsel %vm4622, %v4333, 0.0
      %v5099 = vadd.f32 %v5097, %v5098
      %v5100 = vrot.slane %v5099, 4
      %v5101 = vadd.f32 %v5099, %v5100
      %v5102 = vrot.slane %v5101, 2
      %v5103 = vadd.f32 %v5101, %v5102
      %v5104 = vrot.slane %v5103, 1
      %v5105 = vadd.f32 %v5103, %v5104
      %v5106 = vsel %vm4622, %v4334, 0.0
      %v5107 = vsel %vm4622, %v4335, 0.0
      %v5108 = vadd.f32 %v5106, %v5107
      %v5109 = vsel %vm4622, %v4336, 0.0
      %v5110 = vadd.f32 %v5108, %v5109
      %v5111 = vsel %vm4622, %v4337, 0.0
      %v5112 = vadd.f32 %v5110, %v5111
      %v5113 = vsel %vm4622, %v4338, 0.0
      %v5114 = vadd.f32 %v5112, %v5113
      %v5115 = vsel %vm4622, %v4339, 0.0
      %v5116 = vadd.f32 %v5114, %v5115
      %v5117 = vsel %vm4622, %v4340, 0.0
      %v5118 = vadd.f32 %v5116, %v5117
      %v5119 = vsel %vm4622, %v4341, 0.0
      %v5120 = vadd.f32 %v5118, %v5119
      %v5121 = vsel %vm4622, %v4342, 0.0
      %v5122 = vadd.f32 %v5120, %v5121
      %v5123 = vsel %vm4622, %v4343, 0.0
      %v5124 = vadd.f32 %v5122, %v5123
      %v5125 = vsel %vm4622, %v4344, 0.0
      %v5126 = vadd.f32 %v5124, %v5125
      %v5127 = vsel %vm4622, %v4345, 0.0
      %v5128 = vadd.f32 %v5126, %v5127
      %v5129 = vsel %vm4622, %v4346, 0.0
      %v5130 = vadd.f32 %v5128, %v5129
      %v5131 = vsel %vm4622, %v4347, 0.0
      %v5132 = vadd.f32 %v5130, %v5131
      %v5133 = vsel %vm4622, %v4348, 0.0
      %v5134 = vadd.f32 %v5132, %v5133
      %v5135 = vsel %vm4622, %v4349, 0.0
      %v5136 = vadd.f32 %v5134, %v5135
      %v5137 = vsel %vm4622, %v4350, 0.0
      %v5138 = vadd.f32 %v5136, %v5137
      %v5139 = vsel %vm4622, %v4351, 0.0
      %v5140 = vadd.f32 %v5138, %v5139
      %v5141 = vsel %vm4622, %v4352, 0.0
      %v5142 = vadd.f32 %v5140, %v5141
      %v5143 = vsel %vm4622, %v4353, 0.0
      %v5144 = vadd.f32 %v5142, %v5143
      %v5145 = vsel %vm4622, %v4354, 0.0
      %v5146 = vadd.f32 %v5144, %v5145
      %v5147 = vsel %vm4622, %v4355, 0.0
      %v5148 = vadd.f32 %v5146, %v5147
      %v5149 = vsel %vm4622, %v4356, 0.0
      %v5150 = vadd.f32 %v5148, %v5149
      %v5151 = vsel %vm4622, %v4357, 0.0
      %v5152 = vadd.f32 %v5150, %v5151
      %v5153 = vsel %vm4622, %v4358, 0.0
      %v5154 = vadd.f32 %v5152, %v5153
      %v5155 = vsel %vm4622, %v4359, 0.0
      %v5156 = vadd.f32 %v5154, %v5155
      %v5157 = vsel %vm4622, %v4360, 0.0
      %v5158 = vadd.f32 %v5156, %v5157
      %v5159 = vsel %vm4622, %v4361, 0.0
      %v5160 = vadd.f32 %v5158, %v5159
      %v5161 = vsel %vm4622, %v4362, 0.0
      %v5162 = vadd.f32 %v5160, %v5161
      %v5163 = vsel %vm4622, %v4363, 0.0
      %v5164 = vadd.f32 %v5162, %v5163
      %v5165 = vsel %vm4622, %v4364, 0.0
      %v5166 = vadd.f32 %v5164, %v5165
      %v5167 = vsel %vm4622, %v4365, 0.0
      %v5168 = vadd.f32 %v5166, %v5167
      %v5169 = vrot.slane %v5168, 4
      %v5170 = vadd.f32 %v5168, %v5169
      %v5171 = vrot.slane %v5170, 2
      %v5172 = vadd.f32 %v5170, %v5171
      %v5173 = vrot.slane %v5172, 1
      %v5174 = vadd.f32 %v5172, %v5173
      %v5175 = vsel %vm4622, %v4366, 0.0
      %v5176 = vsel %vm4622, %v4367, 0.0
      %v5177 = vadd.f32 %v5175, %v5176
      %v5178 = vsel %vm4622, %v4368, 0.0
      %v5179 = vadd.f32 %v5177, %v5178
      %v5180 = vsel %vm4622, %v4369, 0.0
      %v5181 = vadd.f32 %v5179, %v5180
      %v5182 = vsel %vm4622, %v4370, 0.0
      %v5183 = vadd.f32 %v5181, %v5182
      %v5184 = vsel %vm4622, %v4371, 0.0
      %v5185 = vadd.f32 %v5183, %v5184
      %v5186 = vsel %vm4622, %v4372, 0.0
      %v5187 = vadd.f32 %v5185, %v5186
      %v5188 = vsel %vm4622, %v4373, 0.0
      %v5189 = vadd.f32 %v5187, %v5188
      %v5190 = vsel %vm4622, %v4374, 0.0
      %v5191 = vadd.f32 %v5189, %v5190
      %v5192 = vsel %vm4622, %v4375, 0.0
      %v5193 = vadd.f32 %v5191, %v5192
      %v5194 = vsel %vm4622, %v4376, 0.0
      %v5195 = vadd.f32 %v5193, %v5194
      %v5196 = vsel %vm4622, %v4377, 0.0
      %v5197 = vadd.f32 %v5195, %v5196
      %v5198 = vsel %vm4622, %v4378, 0.0
      %v5199 = vadd.f32 %v5197, %v5198
      %v5200 = vsel %vm4622, %v4379, 0.0
      %v5201 = vadd.f32 %v5199, %v5200
      %v5202 = vsel %vm4622, %v4380, 0.0
      %v5203 = vadd.f32 %v5201, %v5202
      %v5204 = vsel %vm4622, %v4381, 0.0
      %v5205 = vadd.f32 %v5203, %v5204
      %v5206 = vsel %vm4622, %v4382, 0.0
      %v5207 = vadd.f32 %v5205, %v5206
      %v5208 = vsel %vm4622, %v4383, 0.0
      %v5209 = vadd.f32 %v5207, %v5208
      %v5210 = vsel %vm4622, %v4384, 0.0
      %v5211 = vadd.f32 %v5209, %v5210
      %v5212 = vsel %vm4622, %v4385, 0.0
      %v5213 = vadd.f32 %v5211, %v5212
      %v5214 = vsel %vm4622, %v4386, 0.0
      %v5215 = vadd.f32 %v5213, %v5214
      %v5216 = vsel %vm4622, %v4387, 0.0
      %v5217 = vadd.f32 %v5215, %v5216
      %v5218 = vsel %vm4622, %v4388, 0.0
      %v5219 = vadd.f32 %v5217, %v5218
      %v5220 = vsel %vm4622, %v4389, 0.0
      %v5221 = vadd.f32 %v5219, %v5220
      %v5222 = vsel %vm4622, %v4390, 0.0
      %v5223 = vadd.f32 %v5221, %v5222
      %v5224 = vsel %vm4622, %v4391, 0.0
      %v5225 = vadd.f32 %v5223, %v5224
      %v5226 = vsel %vm4622, %v4392, 0.0
      %v5227 = vadd.f32 %v5225, %v5226
      %v5228 = vsel %vm4622, %v4393, 0.0
      %v5229 = vadd.f32 %v5227, %v5228
      %v5230 = vsel %vm4622, %v4394, 0.0
      %v5231 = vadd.f32 %v5229, %v5230
      %v5232 = vsel %vm4622, %v4395, 0.0
      %v5233 = vadd.f32 %v5231, %v5232
      %v5234 = vsel %vm4622, %v4396, 0.0
      %v5235 = vadd.f32 %v5233, %v5234
      %v5236 = vsel %vm4622, %v4397, 0.0
      %v5237 = vadd.f32 %v5235, %v5236
      %v5238 = vrot.slane %v5237, 4
      %v5239 = vadd.f32 %v5237, %v5238
      %v5240 = vrot.slane %v5239, 2
      %v5241 = vadd.f32 %v5239, %v5240
      %v5242 = vrot.slane %v5241, 1
      %v5243 = vadd.f32 %v5241, %v5242
      %v5244 = vsel %vm4622, %v4398, 0.0
      %v5245 = vsel %vm4622, %v4399, 0.0
      %v5246 = vadd.f32 %v5244, %v5245
      %v5247 = vsel %vm4622, %v4400, 0.0
      %v5248 = vadd.f32 %v5246, %v5247
      %v5249 = vsel %vm4622, %v4401, 0.0
      %v5250 = vadd.f32 %v5248, %v5249
      %v5251 = vsel %vm4622, %v4402, 0.0
      %v5252 = vadd.f32 %v5250, %v5251
      %v5253 = vsel %vm4622, %v4403, 0.0
      %v5254 = vadd.f32 %v5252, %v5253
      %v5255 = vsel %vm4622, %v4404, 0.0
      %v5256 = vadd.f32 %v5254, %v5255
      %v5257 = vsel %vm4622, %v4405, 0.0
      %v5258 = vadd.f32 %v5256, %v5257
      %v5259 = vsel %vm4622, %v4406, 0.0
      %v5260 = vadd.f32 %v5258, %v5259
      %v5261 = vsel %vm4622, %v4407, 0.0
      %v5262 = vadd.f32 %v5260, %v5261
      %v5263 = vsel %vm4622, %v4408, 0.0
      %v5264 = vadd.f32 %v5262, %v5263
      %v5265 = vsel %vm4622, %v4409, 0.0
      %v5266 = vadd.f32 %v5264, %v5265
      %v5267 = vsel %vm4622, %v4410, 0.0
      %v5268 = vadd.f32 %v5266, %v5267
      %v5269 = vsel %vm4622, %v4411, 0.0
      %v5270 = vadd.f32 %v5268, %v5269
      %v5271 = vsel %vm4622, %v4412, 0.0
      %v5272 = vadd.f32 %v5270, %v5271
      %v5273 = vsel %vm4622, %v4413, 0.0
      %v5274 = vadd.f32 %v5272, %v5273
      %v5275 = vsel %vm4622, %v4414, 0.0
      %v5276 = vadd.f32 %v5274, %v5275
      %v5277 = vsel %vm4622, %v4415, 0.0
      %v5278 = vadd.f32 %v5276, %v5277
      %v5279 = vsel %vm4622, %v4416, 0.0
      %v5280 = vadd.f32 %v5278, %v5279
      %v5281 = vsel %vm4622, %v4417, 0.0
      %v5282 = vadd.f32 %v5280, %v5281
      %v5283 = vsel %vm4622, %v4418, 0.0
      %v5284 = vadd.f32 %v5282, %v5283
      %v5285 = vsel %vm4622, %v4419, 0.0
      %v5286 = vadd.f32 %v5284, %v5285
      %v5287 = vsel %vm4622, %v4420, 0.0
      %v5288 = vadd.f32 %v5286, %v5287
      %v5289 = vsel %vm4622, %v4421, 0.0
      %v5290 = vadd.f32 %v5288, %v5289
      %v5291 = vsel %vm4622, %v4422, 0.0
      %v5292 = vadd.f32 %v5290, %v5291
      %v5293 = vsel %vm4622, %v4423, 0.0
      %v5294 = vadd.f32 %v5292, %v5293
      %v5295 = vsel %vm4622, %v4424, 0.0
      %v5296 = vadd.f32 %v5294, %v5295
      %v5297 = vsel %vm4622, %v4425, 0.0
      %v5298 = vadd.f32 %v5296, %v5297
      %v5299 = vsel %vm4622, %v4426, 0.0
      %v5300 = vadd.f32 %v5298, %v5299
      %v5301 = vsel %vm4622, %v4427, 0.0
      %v5302 = vadd.f32 %v5300, %v5301
      %v5303 = vsel %vm4622, %v4428, 0.0
      %v5304 = vadd.f32 %v5302, %v5303
      %v5305 = vsel %vm4622, %v4429, 0.0
      %v5306 = vadd.f32 %v5304, %v5305
      %v5307 = vrot.slane %v5306, 4
      %v5308 = vadd.f32 %v5306, %v5307
      %v5309 = vrot.slane %v5308, 2
      %v5310 = vadd.f32 %v5308, %v5309
      %v5311 = vrot.slane %v5310, 1
      %v5312 = vadd.f32 %v5310, %v5311
      %v5313 = vsel %vm4622, %v4430, 0.0
      %v5314 = vsel %vm4622, %v4431, 0.0
      %v5315 = vadd.f32 %v5313, %v5314
      %v5316 = vsel %vm4622, %v4432, 0.0
      %v5317 = vadd.f32 %v5315, %v5316
      %v5318 = vsel %vm4622, %v4433, 0.0
      %v5319 = vadd.f32 %v5317, %v5318
      %v5320 = vsel %vm4622, %v4434, 0.0
      %v5321 = vadd.f32 %v5319, %v5320
      %v5322 = vsel %vm4622, %v4435, 0.0
      %v5323 = vadd.f32 %v5321, %v5322
      %v5324 = vsel %vm4622, %v4436, 0.0
      %v5325 = vadd.f32 %v5323, %v5324
      %v5326 = vsel %vm4622, %v4437, 0.0
      %v5327 = vadd.f32 %v5325, %v5326
      %v5328 = vsel %vm4622, %v4438, 0.0
      %v5329 = vadd.f32 %v5327, %v5328
      %v5330 = vsel %vm4622, %v4439, 0.0
      %v5331 = vadd.f32 %v5329, %v5330
      %v5332 = vsel %vm4622, %v4440, 0.0
      %v5333 = vadd.f32 %v5331, %v5332
      %v5334 = vsel %vm4622, %v4441, 0.0
      %v5335 = vadd.f32 %v5333, %v5334
      %v5336 = vsel %vm4622, %v4442, 0.0
      %v5337 = vadd.f32 %v5335, %v5336
      %v5338 = vsel %vm4622, %v4443, 0.0
      %v5339 = vadd.f32 %v5337, %v5338
      %v5340 = vsel %vm4622, %v4444, 0.0
      %v5341 = vadd.f32 %v5339, %v5340
      %v5342 = vsel %vm4622, %v4445, 0.0
      %v5343 = vadd.f32 %v5341, %v5342
      %v5344 = vsel %vm4622, %v4446, 0.0
      %v5345 = vadd.f32 %v5343, %v5344
      %v5346 = vsel %vm4622, %v4447, 0.0
      %v5347 = vadd.f32 %v5345, %v5346
      %v5348 = vsel %vm4622, %v4448, 0.0
      %v5349 = vadd.f32 %v5347, %v5348
      %v5350 = vsel %vm4622, %v4449, 0.0
      %v5351 = vadd.f32 %v5349, %v5350
      %v5352 = vsel %vm4622, %v4450, 0.0
      %v5353 = vadd.f32 %v5351, %v5352
      %v5354 = vsel %vm4622, %v4451, 0.0
      %v5355 = vadd.f32 %v5353, %v5354
      %v5356 = vsel %vm4622, %v4452, 0.0
      %v5357 = vadd.f32 %v5355, %v5356
      %v5358 = vsel %vm4622, %v4453, 0.0
      %v5359 = vadd.f32 %v5357, %v5358
      %v5360 = vsel %vm4622, %v4454, 0.0
      %v5361 = vadd.f32 %v5359, %v5360
      %v5362 = vsel %vm4622, %v4455, 0.0
      %v5363 = vadd.f32 %v5361, %v5362
      %v5364 = vsel %vm4622, %v4456, 0.0
      %v5365 = vadd.f32 %v5363, %v5364
      %v5366 = vsel %vm4622, %v4457, 0.0
      %v5367 = vadd.f32 %v5365, %v5366
      %v5368 = vsel %vm4622, %v4458, 0.0
      %v5369 = vadd.f32 %v5367, %v5368
      %v5370 = vsel %vm4622, %v4459, 0.0
      %v5371 = vadd.f32 %v5369, %v5370
      %v5372 = vsel %vm4622, %v4460, 0.0
      %v5373 = vadd.f32 %v5371, %v5372
      %v5374 = vsel %vm4622, %v4461, 0.0
      %v5375 = vadd.f32 %v5373, %v5374
      %v5376 = vrot.slane %v5375, 4
      %v5377 = vadd.f32 %v5375, %v5376
      %v5378 = vrot.slane %v5377, 2
      %v5379 = vadd.f32 %v5377, %v5378
      %v5380 = vrot.slane %v5379, 1
      %v5381 = vadd.f32 %v5379, %v5380
      %v5382 = vsel %vm4622, %v4462, 0.0
      %v5383 = vsel %vm4622, %v4463, 0.0
      %v5384 = vadd.f32 %v5382, %v5383
      %v5385 = vsel %vm4622, %v4464, 0.0
      %v5386 = vadd.f32 %v5384, %v5385
      %v5387 = vsel %vm4622, %v4465, 0.0
      %v5388 = vadd.f32 %v5386, %v5387
      %v5389 = vsel %vm4622, %v4466, 0.0
      %v5390 = vadd.f32 %v5388, %v5389
      %v5391 = vsel %vm4622, %v4467, 0.0
      %v5392 = vadd.f32 %v5390, %v5391
      %v5393 = vsel %vm4622, %v4468, 0.0
      %v5394 = vadd.f32 %v5392, %v5393
      %v5395 = vsel %vm4622, %v4469, 0.0
      %v5396 = vadd.f32 %v5394, %v5395
      %v5397 = vsel %vm4622, %v4470, 0.0
      %v5398 = vadd.f32 %v5396, %v5397
      %v5399 = vsel %vm4622, %v4471, 0.0
      %v5400 = vadd.f32 %v5398, %v5399
      %v5401 = vsel %vm4622, %v4472, 0.0
      %v5402 = vadd.f32 %v5400, %v5401
      %v5403 = vsel %vm4622, %v4473, 0.0
      %v5404 = vadd.f32 %v5402, %v5403
      %v5405 = vsel %vm4622, %v4474, 0.0
      %v5406 = vadd.f32 %v5404, %v5405
      %v5407 = vsel %vm4622, %v4475, 0.0
      %v5408 = vadd.f32 %v5406, %v5407
      %v5409 = vsel %vm4622, %v4476, 0.0
      %v5410 = vadd.f32 %v5408, %v5409
      %v5411 = vsel %vm4622, %v4477, 0.0
      %v5412 = vadd.f32 %v5410, %v5411
      %v5413 = vsel %vm4622, %v4478, 0.0
      %v5414 = vadd.f32 %v5412, %v5413
      %v5415 = vsel %vm4622, %v4479, 0.0
      %v5416 = vadd.f32 %v5414, %v5415
      %v5417 = vsel %vm4622, %v4480, 0.0
      %v5418 = vadd.f32 %v5416, %v5417
      %v5419 = vsel %vm4622, %v4481, 0.0
      %v5420 = vadd.f32 %v5418, %v5419
      %v5421 = vsel %vm4622, %v4482, 0.0
      %v5422 = vadd.f32 %v5420, %v5421
      %v5423 = vsel %vm4622, %v4483, 0.0
      %v5424 = vadd.f32 %v5422, %v5423
      %v5425 = vsel %vm4622, %v4484, 0.0
      %v5426 = vadd.f32 %v5424, %v5425
      %v5427 = vsel %vm4622, %v4485, 0.0
      %v5428 = vadd.f32 %v5426, %v5427
      %v5429 = vsel %vm4622, %v4486, 0.0
      %v5430 = vadd.f32 %v5428, %v5429
      %v5431 = vsel %vm4622, %v4487, 0.0
      %v5432 = vadd.f32 %v5430, %v5431
      %v5433 = vsel %vm4622, %v4488, 0.0
      %v5434 = vadd.f32 %v5432, %v5433
      %v5435 = vsel %vm4622, %v4489, 0.0
      %v5436 = vadd.f32 %v5434, %v5435
      %v5437 = vsel %vm4622, %v4490, 0.0
      %v5438 = vadd.f32 %v5436, %v5437
      %v5439 = vsel %vm4622, %v4491, 0.0
      %v5440 = vadd.f32 %v5438, %v5439
      %v5441 = vsel %vm4622, %v4492, 0.0
      %v5442 = vadd.f32 %v5440, %v5441
      %v5443 = vsel %vm4622, %v4493, 0.0
      %v5444 = vadd.f32 %v5442, %v5443
      %v5445 = vrot.slane %v5444, 4
      %v5446 = vadd.f32 %v5444, %v5445
      %v5447 = vrot.slane %v5446, 2
      %v5448 = vadd.f32 %v5446, %v5447
      %v5449 = vrot.slane %v5448, 1
      %v5450 = vadd.f32 %v5448, %v5449
      %v5451 = vsel %vm4622, %v4494, 0.0
      %v5452 = vsel %vm4622, %v4495, 0.0
      %v5453 = vadd.f32 %v5451, %v5452
      %v5454 = vsel %vm4622, %v4496, 0.0
      %v5455 = vadd.f32 %v5453, %v5454
      %v5456 = vsel %vm4622, %v4497, 0.0
      %v5457 = vadd.f32 %v5455, %v5456
      %v5458 = vsel %vm4622, %v4498, 0.0
      %v5459 = vadd.f32 %v5457, %v5458
      %v5460 = vsel %vm4622, %v4499, 0.0
      %v5461 = vadd.f32 %v5459, %v5460
      %v5462 = vsel %vm4622, %v4500, 0.0
      %v5463 = vadd.f32 %v5461, %v5462
      %v5464 = vsel %vm4622, %v4501, 0.0
      %v5465 = vadd.f32 %v5463, %v5464
      %v5466 = vsel %vm4622, %v4502, 0.0
      %v5467 = vadd.f32 %v5465, %v5466
      %v5468 = vsel %vm4622, %v4503, 0.0
      %v5469 = vadd.f32 %v5467, %v5468
      %v5470 = vsel %vm4622, %v4504, 0.0
      %v5471 = vadd.f32 %v5469, %v5470
      %v5472 = vsel %vm4622, %v4505, 0.0
      %v5473 = vadd.f32 %v5471, %v5472
      %v5474 = vsel %vm4622, %v4506, 0.0
      %v5475 = vadd.f32 %v5473, %v5474
      %v5476 = vsel %vm4622, %v4507, 0.0
      %v5477 = vadd.f32 %v5475, %v5476
      %v5478 = vsel %vm4622, %v4508, 0.0
      %v5479 = vadd.f32 %v5477, %v5478
      %v5480 = vsel %vm4622, %v4509, 0.0
      %v5481 = vadd.f32 %v5479, %v5480
      %v5482 = vsel %vm4622, %v4510, 0.0
      %v5483 = vadd.f32 %v5481, %v5482
      %v5484 = vsel %vm4622, %v4511, 0.0
      %v5485 = vadd.f32 %v5483, %v5484
      %v5486 = vsel %vm4622, %v4512, 0.0
      %v5487 = vadd.f32 %v5485, %v5486
      %v5488 = vsel %vm4622, %v4513, 0.0
      %v5489 = vadd.f32 %v5487, %v5488
      %v5490 = vsel %vm4622, %v4514, 0.0
      %v5491 = vadd.f32 %v5489, %v5490
      %v5492 = vsel %vm4622, %v4515, 0.0
      %v5493 = vadd.f32 %v5491, %v5492
      %v5494 = vsel %vm4622, %v4516, 0.0
      %v5495 = vadd.f32 %v5493, %v5494
      %v5496 = vsel %vm4622, %v4517, 0.0
      %v5497 = vadd.f32 %v5495, %v5496
      %v5498 = vsel %vm4622, %v4518, 0.0
      %v5499 = vadd.f32 %v5497, %v5498
      %v5500 = vsel %vm4622, %v4519, 0.0
      %v5501 = vadd.f32 %v5499, %v5500
      %v5502 = vsel %vm4622, %v4520, 0.0
      %v5503 = vadd.f32 %v5501, %v5502
      %v5504 = vsel %vm4622, %v4521, 0.0
      %v5505 = vadd.f32 %v5503, %v5504
      %v5506 = vsel %vm4622, %v4522, 0.0
      %v5507 = vadd.f32 %v5505, %v5506
      %v5508 = vsel %vm4622, %v4523, 0.0
      %v5509 = vadd.f32 %v5507, %v5508
      %v5510 = vsel %vm4622, %v4524, 0.0
      %v5511 = vadd.f32 %v5509, %v5510
      %v5512 = vsel %vm4622, %v4525, 0.0
      %v5513 = vadd.f32 %v5511, %v5512
      %v5514 = vrot.slane %v5513, 4
      %v5515 = vadd.f32 %v5513, %v5514
      %v5516 = vrot.slane %v5515, 2
      %v5517 = vadd.f32 %v5515, %v5516
      %v5518 = vrot.slane %v5517, 1
      %v5519 = vadd.f32 %v5517, %v5518
      %v5520 = vsel %vm4622, %v4526, 0.0
      %v5521 = vsel %vm4622, %v4527, 0.0
      %v5522 = vadd.f32 %v5520, %v5521
      %v5523 = vsel %vm4622, %v4528, 0.0
      %v5524 = vadd.f32 %v5522, %v5523
      %v5525 = vsel %vm4622, %v4529, 0.0
      %v5526 = vadd.f32 %v5524, %v5525
      %v5527 = vsel %vm4622, %v4530, 0.0
      %v5528 = vadd.f32 %v5526, %v5527
      %v5529 = vsel %vm4622, %v4531, 0.0
      %v5530 = vadd.f32 %v5528, %v5529
      %v5531 = vsel %vm4622, %v4532, 0.0
      %v5532 = vadd.f32 %v5530, %v5531
      %v5533 = vsel %vm4622, %v4533, 0.0
      %v5534 = vadd.f32 %v5532, %v5533
      %v5535 = vsel %vm4622, %v4534, 0.0
      %v5536 = vadd.f32 %v5534, %v5535
      %v5537 = vsel %vm4622, %v4535, 0.0
      %v5538 = vadd.f32 %v5536, %v5537
      %v5539 = vsel %vm4622, %v4536, 0.0
      %v5540 = vadd.f32 %v5538, %v5539
      %v5541 = vsel %vm4622, %v4537, 0.0
      %v5542 = vadd.f32 %v5540, %v5541
      %v5543 = vsel %vm4622, %v4538, 0.0
      %v5544 = vadd.f32 %v5542, %v5543
      %v5545 = vsel %vm4622, %v4539, 0.0
      %v5546 = vadd.f32 %v5544, %v5545
      %v5547 = vsel %vm4622, %v4540, 0.0
      %v5548 = vadd.f32 %v5546, %v5547
      %v5549 = vsel %vm4622, %v4541, 0.0
      %v5550 = vadd.f32 %v5548, %v5549
      %v5551 = vsel %vm4622, %v4542, 0.0
      %v5552 = vadd.f32 %v5550, %v5551
      %v5553 = vsel %vm4622, %v4543, 0.0
      %v5554 = vadd.f32 %v5552, %v5553
      %v5555 = vsel %vm4622, %v4544, 0.0
      %v5556 = vadd.f32 %v5554, %v5555
      %v5557 = vsel %vm4622, %v4545, 0.0
      %v5558 = vadd.f32 %v5556, %v5557
      %v5559 = vsel %vm4622, %v4546, 0.0
      %v5560 = vadd.f32 %v5558, %v5559
      %v5561 = vsel %vm4622, %v4547, 0.0
      %v5562 = vadd.f32 %v5560, %v5561
      %v5563 = vsel %vm4622, %v4548, 0.0
      %v5564 = vadd.f32 %v5562, %v5563
      %v5565 = vsel %vm4622, %v4549, 0.0
      %v5566 = vadd.f32 %v5564, %v5565
      %v5567 = vsel %vm4622, %v4550, 0.0
      %v5568 = vadd.f32 %v5566, %v5567
      %v5569 = vsel %vm4622, %v4551, 0.0
      %v5570 = vadd.f32 %v5568, %v5569
      %v5571 = vsel %vm4622, %v4552, 0.0
      %v5572 = vadd.f32 %v5570, %v5571
      %v5573 = vsel %vm4622, %v4553, 0.0
      %v5574 = vadd.f32 %v5572, %v5573
      %v5575 = vsel %vm4622, %v4554, 0.0
      %v5576 = vadd.f32 %v5574, %v5575
      %v5577 = vsel %vm4622, %v4555, 0.0
      %v5578 = vadd.f32 %v5576, %v5577
      %v5579 = vsel %vm4622, %v4556, 0.0
      %v5580 = vadd.f32 %v5578, %v5579
      %v5581 = vsel %vm4622, %v4557, 0.0
      %v5582 = vadd.f32 %v5580, %v5581
      %v5583 = vrot.slane %v5582, 4
      %v5584 = vadd.f32 %v5582, %v5583
      %v5585 = vrot.slane %v5584, 2
      %v5586 = vadd.f32 %v5584, %v5585
      %v5587 = vrot.slane %v5586, 1
      %v5588 = vadd.f32 %v5586, %v5587
      %v5589 = vsel %vm4622, %v4558, 0.0
      %v5590 = vsel %vm4622, %v4559, 0.0
      %v5591 = vadd.f32 %v5589, %v5590
      %v5592 = vsel %vm4622, %v4560, 0.0
      %v5593 = vadd.f32 %v5591, %v5592
      %v5594 = vsel %vm4622, %v4561, 0.0
      %v5595 = vadd.f32 %v5593, %v5594
      %v5596 = vsel %vm4622, %v4562, 0.0
      %v5597 = vadd.f32 %v5595, %v5596
      %v5598 = vsel %vm4622, %v4563, 0.0
      %v5599 = vadd.f32 %v5597, %v5598
      %v5600 = vsel %vm4622, %v4564, 0.0
      %v5601 = vadd.f32 %v5599, %v5600
      %v5602 = vsel %vm4622, %v4565, 0.0
      %v5603 = vadd.f32 %v5601, %v5602
      %v5604 = vsel %vm4622, %v4566, 0.0
      %v5605 = vadd.f32 %v5603, %v5604
      %v5606 = vsel %vm4622, %v4567, 0.0
      %v5607 = vadd.f32 %v5605, %v5606
      %v5608 = vsel %vm4622, %v4568, 0.0
      %v5609 = vadd.f32 %v5607, %v5608
      %v5610 = vsel %vm4622, %v4569, 0.0
      %v5611 = vadd.f32 %v5609, %v5610
      %v5612 = vsel %vm4622, %v4570, 0.0
      %v5613 = vadd.f32 %v5611, %v5612
      %v5614 = vsel %vm4622, %v4571, 0.0
      %v5615 = vadd.f32 %v5613, %v5614
      %v5616 = vsel %vm4622, %v4572, 0.0
      %v5617 = vadd.f32 %v5615, %v5616
      %v5618 = vsel %vm4622, %v4573, 0.0
      %v5619 = vadd.f32 %v5617, %v5618
      %v5620 = vsel %vm4622, %v4574, 0.0
      %v5621 = vadd.f32 %v5619, %v5620
      %v5622 = vsel %vm4622, %v4575, 0.0
      %v5623 = vadd.f32 %v5621, %v5622
      %v5624 = vsel %vm4622, %v4576, 0.0
      %v5625 = vadd.f32 %v5623, %v5624
      %v5626 = vsel %vm4622, %v4577, 0.0
      %v5627 = vadd.f32 %v5625, %v5626
      %v5628 = vsel %vm4622, %v4578, 0.0
      %v5629 = vadd.f32 %v5627, %v5628
      %v5630 = vsel %vm4622, %v4579, 0.0
      %v5631 = vadd.f32 %v5629, %v5630
      %v5632 = vsel %vm4622, %v4580, 0.0
      %v5633 = vadd.f32 %v5631, %v5632
      %v5634 = vsel %vm4622, %v4581, 0.0
      %v5635 = vadd.f32 %v5633, %v5634
      %v5636 = vsel %vm4622, %v4582, 0.0
      %v5637 = vadd.f32 %v5635, %v5636
      %v5638 = vsel %vm4622, %v4583, 0.0
      %v5639 = vadd.f32 %v5637, %v5638
      %v5640 = vsel %vm4622, %v4584, 0.0
      %v5641 = vadd.f32 %v5639, %v5640
      %v5642 = vsel %vm4622, %v4585, 0.0
      %v5643 = vadd.f32 %v5641, %v5642
      %v5644 = vsel %vm4622, %v4586, 0.0
      %v5645 = vadd.f32 %v5643, %v5644
      %v5646 = vsel %vm4622, %v4587, 0.0
      %v5647 = vadd.f32 %v5645, %v5646
      %v5648 = vsel %vm4622, %v4588, 0.0
      %v5649 = vadd.f32 %v5647, %v5648
      %v5650 = vsel %vm4622, %v4589, 0.0
      %v5651 = vadd.f32 %v5649, %v5650
      %v5652 = vrot.slane %v5651, 4
      %v5653 = vadd.f32 %v5651, %v5652
      %v5654 = vrot.slane %v5653, 2
      %v5655 = vadd.f32 %v5653, %v5654
      %v5656 = vrot.slane %v5655, 1
      %v5657 = vadd.f32 %v5655, %v5656
      %v5658 = vsel %vm4622, %v4590, 0.0
      %v5659 = vsel %vm4622, %v4591, 0.0
      %v5660 = vadd.f32 %v5658, %v5659
      %v5661 = vsel %vm4622, %v4592, 0.0
      %v5662 = vadd.f32 %v5660, %v5661
      %v5663 = vsel %vm4622, %v4593, 0.0
      %v5664 = vadd.f32 %v5662, %v5663
      %v5665 = vsel %vm4622, %v4594, 0.0
      %v5666 = vadd.f32 %v5664, %v5665
      %v5667 = vsel %vm4622, %v4595, 0.0
      %v5668 = vadd.f32 %v5666, %v5667
      %v5669 = vsel %vm4622, %v4596, 0.0
      %v5670 = vadd.f32 %v5668, %v5669
      %v5671 = vsel %vm4622, %v4597, 0.0
      %v5672 = vadd.f32 %v5670, %v5671
      %v5673 = vsel %vm4622, %v4598, 0.0
      %v5674 = vadd.f32 %v5672, %v5673
      %v5675 = vsel %vm4622, %v4599, 0.0
      %v5676 = vadd.f32 %v5674, %v5675
      %v5677 = vsel %vm4622, %v4600, 0.0
      %v5678 = vadd.f32 %v5676, %v5677
      %v5679 = vsel %vm4622, %v4601, 0.0
      %v5680 = vadd.f32 %v5678, %v5679
      %v5681 = vsel %vm4622, %v4602, 0.0
      %v5682 = vadd.f32 %v5680, %v5681
      %v5683 = vsel %vm4622, %v4603, 0.0
      %v5684 = vadd.f32 %v5682, %v5683
      %v5685 = vsel %vm4622, %v4604, 0.0
      %v5686 = vadd.f32 %v5684, %v5685
      %v5687 = vsel %vm4622, %v4605, 0.0
      %v5688 = vadd.f32 %v5686, %v5687
      %v5689 = vsel %vm4622, %v4606, 0.0
      %v5690 = vadd.f32 %v5688, %v5689
      %v5691 = vsel %vm4622, %v4607, 0.0
      %v5692 = vadd.f32 %v5690, %v5691
      %v5693 = vsel %vm4622, %v4608, 0.0
      %v5694 = vadd.f32 %v5692, %v5693
      %v5695 = vsel %vm4622, %v4609, 0.0
      %v5696 = vadd.f32 %v5694, %v5695
      %v5697 = vsel %vm4622, %v4610, 0.0
      %v5698 = vadd.f32 %v5696, %v5697
      %v5699 = vsel %vm4622, %v4611, 0.0
      %v5700 = vadd.f32 %v5698, %v5699
      %v5701 = vsel %vm4622, %v4612, 0.0
      %v5702 = vadd.f32 %v5700, %v5701
      %v5703 = vsel %vm4622, %v4613, 0.0
      %v5704 = vadd.f32 %v5702, %v5703
      %v5705 = vsel %vm4622, %v4614, 0.0
      %v5706 = vadd.f32 %v5704, %v5705
      %v5707 = vsel %vm4622, %v4615, 0.0
      %v5708 = vadd.f32 %v5706, %v5707
      %v5709 = vsel %vm4622, %v4616, 0.0
      %v5710 = vadd.f32 %v5708, %v5709
      %v5711 = vsel %vm4622, %v4617, 0.0
      %v5712 = vadd.f32 %v5710, %v5711
      %v5713 = vsel %vm4622, %v4618, 0.0
      %v5714 = vadd.f32 %v5712, %v5713
      %v5715 = vsel %vm4622, %v4619, 0.0
      %v5716 = vadd.f32 %v5714, %v5715
      %v5717 = vsel %vm4622, %v4620, 0.0
      %v5718 = vadd.f32 %v5716, %v5717
      %v5719 = vsel %vm4622, %v4621, 0.0
      %v5720 = vadd.f32 %v5718, %v5719
      %v5721 = vrot.slane %v5720, 4
      %v5722 = vadd.f32 %v5720, %v5721
      %v5723 = vrot.slane %v5722, 2
      %v5724 = vadd.f32 %v5722, %v5723
      %v5725 = vrot.slane %v5724, 1
      %v5726 = vadd.f32 %v5724, %v5725
      %v5727 = vrcp.pop 256.0
      %v5728 = vmul.f32 256.0, %v5727
      %v5729 = vsub.f32 1.0, %v5728
      %v5730 = vmul.f32 %v5727, %v5729
      %v5731 = vadd.f32 %v5727, %v5730
      %vm5732 = vweird.f32 %v5727
      %v5733 = vsel %vm5732, %v5727, %v5731
      %v5734 = vmul.f32 %v4691, %v5733
      %v5735 = vmul.f32 %v4760, %v5733
      %v5736 = vmul.f32 %v4829, %v5733
      %v5737 = vmul.f32 %v4898, %v5733
      %v5738 = vmul.f32 %v4967, %v5733
      %v5739 = vmul.f32 %v5036, %v5733
      %v5740 = vmul.f32 %v5105, %v5733
      %v5741 = vmul.f32 %v5174, %v5733
      %v5742 = vmul.f32 %v5243, %v5733
      %v5743 = vmul.f32 %v5312, %v5733
      %v5744 = vmul.f32 %v5381, %v5733
      %v5745 = vmul.f32 %v5450, %v5733
      %v5746 = vmul.f32 %v5519, %v5733
      %v5747 = vmul.f32 %v5588, %v5733
      %v5748 = vmul.f32 %v5657, %v5733
      %v5749 = vmul.f32 %v5726, %v5733
      %v5750 = vpack.c.bf16 %v5734, %v5734
      %v5751 = vpack.c.bf16 %v5735, %v5735
      %v5752 = vpack.c.bf16 %v5736, %v5736
      %v5753 = vpack.c.bf16 %v5737, %v5737
      %v5754 = vpack.c.bf16 %v5738, %v5738
      %v5755 = vpack.c.bf16 %v5739, %v5739
      %v5756 = vpack.c.bf16 %v5740, %v5740
      %v5757 = vpack.c.bf16 %v5741, %v5741
      %v5758 = vpack.c.bf16 %v5742, %v5742
      %v5759 = vpack.c.bf16 %v5743, %v5743
      %v5760 = vpack.c.bf16 %v5744, %v5744
      %v5761 = vpack.c.bf16 %v5745, %v5745
      %v5762 = vpack.c.bf16 %v5746, %v5746
      %v5763 = vpack.c.bf16 %v5747, %v5747
      %v5764 = vpack.c.bf16 %v5748, %v5748
      %v5765 = vpack.c.bf16 %v5749, %v5749
      %v5766 = vld [vmem:[%s3] sm:$0xff]
      %v5767 = vld [vmem:[%s3 + $0x8] sm:$0xff]
      %v5768 = vld [vmem:[%s3 + $0x10] sm:$0xff]
      %v5769 = vld [vmem:[%s3 + $0x18] sm:$0xff]
      %v5770 = vld [vmem:[%s3 + $0x20] sm:$0xff]
      %v5771 = vld [vmem:[%s3 + $0x28] sm:$0xff]
      %v5772 = vld [vmem:[%s3 + $0x30] sm:$0xff]
      %v5773 = vld [vmem:[%s3 + $0x38] sm:$0xff]
      %v5774 = vld [vmem:[%s4] sm:$0xf]
      %v5776 = vperm.slane %v5774, 0
      %v5777 = vperm.slane %v5774, 1
      %v5778 = vperm.slane %v5774, 2
      %v5779 = vperm.slane %v5774, 3
      %v5800 = vunpack.c.l.b16 %v5750
      %v5801 = vunpack.c.l.b16 %v5751
      %v5802 = vunpack.c.l.b16 %v5752
      %v5803 = vunpack.c.l.b16 %v5753
      %v5804 = vunpack.c.l.b16 %v5754
      %v5805 = vunpack.c.l.b16 %v5755
      %v5806 = vunpack.c.l.b16 %v5756
      %v5807 = vunpack.c.l.b16 %v5757
      %v5808 = vunpack.c.l.b16 %v5758
      %v5809 = vunpack.c.l.b16 %v5759
      %v5810 = vunpack.c.l.b16 %v5760
      %v5811 = vunpack.c.l.b16 %v5761
      %v5812 = vunpack.c.l.b16 %v5762
      %v5813 = vunpack.c.l.b16 %v5763
      %v5814 = vunpack.c.l.b16 %v5764
      %v5815 = vunpack.c.l.b16 %v5765
      %vm5816 = vcmask 1041409
      %v5817 = vsel %vm5816, %v5801, %v5800
      %vm5818 = vcmask 1042434
      %v5819 = vsel %vm5818, %v5802, %v5817
      %vm5820 = vcmask 1043459
      %v5821 = vsel %vm5820, %v5803, %v5819
      %vm5822 = vcmask 1044484
      %v5823 = vsel %vm5822, %v5804, %v5821
      %vm5824 = vcmask 1045509
      %v5825 = vsel %vm5824, %v5805, %v5823
      %vm5826 = vcmask 1046534
      %v5827 = vsel %vm5826, %v5806, %v5825
      %vm5828 = vcmask 1047559
      %v5829 = vsel %vm5828, %v5807, %v5827
      %v5830 = vsel %vm5816, %v5809, %v5808
      %v5831 = vsel %vm5818, %v5810, %v5830
      %v5832 = vsel %vm5820, %v5811, %v5831
      %v5833 = vsel %vm5822, %v5812, %v5832
      %v5834 = vsel %vm5824, %v5813, %v5833
      %v5835 = vsel %vm5826, %v5814, %v5834
      %v5836 = vsel %vm5828, %v5815, %v5835
      %v5837 = vpack.c.b16 %v5836, %v5829
      %v5846 = vunpack.c.l.b16 %v5766
      %v5847 = vunpack.c.h.b16 %v5766
      %v5848 = vunpack.c.l.b16 %v5767
      %v5849 = vunpack.c.h.b16 %v5767
      %v5850 = vunpack.c.l.b16 %v5768
      %v5851 = vunpack.c.h.b16 %v5768
      %v5852 = vunpack.c.l.b16 %v5769
      %v5853 = vunpack.c.h.b16 %v5769
      %v5854 = vunpack.c.l.b16 %v5770
      %v5855 = vunpack.c.h.b16 %v5770
      %v5856 = vunpack.c.l.b16 %v5771
      %v5857 = vunpack.c.h.b16 %v5771
      %v5858 = vunpack.c.l.b16 %v5772
      %v5859 = vunpack.c.h.b16 %v5772
      %v5860 = vunpack.c.l.b16 %v5773
      %v5861 = vunpack.c.h.b16 %v5773
      %v5862 = vpack.c.b16 %v5850, %v5846
      %v5863 = vpack.c.b16 %v5851, %v5847
      %v5864 = vpack.c.b16 %v5852, %v5848
      %v5865 = vpack.c.b16 %v5853, %v5849
      %v5866 = vpack.c.b16 %v5858, %v5854
      %v5867 = vpack.c.b16 %v5859, %v5855
      %v5868 = vpack.c.b16 %v5860, %v5856
      %v5869 = vpack.c.b16 %v5861, %v5857
      %v5879 = vsel %vm4622, %v5837, 0
      %5881 = vmatpush.bf16.msra.mxu0 0
      %5882 = vmatpush.bf16.msra.mxu0 0
      %5883 = vmatpush.bf16.msra.mxu0 0
      %5884 = vmatpush.bf16.msra.mxu0 0
      %5885 = vmatpush.bf16.msra.mxu0 0
      %5886 = vmatpush.bf16.msra.mxu0 0
      %5887 = vmatpush.bf16.msra.mxu0 %v5866
      %5888 = vmatpush.bf16.msra.mxu0 %v5862
      %5889 = vmatmul.bf16.gmra.mxu0 %v5879
      %v5890 = vpop.f32.mrf.mxu0
      %v5891 = vadd.f32 %v5776, %v5890
      %v5892 = vpop.f32.mrf.mxu0
      %v5893 = vadd.f32 %v5776, %v5892
      %5894 = vdwg.mxu0
      %5895 = vmatpush.bf16.msra.mxu0 0
      %5896 = vmatpush.bf16.msra.mxu0 0
      %5897 = vmatpush.bf16.msra.mxu0 0
      %5898 = vmatpush.bf16.msra.mxu0 0
      %5899 = vmatpush.bf16.msra.mxu0 0
      %5900 = vmatpush.bf16.msra.mxu0 0
      %5901 = vmatpush.bf16.msra.mxu0 %v5867
      %5902 = vmatpush.bf16.msra.mxu0 %v5863
      %5903 = vmatmul.bf16.gmra.mxu0 %v5879
      %v5904 = vpop.f32.mrf.mxu0
      %v5905 = vadd.f32 %v5777, %v5904
      %v5906 = vpop.f32.mrf.mxu0
      %v5907 = vadd.f32 %v5777, %v5906
      %5908 = vdwg.mxu0
      %5909 = vmatpush.bf16.msra.mxu0 0
      %5910 = vmatpush.bf16.msra.mxu0 0
      %5911 = vmatpush.bf16.msra.mxu0 0
      %5912 = vmatpush.bf16.msra.mxu0 0
      %5913 = vmatpush.bf16.msra.mxu0 0
      %5914 = vmatpush.bf16.msra.mxu0 0
      %5915 = vmatpush.bf16.msra.mxu0 %v5868
      %5916 = vmatpush.bf16.msra.mxu0 %v5864
      %5917 = vmatmul.bf16.gmra.mxu0 %v5879
      %v5918 = vpop.f32.mrf.mxu0
      %v5919 = vadd.f32 %v5778, %v5918
      %v5920 = vpop.f32.mrf.mxu0
      %v5921 = vadd.f32 %v5778, %v5920
      %5922 = vdwg.mxu0
      %5923 = vmatpush.bf16.msra.mxu0 0
      %5924 = vmatpush.bf16.msra.mxu0 0
      %5925 = vmatpush.bf16.msra.mxu0 0
      %5926 = vmatpush.bf16.msra.mxu0 0
      %5927 = vmatpush.bf16.msra.mxu0 0
      %5928 = vmatpush.bf16.msra.mxu0 0
      %5929 = vmatpush.bf16.msra.mxu0 %v5869
      %5930 = vmatpush.bf16.msra.mxu0 %v5865
      %5931 = vmatmul.bf16.gmra.mxu0 %v5879
      %v5932 = vpop.f32.mrf.mxu0
      %v5933 = vadd.f32 %v5779, %v5932
      %v5934 = vpop.f32.mrf.mxu0
      %v5935 = vadd.f32 %v5779, %v5934
      %5936 = vdwg.mxu0
      %5937 = vst [vmem:[%s231] sm:$0xff] %v5891
      %5938 = vst [vmem:[%s231 + $0x8] sm:$0xff] %v5905
      %5939 = vst [vmem:[%s231 + $0x10] sm:$0xff] %v5919
      %5940 = vst [vmem:[%s231 + $0x18] sm:$0xff] %v5933
      %5941 = vst [vmem:[%s231 + $0x20] sm:$0xff] %v5893
      %5942 = vst [vmem:[%s231 + $0x28] sm:$0xff] %v5907
      %5943 = vst [vmem:[%s231 + $0x30] sm:$0xff] %v5921
      %5944 = vst [vmem:[%s231 + $0x38] sm:$0xff] %v5935
      %s5945 = smul.u32 2, %s16
      %p5946 = scmp.lt.s32.totalorder %s5945, 7
      %s5947 = scalar_select %p5946, %s5945, 7
      %s5948 = smul.addr %s5947, 4
      %s5949 = smul.addr %s5948, 8
      %s5950 = scalar_lea.vmem %s5, %s5949
      // Predicated region
      $region41: #{sag_forward.2} parent=39 // pred_check
        %p5951 = pneg %p144
      $region42: #{sag_forward.2} parent=39 // pred_check_branch
        %5953 = sbr.rel (%p5951) target = $region44
      $region43: #{sag_forward.2} parent=39 // pred_region
        %s5954 = smul.u32 2, %s16
      $region44: #{sag_forward.2} parent=39 // pred_fallthru
        _
    $region40: #{sag_forward.2} parent=5 // pred_fallthru
      _
    %p5955 = scmp.le.s32.totalorder 2, %s11
    // Predicated region
    $region45: #{sag_forward.2} parent=5 // pred_check
      %p5956 = pneg %p5955
    $region46: #{sag_forward.2} parent=5 // pred_check_branch
      %5958 = sbr.rel (%p5956) target = $region48
    $region47: #{sag_forward.2} parent=5 // pred_region
      %s5959 = ssub.s32 %s11, 2
      // Predicated region
      $region49: #{sag_forward.2} parent=47 // pred_check
        %p5960 = pneg %p150
      $region50: #{sag_forward.2} parent=47 // pred_check_branch
        %5962 = sbr.rel (%p5960) target = $region52
      $region51: #{sag_forward.2} parent=47 // pred_region
        %s5963 = smul.u32 2, %s17
        %p5964 = scmp.lt.s32.totalorder %s5963, 7
        %s5965 = scalar_select %p5964, %s5963, 7
        %s5966 = smul.addr %s5965, 4
        %s5967 = smul.addr %s5966, 8
        %s5968 = scalar_lea.vmem %s5, %s5967
      $region52: #{sag_forward.2} parent=47 // pred_fallthru
        _
    $region48: #{sag_forward.2} parent=5 // pred_fallthru
      _
  $region6: #{sag_forward.2} parent=0 // loop_footer
    %s15 = sadd.s32 1, %s11
  $region7: #{sag_forward.2} parent=0 // loop_footer_branch
    %10 = sbr.rel target = $region3
  $region8: #{sag_forward.2} parent=0 // loop_exit
    _

</llo_original>
